<compile_context>
chip_gen: v7x
topology: tpu7x:2x2x1
jax: 0.10.0
libtpu: 0.0.40
codegen_flags: <defaults>
</compile_context>

<pallas_src>
import functools

import jax
import jax.numpy as jnp
from jax.experimental import pallas as pl
from jax.experimental.pallas import tpu as pltpu


# ----------------------------------------------------------------------------
# Fused kernel: conv1 -> conv2 -> pool -> conv3 -> conv4 -> (pool+flatten+linear)
# ----------------------------------------------------------------------------
def _cnn_fused_kernel(x_ref, w1_ref, b1_ref, w2_ref, b2_ref, w3_ref, b3_ref,
                      w4_ref, b4_ref, wl_ref, bl_ref, s1_ref, m1_ref, m2_ref,
                      o_ref, pad1_ref, pad2_ref, col_ref, feat_ref,
                      *, H, W, Bt):
    H2, W2 = H // 2, W // 2
    HW, HW2 = H * W, H2 * W2
    Cin = x_ref.shape[1]
    Hid = w1_ref.shape[0]

    def set_padded(pad_ref, a, w, write_zeros):
        # pad layout: [ w+1 zeros | activation (row-major flat, len hw) | w+1 zeros ]
        c, hw = a.shape
        if write_zeros:
            z = jnp.zeros((pad_ref.shape[0], w + 1), jnp.float32)
            pad_ref[:, 0:w + 1] = z
            pad_ref[:, w + 1 + hw:w + 1 + hw + w + 1] = z
        pad_ref[0:c, w + 1:w + 1 + hw] = a

    def conv3x3_relu(pad_ref, cin, w_ref, b_ref, m_ref, h, w):
        # im2col: stage the 9 (edge-masked) tap patches into col_ref, then ONE
        # bf16 MXU matmul (Cout, 9*cin) @ (9*cin, h*w), f32 accumulation.
        hw = h * w
        not_left = m_ref[0:1, :]       # 0.0 where x == 0
        not_right = m_ref[1:2, :]      # 0.0 where x == w-1
        for dy in range(3):
            for dx in range(3):
                start = dy * w + dx
                patch = pad_ref[0:cin, start:start + hw]   # (cin, hw)
                if dx == 0:
                    patch = patch * not_left
                elif dx == 2:
                    patch = patch * not_right
                t = 3 * dy + dx
                col_ref[t * cin:(t + 1) * cin, 0:hw] = patch
        col = col_ref[0:9 * cin, 0:hw].astype(jnp.bfloat16)
        acc = jnp.dot(w_ref[...], col, preferred_element_type=jnp.float32)
        return jnp.maximum(acc + b_ref[...], 0.0)

    def maxpool_vals(pad_ref, a, w):
        # Shifted-max through the pad interior (halo zeros stay untouched).
        # Anchor positions (even y, even x) end up holding the 2x2 window max;
        # off-anchor values are junk but are never selected downstream.
        c, hw = a.shape
        base = w + 1
        pad_ref[0:c, base:base + hw] = a
        hmax = jnp.maximum(a, pad_ref[0:c, base + 1:base + 1 + hw])
        pad_ref[0:c, base:base + hw] = hmax
        return jnp.maximum(hmax, pad_ref[0:c, base + w:base + w + hw])

    for b in range(Bt):
        first = (b == 0)

        # --- block 1 (H x W) ---
        set_padded(pad1_ref, x_ref[b], W, first)
        a = conv3x3_relu(pad1_ref, Cin, w1_ref, b1_ref, m1_ref, H, W)
        set_padded(pad1_ref, a, W, False)
        a = conv3x3_relu(pad1_ref, Hid, w2_ref, b2_ref, m1_ref, H, W)
        v = maxpool_vals(pad1_ref, a, W)                      # (Hid, HW)
        # pool-1 compaction: bf16 selection matmul -> (Hid, HW/4)
        p1 = jnp.dot(v.astype(jnp.bfloat16), s1_ref[...],
                     preferred_element_type=jnp.float32)

        # --- block 2 (H/2 x W/2) ---
        set_padded(pad2_ref, p1, W2, first)
        a = conv3x3_relu(pad2_ref, Hid, w3_ref, b3_ref, m2_ref, H2, W2)
        set_padded(pad2_ref, a, W2, False)
        a = conv3x3_relu(pad2_ref, Hid, w4_ref, b4_ref, m2_ref, H2, W2)
        v2 = maxpool_vals(pad2_ref, a, W2)                    # (Hid, HW2)

        # --- stash this image's (uncompacted) feature row; pool-2 compaction
        #     + NCHW flatten are folded into the expanded classifier weight.
        for c in range(Hid):
            feat_ref[b:b + 1, c * HW2:(c + 1) * HW2] = v2[c:c + 1, :]

    # --- classifier: single (Bt, Hid*HW2) @ (Hid*HW2, Out) bf16 matmul ---
    feats = feat_ref[...].astype(jnp.bfloat16)
    logits = jnp.dot(feats, wl_ref[...], preferred_element_type=jnp.float32)
    o_ref[...] = (logits + bl_ref[...]).astype(o_ref.dtype)


# ----------------------------------------------------------------------------
# Host-side helpers (tiny constants, folded at compile time under jit)
# ----------------------------------------------------------------------------
def _pool_select(H, W):
    # S[p, q] = 1 where p is the top-left anchor of pooled output position q.
    Hq, Wq = H // 2, W // 2
    q = jnp.arange(Hq * Wq)
    anchor = (q // Wq) * (2 * W) + (q % Wq) * 2
    p = jnp.arange(H * W)
    return (p[:, None] == anchor[None, :]).astype(jnp.bfloat16)  # (H*W, Hq*Wq)


def _edge_masks(H, W):
    x = jnp.arange(H * W) % W
    not_left = (x != 0).astype(jnp.float32)
    not_right = (x != W - 1).astype(jnp.float32)
    return jnp.stack([not_left, not_right], axis=0)              # (2, H*W)


def _pack_conv(w):
    # (3, 3, Cin, Cout) -> (Cout, 9*Cin) bf16, K ordered as (dy, dx, cin) to
    # match the im2col staging order.
    kh, kw, ci, co = w.shape
    return jnp.transpose(w, (3, 0, 1, 2)).reshape(co, kh * kw * ci).astype(
        jnp.bfloat16)


# ----------------------------------------------------------------------------
# Forward pass
# ----------------------------------------------------------------------------
@jax.jit
def cnn_forward(x_nchw, params):
    B, Cin, H, W = x_nchw.shape
    Hid = params["w1"].shape[3]
    Out = params["wl"].shape[1]
    H2, W2 = H // 2, W // 2
    H4, W4 = H // 4, W // 4
    HW, HW2 = H * W, H2 * W2
    Cmax = max(Cin, Hid)

    # Images per grid step (amortizes per-step overhead & tiny DMAs).
    Bt = next(bt for bt in (8, 4, 2, 1) if B % bt == 0)

    # NCHW -> (B, C, H*W) is a free (contiguous) reshape; spatial in lanes.
    xf = x_nchw.reshape(B, Cin, HW)

    w1, w2 = _pack_conv(params["w1"]), _pack_conv(params["w2"])
    w3, w4 = _pack_conv(params["w3"]), _pack_conv(params["w4"])
    b1 = params["b1"].reshape(Hid, 1)
    b2 = params["b2"].reshape(Hid, 1)
    b3 = params["b3"].reshape(Hid, 1)
    b4 = params["b4"].reshape(Hid, 1)

    # Fold pool-2 compaction + NCHW flatten into the classifier weight:
    # expanded row index is c*HW2 + (2i)*W2 + 2j; non-anchor rows are zero.
    wl4 = params["wl"].reshape(Hid, H4, W4, Out)
    wl_exp = jnp.zeros((Hid, H2, W2, Out), jnp.float32)
    wl_exp = wl_exp.at[:, ::2, ::2, :].set(wl4)
    wl_exp = wl_exp.reshape(Hid * HW2, Out).astype(jnp.bfloat16)
    bl = params["bl"].reshape(1, Out)

    s1 = _pool_select(H, W)                     # (HW, HW2) bf16
    m1, m2 = _edge_masks(H, W), _edge_masks(H2, W2)

    kern = functools.partial(_cnn_fused_kernel, H=H, W=W, Bt=Bt)
    out = pl.pallas_call(
        kern,
        out_shape=jax.ShapeDtypeStruct((B, Out), jnp.float32),
        grid=(B // Bt,),
        in_specs=[
            pl.BlockSpec((Bt, Cin, HW), lambda i: (i, 0, 0)),
            pl.BlockSpec((Hid, 9 * Cin), lambda i: (0, 0)),
            pl.BlockSpec((Hid, 1), lambda i: (0, 0)),
            pl.BlockSpec((Hid, 9 * Hid), lambda i: (0, 0)),
            pl.BlockSpec((Hid, 1), lambda i: (0, 0)),
            pl.BlockSpec((Hid, 9 * Hid), lambda i: (0, 0)),
            pl.BlockSpec((Hid, 1), lambda i: (0, 0)),
            pl.BlockSpec((Hid, 9 * Hid), lambda i: (0, 0)),
            pl.BlockSpec((Hid, 1), lambda i: (0, 0)),
            pl.BlockSpec((Hid * HW2, Out), lambda i: (0, 0)),
            pl.BlockSpec((1, Out), lambda i: (0, 0)),
            pl.BlockSpec((HW, HW2), lambda i: (0, 0)),
            pl.BlockSpec((2, HW), lambda i: (0, 0)),
            pl.BlockSpec((2, HW2), lambda i: (0, 0)),
        ],
        out_specs=pl.BlockSpec((Bt, Out), lambda i: (i, 0)),
        scratch_shapes=[
            pltpu.VMEM((Cmax, HW + 2 * W + 2), jnp.float32),    # block-1 halo buf
            pltpu.VMEM((Hid, HW2 + 2 * W2 + 2), jnp.float32),   # block-2 halo buf
            pltpu.VMEM((9 * Cmax, HW), jnp.float32),            # im2col staging
            pltpu.VMEM((Bt, Hid * HW2), jnp.float32),           # per-step features
        ],
        compiler_params=pltpu.CompilerParams(
            dimension_semantics=("parallel",)),
    )(xf, w1, b1, w2, b2, w3, b3, w4, b4, wl_exp, bl, s1, m1, m2)
    return out


# ----------------------------------------------------------------------------
# Parameters + pure-JAX reference (for the correctness check)
# ----------------------------------------------------------------------------
def init_params(key, input_layer, hidden_layer, output_layer):
    ks = jax.random.split(key, 10)
    s = 0.05
    return {
        # conv weights stored as (kh, kw, Cin, Cout); PyTorch is (Cout, Cin, kh, kw)
        "w1": s * jax.random.normal(ks[0], (3, 3, input_layer, hidden_layer), jnp.float32),
        "b1": s * jax.random.normal(ks[1], (hidden_layer,), jnp.float32),
        "w2": s * jax.random.normal(ks[2], (3, 3, hidden_layer, hidden_layer), jnp.float32),
        "b2": s * jax.random.normal(ks[3], (hidden_layer,), jnp.float32),
        "w3": s * jax.random.normal(ks[4], (3, 3, hidden_layer, hidden_layer), jnp.float32),
        "b3": s * jax.random.normal(ks[5], (hidden_layer,), jnp.float32),
        "w4": s * jax.random.normal(ks[6], (3, 3, hidden_layer, hidden_layer), jnp.float32),
        "b4": s * jax.random.normal(ks[7], (hidden_layer,), jnp.float32),
        # linear stored as (F, O); PyTorch nn.Linear weight is (O, F)
        "wl": s * jax.random.normal(ks[8], (hidden_layer * 7 * 7, output_layer), jnp.float32),
        "bl": s * jax.random.normal(ks[9], (output_layer,), jnp.float32),
    }


def cnn_forward_ref(x_nchw, params):
    def conv(x, w, b):  # w: (kh, kw, Cin, Cout) -> OIHW
        w_oihw = jnp.transpose(w, (3, 2, 0, 1))
        y = jax.lax.conv_general_dilated(
            x, w_oihw, window_strides=(1, 1), padding=((1, 1), (1, 1)),
            dimension_numbers=("NCHW", "OIHW", "NCHW"))
        return jax.nn.relu(y + b[None, :, None, None])

    def pool(x):
        return jax.lax.reduce_window(x, -jnp.inf, jax.lax.max,
                                     (1, 1, 2, 2), (1, 1, 2, 2), "VALID")

    x = conv(x_nchw, params["w1"], params["b1"])
    x = conv(x, params["w2"], params["b2"])
    x = pool(x)
    x = conv(x, params["w3"], params["b3"])
    x = conv(x, params["w4"], params["b4"])
    x = pool(x)
    x = x.reshape(x.shape[0], -1)
    return x @ params["wl"] + params["bl"]


if __name__ == "__main__":
    key = jax.random.PRNGKey(0)
    k_x, k_p = jax.random.split(key)

    # The classifier requires a 7x7 map after two 2x pools -> input spatial 28.
    B, Cin, Hid, Out = 2, 3, 8, 10
    x = jax.random.normal(k_x, (B, Cin, 28, 28), jnp.float32)
    params = init_params(k_p, Cin, Hid, Out)

    out = cnn_forward(x, params)
    out = jax.block_until_ready(out)
    assert out.shape == (B, Out), out.shape

    ref = cnn_forward_ref(x, params)
    assert jnp.allclose(out, ref, rtol=2e-2, atol=2e-2), (
        float(jnp.max(jnp.abs(out - ref))))

    print("KERNEL_OK")
</pallas_src>

<mosaic_0001>
module attributes {stable_mosaic.version = 11 : i64} {
  func.func @_cnn_fused_kernel(%arg0: i32, %arg1: memref<2x3x784xf32, #tpu.memory_space<vmem>>, %arg2: memref<8x27xbf16, #tpu.memory_space<vmem>>, %arg3: memref<8x1xf32, #tpu.memory_space<vmem>>, %arg4: memref<8x72xbf16, #tpu.memory_space<vmem>>, %arg5: memref<8x1xf32, #tpu.memory_space<vmem>>, %arg6: memref<8x72xbf16, #tpu.memory_space<vmem>>, %arg7: memref<8x1xf32, #tpu.memory_space<vmem>>, %arg8: memref<8x72xbf16, #tpu.memory_space<vmem>>, %arg9: memref<8x1xf32, #tpu.memory_space<vmem>>, %arg10: memref<1568x10xbf16, #tpu.memory_space<vmem>>, %arg11: memref<1x10xf32, #tpu.memory_space<vmem>>, %arg12: memref<784x196xbf16, #tpu.memory_space<vmem>>, %arg13: memref<2x784xf32, #tpu.memory_space<vmem>>, %arg14: memref<2x196xf32, #tpu.memory_space<vmem>>, %arg15: memref<2x10xf32, #tpu.memory_space<vmem>>, %arg16: memref<8x842xf32, #tpu.memory_space<vmem>>, %arg17: memref<8x226xf32, #tpu.memory_space<vmem>>, %arg18: memref<72x784xf32, #tpu.memory_space<vmem>>, %arg19: memref<2x1568xf32, #tpu.memory_space<vmem>>) attributes {dimension_semantics = [#tpu.dimension_semantics<parallel>], iteration_bounds = array<i64: 1>, scalar_prefetch = 0 : i64, scratch_operands = 4 : i64, tpu.core_type = #tpu.core_type<tc>, window_params = [{transform_indices = @transform_0, window_bounds = array<i64: 2, 3, 784>}, {pipeline_mode = #tpu.pipeline_mode<synchronous>, transform_indices = @transform_1, window_bounds = array<i64: 8, 27>}, {pipeline_mode = #tpu.pipeline_mode<synchronous>, transform_indices = @transform_2, window_bounds = array<i64: 8, 1>}, {pipeline_mode = #tpu.pipeline_mode<synchronous>, transform_indices = @transform_3, window_bounds = array<i64: 8, 72>}, {pipeline_mode = #tpu.pipeline_mode<synchronous>, transform_indices = @transform_4, window_bounds = array<i64: 8, 1>}, {pipeline_mode = #tpu.pipeline_mode<synchronous>, transform_indices = @transform_5, window_bounds = array<i64: 8, 72>}, {pipeline_mode = #tpu.pipeline_mode<synchronous>, transform_indices = @transform_6, window_bounds = array<i64: 8, 1>}, {pipeline_mode = #tpu.pipeline_mode<synchronous>, transform_indices = @transform_7, window_bounds = array<i64: 8, 72>}, {pipeline_mode = #tpu.pipeline_mode<synchronous>, transform_indices = @transform_8, window_bounds = array<i64: 8, 1>}, {pipeline_mode = #tpu.pipeline_mode<synchronous>, transform_indices = @transform_9, window_bounds = array<i64: 1568, 10>}, {pipeline_mode = #tpu.pipeline_mode<synchronous>, transform_indices = @transform_10, window_bounds = array<i64: 1, 10>}, {pipeline_mode = #tpu.pipeline_mode<synchronous>, transform_indices = @transform_11, window_bounds = array<i64: 784, 196>}, {pipeline_mode = #tpu.pipeline_mode<synchronous>, transform_indices = @transform_12, window_bounds = array<i64: 2, 784>}, {pipeline_mode = #tpu.pipeline_mode<synchronous>, transform_indices = @transform_13, window_bounds = array<i64: 2, 196>}, {transform_indices = @transform_14, window_bounds = array<i64: 2, 10>}]} {
    %c0 = arith.constant 0 : index
    %c0_0 = arith.constant 0 : index
    %c0_1 = arith.constant 0 : index
    %0 = vector.load %arg1[%c0, %c0_0, %c0_1] : memref<2x3x784xf32, #tpu.memory_space<vmem>>, vector<1x3x784xf32>
    %1 = vector.shape_cast %0 : vector<1x3x784xf32> to vector<3x784xf32>
    %cst = arith.constant 0.000000e+00 : f32
    %2 = vector.broadcast %cst : f32 to vector<8x29xf32>
    %c0_2 = arith.constant 0 : index
    %c0_3 = arith.constant 0 : index
    %3 = vector.load %arg16[%c0_2, %c0_3] : memref<8x842xf32, #tpu.memory_space<vmem>>, vector<8x29xf32>
    tpu.vector_store %arg16[%c0_2, %c0_3], %2 {strides = array<i32>} : memref<8x842xf32, #tpu.memory_space<vmem>>, vector<8x29xf32>,
    %c0_4 = arith.constant 0 : index
    %c813 = arith.constant 813 : index
    %4 = vector.load %arg16[%c0_4, %c813] : memref<8x842xf32, #tpu.memory_space<vmem>>, vector<8x29xf32>
    tpu.vector_store %arg16[%c0_4, %c813], %2 {strides = array<i32>} : memref<8x842xf32, #tpu.memory_space<vmem>>, vector<8x29xf32>,
    %c0_5 = arith.constant 0 : index
    %c29 = arith.constant 29 : index
    %5 = vector.load %arg16[%c0_5, %c29] : memref<8x842xf32, #tpu.memory_space<vmem>>, vector<3x784xf32>
    tpu.vector_store %arg16[%c0_5, %c29], %1 {strides = array<i32>} : memref<8x842xf32, #tpu.memory_space<vmem>>, vector<3x784xf32>,
    %c0_6 = arith.constant 0 : index
    %c0_7 = arith.constant 0 : index
    %6 = vector.load %arg13[%c0_6, %c0_7] : memref<2x784xf32, #tpu.memory_space<vmem>>, vector<1x784xf32>
    %c1 = arith.constant 1 : index
    %c0_8 = arith.constant 0 : index
    %7 = vector.load %arg13[%c1, %c0_8] : memref<2x784xf32, #tpu.memory_space<vmem>>, vector<1x784xf32>
    %c0_9 = arith.constant 0 : index
    %c0_10 = arith.constant 0 : index
    %8 = vector.load %arg16[%c0_9, %c0_10] : memref<8x842xf32, #tpu.memory_space<vmem>>, vector<3x784xf32>
    %9 = vector.broadcast %6 : vector<1x784xf32> to vector<3x784xf32>
    %10 = arith.mulf %8, %9 : vector<3x784xf32>
    %c0_11 = arith.constant 0 : index
    %c0_12 = arith.constant 0 : index
    %11 = vector.load %arg18[%c0_11, %c0_12] : memref<72x784xf32, #tpu.memory_space<vmem>>, vector<3x784xf32>
    tpu.vector_store %arg18[%c0_11, %c0_12], %10 {strides = array<i32>} : memref<72x784xf32, #tpu.memory_space<vmem>>, vector<3x784xf32>,
    %c0_13 = arith.constant 0 : index
    %c1_14 = arith.constant 1 : index
    %12 = vector.load %arg16[%c0_13, %c1_14] : memref<8x842xf32, #tpu.memory_space<vmem>>, vector<3x784xf32>
    %c3 = arith.constant 3 : index
    %c0_15 = arith.constant 0 : index
    %13 = vector.load %arg18[%c3, %c0_15] : memref<72x784xf32, #tpu.memory_space<vmem>>, vector<3x784xf32>
    tpu.vector_store %arg18[%c3, %c0_15], %12 {strides = array<i32>} : memref<72x784xf32, #tpu.memory_space<vmem>>, vector<3x784xf32>,
    %c0_16 = arith.constant 0 : index
    %c2 = arith.constant 2 : index
    %14 = vector.load %arg16[%c0_16, %c2] : memref<8x842xf32, #tpu.memory_space<vmem>>, vector<3x784xf32>
    %15 = vector.broadcast %7 : vector<1x784xf32> to vector<3x784xf32>
    %16 = arith.mulf %14, %15 : vector<3x784xf32>
    %c6 = arith.constant 6 : index
    %c0_17 = arith.constant 0 : index
    %17 = vector.load %arg18[%c6, %c0_17] : memref<72x784xf32, #tpu.memory_space<vmem>>, vector<3x784xf32>
    tpu.vector_store %arg18[%c6, %c0_17], %16 {strides = array<i32>} : memref<72x784xf32, #tpu.memory_space<vmem>>, vector<3x784xf32>,
    %c0_18 = arith.constant 0 : index
    %c28 = arith.constant 28 : index
    %18 = vector.load %arg16[%c0_18, %c28] : memref<8x842xf32, #tpu.memory_space<vmem>>, vector<3x784xf32>
    %19 = vector.broadcast %6 : vector<1x784xf32> to vector<3x784xf32>
    %20 = arith.mulf %18, %19 : vector<3x784xf32>
    %c9 = arith.constant 9 : index
    %c0_19 = arith.constant 0 : index
    %21 = vector.load %arg18[%c9, %c0_19] : memref<72x784xf32, #tpu.memory_space<vmem>>, vector<3x784xf32>
    tpu.vector_store %arg18[%c9, %c0_19], %20 {strides = array<i32>} : memref<72x784xf32, #tpu.memory_space<vmem>>, vector<3x784xf32>,
    %c0_20 = arith.constant 0 : index
    %c29_21 = arith.constant 29 : index
    %22 = vector.load %arg16[%c0_20, %c29_21] : memref<8x842xf32, #tpu.memory_space<vmem>>, vector<3x784xf32>
    %c12 = arith.constant 12 : index
    %c0_22 = arith.constant 0 : index
    %23 = vector.load %arg18[%c12, %c0_22] : memref<72x784xf32, #tpu.memory_space<vmem>>, vector<3x784xf32>
    tpu.vector_store %arg18[%c12, %c0_22], %22 {strides = array<i32>} : memref<72x784xf32, #tpu.memory_space<vmem>>, vector<3x784xf32>,
    %c0_23 = arith.constant 0 : index
    %c30 = arith.constant 30 : index
    %24 = vector.load %arg16[%c0_23, %c30] : memref<8x842xf32, #tpu.memory_space<vmem>>, vector<3x784xf32>
    %25 = vector.broadcast %7 : vector<1x784xf32> to vector<3x784xf32>
    %26 = arith.mulf %24, %25 : vector<3x784xf32>
    %c15 = arith.constant 15 : index
    %c0_24 = arith.constant 0 : index
    %27 = vector.load %arg18[%c15, %c0_24] : memref<72x784xf32, #tpu.memory_space<vmem>>, vector<3x784xf32>
    tpu.vector_store %arg18[%c15, %c0_24], %26 {strides = array<i32>} : memref<72x784xf32, #tpu.memory_space<vmem>>, vector<3x784xf32>,
    %c0_25 = arith.constant 0 : index
    %c56 = arith.constant 56 : index
    %28 = vector.load %arg16[%c0_25, %c56] : memref<8x842xf32, #tpu.memory_space<vmem>>, vector<3x784xf32>
    %29 = vector.broadcast %6 : vector<1x784xf32> to vector<3x784xf32>
    %30 = arith.mulf %28, %29 : vector<3x784xf32>
    %c18 = arith.constant 18 : index
    %c0_26 = arith.constant 0 : index
    %31 = vector.load %arg18[%c18, %c0_26] : memref<72x784xf32, #tpu.memory_space<vmem>>, vector<3x784xf32>
    tpu.vector_store %arg18[%c18, %c0_26], %30 {strides = array<i32>} : memref<72x784xf32, #tpu.memory_space<vmem>>, vector<3x784xf32>,
    %c0_27 = arith.constant 0 : index
    %c57 = arith.constant 57 : index
    %32 = vector.load %arg16[%c0_27, %c57] : memref<8x842xf32, #tpu.memory_space<vmem>>, vector<3x784xf32>
    %c21 = arith.constant 21 : index
    %c0_28 = arith.constant 0 : index
    %33 = vector.load %arg18[%c21, %c0_28] : memref<72x784xf32, #tpu.memory_space<vmem>>, vector<3x784xf32>
    tpu.vector_store %arg18[%c21, %c0_28], %32 {strides = array<i32>} : memref<72x784xf32, #tpu.memory_space<vmem>>, vector<3x784xf32>,
    %c0_29 = arith.constant 0 : index
    %c58 = arith.constant 58 : index
    %34 = vector.load %arg16[%c0_29, %c58] : memref<8x842xf32, #tpu.memory_space<vmem>>, vector<3x784xf32>
    %35 = vector.broadcast %7 : vector<1x784xf32> to vector<3x784xf32>
    %36 = arith.mulf %34, %35 : vector<3x784xf32>
    %c24 = arith.constant 24 : index
    %c0_30 = arith.constant 0 : index
    %37 = vector.load %arg18[%c24, %c0_30] : memref<72x784xf32, #tpu.memory_space<vmem>>, vector<3x784xf32>
    tpu.vector_store %arg18[%c24, %c0_30], %36 {strides = array<i32>} : memref<72x784xf32, #tpu.memory_space<vmem>>, vector<3x784xf32>,
    %c0_31 = arith.constant 0 : index
    %c0_32 = arith.constant 0 : index
    %38 = vector.load %arg18[%c0_31, %c0_32] : memref<72x784xf32, #tpu.memory_space<vmem>>, vector<27x784xf32>
    %39 = arith.truncf %38 : vector<27x784xf32> to vector<27x784xbf16>
    %c0_33 = arith.constant 0 : index
    %c0_34 = arith.constant 0 : index
    %40 = vector.load %arg2[%c0_33, %c0_34] : memref<8x27xbf16, #tpu.memory_space<vmem>>, vector<8x27xbf16>
    %cst_35 = arith.constant dense<0.000000e+00> : vector<8x784xf32>
    %41 = tpu.matmul %40, %39, %cst_35 {dimension_numbers = #tpu.dot_dimension_numbers<[1], [0], [0], [1], [0, 0, 1, 1], [], []>} : vector<8x27xbf16>, vector<27x784xbf16>, vector<8x784xf32> -> vector<8x784xf32>
    %c0_36 = arith.constant 0 : index
    %c0_37 = arith.constant 0 : index
    %42 = vector.load %arg3[%c0_36, %c0_37] : memref<8x1xf32, #tpu.memory_space<vmem>>, vector<8x1xf32>
    %43 = vector.broadcast %42 : vector<8x1xf32> to vector<8x784xf32>
    %44 = arith.addf %41, %43 : vector<8x784xf32>
    %cst_38 = arith.constant 0.000000e+00 : f32
    %45 = vector.broadcast %cst_38 : f32 to vector<8x784xf32>
    %46 = arith.maximumf %44, %45 : vector<8x784xf32>
    %c0_39 = arith.constant 0 : index
    %c29_40 = arith.constant 29 : index
    %47 = vector.load %arg16[%c0_39, %c29_40] : memref<8x842xf32, #tpu.memory_space<vmem>>, vector<8x784xf32>
    tpu.vector_store %arg16[%c0_39, %c29_40], %46 {strides = array<i32>} : memref<8x842xf32, #tpu.memory_space<vmem>>, vector<8x784xf32>,
    %c0_41 = arith.constant 0 : index
    %c0_42 = arith.constant 0 : index
    %48 = vector.load %arg13[%c0_41, %c0_42] : memref<2x784xf32, #tpu.memory_space<vmem>>, vector<1x784xf32>
    %c1_43 = arith.constant 1 : index
    %c0_44 = arith.constant 0 : index
    %49 = vector.load %arg13[%c1_43, %c0_44] : memref<2x784xf32, #tpu.memory_space<vmem>>, vector<1x784xf32>
    %c0_45 = arith.constant 0 : index
    %c0_46 = arith.constant 0 : index
    %50 = vector.load %arg16[%c0_45, %c0_46] : memref<8x842xf32, #tpu.memory_space<vmem>>, vector<8x784xf32>
    %51 = vector.broadcast %48 : vector<1x784xf32> to vector<8x784xf32>
    %52 = arith.mulf %50, %51 : vector<8x784xf32>
    %c0_47 = arith.constant 0 : index
    %c0_48 = arith.constant 0 : index
    %53 = vector.load %arg18[%c0_47, %c0_48] : memref<72x784xf32, #tpu.memory_space<vmem>>, vector<8x784xf32>
    tpu.vector_store %arg18[%c0_47, %c0_48], %52 {strides = array<i32>} : memref<72x784xf32, #tpu.memory_space<vmem>>, vector<8x784xf32>,
    %c0_49 = arith.constant 0 : index
    %c1_50 = arith.constant 1 : index
    %54 = vector.load %arg16[%c0_49, %c1_50] : memref<8x842xf32, #tpu.memory_space<vmem>>, vector<8x784xf32>
    %c8 = arith.constant 8 : index
    %c0_51 = arith.constant 0 : index
    %55 = vector.load %arg18[%c8, %c0_51] : memref<72x784xf32, #tpu.memory_space<vmem>>, vector<8x784xf32>
    tpu.vector_store %arg18[%c8, %c0_51], %54 {strides = array<i32>} : memref<72x784xf32, #tpu.memory_space<vmem>>, vector<8x784xf32>,
    %c0_52 = arith.constant 0 : index
    %c2_53 = arith.constant 2 : index
    %56 = vector.load %arg16[%c0_52, %c2_53] : memref<8x842xf32, #tpu.memory_space<vmem>>, vector<8x784xf32>
    %57 = vector.broadcast %49 : vector<1x784xf32> to vector<8x784xf32>
    %58 = arith.mulf %56, %57 : vector<8x784xf32>
    %c16 = arith.constant 16 : index
    %c0_54 = arith.constant 0 : index
    %59 = vector.load %arg18[%c16, %c0_54] : memref<72x784xf32, #tpu.memory_space<vmem>>, vector<8x784xf32>
    tpu.vector_store %arg18[%c16, %c0_54], %58 {strides = array<i32>} : memref<72x784xf32, #tpu.memory_space<vmem>>, vector<8x784xf32>,
    %c0_55 = arith.constant 0 : index
    %c28_56 = arith.constant 28 : index
    %60 = vector.load %arg16[%c0_55, %c28_56] : memref<8x842xf32, #tpu.memory_space<vmem>>, vector<8x784xf32>
    %61 = vector.broadcast %48 : vector<1x784xf32> to vector<8x784xf32>
    %62 = arith.mulf %60, %61 : vector<8x784xf32>
    %c24_57 = arith.constant 24 : index
    %c0_58 = arith.constant 0 : index
    %63 = vector.load %arg18[%c24_57, %c0_58] : memref<72x784xf32, #tpu.memory_space<vmem>>, vector<8x784xf32>
    tpu.vector_store %arg18[%c24_57, %c0_58], %62 {strides = array<i32>} : memref<72x784xf32, #tpu.memory_space<vmem>>, vector<8x784xf32>,
    %c0_59 = arith.constant 0 : index
    %c29_60 = arith.constant 29 : index
    %64 = vector.load %arg16[%c0_59, %c29_60] : memref<8x842xf32, #tpu.memory_space<vmem>>, vector<8x784xf32>
    %c32 = arith.constant 32 : index
    %c0_61 = arith.constant 0 : index
    %65 = vector.load %arg18[%c32, %c0_61] : memref<72x784xf32, #tpu.memory_space<vmem>>, vector<8x784xf32>
    tpu.vector_store %arg18[%c32, %c0_61], %64 {strides = array<i32>} : memref<72x784xf32, #tpu.memory_space<vmem>>, vector<8x784xf32>,
    %c0_62 = arith.constant 0 : index
    %c30_63 = arith.constant 30 : index
    %66 = vector.load %arg16[%c0_62, %c30_63] : memref<8x842xf32, #tpu.memory_space<vmem>>, vector<8x784xf32>
    %67 = vector.broadcast %49 : vector<1x784xf32> to vector<8x784xf32>
    %68 = arith.mulf %66, %67 : vector<8x784xf32>
    %c40 = arith.constant 40 : index
    %c0_64 = arith.constant 0 : index
    %69 = vector.load %arg18[%c40, %c0_64] : memref<72x784xf32, #tpu.memory_space<vmem>>, vector<8x784xf32>
    tpu.vector_store %arg18[%c40, %c0_64], %68 {strides = array<i32>} : memref<72x784xf32, #tpu.memory_space<vmem>>, vector<8x784xf32>,
    %c0_65 = arith.constant 0 : index
    %c56_66 = arith.constant 56 : index
    %70 = vector.load %arg16[%c0_65, %c56_66] : memref<8x842xf32, #tpu.memory_space<vmem>>, vector<8x784xf32>
    %71 = vector.broadcast %48 : vector<1x784xf32> to vector<8x784xf32>
    %72 = arith.mulf %70, %71 : vector<8x784xf32>
    %c48 = arith.constant 48 : index
    %c0_67 = arith.constant 0 : index
    %73 = vector.load %arg18[%c48, %c0_67] : memref<72x784xf32, #tpu.memory_space<vmem>>, vector<8x784xf32>
    tpu.vector_store %arg18[%c48, %c0_67], %72 {strides = array<i32>} : memref<72x784xf32, #tpu.memory_space<vmem>>, vector<8x784xf32>,
    %c0_68 = arith.constant 0 : index
    %c57_69 = arith.constant 57 : index
    %74 = vector.load %arg16[%c0_68, %c57_69] : memref<8x842xf32, #tpu.memory_space<vmem>>, vector<8x784xf32>
    %c56_70 = arith.constant 56 : index
    %c0_71 = arith.constant 0 : index
    %75 = vector.load %arg18[%c56_70, %c0_71] : memref<72x784xf32, #tpu.memory_space<vmem>>, vector<8x784xf32>
    tpu.vector_store %arg18[%c56_70, %c0_71], %74 {strides = array<i32>} : memref<72x784xf32, #tpu.memory_space<vmem>>, vector<8x784xf32>,
    %c0_72 = arith.constant 0 : index
    %c58_73 = arith.constant 58 : index
    %76 = vector.load %arg16[%c0_72, %c58_73] : memref<8x842xf32, #tpu.memory_space<vmem>>, vector<8x784xf32>
    %77 = vector.broadcast %49 : vector<1x784xf32> to vector<8x784xf32>
    %78 = arith.mulf %76, %77 : vector<8x784xf32>
    %c64 = arith.constant 64 : index
    %c0_74 = arith.constant 0 : index
    %79 = vector.load %arg18[%c64, %c0_74] : memref<72x784xf32, #tpu.memory_space<vmem>>, vector<8x784xf32>
    tpu.vector_store %arg18[%c64, %c0_74], %78 {strides = array<i32>} : memref<72x784xf32, #tpu.memory_space<vmem>>, vector<8x784xf32>,
    %c0_75 = arith.constant 0 : index
    %c0_76 = arith.constant 0 : index
    %80 = vector.load %arg18[%c0_75, %c0_76] : memref<72x784xf32, #tpu.memory_space<vmem>>, vector<72x784xf32>
    %81 = arith.truncf %80 : vector<72x784xf32> to vector<72x784xbf16>
    %c0_77 = arith.constant 0 : index
    %c0_78 = arith.constant 0 : index
    %82 = vector.load %arg4[%c0_77, %c0_78] : memref<8x72xbf16, #tpu.memory_space<vmem>>, vector<8x72xbf16>
    %cst_79 = arith.constant dense<0.000000e+00> : vector<8x784xf32>
    %83 = tpu.matmul %82, %81, %cst_79 {dimension_numbers = #tpu.dot_dimension_numbers<[1], [0], [0], [1], [0, 0, 1, 1], [], []>} : vector<8x72xbf16>, vector<72x784xbf16>, vector<8x784xf32> -> vector<8x784xf32>
    %c0_80 = arith.constant 0 : index
    %c0_81 = arith.constant 0 : index
    %84 = vector.load %arg5[%c0_80, %c0_81] : memref<8x1xf32, #tpu.memory_space<vmem>>, vector<8x1xf32>
    %85 = vector.broadcast %84 : vector<8x1xf32> to vector<8x784xf32>
    %86 = arith.addf %83, %85 : vector<8x784xf32>
    %cst_82 = arith.constant 0.000000e+00 : f32
    %87 = vector.broadcast %cst_82 : f32 to vector<8x784xf32>
    %88 = arith.maximumf %86, %87 : vector<8x784xf32>
    %c0_83 = arith.constant 0 : index
    %c29_84 = arith.constant 29 : index
    %89 = vector.load %arg16[%c0_83, %c29_84] : memref<8x842xf32, #tpu.memory_space<vmem>>, vector<8x784xf32>
    tpu.vector_store %arg16[%c0_83, %c29_84], %88 {strides = array<i32>} : memref<8x842xf32, #tpu.memory_space<vmem>>, vector<8x784xf32>,
    %c0_85 = arith.constant 0 : index
    %c30_86 = arith.constant 30 : index
    %90 = vector.load %arg16[%c0_85, %c30_86] : memref<8x842xf32, #tpu.memory_space<vmem>>, vector<8x784xf32>
    %91 = arith.maximumf %88, %90 : vector<8x784xf32>
    %c0_87 = arith.constant 0 : index
    %c29_88 = arith.constant 29 : index
    %92 = vector.load %arg16[%c0_87, %c29_88] : memref<8x842xf32, #tpu.memory_space<vmem>>, vector<8x784xf32>
    tpu.vector_store %arg16[%c0_87, %c29_88], %91 {strides = array<i32>} : memref<8x842xf32, #tpu.memory_space<vmem>>, vector<8x784xf32>,
    %c0_89 = arith.constant 0 : index
    %c57_90 = arith.constant 57 : index
    %93 = vector.load %arg16[%c0_89, %c57_90] : memref<8x842xf32, #tpu.memory_space<vmem>>, vector<8x784xf32>
    %94 = arith.maximumf %91, %93 : vector<8x784xf32>
    %95 = arith.truncf %94 : vector<8x784xf32> to vector<8x784xbf16>
    %c0_91 = arith.constant 0 : index
    %c0_92 = arith.constant 0 : index
    %96 = vector.load %arg12[%c0_91, %c0_92] : memref<784x196xbf16, #tpu.memory_space<vmem>>, vector<784x196xbf16>
    %cst_93 = arith.constant dense<0.000000e+00> : vector<8x196xf32>
    %97 = tpu.matmul %95, %96, %cst_93 {dimension_numbers = #tpu.dot_dimension_numbers<[1], [0], [0], [1], [0, 0, 1, 1], [], []>} : vector<8x784xbf16>, vector<784x196xbf16>, vector<8x196xf32> -> vector<8x196xf32>
    %cst_94 = arith.constant 0.000000e+00 : f32
    %98 = vector.broadcast %cst_94 : f32 to vector<8x15xf32>
    %c0_95 = arith.constant 0 : index
    %c0_96 = arith.constant 0 : index
    %99 = vector.load %arg17[%c0_95, %c0_96] : memref<8x226xf32, #tpu.memory_space<vmem>>, vector<8x15xf32>
    tpu.vector_store %arg17[%c0_95, %c0_96], %98 {strides = array<i32>} : memref<8x226xf32, #tpu.memory_space<vmem>>, vector<8x15xf32>,
    %c0_97 = arith.constant 0 : index
    %c211 = arith.constant 211 : index
    %100 = vector.load %arg17[%c0_97, %c211] : memref<8x226xf32, #tpu.memory_space<vmem>>, vector<8x15xf32>
    tpu.vector_store %arg17[%c0_97, %c211], %98 {strides = array<i32>} : memref<8x226xf32, #tpu.memory_space<vmem>>, vector<8x15xf32>,
    %c0_98 = arith.constant 0 : index
    %c15_99 = arith.constant 15 : index
    %101 = vector.load %arg17[%c0_98, %c15_99] : memref<8x226xf32, #tpu.memory_space<vmem>>, vector<8x196xf32>
    tpu.vector_store %arg17[%c0_98, %c15_99], %97 {strides = array<i32>} : memref<8x226xf32, #tpu.memory_space<vmem>>, vector<8x196xf32>,
    %c0_100 = arith.constant 0 : index
    %c0_101 = arith.constant 0 : index
    %102 = vector.load %arg14[%c0_100, %c0_101] : memref<2x196xf32, #tpu.memory_space<vmem>>, vector<1x196xf32>
    %c1_102 = arith.constant 1 : index
    %c0_103 = arith.constant 0 : index
    %103 = vector.load %arg14[%c1_102, %c0_103] : memref<2x196xf32, #tpu.memory_space<vmem>>, vector<1x196xf32>
    %c0_104 = arith.constant 0 : index
    %c0_105 = arith.constant 0 : index
    %104 = vector.load %arg17[%c0_104, %c0_105] : memref<8x226xf32, #tpu.memory_space<vmem>>, vector<8x196xf32>
    %105 = vector.broadcast %102 : vector<1x196xf32> to vector<8x196xf32>
    %106 = arith.mulf %104, %105 : vector<8x196xf32>
    %c0_106 = arith.constant 0 : index
    %c0_107 = arith.constant 0 : index
    %107 = vector.load %arg18[%c0_106, %c0_107] : memref<72x784xf32, #tpu.memory_space<vmem>>, vector<8x196xf32>
    tpu.vector_store %arg18[%c0_106, %c0_107], %106 {strides = array<i32>} : memref<72x784xf32, #tpu.memory_space<vmem>>, vector<8x196xf32>,
    %c0_108 = arith.constant 0 : index
    %c1_109 = arith.constant 1 : index
    %108 = vector.load %arg17[%c0_108, %c1_109] : memref<8x226xf32, #tpu.memory_space<vmem>>, vector<8x196xf32>
    %c8_110 = arith.constant 8 : index
    %c0_111 = arith.constant 0 : index
    %109 = vector.load %arg18[%c8_110, %c0_111] : memref<72x784xf32, #tpu.memory_space<vmem>>, vector<8x196xf32>
    tpu.vector_store %arg18[%c8_110, %c0_111], %108 {strides = array<i32>} : memref<72x784xf32, #tpu.memory_space<vmem>>, vector<8x196xf32>,
    %c0_112 = arith.constant 0 : index
    %c2_113 = arith.constant 2 : index
    %110 = vector.load %arg17[%c0_112, %c2_113] : memref<8x226xf32, #tpu.memory_space<vmem>>, vector<8x196xf32>
    %111 = vector.broadcast %103 : vector<1x196xf32> to vector<8x196xf32>
    %112 = arith.mulf %110, %111 : vector<8x196xf32>
    %c16_114 = arith.constant 16 : index
    %c0_115 = arith.constant 0 : index
    %113 = vector.load %arg18[%c16_114, %c0_115] : memref<72x784xf32, #tpu.memory_space<vmem>>, vector<8x196xf32>
    tpu.vector_store %arg18[%c16_114, %c0_115], %112 {strides = array<i32>} : memref<72x784xf32, #tpu.memory_space<vmem>>, vector<8x196xf32>,
    %c0_116 = arith.constant 0 : index
    %c14 = arith.constant 14 : index
    %114 = vector.load %arg17[%c0_116, %c14] : memref<8x226xf32, #tpu.memory_space<vmem>>, vector<8x196xf32>
    %115 = vector.broadcast %102 : vector<1x196xf32> to vector<8x196xf32>
    %116 = arith.mulf %114, %115 : vector<8x196xf32>
    %c24_117 = arith.constant 24 : index
    %c0_118 = arith.constant 0 : index
    %117 = vector.load %arg18[%c24_117, %c0_118] : memref<72x784xf32, #tpu.memory_space<vmem>>, vector<8x196xf32>
    tpu.vector_store %arg18[%c24_117, %c0_118], %116 {strides = array<i32>} : memref<72x784xf32, #tpu.memory_space<vmem>>, vector<8x196xf32>,
    %c0_119 = arith.constant 0 : index
    %c15_120 = arith.constant 15 : index
    %118 = vector.load %arg17[%c0_119, %c15_120] : memref<8x226xf32, #tpu.memory_space<vmem>>, vector<8x196xf32>
    %c32_121 = arith.constant 32 : index
    %c0_122 = arith.constant 0 : index
    %119 = vector.load %arg18[%c32_121, %c0_122] : memref<72x784xf32, #tpu.memory_space<vmem>>, vector<8x196xf32>
    tpu.vector_store %arg18[%c32_121, %c0_122], %118 {strides = array<i32>} : memref<72x784xf32, #tpu.memory_space<vmem>>, vector<8x196xf32>,
    %c0_123 = arith.constant 0 : index
    %c16_124 = arith.constant 16 : index
    %120 = vector.load %arg17[%c0_123, %c16_124] : memref<8x226xf32, #tpu.memory_space<vmem>>, vector<8x196xf32>
    %121 = vector.broadcast %103 : vector<1x196xf32> to vector<8x196xf32>
    %122 = arith.mulf %120, %121 : vector<8x196xf32>
    %c40_125 = arith.constant 40 : index
    %c0_126 = arith.constant 0 : index
    %123 = vector.load %arg18[%c40_125, %c0_126] : memref<72x784xf32, #tpu.memory_space<vmem>>, vector<8x196xf32>
    tpu.vector_store %arg18[%c40_125, %c0_126], %122 {strides = array<i32>} : memref<72x784xf32, #tpu.memory_space<vmem>>, vector<8x196xf32>,
    %c0_127 = arith.constant 0 : index
    %c28_128 = arith.constant 28 : index
    %124 = vector.load %arg17[%c0_127, %c28_128] : memref<8x226xf32, #tpu.memory_space<vmem>>, vector<8x196xf32>
    %125 = vector.broadcast %102 : vector<1x196xf32> to vector<8x196xf32>
    %126 = arith.mulf %124, %125 : vector<8x196xf32>
    %c48_129 = arith.constant 48 : index
    %c0_130 = arith.constant 0 : index
    %127 = vector.load %arg18[%c48_129, %c0_130] : memref<72x784xf32, #tpu.memory_space<vmem>>, vector<8x196xf32>
    tpu.vector_store %arg18[%c48_129, %c0_130], %126 {strides = array<i32>} : memref<72x784xf32, #tpu.memory_space<vmem>>, vector<8x196xf32>,
    %c0_131 = arith.constant 0 : index
    %c29_132 = arith.constant 29 : index
    %128 = vector.load %arg17[%c0_131, %c29_132] : memref<8x226xf32, #tpu.memory_space<vmem>>, vector<8x196xf32>
    %c56_133 = arith.constant 56 : index
    %c0_134 = arith.constant 0 : index
    %129 = vector.load %arg18[%c56_133, %c0_134] : memref<72x784xf32, #tpu.memory_space<vmem>>, vector<8x196xf32>
    tpu.vector_store %arg18[%c56_133, %c0_134], %128 {strides = array<i32>} : memref<72x784xf32, #tpu.memory_space<vmem>>, vector<8x196xf32>,
    %c0_135 = arith.constant 0 : index
    %c30_136 = arith.constant 30 : index
    %130 = vector.load %arg17[%c0_135, %c30_136] : memref<8x226xf32, #tpu.memory_space<vmem>>, vector<8x196xf32>
    %131 = vector.broadcast %103 : vector<1x196xf32> to vector<8x196xf32>
    %132 = arith.mulf %130, %131 : vector<8x196xf32>
    %c64_137 = arith.constant 64 : index
    %c0_138 = arith.constant 0 : index
    %133 = vector.load %arg18[%c64_137, %c0_138] : memref<72x784xf32, #tpu.memory_space<vmem>>, vector<8x196xf32>
    tpu.vector_store %arg18[%c64_137, %c0_138], %132 {strides = array<i32>} : memref<72x784xf32, #tpu.memory_space<vmem>>, vector<8x196xf32>,
    %c0_139 = arith.constant 0 : index
    %c0_140 = arith.constant 0 : index
    %134 = vector.load %arg18[%c0_139, %c0_140] : memref<72x784xf32, #tpu.memory_space<vmem>>, vector<72x196xf32>
    %135 = arith.truncf %134 : vector<72x196xf32> to vector<72x196xbf16>
    %c0_141 = arith.constant 0 : index
    %c0_142 = arith.constant 0 : index
    %136 = vector.load %arg6[%c0_141, %c0_142] : memref<8x72xbf16, #tpu.memory_space<vmem>>, vector<8x72xbf16>
    %cst_143 = arith.constant dense<0.000000e+00> : vector<8x196xf32>
    %137 = tpu.matmul %136, %135, %cst_143 {dimension_numbers = #tpu.dot_dimension_numbers<[1], [0], [0], [1], [0, 0, 1, 1], [], []>} : vector<8x72xbf16>, vector<72x196xbf16>, vector<8x196xf32> -> vector<8x196xf32>
    %c0_144 = arith.constant 0 : index
    %c0_145 = arith.constant 0 : index
    %138 = vector.load %arg7[%c0_144, %c0_145] : memref<8x1xf32, #tpu.memory_space<vmem>>, vector<8x1xf32>
    %139 = vector.broadcast %138 : vector<8x1xf32> to vector<8x196xf32>
    %140 = arith.addf %137, %139 : vector<8x196xf32>
    %cst_146 = arith.constant 0.000000e+00 : f32
    %141 = vector.broadcast %cst_146 : f32 to vector<8x196xf32>
    %142 = arith.maximumf %140, %141 : vector<8x196xf32>
    %c0_147 = arith.constant 0 : index
    %c15_148 = arith.constant 15 : index
    %143 = vector.load %arg17[%c0_147, %c15_148] : memref<8x226xf32, #tpu.memory_space<vmem>>, vector<8x196xf32>
    tpu.vector_store %arg17[%c0_147, %c15_148], %142 {strides = array<i32>} : memref<8x226xf32, #tpu.memory_space<vmem>>, vector<8x196xf32>,
    %c0_149 = arith.constant 0 : index
    %c0_150 = arith.constant 0 : index
    %144 = vector.load %arg14[%c0_149, %c0_150] : memref<2x196xf32, #tpu.memory_space<vmem>>, vector<1x196xf32>
    %c1_151 = arith.constant 1 : index
    %c0_152 = arith.constant 0 : index
    %145 = vector.load %arg14[%c1_151, %c0_152] : memref<2x196xf32, #tpu.memory_space<vmem>>, vector<1x196xf32>
    %c0_153 = arith.constant 0 : index
    %c0_154 = arith.constant 0 : index
    %146 = vector.load %arg17[%c0_153, %c0_154] : memref<8x226xf32, #tpu.memory_space<vmem>>, vector<8x196xf32>
    %147 = vector.broadcast %144 : vector<1x196xf32> to vector<8x196xf32>
    %148 = arith.mulf %146, %147 : vector<8x196xf32>
    %c0_155 = arith.constant 0 : index
    %c0_156 = arith.constant 0 : index
    %149 = vector.load %arg18[%c0_155, %c0_156] : memref<72x784xf32, #tpu.memory_space<vmem>>, vector<8x196xf32>
    tpu.vector_store %arg18[%c0_155, %c0_156], %148 {strides = array<i32>} : memref<72x784xf32, #tpu.memory_space<vmem>>, vector<8x196xf32>,
    %c0_157 = arith.constant 0 : index
    %c1_158 = arith.constant 1 : index
    %150 = vector.load %arg17[%c0_157, %c1_158] : memref<8x226xf32, #tpu.memory_space<vmem>>, vector<8x196xf32>
    %c8_159 = arith.constant 8 : index
    %c0_160 = arith.constant 0 : index
    %151 = vector.load %arg18[%c8_159, %c0_160] : memref<72x784xf32, #tpu.memory_space<vmem>>, vector<8x196xf32>
    tpu.vector_store %arg18[%c8_159, %c0_160], %150 {strides = array<i32>} : memref<72x784xf32, #tpu.memory_space<vmem>>, vector<8x196xf32>,
    %c0_161 = arith.constant 0 : index
    %c2_162 = arith.constant 2 : index
    %152 = vector.load %arg17[%c0_161, %c2_162] : memref<8x226xf32, #tpu.memory_space<vmem>>, vector<8x196xf32>
    %153 = vector.broadcast %145 : vector<1x196xf32> to vector<8x196xf32>
    %154 = arith.mulf %152, %153 : vector<8x196xf32>
    %c16_163 = arith.constant 16 : index
    %c0_164 = arith.constant 0 : index
    %155 = vector.load %arg18[%c16_163, %c0_164] : memref<72x784xf32, #tpu.memory_space<vmem>>, vector<8x196xf32>
    tpu.vector_store %arg18[%c16_163, %c0_164], %154 {strides = array<i32>} : memref<72x784xf32, #tpu.memory_space<vmem>>, vector<8x196xf32>,
    %c0_165 = arith.constant 0 : index
    %c14_166 = arith.constant 14 : index
    %156 = vector.load %arg17[%c0_165, %c14_166] : memref<8x226xf32, #tpu.memory_space<vmem>>, vector<8x196xf32>
    %157 = vector.broadcast %144 : vector<1x196xf32> to vector<8x196xf32>
    %158 = arith.mulf %156, %157 : vector<8x196xf32>
    %c24_167 = arith.constant 24 : index
    %c0_168 = arith.constant 0 : index
    %159 = vector.load %arg18[%c24_167, %c0_168] : memref<72x784xf32, #tpu.memory_space<vmem>>, vector<8x196xf32>
    tpu.vector_store %arg18[%c24_167, %c0_168], %158 {strides = array<i32>} : memref<72x784xf32, #tpu.memory_space<vmem>>, vector<8x196xf32>,
    %c0_169 = arith.constant 0 : index
    %c15_170 = arith.constant 15 : index
    %160 = vector.load %arg17[%c0_169, %c15_170] : memref<8x226xf32, #tpu.memory_space<vmem>>, vector<8x196xf32>
    %c32_171 = arith.constant 32 : index
    %c0_172 = arith.constant 0 : index
    %161 = vector.load %arg18[%c32_171, %c0_172] : memref<72x784xf32, #tpu.memory_space<vmem>>, vector<8x196xf32>
    tpu.vector_store %arg18[%c32_171, %c0_172], %160 {strides = array<i32>} : memref<72x784xf32, #tpu.memory_space<vmem>>, vector<8x196xf32>,
    %c0_173 = arith.constant 0 : index
    %c16_174 = arith.constant 16 : index
    %162 = vector.load %arg17[%c0_173, %c16_174] : memref<8x226xf32, #tpu.memory_space<vmem>>, vector<8x196xf32>
    %163 = vector.broadcast %145 : vector<1x196xf32> to vector<8x196xf32>
    %164 = arith.mulf %162, %163 : vector<8x196xf32>
    %c40_175 = arith.constant 40 : index
    %c0_176 = arith.constant 0 : index
    %165 = vector.load %arg18[%c40_175, %c0_176] : memref<72x784xf32, #tpu.memory_space<vmem>>, vector<8x196xf32>
    tpu.vector_store %arg18[%c40_175, %c0_176], %164 {strides = array<i32>} : memref<72x784xf32, #tpu.memory_space<vmem>>, vector<8x196xf32>,
    %c0_177 = arith.constant 0 : index
    %c28_178 = arith.constant 28 : index
    %166 = vector.load %arg17[%c0_177, %c28_178] : memref<8x226xf32, #tpu.memory_space<vmem>>, vector<8x196xf32>
    %167 = vector.broadcast %144 : vector<1x196xf32> to vector<8x196xf32>
    %168 = arith.mulf %166, %167 : vector<8x196xf32>
    %c48_179 = arith.constant 48 : index
    %c0_180 = arith.constant 0 : index
    %169 = vector.load %arg18[%c48_179, %c0_180] : memref<72x784xf32, #tpu.memory_space<vmem>>, vector<8x196xf32>
    tpu.vector_store %arg18[%c48_179, %c0_180], %168 {strides = array<i32>} : memref<72x784xf32, #tpu.memory_space<vmem>>, vector<8x196xf32>,
    %c0_181 = arith.constant 0 : index
    %c29_182 = arith.constant 29 : index
    %170 = vector.load %arg17[%c0_181, %c29_182] : memref<8x226xf32, #tpu.memory_space<vmem>>, vector<8x196xf32>
    %c56_183 = arith.constant 56 : index
    %c0_184 = arith.constant 0 : index
    %171 = vector.load %arg18[%c56_183, %c0_184] : memref<72x784xf32, #tpu.memory_space<vmem>>, vector<8x196xf32>
    tpu.vector_store %arg18[%c56_183, %c0_184], %170 {strides = array<i32>} : memref<72x784xf32, #tpu.memory_space<vmem>>, vector<8x196xf32>,
    %c0_185 = arith.constant 0 : index
    %c30_186 = arith.constant 30 : index
    %172 = vector.load %arg17[%c0_185, %c30_186] : memref<8x226xf32, #tpu.memory_space<vmem>>, vector<8x196xf32>
    %173 = vector.broadcast %145 : vector<1x196xf32> to vector<8x196xf32>
    %174 = arith.mulf %172, %173 : vector<8x196xf32>
    %c64_187 = arith.constant 64 : index
    %c0_188 = arith.constant 0 : index
    %175 = vector.load %arg18[%c64_187, %c0_188] : memref<72x784xf32, #tpu.memory_space<vmem>>, vector<8x196xf32>
    tpu.vector_store %arg18[%c64_187, %c0_188], %174 {strides = array<i32>} : memref<72x784xf32, #tpu.memory_space<vmem>>, vector<8x196xf32>,
    %c0_189 = arith.constant 0 : index
    %c0_190 = arith.constant 0 : index
    %176 = vector.load %arg18[%c0_189, %c0_190] : memref<72x784xf32, #tpu.memory_space<vmem>>, vector<72x196xf32>
    %177 = arith.truncf %176 : vector<72x196xf32> to vector<72x196xbf16>
    %c0_191 = arith.constant 0 : index
    %c0_192 = arith.constant 0 : index
    %178 = vector.load %arg8[%c0_191, %c0_192] : memref<8x72xbf16, #tpu.memory_space<vmem>>, vector<8x72xbf16>
    %cst_193 = arith.constant dense<0.000000e+00> : vector<8x196xf32>
    %179 = tpu.matmul %178, %177, %cst_193 {dimension_numbers = #tpu.dot_dimension_numbers<[1], [0], [0], [1], [0, 0, 1, 1], [], []>} : vector<8x72xbf16>, vector<72x196xbf16>, vector<8x196xf32> -> vector<8x196xf32>
    %c0_194 = arith.constant 0 : index
    %c0_195 = arith.constant 0 : index
    %180 = vector.load %arg9[%c0_194, %c0_195] : memref<8x1xf32, #tpu.memory_space<vmem>>, vector<8x1xf32>
    %181 = vector.broadcast %180 : vector<8x1xf32> to vector<8x196xf32>
    %182 = arith.addf %179, %181 : vector<8x196xf32>
    %cst_196 = arith.constant 0.000000e+00 : f32
    %183 = vector.broadcast %cst_196 : f32 to vector<8x196xf32>
    %184 = arith.maximumf %182, %183 : vector<8x196xf32>
    %c0_197 = arith.constant 0 : index
    %c15_198 = arith.constant 15 : index
    %185 = vector.load %arg17[%c0_197, %c15_198] : memref<8x226xf32, #tpu.memory_space<vmem>>, vector<8x196xf32>
    tpu.vector_store %arg17[%c0_197, %c15_198], %184 {strides = array<i32>} : memref<8x226xf32, #tpu.memory_space<vmem>>, vector<8x196xf32>,
    %c0_199 = arith.constant 0 : index
    %c16_200 = arith.constant 16 : index
    %186 = vector.load %arg17[%c0_199, %c16_200] : memref<8x226xf32, #tpu.memory_space<vmem>>, vector<8x196xf32>
    %187 = arith.maximumf %184, %186 : vector<8x196xf32>
    %c0_201 = arith.constant 0 : index
    %c15_202 = arith.constant 15 : index
    %188 = vector.load %arg17[%c0_201, %c15_202] : memref<8x226xf32, #tpu.memory_space<vmem>>, vector<8x196xf32>
    tpu.vector_store %arg17[%c0_201, %c15_202], %187 {strides = array<i32>} : memref<8x226xf32, #tpu.memory_space<vmem>>, vector<8x196xf32>,
    %c0_203 = arith.constant 0 : index
    %c29_204 = arith.constant 29 : index
    %189 = vector.load %arg17[%c0_203, %c29_204] : memref<8x226xf32, #tpu.memory_space<vmem>>, vector<8x196xf32>
    %190 = arith.maximumf %187, %189 : vector<8x196xf32>
    %191 = vector.extract_strided_slice %190 {offsets = [0, 0], sizes = [1, 196], strides = [1, 1]} : vector<8x196xf32> to vector<1x196xf32>
    %c0_205 = arith.constant 0 : index
    %c0_206 = arith.constant 0 : index
    %192 = vector.load %arg19[%c0_205, %c0_206] : memref<2x1568xf32, #tpu.memory_space<vmem>>, vector<1x196xf32>
    tpu.vector_store %arg19[%c0_205, %c0_206], %191 {strides = array<i32>} : memref<2x1568xf32, #tpu.memory_space<vmem>>, vector<1x196xf32>,
    %193 = vector.extract_strided_slice %190 {offsets = [1, 0], sizes = [1, 196], strides = [1, 1]} : vector<8x196xf32> to vector<1x196xf32>
    %c0_207 = arith.constant 0 : index
    %c196 = arith.constant 196 : index
    %194 = vector.load %arg19[%c0_207, %c196] : memref<2x1568xf32, #tpu.memory_space<vmem>>, vector<1x196xf32>
    tpu.vector_store %arg19[%c0_207, %c196], %193 {strides = array<i32>} : memref<2x1568xf32, #tpu.memory_space<vmem>>, vector<1x196xf32>,
    %195 = vector.extract_strided_slice %190 {offsets = [2, 0], sizes = [1, 196], strides = [1, 1]} : vector<8x196xf32> to vector<1x196xf32>
    %c0_208 = arith.constant 0 : index
    %c392 = arith.constant 392 : index
    %196 = vector.load %arg19[%c0_208, %c392] : memref<2x1568xf32, #tpu.memory_space<vmem>>, vector<1x196xf32>
    tpu.vector_store %arg19[%c0_208, %c392], %195 {strides = array<i32>} : memref<2x1568xf32, #tpu.memory_space<vmem>>, vector<1x196xf32>,
    %197 = vector.extract_strided_slice %190 {offsets = [3, 0], sizes = [1, 196], strides = [1, 1]} : vector<8x196xf32> to vector<1x196xf32>
    %c0_209 = arith.constant 0 : index
    %c588 = arith.constant 588 : index
    %198 = vector.load %arg19[%c0_209, %c588] : memref<2x1568xf32, #tpu.memory_space<vmem>>, vector<1x196xf32>
    tpu.vector_store %arg19[%c0_209, %c588], %197 {strides = array<i32>} : memref<2x1568xf32, #tpu.memory_space<vmem>>, vector<1x196xf32>,
    %199 = vector.extract_strided_slice %190 {offsets = [4, 0], sizes = [1, 196], strides = [1, 1]} : vector<8x196xf32> to vector<1x196xf32>
    %c0_210 = arith.constant 0 : index
    %c784 = arith.constant 784 : index
    %200 = vector.load %arg19[%c0_210, %c784] : memref<2x1568xf32, #tpu.memory_space<vmem>>, vector<1x196xf32>
    tpu.vector_store %arg19[%c0_210, %c784], %199 {strides = array<i32>} : memref<2x1568xf32, #tpu.memory_space<vmem>>, vector<1x196xf32>,
    %201 = vector.extract_strided_slice %190 {offsets = [5, 0], sizes = [1, 196], strides = [1, 1]} : vector<8x196xf32> to vector<1x196xf32>
    %c0_211 = arith.constant 0 : index
    %c980 = arith.constant 980 : index
    %202 = vector.load %arg19[%c0_211, %c980] : memref<2x1568xf32, #tpu.memory_space<vmem>>, vector<1x196xf32>
    tpu.vector_store %arg19[%c0_211, %c980], %201 {strides = array<i32>} : memref<2x1568xf32, #tpu.memory_space<vmem>>, vector<1x196xf32>,
    %203 = vector.extract_strided_slice %190 {offsets = [6, 0], sizes = [1, 196], strides = [1, 1]} : vector<8x196xf32> to vector<1x196xf32>
    %c0_212 = arith.constant 0 : index
    %c1176 = arith.constant 1176 : index
    %204 = vector.load %arg19[%c0_212, %c1176] : memref<2x1568xf32, #tpu.memory_space<vmem>>, vector<1x196xf32>
    tpu.vector_store %arg19[%c0_212, %c1176], %203 {strides = array<i32>} : memref<2x1568xf32, #tpu.memory_space<vmem>>, vector<1x196xf32>,
    %205 = vector.extract_strided_slice %190 {offsets = [7, 0], sizes = [1, 196], strides = [1, 1]} : vector<8x196xf32> to vector<1x196xf32>
    %c0_213 = arith.constant 0 : index
    %c1372 = arith.constant 1372 : index
    %206 = vector.load %arg19[%c0_213, %c1372] : memref<2x1568xf32, #tpu.memory_space<vmem>>, vector<1x196xf32>
    tpu.vector_store %arg19[%c0_213, %c1372], %205 {strides = array<i32>} : memref<2x1568xf32, #tpu.memory_space<vmem>>, vector<1x196xf32>,
    %c1_214 = arith.constant 1 : index
    %c0_215 = arith.constant 0 : index
    %c0_216 = arith.constant 0 : index
    %207 = vector.load %arg1[%c1_214, %c0_215, %c0_216] : memref<2x3x784xf32, #tpu.memory_space<vmem>>, vector<1x3x784xf32>
    %208 = vector.shape_cast %207 : vector<1x3x784xf32> to vector<3x784xf32>
    %c0_217 = arith.constant 0 : index
    %c29_218 = arith.constant 29 : index
    %209 = vector.load %arg16[%c0_217, %c29_218] : memref<8x842xf32, #tpu.memory_space<vmem>>, vector<3x784xf32>
    tpu.vector_store %arg16[%c0_217, %c29_218], %208 {strides = array<i32>} : memref<8x842xf32, #tpu.memory_space<vmem>>, vector<3x784xf32>,
    %c0_219 = arith.constant 0 : index
    %c0_220 = arith.constant 0 : index
    %210 = vector.load %arg13[%c0_219, %c0_220] : memref<2x784xf32, #tpu.memory_space<vmem>>, vector<1x784xf32>
    %c1_221 = arith.constant 1 : index
    %c0_222 = arith.constant 0 : index
    %211 = vector.load %arg13[%c1_221, %c0_222] : memref<2x784xf32, #tpu.memory_space<vmem>>, vector<1x784xf32>
    %c0_223 = arith.constant 0 : index
    %c0_224 = arith.constant 0 : index
    %212 = vector.load %arg16[%c0_223, %c0_224] : memref<8x842xf32, #tpu.memory_space<vmem>>, vector<3x784xf32>
    %213 = vector.broadcast %210 : vector<1x784xf32> to vector<3x784xf32>
    %214 = arith.mulf %212, %213 : vector<3x784xf32>
    %c0_225 = arith.constant 0 : index
    %c0_226 = arith.constant 0 : index
    %215 = vector.load %arg18[%c0_225, %c0_226] : memref<72x784xf32, #tpu.memory_space<vmem>>, vector<3x784xf32>
    tpu.vector_store %arg18[%c0_225, %c0_226], %214 {strides = array<i32>} : memref<72x784xf32, #tpu.memory_space<vmem>>, vector<3x784xf32>,
    %c0_227 = arith.constant 0 : index
    %c1_228 = arith.constant 1 : index
    %216 = vector.load %arg16[%c0_227, %c1_228] : memref<8x842xf32, #tpu.memory_space<vmem>>, vector<3x784xf32>
    %c3_229 = arith.constant 3 : index
    %c0_230 = arith.constant 0 : index
    %217 = vector.load %arg18[%c3_229, %c0_230] : memref<72x784xf32, #tpu.memory_space<vmem>>, vector<3x784xf32>
    tpu.vector_store %arg18[%c3_229, %c0_230], %216 {strides = array<i32>} : memref<72x784xf32, #tpu.memory_space<vmem>>, vector<3x784xf32>,
    %c0_231 = arith.constant 0 : index
    %c2_232 = arith.constant 2 : index
    %218 = vector.load %arg16[%c0_231, %c2_232] : memref<8x842xf32, #tpu.memory_space<vmem>>, vector<3x784xf32>
    %219 = vector.broadcast %211 : vector<1x784xf32> to vector<3x784xf32>
    %220 = arith.mulf %218, %219 : vector<3x784xf32>
    %c6_233 = arith.constant 6 : index
    %c0_234 = arith.constant 0 : index
    %221 = vector.load %arg18[%c6_233, %c0_234] : memref<72x784xf32, #tpu.memory_space<vmem>>, vector<3x784xf32>
    tpu.vector_store %arg18[%c6_233, %c0_234], %220 {strides = array<i32>} : memref<72x784xf32, #tpu.memory_space<vmem>>, vector<3x784xf32>,
    %c0_235 = arith.constant 0 : index
    %c28_236 = arith.constant 28 : index
    %222 = vector.load %arg16[%c0_235, %c28_236] : memref<8x842xf32, #tpu.memory_space<vmem>>, vector<3x784xf32>
    %223 = vector.broadcast %210 : vector<1x784xf32> to vector<3x784xf32>
    %224 = arith.mulf %222, %223 : vector<3x784xf32>
    %c9_237 = arith.constant 9 : index
    %c0_238 = arith.constant 0 : index
    %225 = vector.load %arg18[%c9_237, %c0_238] : memref<72x784xf32, #tpu.memory_space<vmem>>, vector<3x784xf32>
    tpu.vector_store %arg18[%c9_237, %c0_238], %224 {strides = array<i32>} : memref<72x784xf32, #tpu.memory_space<vmem>>, vector<3x784xf32>,
    %c0_239 = arith.constant 0 : index
    %c29_240 = arith.constant 29 : index
    %226 = vector.load %arg16[%c0_239, %c29_240] : memref<8x842xf32, #tpu.memory_space<vmem>>, vector<3x784xf32>
    %c12_241 = arith.constant 12 : index
    %c0_242 = arith.constant 0 : index
    %227 = vector.load %arg18[%c12_241, %c0_242] : memref<72x784xf32, #tpu.memory_space<vmem>>, vector<3x784xf32>
    tpu.vector_store %arg18[%c12_241, %c0_242], %226 {strides = array<i32>} : memref<72x784xf32, #tpu.memory_space<vmem>>, vector<3x784xf32>,
    %c0_243 = arith.constant 0 : index
    %c30_244 = arith.constant 30 : index
    %228 = vector.load %arg16[%c0_243, %c30_244] : memref<8x842xf32, #tpu.memory_space<vmem>>, vector<3x784xf32>
    %229 = vector.broadcast %211 : vector<1x784xf32> to vector<3x784xf32>
    %230 = arith.mulf %228, %229 : vector<3x784xf32>
    %c15_245 = arith.constant 15 : index
    %c0_246 = arith.constant 0 : index
    %231 = vector.load %arg18[%c15_245, %c0_246] : memref<72x784xf32, #tpu.memory_space<vmem>>, vector<3x784xf32>
    tpu.vector_store %arg18[%c15_245, %c0_246], %230 {strides = array<i32>} : memref<72x784xf32, #tpu.memory_space<vmem>>, vector<3x784xf32>,
    %c0_247 = arith.constant 0 : index
    %c56_248 = arith.constant 56 : index
    %232 = vector.load %arg16[%c0_247, %c56_248] : memref<8x842xf32, #tpu.memory_space<vmem>>, vector<3x784xf32>
    %233 = vector.broadcast %210 : vector<1x784xf32> to vector<3x784xf32>
    %234 = arith.mulf %232, %233 : vector<3x784xf32>
    %c18_249 = arith.constant 18 : index
    %c0_250 = arith.constant 0 : index
    %235 = vector.load %arg18[%c18_249, %c0_250] : memref<72x784xf32, #tpu.memory_space<vmem>>, vector<3x784xf32>
    tpu.vector_store %arg18[%c18_249, %c0_250], %234 {strides = array<i32>} : memref<72x784xf32, #tpu.memory_space<vmem>>, vector<3x784xf32>,
    %c0_251 = arith.constant 0 : index
    %c57_252 = arith.constant 57 : index
    %236 = vector.load %arg16[%c0_251, %c57_252] : memref<8x842xf32, #tpu.memory_space<vmem>>, vector<3x784xf32>
    %c21_253 = arith.constant 21 : index
    %c0_254 = arith.constant 0 : index
    %237 = vector.load %arg18[%c21_253, %c0_254] : memref<72x784xf32, #tpu.memory_space<vmem>>, vector<3x784xf32>
    tpu.vector_store %arg18[%c21_253, %c0_254], %236 {strides = array<i32>} : memref<72x784xf32, #tpu.memory_space<vmem>>, vector<3x784xf32>,
    %c0_255 = arith.constant 0 : index
    %c58_256 = arith.constant 58 : index
    %238 = vector.load %arg16[%c0_255, %c58_256] : memref<8x842xf32, #tpu.memory_space<vmem>>, vector<3x784xf32>
    %239 = vector.broadcast %211 : vector<1x784xf32> to vector<3x784xf32>
    %240 = arith.mulf %238, %239 : vector<3x784xf32>
    %c24_257 = arith.constant 24 : index
    %c0_258 = arith.constant 0 : index
    %241 = vector.load %arg18[%c24_257, %c0_258] : memref<72x784xf32, #tpu.memory_space<vmem>>, vector<3x784xf32>
    tpu.vector_store %arg18[%c24_257, %c0_258], %240 {strides = array<i32>} : memref<72x784xf32, #tpu.memory_space<vmem>>, vector<3x784xf32>,
    %c0_259 = arith.constant 0 : index
    %c0_260 = arith.constant 0 : index
    %242 = vector.load %arg18[%c0_259, %c0_260] : memref<72x784xf32, #tpu.memory_space<vmem>>, vector<27x784xf32>
    %243 = arith.truncf %242 : vector<27x784xf32> to vector<27x784xbf16>
    %c0_261 = arith.constant 0 : index
    %c0_262 = arith.constant 0 : index
    %244 = vector.load %arg2[%c0_261, %c0_262] : memref<8x27xbf16, #tpu.memory_space<vmem>>, vector<8x27xbf16>
    %cst_263 = arith.constant dense<0.000000e+00> : vector<8x784xf32>
    %245 = tpu.matmul %244, %243, %cst_263 {dimension_numbers = #tpu.dot_dimension_numbers<[1], [0], [0], [1], [0, 0, 1, 1], [], []>} : vector<8x27xbf16>, vector<27x784xbf16>, vector<8x784xf32> -> vector<8x784xf32>
    %c0_264 = arith.constant 0 : index
    %c0_265 = arith.constant 0 : index
    %246 = vector.load %arg3[%c0_264, %c0_265] : memref<8x1xf32, #tpu.memory_space<vmem>>, vector<8x1xf32>
    %247 = vector.broadcast %246 : vector<8x1xf32> to vector<8x784xf32>
    %248 = arith.addf %245, %247 : vector<8x784xf32>
    %cst_266 = arith.constant 0.000000e+00 : f32
    %249 = vector.broadcast %cst_266 : f32 to vector<8x784xf32>
    %250 = arith.maximumf %248, %249 : vector<8x784xf32>
    %c0_267 = arith.constant 0 : index
    %c29_268 = arith.constant 29 : index
    %251 = vector.load %arg16[%c0_267, %c29_268] : memref<8x842xf32, #tpu.memory_space<vmem>>, vector<8x784xf32>
    tpu.vector_store %arg16[%c0_267, %c29_268], %250 {strides = array<i32>} : memref<8x842xf32, #tpu.memory_space<vmem>>, vector<8x784xf32>,
    %c0_269 = arith.constant 0 : index
    %c0_270 = arith.constant 0 : index
    %252 = vector.load %arg13[%c0_269, %c0_270] : memref<2x784xf32, #tpu.memory_space<vmem>>, vector<1x784xf32>
    %c1_271 = arith.constant 1 : index
    %c0_272 = arith.constant 0 : index
    %253 = vector.load %arg13[%c1_271, %c0_272] : memref<2x784xf32, #tpu.memory_space<vmem>>, vector<1x784xf32>
    %c0_273 = arith.constant 0 : index
    %c0_274 = arith.constant 0 : index
    %254 = vector.load %arg16[%c0_273, %c0_274] : memref<8x842xf32, #tpu.memory_space<vmem>>, vector<8x784xf32>
    %255 = vector.broadcast %252 : vector<1x784xf32> to vector<8x784xf32>
    %256 = arith.mulf %254, %255 : vector<8x784xf32>
    %c0_275 = arith.constant 0 : index
    %c0_276 = arith.constant 0 : index
    %257 = vector.load %arg18[%c0_275, %c0_276] : memref<72x784xf32, #tpu.memory_space<vmem>>, vector<8x784xf32>
    tpu.vector_store %arg18[%c0_275, %c0_276], %256 {strides = array<i32>} : memref<72x784xf32, #tpu.memory_space<vmem>>, vector<8x784xf32>,
    %c0_277 = arith.constant 0 : index
    %c1_278 = arith.constant 1 : index
    %258 = vector.load %arg16[%c0_277, %c1_278] : memref<8x842xf32, #tpu.memory_space<vmem>>, vector<8x784xf32>
    %c8_279 = arith.constant 8 : index
    %c0_280 = arith.constant 0 : index
    %259 = vector.load %arg18[%c8_279, %c0_280] : memref<72x784xf32, #tpu.memory_space<vmem>>, vector<8x784xf32>
    tpu.vector_store %arg18[%c8_279, %c0_280], %258 {strides = array<i32>} : memref<72x784xf32, #tpu.memory_space<vmem>>, vector<8x784xf32>,
    %c0_281 = arith.constant 0 : index
    %c2_282 = arith.constant 2 : index
    %260 = vector.load %arg16[%c0_281, %c2_282] : memref<8x842xf32, #tpu.memory_space<vmem>>, vector<8x784xf32>
    %261 = vector.broadcast %253 : vector<1x784xf32> to vector<8x784xf32>
    %262 = arith.mulf %260, %261 : vector<8x784xf32>
    %c16_283 = arith.constant 16 : index
    %c0_284 = arith.constant 0 : index
    %263 = vector.load %arg18[%c16_283, %c0_284] : memref<72x784xf32, #tpu.memory_space<vmem>>, vector<8x784xf32>
    tpu.vector_store %arg18[%c16_283, %c0_284], %262 {strides = array<i32>} : memref<72x784xf32, #tpu.memory_space<vmem>>, vector<8x784xf32>,
    %c0_285 = arith.constant 0 : index
    %c28_286 = arith.constant 28 : index
    %264 = vector.load %arg16[%c0_285, %c28_286] : memref<8x842xf32, #tpu.memory_space<vmem>>, vector<8x784xf32>
    %265 = vector.broadcast %252 : vector<1x784xf32> to vector<8x784xf32>
    %266 = arith.mulf %264, %265 : vector<8x784xf32>
    %c24_287 = arith.constant 24 : index
    %c0_288 = arith.constant 0 : index
    %267 = vector.load %arg18[%c24_287, %c0_288] : memref<72x784xf32, #tpu.memory_space<vmem>>, vector<8x784xf32>
    tpu.vector_store %arg18[%c24_287, %c0_288], %266 {strides = array<i32>} : memref<72x784xf32, #tpu.memory_space<vmem>>, vector<8x784xf32>,
    %c0_289 = arith.constant 0 : index
    %c29_290 = arith.constant 29 : index
    %268 = vector.load %arg16[%c0_289, %c29_290] : memref<8x842xf32, #tpu.memory_space<vmem>>, vector<8x784xf32>
    %c32_291 = arith.constant 32 : index
    %c0_292 = arith.constant 0 : index
    %269 = vector.load %arg18[%c32_291, %c0_292] : memref<72x784xf32, #tpu.memory_space<vmem>>, vector<8x784xf32>
    tpu.vector_store %arg18[%c32_291, %c0_292], %268 {strides = array<i32>} : memref<72x784xf32, #tpu.memory_space<vmem>>, vector<8x784xf32>,
    %c0_293 = arith.constant 0 : index
    %c30_294 = arith.constant 30 : index
    %270 = vector.load %arg16[%c0_293, %c30_294] : memref<8x842xf32, #tpu.memory_space<vmem>>, vector<8x784xf32>
    %271 = vector.broadcast %253 : vector<1x784xf32> to vector<8x784xf32>
    %272 = arith.mulf %270, %271 : vector<8x784xf32>
    %c40_295 = arith.constant 40 : index
    %c0_296 = arith.constant 0 : index
    %273 = vector.load %arg18[%c40_295, %c0_296] : memref<72x784xf32, #tpu.memory_space<vmem>>, vector<8x784xf32>
    tpu.vector_store %arg18[%c40_295, %c0_296], %272 {strides = array<i32>} : memref<72x784xf32, #tpu.memory_space<vmem>>, vector<8x784xf32>,
    %c0_297 = arith.constant 0 : index
    %c56_298 = arith.constant 56 : index
    %274 = vector.load %arg16[%c0_297, %c56_298] : memref<8x842xf32, #tpu.memory_space<vmem>>, vector<8x784xf32>
    %275 = vector.broadcast %252 : vector<1x784xf32> to vector<8x784xf32>
    %276 = arith.mulf %274, %275 : vector<8x784xf32>
    %c48_299 = arith.constant 48 : index
    %c0_300 = arith.constant 0 : index
    %277 = vector.load %arg18[%c48_299, %c0_300] : memref<72x784xf32, #tpu.memory_space<vmem>>, vector<8x784xf32>
    tpu.vector_store %arg18[%c48_299, %c0_300], %276 {strides = array<i32>} : memref<72x784xf32, #tpu.memory_space<vmem>>, vector<8x784xf32>,
    %c0_301 = arith.constant 0 : index
    %c57_302 = arith.constant 57 : index
    %278 = vector.load %arg16[%c0_301, %c57_302] : memref<8x842xf32, #tpu.memory_space<vmem>>, vector<8x784xf32>
    %c56_303 = arith.constant 56 : index
    %c0_304 = arith.constant 0 : index
    %279 = vector.load %arg18[%c56_303, %c0_304] : memref<72x784xf32, #tpu.memory_space<vmem>>, vector<8x784xf32>
    tpu.vector_store %arg18[%c56_303, %c0_304], %278 {strides = array<i32>} : memref<72x784xf32, #tpu.memory_space<vmem>>, vector<8x784xf32>,
    %c0_305 = arith.constant 0 : index
    %c58_306 = arith.constant 58 : index
    %280 = vector.load %arg16[%c0_305, %c58_306] : memref<8x842xf32, #tpu.memory_space<vmem>>, vector<8x784xf32>
    %281 = vector.broadcast %253 : vector<1x784xf32> to vector<8x784xf32>
    %282 = arith.mulf %280, %281 : vector<8x784xf32>
    %c64_307 = arith.constant 64 : index
    %c0_308 = arith.constant 0 : index
    %283 = vector.load %arg18[%c64_307, %c0_308] : memref<72x784xf32, #tpu.memory_space<vmem>>, vector<8x784xf32>
    tpu.vector_store %arg18[%c64_307, %c0_308], %282 {strides = array<i32>} : memref<72x784xf32, #tpu.memory_space<vmem>>, vector<8x784xf32>,
    %c0_309 = arith.constant 0 : index
    %c0_310 = arith.constant 0 : index
    %284 = vector.load %arg18[%c0_309, %c0_310] : memref<72x784xf32, #tpu.memory_space<vmem>>, vector<72x784xf32>
    %285 = arith.truncf %284 : vector<72x784xf32> to vector<72x784xbf16>
    %c0_311 = arith.constant 0 : index
    %c0_312 = arith.constant 0 : index
    %286 = vector.load %arg4[%c0_311, %c0_312] : memref<8x72xbf16, #tpu.memory_space<vmem>>, vector<8x72xbf16>
    %cst_313 = arith.constant dense<0.000000e+00> : vector<8x784xf32>
    %287 = tpu.matmul %286, %285, %cst_313 {dimension_numbers = #tpu.dot_dimension_numbers<[1], [0], [0], [1], [0, 0, 1, 1], [], []>} : vector<8x72xbf16>, vector<72x784xbf16>, vector<8x784xf32> -> vector<8x784xf32>
    %c0_314 = arith.constant 0 : index
    %c0_315 = arith.constant 0 : index
    %288 = vector.load %arg5[%c0_314, %c0_315] : memref<8x1xf32, #tpu.memory_space<vmem>>, vector<8x1xf32>
    %289 = vector.broadcast %288 : vector<8x1xf32> to vector<8x784xf32>
    %290 = arith.addf %287, %289 : vector<8x784xf32>
    %cst_316 = arith.constant 0.000000e+00 : f32
    %291 = vector.broadcast %cst_316 : f32 to vector<8x784xf32>
    %292 = arith.maximumf %290, %291 : vector<8x784xf32>
    %c0_317 = arith.constant 0 : index
    %c29_318 = arith.constant 29 : index
    %293 = vector.load %arg16[%c0_317, %c29_318] : memref<8x842xf32, #tpu.memory_space<vmem>>, vector<8x784xf32>
    tpu.vector_store %arg16[%c0_317, %c29_318], %292 {strides = array<i32>} : memref<8x842xf32, #tpu.memory_space<vmem>>, vector<8x784xf32>,
    %c0_319 = arith.constant 0 : index
    %c30_320 = arith.constant 30 : index
    %294 = vector.load %arg16[%c0_319, %c30_320] : memref<8x842xf32, #tpu.memory_space<vmem>>, vector<8x784xf32>
    %295 = arith.maximumf %292, %294 : vector<8x784xf32>
    %c0_321 = arith.constant 0 : index
    %c29_322 = arith.constant 29 : index
    %296 = vector.load %arg16[%c0_321, %c29_322] : memref<8x842xf32, #tpu.memory_space<vmem>>, vector<8x784xf32>
    tpu.vector_store %arg16[%c0_321, %c29_322], %295 {strides = array<i32>} : memref<8x842xf32, #tpu.memory_space<vmem>>, vector<8x784xf32>,
    %c0_323 = arith.constant 0 : index
    %c57_324 = arith.constant 57 : index
    %297 = vector.load %arg16[%c0_323, %c57_324] : memref<8x842xf32, #tpu.memory_space<vmem>>, vector<8x784xf32>
    %298 = arith.maximumf %295, %297 : vector<8x784xf32>
    %299 = arith.truncf %298 : vector<8x784xf32> to vector<8x784xbf16>
    %c0_325 = arith.constant 0 : index
    %c0_326 = arith.constant 0 : index
    %300 = vector.load %arg12[%c0_325, %c0_326] : memref<784x196xbf16, #tpu.memory_space<vmem>>, vector<784x196xbf16>
    %cst_327 = arith.constant dense<0.000000e+00> : vector<8x196xf32>
    %301 = tpu.matmul %299, %300, %cst_327 {dimension_numbers = #tpu.dot_dimension_numbers<[1], [0], [0], [1], [0, 0, 1, 1], [], []>} : vector<8x784xbf16>, vector<784x196xbf16>, vector<8x196xf32> -> vector<8x196xf32>
    %c0_328 = arith.constant 0 : index
    %c15_329 = arith.constant 15 : index
    %302 = vector.load %arg17[%c0_328, %c15_329] : memref<8x226xf32, #tpu.memory_space<vmem>>, vector<8x196xf32>
    tpu.vector_store %arg17[%c0_328, %c15_329], %301 {strides = array<i32>} : memref<8x226xf32, #tpu.memory_space<vmem>>, vector<8x196xf32>,
    %c0_330 = arith.constant 0 : index
    %c0_331 = arith.constant 0 : index
    %303 = vector.load %arg14[%c0_330, %c0_331] : memref<2x196xf32, #tpu.memory_space<vmem>>, vector<1x196xf32>
    %c1_332 = arith.constant 1 : index
    %c0_333 = arith.constant 0 : index
    %304 = vector.load %arg14[%c1_332, %c0_333] : memref<2x196xf32, #tpu.memory_space<vmem>>, vector<1x196xf32>
    %c0_334 = arith.constant 0 : index
    %c0_335 = arith.constant 0 : index
    %305 = vector.load %arg17[%c0_334, %c0_335] : memref<8x226xf32, #tpu.memory_space<vmem>>, vector<8x196xf32>
    %306 = vector.broadcast %303 : vector<1x196xf32> to vector<8x196xf32>
    %307 = arith.mulf %305, %306 : vector<8x196xf32>
    %c0_336 = arith.constant 0 : index
    %c0_337 = arith.constant 0 : index
    %308 = vector.load %arg18[%c0_336, %c0_337] : memref<72x784xf32, #tpu.memory_space<vmem>>, vector<8x196xf32>
    tpu.vector_store %arg18[%c0_336, %c0_337], %307 {strides = array<i32>} : memref<72x784xf32, #tpu.memory_space<vmem>>, vector<8x196xf32>,
    %c0_338 = arith.constant 0 : index
    %c1_339 = arith.constant 1 : index
    %309 = vector.load %arg17[%c0_338, %c1_339] : memref<8x226xf32, #tpu.memory_space<vmem>>, vector<8x196xf32>
    %c8_340 = arith.constant 8 : index
    %c0_341 = arith.constant 0 : index
    %310 = vector.load %arg18[%c8_340, %c0_341] : memref<72x784xf32, #tpu.memory_space<vmem>>, vector<8x196xf32>
    tpu.vector_store %arg18[%c8_340, %c0_341], %309 {strides = array<i32>} : memref<72x784xf32, #tpu.memory_space<vmem>>, vector<8x196xf32>,
    %c0_342 = arith.constant 0 : index
    %c2_343 = arith.constant 2 : index
    %311 = vector.load %arg17[%c0_342, %c2_343] : memref<8x226xf32, #tpu.memory_space<vmem>>, vector<8x196xf32>
    %312 = vector.broadcast %304 : vector<1x196xf32> to vector<8x196xf32>
    %313 = arith.mulf %311, %312 : vector<8x196xf32>
    %c16_344 = arith.constant 16 : index
    %c0_345 = arith.constant 0 : index
    %314 = vector.load %arg18[%c16_344, %c0_345] : memref<72x784xf32, #tpu.memory_space<vmem>>, vector<8x196xf32>
    tpu.vector_store %arg18[%c16_344, %c0_345], %313 {strides = array<i32>} : memref<72x784xf32, #tpu.memory_space<vmem>>, vector<8x196xf32>,
    %c0_346 = arith.constant 0 : index
    %c14_347 = arith.constant 14 : index
    %315 = vector.load %arg17[%c0_346, %c14_347] : memref<8x226xf32, #tpu.memory_space<vmem>>, vector<8x196xf32>
    %316 = vector.broadcast %303 : vector<1x196xf32> to vector<8x196xf32>
    %317 = arith.mulf %315, %316 : vector<8x196xf32>
    %c24_348 = arith.constant 24 : index
    %c0_349 = arith.constant 0 : index
    %318 = vector.load %arg18[%c24_348, %c0_349] : memref<72x784xf32, #tpu.memory_space<vmem>>, vector<8x196xf32>
    tpu.vector_store %arg18[%c24_348, %c0_349], %317 {strides = array<i32>} : memref<72x784xf32, #tpu.memory_space<vmem>>, vector<8x196xf32>,
    %c0_350 = arith.constant 0 : index
    %c15_351 = arith.constant 15 : index
    %319 = vector.load %arg17[%c0_350, %c15_351] : memref<8x226xf32, #tpu.memory_space<vmem>>, vector<8x196xf32>
    %c32_352 = arith.constant 32 : index
    %c0_353 = arith.constant 0 : index
    %320 = vector.load %arg18[%c32_352, %c0_353] : memref<72x784xf32, #tpu.memory_space<vmem>>, vector<8x196xf32>
    tpu.vector_store %arg18[%c32_352, %c0_353], %319 {strides = array<i32>} : memref<72x784xf32, #tpu.memory_space<vmem>>, vector<8x196xf32>,
    %c0_354 = arith.constant 0 : index
    %c16_355 = arith.constant 16 : index
    %321 = vector.load %arg17[%c0_354, %c16_355] : memref<8x226xf32, #tpu.memory_space<vmem>>, vector<8x196xf32>
    %322 = vector.broadcast %304 : vector<1x196xf32> to vector<8x196xf32>
    %323 = arith.mulf %321, %322 : vector<8x196xf32>
    %c40_356 = arith.constant 40 : index
    %c0_357 = arith.constant 0 : index
    %324 = vector.load %arg18[%c40_356, %c0_357] : memref<72x784xf32, #tpu.memory_space<vmem>>, vector<8x196xf32>
    tpu.vector_store %arg18[%c40_356, %c0_357], %323 {strides = array<i32>} : memref<72x784xf32, #tpu.memory_space<vmem>>, vector<8x196xf32>,
    %c0_358 = arith.constant 0 : index
    %c28_359 = arith.constant 28 : index
    %325 = vector.load %arg17[%c0_358, %c28_359] : memref<8x226xf32, #tpu.memory_space<vmem>>, vector<8x196xf32>
    %326 = vector.broadcast %303 : vector<1x196xf32> to vector<8x196xf32>
    %327 = arith.mulf %325, %326 : vector<8x196xf32>
    %c48_360 = arith.constant 48 : index
    %c0_361 = arith.constant 0 : index
    %328 = vector.load %arg18[%c48_360, %c0_361] : memref<72x784xf32, #tpu.memory_space<vmem>>, vector<8x196xf32>
    tpu.vector_store %arg18[%c48_360, %c0_361], %327 {strides = array<i32>} : memref<72x784xf32, #tpu.memory_space<vmem>>, vector<8x196xf32>,
    %c0_362 = arith.constant 0 : index
    %c29_363 = arith.constant 29 : index
    %329 = vector.load %arg17[%c0_362, %c29_363] : memref<8x226xf32, #tpu.memory_space<vmem>>, vector<8x196xf32>
    %c56_364 = arith.constant 56 : index
    %c0_365 = arith.constant 0 : index
    %330 = vector.load %arg18[%c56_364, %c0_365] : memref<72x784xf32, #tpu.memory_space<vmem>>, vector<8x196xf32>
    tpu.vector_store %arg18[%c56_364, %c0_365], %329 {strides = array<i32>} : memref<72x784xf32, #tpu.memory_space<vmem>>, vector<8x196xf32>,
    %c0_366 = arith.constant 0 : index
    %c30_367 = arith.constant 30 : index
    %331 = vector.load %arg17[%c0_366, %c30_367] : memref<8x226xf32, #tpu.memory_space<vmem>>, vector<8x196xf32>
    %332 = vector.broadcast %304 : vector<1x196xf32> to vector<8x196xf32>
    %333 = arith.mulf %331, %332 : vector<8x196xf32>
    %c64_368 = arith.constant 64 : index
    %c0_369 = arith.constant 0 : index
    %334 = vector.load %arg18[%c64_368, %c0_369] : memref<72x784xf32, #tpu.memory_space<vmem>>, vector<8x196xf32>
    tpu.vector_store %arg18[%c64_368, %c0_369], %333 {strides = array<i32>} : memref<72x784xf32, #tpu.memory_space<vmem>>, vector<8x196xf32>,
    %c0_370 = arith.constant 0 : index
    %c0_371 = arith.constant 0 : index
    %335 = vector.load %arg18[%c0_370, %c0_371] : memref<72x784xf32, #tpu.memory_space<vmem>>, vector<72x196xf32>
    %336 = arith.truncf %335 : vector<72x196xf32> to vector<72x196xbf16>
    %c0_372 = arith.constant 0 : index
    %c0_373 = arith.constant 0 : index
    %337 = vector.load %arg6[%c0_372, %c0_373] : memref<8x72xbf16, #tpu.memory_space<vmem>>, vector<8x72xbf16>
    %cst_374 = arith.constant dense<0.000000e+00> : vector<8x196xf32>
    %338 = tpu.matmul %337, %336, %cst_374 {dimension_numbers = #tpu.dot_dimension_numbers<[1], [0], [0], [1], [0, 0, 1, 1], [], []>} : vector<8x72xbf16>, vector<72x196xbf16>, vector<8x196xf32> -> vector<8x196xf32>
    %c0_375 = arith.constant 0 : index
    %c0_376 = arith.constant 0 : index
    %339 = vector.load %arg7[%c0_375, %c0_376] : memref<8x1xf32, #tpu.memory_space<vmem>>, vector<8x1xf32>
    %340 = vector.broadcast %339 : vector<8x1xf32> to vector<8x196xf32>
    %341 = arith.addf %338, %340 : vector<8x196xf32>
    %cst_377 = arith.constant 0.000000e+00 : f32
    %342 = vector.broadcast %cst_377 : f32 to vector<8x196xf32>
    %343 = arith.maximumf %341, %342 : vector<8x196xf32>
    %c0_378 = arith.constant 0 : index
    %c15_379 = arith.constant 15 : index
    %344 = vector.load %arg17[%c0_378, %c15_379] : memref<8x226xf32, #tpu.memory_space<vmem>>, vector<8x196xf32>
    tpu.vector_store %arg17[%c0_378, %c15_379], %343 {strides = array<i32>} : memref<8x226xf32, #tpu.memory_space<vmem>>, vector<8x196xf32>,
    %c0_380 = arith.constant 0 : index
    %c0_381 = arith.constant 0 : index
    %345 = vector.load %arg14[%c0_380, %c0_381] : memref<2x196xf32, #tpu.memory_space<vmem>>, vector<1x196xf32>
    %c1_382 = arith.constant 1 : index
    %c0_383 = arith.constant 0 : index
    %346 = vector.load %arg14[%c1_382, %c0_383] : memref<2x196xf32, #tpu.memory_space<vmem>>, vector<1x196xf32>
    %c0_384 = arith.constant 0 : index
    %c0_385 = arith.constant 0 : index
    %347 = vector.load %arg17[%c0_384, %c0_385] : memref<8x226xf32, #tpu.memory_space<vmem>>, vector<8x196xf32>
    %348 = vector.broadcast %345 : vector<1x196xf32> to vector<8x196xf32>
    %349 = arith.mulf %347, %348 : vector<8x196xf32>
    %c0_386 = arith.constant 0 : index
    %c0_387 = arith.constant 0 : index
    %350 = vector.load %arg18[%c0_386, %c0_387] : memref<72x784xf32, #tpu.memory_space<vmem>>, vector<8x196xf32>
    tpu.vector_store %arg18[%c0_386, %c0_387], %349 {strides = array<i32>} : memref<72x784xf32, #tpu.memory_space<vmem>>, vector<8x196xf32>,
    %c0_388 = arith.constant 0 : index
    %c1_389 = arith.constant 1 : index
    %351 = vector.load %arg17[%c0_388, %c1_389] : memref<8x226xf32, #tpu.memory_space<vmem>>, vector<8x196xf32>
    %c8_390 = arith.constant 8 : index
    %c0_391 = arith.constant 0 : index
    %352 = vector.load %arg18[%c8_390, %c0_391] : memref<72x784xf32, #tpu.memory_space<vmem>>, vector<8x196xf32>
    tpu.vector_store %arg18[%c8_390, %c0_391], %351 {strides = array<i32>} : memref<72x784xf32, #tpu.memory_space<vmem>>, vector<8x196xf32>,
    %c0_392 = arith.constant 0 : index
    %c2_393 = arith.constant 2 : index
    %353 = vector.load %arg17[%c0_392, %c2_393] : memref<8x226xf32, #tpu.memory_space<vmem>>, vector<8x196xf32>
    %354 = vector.broadcast %346 : vector<1x196xf32> to vector<8x196xf32>
    %355 = arith.mulf %353, %354 : vector<8x196xf32>
    %c16_394 = arith.constant 16 : index
    %c0_395 = arith.constant 0 : index
    %356 = vector.load %arg18[%c16_394, %c0_395] : memref<72x784xf32, #tpu.memory_space<vmem>>, vector<8x196xf32>
    tpu.vector_store %arg18[%c16_394, %c0_395], %355 {strides = array<i32>} : memref<72x784xf32, #tpu.memory_space<vmem>>, vector<8x196xf32>,
    %c0_396 = arith.constant 0 : index
    %c14_397 = arith.constant 14 : index
    %357 = vector.load %arg17[%c0_396, %c14_397] : memref<8x226xf32, #tpu.memory_space<vmem>>, vector<8x196xf32>
    %358 = vector.broadcast %345 : vector<1x196xf32> to vector<8x196xf32>
    %359 = arith.mulf %357, %358 : vector<8x196xf32>
    %c24_398 = arith.constant 24 : index
    %c0_399 = arith.constant 0 : index
    %360 = vector.load %arg18[%c24_398, %c0_399] : memref<72x784xf32, #tpu.memory_space<vmem>>, vector<8x196xf32>
    tpu.vector_store %arg18[%c24_398, %c0_399], %359 {strides = array<i32>} : memref<72x784xf32, #tpu.memory_space<vmem>>, vector<8x196xf32>,
    %c0_400 = arith.constant 0 : index
    %c15_401 = arith.constant 15 : index
    %361 = vector.load %arg17[%c0_400, %c15_401] : memref<8x226xf32, #tpu.memory_space<vmem>>, vector<8x196xf32>
    %c32_402 = arith.constant 32 : index
    %c0_403 = arith.constant 0 : index
    %362 = vector.load %arg18[%c32_402, %c0_403] : memref<72x784xf32, #tpu.memory_space<vmem>>, vector<8x196xf32>
    tpu.vector_store %arg18[%c32_402, %c0_403], %361 {strides = array<i32>} : memref<72x784xf32, #tpu.memory_space<vmem>>, vector<8x196xf32>,
    %c0_404 = arith.constant 0 : index
    %c16_405 = arith.constant 16 : index
    %363 = vector.load %arg17[%c0_404, %c16_405] : memref<8x226xf32, #tpu.memory_space<vmem>>, vector<8x196xf32>
    %364 = vector.broadcast %346 : vector<1x196xf32> to vector<8x196xf32>
    %365 = arith.mulf %363, %364 : vector<8x196xf32>
    %c40_406 = arith.constant 40 : index
    %c0_407 = arith.constant 0 : index
    %366 = vector.load %arg18[%c40_406, %c0_407] : memref<72x784xf32, #tpu.memory_space<vmem>>, vector<8x196xf32>
    tpu.vector_store %arg18[%c40_406, %c0_407], %365 {strides = array<i32>} : memref<72x784xf32, #tpu.memory_space<vmem>>, vector<8x196xf32>,
    %c0_408 = arith.constant 0 : index
    %c28_409 = arith.constant 28 : index
    %367 = vector.load %arg17[%c0_408, %c28_409] : memref<8x226xf32, #tpu.memory_space<vmem>>, vector<8x196xf32>
    %368 = vector.broadcast %345 : vector<1x196xf32> to vector<8x196xf32>
    %369 = arith.mulf %367, %368 : vector<8x196xf32>
    %c48_410 = arith.constant 48 : index
    %c0_411 = arith.constant 0 : index
    %370 = vector.load %arg18[%c48_410, %c0_411] : memref<72x784xf32, #tpu.memory_space<vmem>>, vector<8x196xf32>
    tpu.vector_store %arg18[%c48_410, %c0_411], %369 {strides = array<i32>} : memref<72x784xf32, #tpu.memory_space<vmem>>, vector<8x196xf32>,
    %c0_412 = arith.constant 0 : index
    %c29_413 = arith.constant 29 : index
    %371 = vector.load %arg17[%c0_412, %c29_413] : memref<8x226xf32, #tpu.memory_space<vmem>>, vector<8x196xf32>
    %c56_414 = arith.constant 56 : index
    %c0_415 = arith.constant 0 : index
    %372 = vector.load %arg18[%c56_414, %c0_415] : memref<72x784xf32, #tpu.memory_space<vmem>>, vector<8x196xf32>
    tpu.vector_store %arg18[%c56_414, %c0_415], %371 {strides = array<i32>} : memref<72x784xf32, #tpu.memory_space<vmem>>, vector<8x196xf32>,
    %c0_416 = arith.constant 0 : index
    %c30_417 = arith.constant 30 : index
    %373 = vector.load %arg17[%c0_416, %c30_417] : memref<8x226xf32, #tpu.memory_space<vmem>>, vector<8x196xf32>
    %374 = vector.broadcast %346 : vector<1x196xf32> to vector<8x196xf32>
    %375 = arith.mulf %373, %374 : vector<8x196xf32>
    %c64_418 = arith.constant 64 : index
    %c0_419 = arith.constant 0 : index
    %376 = vector.load %arg18[%c64_418, %c0_419] : memref<72x784xf32, #tpu.memory_space<vmem>>, vector<8x196xf32>
    tpu.vector_store %arg18[%c64_418, %c0_419], %375 {strides = array<i32>} : memref<72x784xf32, #tpu.memory_space<vmem>>, vector<8x196xf32>,
    %c0_420 = arith.constant 0 : index
    %c0_421 = arith.constant 0 : index
    %377 = vector.load %arg18[%c0_420, %c0_421] : memref<72x784xf32, #tpu.memory_space<vmem>>, vector<72x196xf32>
    %378 = arith.truncf %377 : vector<72x196xf32> to vector<72x196xbf16>
    %c0_422 = arith.constant 0 : index
    %c0_423 = arith.constant 0 : index
    %379 = vector.load %arg8[%c0_422, %c0_423] : memref<8x72xbf16, #tpu.memory_space<vmem>>, vector<8x72xbf16>
    %cst_424 = arith.constant dense<0.000000e+00> : vector<8x196xf32>
    %380 = tpu.matmul %379, %378, %cst_424 {dimension_numbers = #tpu.dot_dimension_numbers<[1], [0], [0], [1], [0, 0, 1, 1], [], []>} : vector<8x72xbf16>, vector<72x196xbf16>, vector<8x196xf32> -> vector<8x196xf32>
    %c0_425 = arith.constant 0 : index
    %c0_426 = arith.constant 0 : index
    %381 = vector.load %arg9[%c0_425, %c0_426] : memref<8x1xf32, #tpu.memory_space<vmem>>, vector<8x1xf32>
    %382 = vector.broadcast %381 : vector<8x1xf32> to vector<8x196xf32>
    %383 = arith.addf %380, %382 : vector<8x196xf32>
    %cst_427 = arith.constant 0.000000e+00 : f32
    %384 = vector.broadcast %cst_427 : f32 to vector<8x196xf32>
    %385 = arith.maximumf %383, %384 : vector<8x196xf32>
    %c0_428 = arith.constant 0 : index
    %c15_429 = arith.constant 15 : index
    %386 = vector.load %arg17[%c0_428, %c15_429] : memref<8x226xf32, #tpu.memory_space<vmem>>, vector<8x196xf32>
    tpu.vector_store %arg17[%c0_428, %c15_429], %385 {strides = array<i32>} : memref<8x226xf32, #tpu.memory_space<vmem>>, vector<8x196xf32>,
    %c0_430 = arith.constant 0 : index
    %c16_431 = arith.constant 16 : index
    %387 = vector.load %arg17[%c0_430, %c16_431] : memref<8x226xf32, #tpu.memory_space<vmem>>, vector<8x196xf32>
    %388 = arith.maximumf %385, %387 : vector<8x196xf32>
    %c0_432 = arith.constant 0 : index
    %c15_433 = arith.constant 15 : index
    %389 = vector.load %arg17[%c0_432, %c15_433] : memref<8x226xf32, #tpu.memory_space<vmem>>, vector<8x196xf32>
    tpu.vector_store %arg17[%c0_432, %c15_433], %388 {strides = array<i32>} : memref<8x226xf32, #tpu.memory_space<vmem>>, vector<8x196xf32>,
    %c0_434 = arith.constant 0 : index
    %c29_435 = arith.constant 29 : index
    %390 = vector.load %arg17[%c0_434, %c29_435] : memref<8x226xf32, #tpu.memory_space<vmem>>, vector<8x196xf32>
    %391 = arith.maximumf %388, %390 : vector<8x196xf32>
    %392 = vector.extract_strided_slice %391 {offsets = [0, 0], sizes = [1, 196], strides = [1, 1]} : vector<8x196xf32> to vector<1x196xf32>
    %c1_436 = arith.constant 1 : index
    %c0_437 = arith.constant 0 : index
    %393 = vector.load %arg19[%c1_436, %c0_437] : memref<2x1568xf32, #tpu.memory_space<vmem>>, vector<1x196xf32>
    tpu.vector_store %arg19[%c1_436, %c0_437], %392 {strides = array<i32>} : memref<2x1568xf32, #tpu.memory_space<vmem>>, vector<1x196xf32>,
    %394 = vector.extract_strided_slice %391 {offsets = [1, 0], sizes = [1, 196], strides = [1, 1]} : vector<8x196xf32> to vector<1x196xf32>
    %c1_438 = arith.constant 1 : index
    %c196_439 = arith.constant 196 : index
    %395 = vector.load %arg19[%c1_438, %c196_439] : memref<2x1568xf32, #tpu.memory_space<vmem>>, vector<1x196xf32>
    tpu.vector_store %arg19[%c1_438, %c196_439], %394 {strides = array<i32>} : memref<2x1568xf32, #tpu.memory_space<vmem>>, vector<1x196xf32>,
    %396 = vector.extract_strided_slice %391 {offsets = [2, 0], sizes = [1, 196], strides = [1, 1]} : vector<8x196xf32> to vector<1x196xf32>
    %c1_440 = arith.constant 1 : index
    %c392_441 = arith.constant 392 : index
    %397 = vector.load %arg19[%c1_440, %c392_441] : memref<2x1568xf32, #tpu.memory_space<vmem>>, vector<1x196xf32>
    tpu.vector_store %arg19[%c1_440, %c392_441], %396 {strides = array<i32>} : memref<2x1568xf32, #tpu.memory_space<vmem>>, vector<1x196xf32>,
    %398 = vector.extract_strided_slice %391 {offsets = [3, 0], sizes = [1, 196], strides = [1, 1]} : vector<8x196xf32> to vector<1x196xf32>
    %c1_442 = arith.constant 1 : index
    %c588_443 = arith.constant 588 : index
    %399 = vector.load %arg19[%c1_442, %c588_443] : memref<2x1568xf32, #tpu.memory_space<vmem>>, vector<1x196xf32>
    tpu.vector_store %arg19[%c1_442, %c588_443], %398 {strides = array<i32>} : memref<2x1568xf32, #tpu.memory_space<vmem>>, vector<1x196xf32>,
    %400 = vector.extract_strided_slice %391 {offsets = [4, 0], sizes = [1, 196], strides = [1, 1]} : vector<8x196xf32> to vector<1x196xf32>
    %c1_444 = arith.constant 1 : index
    %c784_445 = arith.constant 784 : index
    %401 = vector.load %arg19[%c1_444, %c784_445] : memref<2x1568xf32, #tpu.memory_space<vmem>>, vector<1x196xf32>
    tpu.vector_store %arg19[%c1_444, %c784_445], %400 {strides = array<i32>} : memref<2x1568xf32, #tpu.memory_space<vmem>>, vector<1x196xf32>,
    %402 = vector.extract_strided_slice %391 {offsets = [5, 0], sizes = [1, 196], strides = [1, 1]} : vector<8x196xf32> to vector<1x196xf32>
    %c1_446 = arith.constant 1 : index
    %c980_447 = arith.constant 980 : index
    %403 = vector.load %arg19[%c1_446, %c980_447] : memref<2x1568xf32, #tpu.memory_space<vmem>>, vector<1x196xf32>
    tpu.vector_store %arg19[%c1_446, %c980_447], %402 {strides = array<i32>} : memref<2x1568xf32, #tpu.memory_space<vmem>>, vector<1x196xf32>,
    %404 = vector.extract_strided_slice %391 {offsets = [6, 0], sizes = [1, 196], strides = [1, 1]} : vector<8x196xf32> to vector<1x196xf32>
    %c1_448 = arith.constant 1 : index
    %c1176_449 = arith.constant 1176 : index
    %405 = vector.load %arg19[%c1_448, %c1176_449] : memref<2x1568xf32, #tpu.memory_space<vmem>>, vector<1x196xf32>
    tpu.vector_store %arg19[%c1_448, %c1176_449], %404 {strides = array<i32>} : memref<2x1568xf32, #tpu.memory_space<vmem>>, vector<1x196xf32>,
    %406 = vector.extract_strided_slice %391 {offsets = [7, 0], sizes = [1, 196], strides = [1, 1]} : vector<8x196xf32> to vector<1x196xf32>
    %c1_450 = arith.constant 1 : index
    %c1372_451 = arith.constant 1372 : index
    %407 = vector.load %arg19[%c1_450, %c1372_451] : memref<2x1568xf32, #tpu.memory_space<vmem>>, vector<1x196xf32>
    tpu.vector_store %arg19[%c1_450, %c1372_451], %406 {strides = array<i32>} : memref<2x1568xf32, #tpu.memory_space<vmem>>, vector<1x196xf32>,
    %c0_452 = arith.constant 0 : index
    %c0_453 = arith.constant 0 : index
    %408 = vector.load %arg19[%c0_452, %c0_453] : memref<2x1568xf32, #tpu.memory_space<vmem>>, vector<2x1568xf32>
    %409 = arith.truncf %408 : vector<2x1568xf32> to vector<2x1568xbf16>
    %c0_454 = arith.constant 0 : index
    %c0_455 = arith.constant 0 : index
    %410 = vector.load %arg10[%c0_454, %c0_455] : memref<1568x10xbf16, #tpu.memory_space<vmem>>, vector<1568x10xbf16>
    %cst_456 = arith.constant dense<0.000000e+00> : vector<2x10xf32>
    %411 = tpu.matmul %409, %410, %cst_456 {dimension_numbers = #tpu.dot_dimension_numbers<[1], [0], [0], [1], [0, 0, 1, 1], [], []>} : vector<2x1568xbf16>, vector<1568x10xbf16>, vector<2x10xf32> -> vector<2x10xf32>
    %c0_457 = arith.constant 0 : index
    %c0_458 = arith.constant 0 : index
    %412 = vector.load %arg11[%c0_457, %c0_458] : memref<1x10xf32, #tpu.memory_space<vmem>>, vector<1x10xf32>
    %413 = vector.broadcast %412 : vector<1x10xf32> to vector<2x10xf32>
    %414 = arith.addf %411, %413 : vector<2x10xf32>
    %c0_459 = arith.constant 0 : index
    %c0_460 = arith.constant 0 : index
    %415 = vector.load %arg15[%c0_459, %c0_460] : memref<2x10xf32, #tpu.memory_space<vmem>>, vector<2x10xf32>
    tpu.vector_store %arg15[%c0_459, %c0_460], %414 {strides = array<i32>} : memref<2x10xf32, #tpu.memory_space<vmem>>, vector<2x10xf32>,
    return
  }
  func.func @transform_0(%arg0: i32) -> (i32, i32, i32) {
    %c0_i32 = arith.constant 0 : i32
    %c0_i32_0 = arith.constant 0 : i32
    %c0_i32_1 = arith.constant 0 : i32
    return %arg0, %c0_i32, %c0_i32_0 : i32, i32, i32
  }
  func.func @transform_1(%arg0: i32) -> (i32, i32) {
    %c0_i32 = arith.constant 0 : i32
    %c0_i32_0 = arith.constant 0 : i32
    %c0_i32_1 = arith.constant 0 : i32
    return %c0_i32, %c0_i32_0 : i32, i32
  }
  func.func @transform_2(%arg0: i32) -> (i32, i32) {
    %c0_i32 = arith.constant 0 : i32
    %c0_i32_0 = arith.constant 0 : i32
    %c0_i32_1 = arith.constant 0 : i32
    return %c0_i32, %c0_i32_0 : i32, i32
  }
  func.func @transform_3(%arg0: i32) -> (i32, i32) {
    %c0_i32 = arith.constant 0 : i32
    %c0_i32_0 = arith.constant 0 : i32
    %c0_i32_1 = arith.constant 0 : i32
    return %c0_i32, %c0_i32_0 : i32, i32
  }
  func.func @transform_4(%arg0: i32) -> (i32, i32) {
    %c0_i32 = arith.constant 0 : i32
    %c0_i32_0 = arith.constant 0 : i32
    %c0_i32_1 = arith.constant 0 : i32
    return %c0_i32, %c0_i32_0 : i32, i32
  }
  func.func @transform_5(%arg0: i32) -> (i32, i32) {
    %c0_i32 = arith.constant 0 : i32
    %c0_i32_0 = arith.constant 0 : i32
    %c0_i32_1 = arith.constant 0 : i32
    return %c0_i32, %c0_i32_0 : i32, i32
  }
  func.func @transform_6(%arg0: i32) -> (i32, i32) {
    %c0_i32 = arith.constant 0 : i32
    %c0_i32_0 = arith.constant 0 : i32
    %c0_i32_1 = arith.constant 0 : i32
    return %c0_i32, %c0_i32_0 : i32, i32
  }
  func.func @transform_7(%arg0: i32) -> (i32, i32) {
    %c0_i32 = arith.constant 0 : i32
    %c0_i32_0 = arith.constant 0 : i32
    %c0_i32_1 = arith.constant 0 : i32
    return %c0_i32, %c0_i32_0 : i32, i32
  }
  func.func @transform_8(%arg0: i32) -> (i32, i32) {
    %c0_i32 = arith.constant 0 : i32
    %c0_i32_0 = arith.constant 0 : i32
    %c0_i32_1 = arith.constant 0 : i32
    return %c0_i32, %c0_i32_0 : i32, i32
  }
  func.func @transform_9(%arg0: i32) -> (i32, i32) {
    %c0_i32 = arith.constant 0 : i32
    %c0_i32_0 = arith.constant 0 : i32
    %c0_i32_1 = arith.constant 0 : i32
    return %c0_i32, %c0_i32_0 : i32, i32
  }
  func.func @transform_10(%arg0: i32) -> (i32, i32) {
    %c0_i32 = arith.constant 0 : i32
    %c0_i32_0 = arith.constant 0 : i32
    %c0_i32_1 = arith.constant 0 : i32
    return %c0_i32, %c0_i32_0 : i32, i32
  }
  func.func @transform_11(%arg0: i32) -> (i32, i32) {
    %c0_i32 = arith.constant 0 : i32
    %c0_i32_0 = arith.constant 0 : i32
    %c0_i32_1 = arith.constant 0 : i32
    return %c0_i32, %c0_i32_0 : i32, i32
  }
  func.func @transform_12(%arg0: i32) -> (i32, i32) {
    %c0_i32 = arith.constant 0 : i32
    %c0_i32_0 = arith.constant 0 : i32
    %c0_i32_1 = arith.constant 0 : i32
    return %c0_i32, %c0_i32_0 : i32, i32
  }
  func.func @transform_13(%arg0: i32) -> (i32, i32) {
    %c0_i32 = arith.constant 0 : i32
    %c0_i32_0 = arith.constant 0 : i32
    %c0_i32_1 = arith.constant 0 : i32
    return %c0_i32, %c0_i32_0 : i32, i32
  }
  func.func @transform_14(%arg0: i32) -> (i32, i32) {
    %c0_i32 = arith.constant 0 : i32
    %c0_i32_0 = arith.constant 0 : i32
    return %arg0, %c0_i32 : i32, i32
  }
}

</mosaic_0001>

<llo_original>
// kernel: cnn_forward.1
$region0: #{cnn_forward.1}
  #allocation0 [shape = 'u32[]', space=smem, size = 0x4, offset = 0x4, fixed_abs, tag = 'smem constant byte address 0x4 - core index']
  #allocation1 [shape = 'u32[144,128]{1,0:T(1,128)}', space=vmem, size = 0x12000, scoped, tag = 'internal scratch']
  #allocation2 [shape = 'f32[8,842]{1,0:T(8,128)}', space=vmem, size = 0x7000, scoped, tag = 'scratch operand']
  #allocation3 [shape = 'f32[8,226]{1,0:T(8,128)}', space=vmem, size = 0x2000, scoped, tag = 'scratch operand']
  #allocation4 [shape = 'f32[72,784]{1,0:T(8,128)}', space=vmem, size = 0x3f000, scoped, tag = 'scratch operand']
  #allocation5 [shape = 'f32[2,1568]{1,0:T(2,128)}', space=vmem, size = 0x3400, scoped, tag = 'scratch operand']
  %s0 = inlined_call_operand.vmem [shape: f32[2,3,784], index: 0, kind: input, shape index: {}]
  %s1 = inlined_call_operand.vmem [shape: bf16[8,27], index: 1, kind: input, shape index: {}]
  %s2 = inlined_call_operand.vmem [shape: f32[8,1], index: 2, kind: input, shape index: {}]
  %s3 = inlined_call_operand.vmem [shape: bf16[8,72], index: 3, kind: input, shape index: {}]
  %s4 = inlined_call_operand.vmem [shape: f32[8,1], index: 4, kind: input, shape index: {}]
  %s5 = inlined_call_operand.vmem [shape: bf16[8,72], index: 5, kind: input, shape index: {}]
  %s6 = inlined_call_operand.vmem [shape: f32[8,1], index: 6, kind: input, shape index: {}]
  %s7 = inlined_call_operand.vmem [shape: bf16[8,72], index: 7, kind: input, shape index: {}]
  %s8 = inlined_call_operand.vmem [shape: f32[8,1], index: 8, kind: input, shape index: {}]
  %s9 = inlined_call_operand.vmem [shape: bf16[1568,10], index: 9, kind: input, shape index: {}]
  %s10 = inlined_call_operand.vmem [shape: f32[1,10], index: 10, kind: input, shape index: {}]
  %s11 = inlined_call_operand.vmem [shape: bf16[784,196], index: 11, kind: input, shape index: {}]
  %s12 = inlined_call_operand.vmem [shape: f32[2,784], index: 12, kind: input, shape index: {}]
  %s13 = inlined_call_operand.vmem [shape: f32[2,196], index: 13, kind: input, shape index: {}]
  %s14 = inlined_call_operand.hbm [shape: f32[2,10], index: 14, kind: output, shape index: {}]
  %s15 = sld [smem:[#allocation0]]
  $region66: #{cnn_forward.1} parent=0
    _
  %s17 = ssub.s32 1, %s15
  %s18 = scalar_select 0, %s17, %s15
  $region1: #{cnn_forward.1} parent=0
    #allocation6 [shape = 'u8[1024]{0}', space=vmem, size = 0x400, scoped, tag = 'output window, operand 0, single buffered']
    #allocation7 [shape = 's32[1]{0}', space=sflag, size = 0x4, scoped, tag = 'scoped memory for cnn_forward.1']
    %19 = vsyncpa [#allocation7], 0
    // Predicated region
    $region2: #{cnn_forward.1} parent=1 // pred_check
      _
    $region3: #{cnn_forward.1} parent=1 // pred_check_branch
      %21 = sbr.rel (0) target = $region5
    $region4: #{cnn_forward.1} parent=1 // pred_region
      _
    $region5: #{cnn_forward.1} parent=1 // pred_fallthru
      _
    // Predicated region
    $region6: #{cnn_forward.1} parent=1 // pred_check
      _
    $region7: #{cnn_forward.1} parent=1 // pred_check_branch
      %23 = sbr.rel (0) target = $region9
    $region8: #{cnn_forward.1} parent=1 // pred_region
      _
    $region9: #{cnn_forward.1} parent=1 // pred_fallthru
      _
    // Predicated region
    $region10: #{cnn_forward.1} parent=1 // pred_check
      _
    $region11: #{cnn_forward.1} parent=1 // pred_check_branch
      %25 = sbr.rel (0) target = $region13
    $region12: #{cnn_forward.1} parent=1 // pred_region
      _
    $region13: #{cnn_forward.1} parent=1 // pred_fallthru
      _
    // Predicated region
    $region14: #{cnn_forward.1} parent=1 // pred_check
      _
    $region15: #{cnn_forward.1} parent=1 // pred_check_branch
      %27 = sbr.rel (0) target = $region17
    $region16: #{cnn_forward.1} parent=1 // pred_region
      _
    $region17: #{cnn_forward.1} parent=1 // pred_fallthru
      _
    // Predicated region
    $region18: #{cnn_forward.1} parent=1 // pred_check
      _
    $region19: #{cnn_forward.1} parent=1 // pred_check_branch
      %29 = sbr.rel (0) target = $region21
    $region20: #{cnn_forward.1} parent=1 // pred_region
      _
    $region21: #{cnn_forward.1} parent=1 // pred_fallthru
      _
    // Predicated region
    $region22: #{cnn_forward.1} parent=1 // pred_check
      _
    $region23: #{cnn_forward.1} parent=1 // pred_check_branch
      %31 = sbr.rel (0) target = $region25
    $region24: #{cnn_forward.1} parent=1 // pred_region
      _
    $region25: #{cnn_forward.1} parent=1 // pred_fallthru
      _
    // Predicated region
    $region26: #{cnn_forward.1} parent=1 // pred_check
      _
    $region27: #{cnn_forward.1} parent=1 // pred_check_branch
      %33 = sbr.rel (0) target = $region29
    $region28: #{cnn_forward.1} parent=1 // pred_region
      _
    $region29: #{cnn_forward.1} parent=1 // pred_fallthru
      _
    // Predicated region
    $region30: #{cnn_forward.1} parent=1 // pred_check
      _
    $region31: #{cnn_forward.1} parent=1 // pred_check_branch
      %35 = sbr.rel (0) target = $region33
    $region32: #{cnn_forward.1} parent=1 // pred_region
      _
    $region33: #{cnn_forward.1} parent=1 // pred_fallthru
      _
    // Predicated region
    $region34: #{cnn_forward.1} parent=1 // pred_check
      _
    $region35: #{cnn_forward.1} parent=1 // pred_check_branch
      %37 = sbr.rel (0) target = $region37
    $region36: #{cnn_forward.1} parent=1 // pred_region
      _
    $region37: #{cnn_forward.1} parent=1 // pred_fallthru
      _
    // Predicated region
    $region38: #{cnn_forward.1} parent=1 // pred_check
      _
    $region39: #{cnn_forward.1} parent=1 // pred_check_branch
      %39 = sbr.rel (0) target = $region41
    $region40: #{cnn_forward.1} parent=1 // pred_region
      _
    $region41: #{cnn_forward.1} parent=1 // pred_fallthru
      _
    // Predicated region
    $region42: #{cnn_forward.1} parent=1 // pred_check
      _
    $region43: #{cnn_forward.1} parent=1 // pred_check_branch
      %41 = sbr.rel (0) target = $region45
    $region44: #{cnn_forward.1} parent=1 // pred_region
      _
    $region45: #{cnn_forward.1} parent=1 // pred_fallthru
      _
    // Predicated region
    $region46: #{cnn_forward.1} parent=1 // pred_check
      _
    $region47: #{cnn_forward.1} parent=1 // pred_check_branch
      %43 = sbr.rel (0) target = $region49
    $region48: #{cnn_forward.1} parent=1 // pred_region
      _
    $region49: #{cnn_forward.1} parent=1 // pred_fallthru
      _
    // Predicated region
    $region50: #{cnn_forward.1} parent=1 // pred_check
      _
    $region51: #{cnn_forward.1} parent=1 // pred_check_branch
      %45 = sbr.rel (0) target = $region53
    $region52: #{cnn_forward.1} parent=1 // pred_region
      _
    $region53: #{cnn_forward.1} parent=1 // pred_fallthru
      _
    // Predicated region
    $region54: #{cnn_forward.1} parent=1 // pred_check
      _
    $region55: #{cnn_forward.1} parent=1 // pred_check_branch
      %47 = sbr.rel (0) target = $region57
    $region56: #{cnn_forward.1} parent=1 // pred_region
      _
    $region57: #{cnn_forward.1} parent=1 // pred_fallthru
      _
    %v49 = vld [vmem:[%s0] sm:$0x77]
    %v50 = vld [vmem:[%s0 + $0x8] sm:$0x77]
    %v51 = vld [vmem:[%s0 + $0x10] sm:$0x77]
    %v52 = vld [vmem:[%s0 + $0x18] sm:$0x7]
    %vm53 = vcmask 236544
    %54 = vst.msk [vmem:[#allocation2] sm:$0xff] %vm53, 0.0
    %vm55 = vcmask 605544
    %56 = vst.msk [vmem:[#allocation2 + $0x30] sm:$0xff] %vm55, 0.0
    %v61 = vcombine.high %v49, %v49
    %v62 = vcombine.high %v50, %v50
    %v63 = vcombine.high %v51, %v51
    %64 = vrot.lane.b32.xlu0 %v49, 29
    %v65 = vpop.permute.xlu0 %64
    %66 = vrot.lane.b32.xlu0 %v61, 29
    %v67 = vpop.permute.xlu0 %66
    %68 = vrot.lane.b32.xlu0 %v50, 29
    %v69 = vpop.permute.xlu0 %68
    %70 = vrot.lane.b32.xlu0 %v62, 29
    %v71 = vpop.permute.xlu0 %70
    %72 = vrot.lane.b32.xlu0 %v51, 29
    %v73 = vpop.permute.xlu0 %72
    %74 = vrot.lane.b32.xlu0 %v63, 29
    %v75 = vpop.permute.xlu0 %74
    %76 = vrot.lane.b32.xlu0 %v52, 29
    %v77 = vpop.permute.xlu0 %76
    %v78 = vsel %vm53, %v65, %v67
    %v79 = vsel %vm53, %v67, %v69
    %v80 = vsel %vm53, %v69, %v71
    %v81 = vsel %vm53, %v71, %v73
    %v82 = vsel %vm53, %v73, %v75
    %v83 = vsel %vm53, %v75, %v77
    %vm91 = vcmask 1042664
    %92 = vst.msk [vmem:[#allocation2] sm:$0x7] %vm91, %v65
    %93 = vst [vmem:[#allocation2 + $0x8] sm:$0x7] %v78
    %94 = vst [vmem:[#allocation2 + $0x10] sm:$0x7] %v79
    %95 = vst [vmem:[#allocation2 + $0x18] sm:$0x7] %v80
    %96 = vst [vmem:[#allocation2 + $0x20] sm:$0x7] %v81
    %97 = vst [vmem:[#allocation2 + $0x28] sm:$0x7] %v82
    %vm98 = vcmask 362496
    %99 = vst.msk [vmem:[#allocation2 + $0x30] sm:$0x7] %vm98, %v83
    %v100 = vld [vmem:[%s12] ss:$2 sm:$0x7f]
    %s101 = scalar_lea.vmem %s12, 1
    %v102 = vld [vmem:[%s101] ss:$2 sm:$0x7f]
    %v103 = vld [vmem:[#allocation2] sm:$0x7]
    %v104 = vld [vmem:[#allocation2 + $0x8] sm:$0x7]
    %v105 = vld [vmem:[#allocation2 + $0x10] sm:$0x7]
    %v106 = vld [vmem:[#allocation2 + $0x18] sm:$0x7]
    %v107 = vld [vmem:[#allocation2 + $0x20] sm:$0x7]
    %v108 = vld [vmem:[#allocation2 + $0x28] sm:$0x7]
    %v109 = vld [vmem:[#allocation2 + $0x30] sm:$0x7]
    %v111 = vlaneseq
    %v112 = vshrl.u32 %v111, 7
    %v113 = vsub.s32 0, %v112
    %v114 = vrot.slane %v100, %v113
    %v115 = vlaneseq
    %v116 = vshrl.u32 %v115, 7
    %v117 = vsub.s32 1, %v116
    %v118 = vrot.slane %v100, %v117
    %v119 = vlaneseq
    %v120 = vshrl.u32 %v119, 7
    %v121 = vsub.s32 2, %v120
    %v122 = vrot.slane %v100, %v121
    %v123 = vlaneseq
    %v124 = vshrl.u32 %v123, 7
    %v125 = vsub.s32 3, %v124
    %v126 = vrot.slane %v100, %v125
    %v127 = vlaneseq
    %v128 = vshrl.u32 %v127, 7
    %v129 = vsub.s32 4, %v128
    %v130 = vrot.slane %v100, %v129
    %v131 = vlaneseq
    %v132 = vshrl.u32 %v131, 7
    %v133 = vsub.s32 5, %v132
    %v134 = vrot.slane %v100, %v133
    %v135 = vlaneseq
    %v136 = vshrl.u32 %v135, 7
    %v137 = vsub.s32 6, %v136
    %v138 = vrot.slane %v100, %v137
    %v146 = vmul.f32 %v103, %v114
    %v147 = vmul.f32 %v104, %v118
    %v148 = vmul.f32 %v105, %v122
    %v149 = vmul.f32 %v106, %v126
    %v150 = vmul.f32 %v107, %v130
    %v151 = vmul.f32 %v108, %v134
    %v152 = vmul.f32 %v109, %v138
    %153 = vst [vmem:[#allocation4] sm:$0x7] %v146
    %154 = vst [vmem:[#allocation4 + $0x8] sm:$0x7] %v147
    %155 = vst [vmem:[#allocation4 + $0x10] sm:$0x7] %v148
    %156 = vst [vmem:[#allocation4 + $0x18] sm:$0x7] %v149
    %157 = vst [vmem:[#allocation4 + $0x20] sm:$0x7] %v150
    %158 = vst [vmem:[#allocation4 + $0x28] sm:$0x7] %v151
    %vm159 = vcmask 124928
    %160 = vst.msk [vmem:[#allocation4 + $0x30] sm:$0x7] %vm159, %v152
    %v161 = vld [vmem:[#allocation2] sm:$0x7]
    %v162 = vld [vmem:[#allocation2 + $0x8] sm:$0x7]
    %v163 = vld [vmem:[#allocation2 + $0x10] sm:$0x7]
    %v164 = vld [vmem:[#allocation2 + $0x18] sm:$0x7]
    %v165 = vld [vmem:[#allocation2 + $0x20] sm:$0x7]
    %v166 = vld [vmem:[#allocation2 + $0x28] sm:$0x7]
    %v167 = vld [vmem:[#allocation2 + $0x30] sm:$0x7]
    %v175 = vrot.slane %v161, 5
    %v176 = vrot.slane %v162, 5
    %v177 = vrot.slane %v163, 5
    %v178 = vrot.slane %v164, 5
    %v179 = vrot.slane %v165, 5
    %v180 = vrot.slane %v166, 5
    %v181 = vrot.slane %v167, 5
    %182 = vrot.lane.b32.xlu0 %v175, 127
    %v183 = vpop.permute.xlu0 %182
    %184 = vrot.lane.b32.xlu0 %v176, 127
    %v185 = vpop.permute.xlu0 %184
    %186 = vrot.lane.b32.xlu0 %v177, 127
    %v187 = vpop.permute.xlu0 %186
    %188 = vrot.lane.b32.xlu0 %v178, 127
    %v189 = vpop.permute.xlu0 %188
    %190 = vrot.lane.b32.xlu0 %v179, 127
    %v191 = vpop.permute.xlu0 %190
    %192 = vrot.lane.b32.xlu0 %v180, 127
    %v193 = vpop.permute.xlu0 %192
    %194 = vrot.lane.b32.xlu0 %v181, 127
    %v195 = vpop.permute.xlu0 %194
    %vm196 = vcmask 1039360
    %v197 = vsel %vm196, %v183, %v185
    %v198 = vsel %vm196, %v185, %v187
    %v199 = vsel %vm196, %v187, %v189
    %v200 = vsel %vm196, %v189, %v191
    %v201 = vsel %vm196, %v191, %v193
    %v202 = vsel %vm196, %v193, %v195
    %210 = vst [vmem:[#allocation4] sm:$0x38] %v197
    %211 = vst [vmem:[#allocation4 + $0x8] sm:$0x38] %v198
    %212 = vst [vmem:[#allocation4 + $0x10] sm:$0x38] %v199
    %213 = vst [vmem:[#allocation4 + $0x18] sm:$0x38] %v200
    %214 = vst [vmem:[#allocation4 + $0x20] sm:$0x38] %v201
    %215 = vst [vmem:[#allocation4 + $0x28] sm:$0x38] %v202
    %vm216 = vcmask 128003
    %217 = vst.msk [vmem:[#allocation4 + $0x30] sm:$0x38] %vm216, %v195
    %v218 = vld [vmem:[#allocation2] sm:$0x7]
    %v219 = vld [vmem:[#allocation2 + $0x8] sm:$0x7]
    %v220 = vld [vmem:[#allocation2 + $0x10] sm:$0x7]
    %v221 = vld [vmem:[#allocation2 + $0x18] sm:$0x7]
    %v222 = vld [vmem:[#allocation2 + $0x20] sm:$0x7]
    %v223 = vld [vmem:[#allocation2 + $0x28] sm:$0x7]
    %v224 = vld [vmem:[#allocation2 + $0x30] sm:$0x7]
    %v226 = vlaneseq
    %v227 = vshrl.u32 %v226, 7
    %v228 = vsub.s32 0, %v227
    %v229 = vrot.slane %v102, %v228
    %v230 = vlaneseq
    %v231 = vshrl.u32 %v230, 7
    %v232 = vsub.s32 1, %v231
    %v233 = vrot.slane %v102, %v232
    %v234 = vlaneseq
    %v235 = vshrl.u32 %v234, 7
    %v236 = vsub.s32 2, %v235
    %v237 = vrot.slane %v102, %v236
    %v238 = vlaneseq
    %v239 = vshrl.u32 %v238, 7
    %v240 = vsub.s32 3, %v239
    %v241 = vrot.slane %v102, %v240
    %v242 = vlaneseq
    %v243 = vshrl.u32 %v242, 7
    %v244 = vsub.s32 4, %v243
    %v245 = vrot.slane %v102, %v244
    %v246 = vlaneseq
    %v247 = vshrl.u32 %v246, 7
    %v248 = vsub.s32 5, %v247
    %v249 = vrot.slane %v102, %v248
    %v250 = vlaneseq
    %v251 = vshrl.u32 %v250, 7
    %v252 = vsub.s32 6, %v251
    %v253 = vrot.slane %v102, %v252
    %254 = vrot.lane.b32.xlu0 %v229, 2
    %v255 = vpop.permute.xlu0 %254
    %256 = vrot.lane.b32.xlu0 %v233, 2
    %v257 = vpop.permute.xlu0 %256
    %258 = vrot.lane.b32.xlu0 %v237, 2
    %v259 = vpop.permute.xlu0 %258
    %260 = vrot.lane.b32.xlu0 %v241, 2
    %v261 = vpop.permute.xlu0 %260
    %262 = vrot.lane.b32.xlu0 %v245, 2
    %v263 = vpop.permute.xlu0 %262
    %264 = vrot.lane.b32.xlu0 %v249, 2
    %v265 = vpop.permute.xlu0 %264
    %266 = vrot.lane.b32.xlu0 %v253, 2
    %v267 = vpop.permute.xlu0 %266
    %vm268 = vcmask 15360
    %v269 = vsel %vm268, %v255, %v257
    %v270 = vsel %vm268, %v257, %v259
    %v271 = vsel %vm268, %v259, %v261
    %v272 = vsel %vm268, %v261, %v263
    %v273 = vsel %vm268, %v263, %v265
    %v274 = vsel %vm268, %v265, %v267
    %v282 = vmul.f32 %v218, %v255
    %v283 = vmul.f32 %v219, %v269
    %v284 = vmul.f32 %v220, %v270
    %v285 = vmul.f32 %v221, %v271
    %v286 = vmul.f32 %v222, %v272
    %v287 = vmul.f32 %v223, %v273
    %v288 = vmul.f32 %v224, %v274
    %v296 = vrot.slane %v282, 2
    %v297 = vrot.slane %v283, 2
    %v298 = vrot.slane %v284, 2
    %v299 = vrot.slane %v285, 2
    %v300 = vrot.slane %v286, 2
    %v301 = vrot.slane %v287, 2
    %v302 = vrot.slane %v288, 2
    %303 = vrot.lane.b32.xlu0 %v296, 126
    %v304 = vpop.permute.xlu0 %303
    %305 = vrot.lane.b32.xlu0 %v297, 126
    %v306 = vpop.permute.xlu0 %305
    %307 = vrot.lane.b32.xlu0 %v298, 126
    %v308 = vpop.permute.xlu0 %307
    %309 = vrot.lane.b32.xlu0 %v299, 126
    %v310 = vpop.permute.xlu0 %309
    %311 = vrot.lane.b32.xlu0 %v300, 126
    %v312 = vpop.permute.xlu0 %311
    %313 = vrot.lane.b32.xlu0 %v301, 126
    %v314 = vpop.permute.xlu0 %313
    %315 = vrot.lane.b32.xlu0 %v302, 126
    %v316 = vpop.permute.xlu0 %315
    %vm317 = vcmask 1031168
    %v318 = vsel %vm317, %v304, %v306
    %v319 = vsel %vm317, %v306, %v308
    %v320 = vsel %vm317, %v308, %v310
    %v321 = vsel %vm317, %v310, %v312
    %v322 = vsel %vm317, %v312, %v314
    %v323 = vsel %vm317, %v314, %v316
    %331 = vst [vmem:[#allocation4] sm:$0xc0] %v318
    %332 = vst [vmem:[#allocation4 + $0x8] sm:$0xc0] %v319
    %333 = vst [vmem:[#allocation4 + $0x10] sm:$0xc0] %v320
    %334 = vst [vmem:[#allocation4 + $0x18] sm:$0xc0] %v321
    %335 = vst [vmem:[#allocation4 + $0x20] sm:$0xc0] %v322
    %336 = vst [vmem:[#allocation4 + $0x28] sm:$0xc0] %v323
    %vm337 = vcmask 130054
    %338 = vst.msk [vmem:[#allocation4 + $0x30] sm:$0xc0] %vm337, %v316
    %339 = vst [vmem:[#allocation4 + $0x38] sm:$0x1] %v318
    %340 = vst [vmem:[#allocation4 + $0x40] sm:$0x1] %v319
    %341 = vst [vmem:[#allocation4 + $0x48] sm:$0x1] %v320
    %342 = vst [vmem:[#allocation4 + $0x50] sm:$0x1] %v321
    %343 = vst [vmem:[#allocation4 + $0x58] sm:$0x1] %v322
    %344 = vst [vmem:[#allocation4 + $0x60] sm:$0x1] %v323
    %vm345 = vcmask 122880
    %346 = vst.msk [vmem:[#allocation4 + $0x68] sm:$0x1] %vm345, %v316
    %v347 = vld [vmem:[#allocation2] sm:$0x7]
    %v348 = vld [vmem:[#allocation2 + $0x8] sm:$0x7]
    %v349 = vld [vmem:[#allocation2 + $0x10] sm:$0x7]
    %v350 = vld [vmem:[#allocation2 + $0x18] sm:$0x7]
    %v351 = vld [vmem:[#allocation2 + $0x20] sm:$0x7]
    %v352 = vld [vmem:[#allocation2 + $0x28] sm:$0x7]
    %v353 = vld [vmem:[#allocation2 + $0x30] sm:$0x7]
    %354 = vrot.lane.b32.xlu0 %v114, 28
    %v355 = vpop.permute.xlu0 %354
    %356 = vrot.lane.b32.xlu0 %v118, 28
    %v357 = vpop.permute.xlu0 %356
    %358 = vrot.lane.b32.xlu0 %v122, 28
    %v359 = vpop.permute.xlu0 %358
    %360 = vrot.lane.b32.xlu0 %v126, 28
    %v361 = vpop.permute.xlu0 %360
    %362 = vrot.lane.b32.xlu0 %v130, 28
    %v363 = vpop.permute.xlu0 %362
    %364 = vrot.lane.b32.xlu0 %v134, 28
    %v365 = vpop.permute.xlu0 %364
    %366 = vrot.lane.b32.xlu0 %v138, 28
    %v367 = vpop.permute.xlu0 %366
    %vm368 = vcmask 228352
    %v369 = vsel %vm368, %v355, %v357
    %v370 = vsel %vm368, %v357, %v359
    %v371 = vsel %vm368, %v359, %v361
    %v372 = vsel %vm368, %v361, %v363
    %v373 = vsel %vm368, %v363, %v365
    %v374 = vsel %vm368, %v365, %v367
    %v382 = vmul.f32 %v347, %v355
    %v383 = vmul.f32 %v348, %v369
    %v384 = vmul.f32 %v349, %v370
    %v385 = vmul.f32 %v350, %v371
    %v386 = vmul.f32 %v351, %v372
    %v387 = vmul.f32 %v352, %v373
    %v388 = vmul.f32 %v353, %v374
    %v396 = vrot.slane %v382, 7
    %v397 = vrot.slane %v383, 7
    %v398 = vrot.slane %v384, 7
    %v399 = vrot.slane %v385, 7
    %v400 = vrot.slane %v386, 7
    %v401 = vrot.slane %v387, 7
    %v402 = vrot.slane %v388, 7
    %403 = vrot.lane.b32.xlu0 %v396, 100
    %v404 = vpop.permute.xlu0 %403
    %405 = vrot.lane.b32.xlu0 %v397, 100
    %v406 = vpop.permute.xlu0 %405
    %407 = vrot.lane.b32.xlu0 %v398, 100
    %v408 = vpop.permute.xlu0 %407
    %409 = vrot.lane.b32.xlu0 %v399, 100
    %v410 = vpop.permute.xlu0 %409
    %411 = vrot.lane.b32.xlu0 %v400, 100
    %v412 = vpop.permute.xlu0 %411
    %413 = vrot.lane.b32.xlu0 %v401, 100
    %v414 = vpop.permute.xlu0 %413
    %415 = vrot.lane.b32.xlu0 %v402, 100
    %v416 = vpop.permute.xlu0 %415
    %vm417 = vcmask 818176
    %v418 = vsel %vm417, %v404, %v406
    %v419 = vsel %vm417, %v406, %v408
    %v420 = vsel %vm417, %v408, %v410
    %v421 = vsel %vm417, %v410, %v412
    %v422 = vsel %vm417, %v412, %v414
    %v423 = vsel %vm417, %v414, %v416
    %431 = vst [vmem:[#allocation4 + $0x38] sm:$0xe] %v418
    %432 = vst [vmem:[#allocation4 + $0x40] sm:$0xe] %v419
    %433 = vst [vmem:[#allocation4 + $0x48] sm:$0xe] %v420
    %434 = vst [vmem:[#allocation4 + $0x50] sm:$0xe] %v421
    %435 = vst [vmem:[#allocation4 + $0x58] sm:$0xe] %v422
    %436 = vst [vmem:[#allocation4 + $0x60] sm:$0xe] %v423
    %vm437 = vcmask 125953
    %438 = vst.msk [vmem:[#allocation4 + $0x68] sm:$0xe] %vm437, %v416
    %v439 = vld [vmem:[#allocation2] sm:$0x7]
    %v440 = vld [vmem:[#allocation2 + $0x8] sm:$0x7]
    %v441 = vld [vmem:[#allocation2 + $0x10] sm:$0x7]
    %v442 = vld [vmem:[#allocation2 + $0x18] sm:$0x7]
    %v443 = vld [vmem:[#allocation2 + $0x20] sm:$0x7]
    %v444 = vld [vmem:[#allocation2 + $0x28] sm:$0x7]
    %v445 = vld [vmem:[#allocation2 + $0x30] sm:$0x7]
    %v453 = vrot.slane %v439, 4
    %v454 = vrot.slane %v440, 4
    %v455 = vrot.slane %v441, 4
    %v456 = vrot.slane %v442, 4
    %v457 = vrot.slane %v443, 4
    %v458 = vrot.slane %v444, 4
    %v459 = vrot.slane %v445, 4
    %460 = vrot.lane.b32.xlu0 %v453, 99
    %v461 = vpop.permute.xlu0 %460
    %462 = vrot.lane.b32.xlu0 %v454, 99
    %v463 = vpop.permute.xlu0 %462
    %464 = vrot.lane.b32.xlu0 %v455, 99
    %v465 = vpop.permute.xlu0 %464
    %466 = vrot.lane.b32.xlu0 %v456, 99
    %v467 = vpop.permute.xlu0 %466
    %468 = vrot.lane.b32.xlu0 %v457, 99
    %v469 = vpop.permute.xlu0 %468
    %470 = vrot.lane.b32.xlu0 %v458, 99
    %v471 = vpop.permute.xlu0 %470
    %472 = vrot.lane.b32.xlu0 %v459, 99
    %v473 = vpop.permute.xlu0 %472
    %vm474 = vcmask 809984
    %v475 = vsel %vm474, %v461, %v463
    %v476 = vsel %vm474, %v463, %v465
    %v477 = vsel %vm474, %v465, %v467
    %v478 = vsel %vm474, %v467, %v469
    %v479 = vsel %vm474, %v469, %v471
    %v480 = vsel %vm474, %v471, %v473
    %488 = vst [vmem:[#allocation4 + $0x38] sm:$0x70] %v475
    %489 = vst [vmem:[#allocation4 + $0x40] sm:$0x70] %v476
    %490 = vst [vmem:[#allocation4 + $0x48] sm:$0x70] %v477
    %491 = vst [vmem:[#allocation4 + $0x50] sm:$0x70] %v478
    %492 = vst [vmem:[#allocation4 + $0x58] sm:$0x70] %v479
    %493 = vst [vmem:[#allocation4 + $0x60] sm:$0x70] %v480
    %vm494 = vcmask 129028
    %495 = vst.msk [vmem:[#allocation4 + $0x68] sm:$0x70] %vm494, %v473
    %v496 = vld [vmem:[#allocation2] sm:$0x7]
    %v497 = vld [vmem:[#allocation2 + $0x8] sm:$0x7]
    %v498 = vld [vmem:[#allocation2 + $0x10] sm:$0x7]
    %v499 = vld [vmem:[#allocation2 + $0x18] sm:$0x7]
    %v500 = vld [vmem:[#allocation2 + $0x20] sm:$0x7]
    %v501 = vld [vmem:[#allocation2 + $0x28] sm:$0x7]
    %v502 = vld [vmem:[#allocation2 + $0x30] sm:$0x7]
    %503 = vrot.lane.b32.xlu0 %v229, 30
    %v504 = vpop.permute.xlu0 %503
    %505 = vrot.lane.b32.xlu0 %v233, 30
    %v506 = vpop.permute.xlu0 %505
    %507 = vrot.lane.b32.xlu0 %v237, 30
    %v508 = vpop.permute.xlu0 %507
    %509 = vrot.lane.b32.xlu0 %v241, 30
    %v510 = vpop.permute.xlu0 %509
    %511 = vrot.lane.b32.xlu0 %v245, 30
    %v512 = vpop.permute.xlu0 %511
    %513 = vrot.lane.b32.xlu0 %v249, 30
    %v514 = vpop.permute.xlu0 %513
    %515 = vrot.lane.b32.xlu0 %v253, 30
    %v516 = vpop.permute.xlu0 %515
    %vm517 = vcmask 244736
    %v518 = vsel %vm517, %v504, %v506
    %v519 = vsel %vm517, %v506, %v508
    %v520 = vsel %vm517, %v508, %v510
    %v521 = vsel %vm517, %v510, %v512
    %v522 = vsel %vm517, %v512, %v514
    %v523 = vsel %vm517, %v514, %v516
    %v531 = vmul.f32 %v496, %v504
    %v532 = vmul.f32 %v497, %v518
    %v533 = vmul.f32 %v498, %v519
    %v534 = vmul.f32 %v499, %v520
    %v535 = vmul.f32 %v500, %v521
    %v536 = vmul.f32 %v501, %v522
    %v537 = vmul.f32 %v502, %v523
    %v545 = vrot.slane %v531, 1
    %v546 = vrot.slane %v532, 1
    %v547 = vrot.slane %v533, 1
    %v548 = vrot.slane %v534, 1
    %v549 = vrot.slane %v535, 1
    %v550 = vrot.slane %v536, 1
    %v551 = vrot.slane %v537, 1
    %552 = vrot.lane.b32.xlu0 %v545, 98
    %v553 = vpop.permute.xlu0 %552
    %554 = vrot.lane.b32.xlu0 %v546, 98
    %v555 = vpop.permute.xlu0 %554
    %556 = vrot.lane.b32.xlu0 %v547, 98
    %v557 = vpop.permute.xlu0 %556
    %558 = vrot.lane.b32.xlu0 %v548, 98
    %v559 = vpop.permute.xlu0 %558
    %560 = vrot.lane.b32.xlu0 %v549, 98
    %v561 = vpop.permute.xlu0 %560
    %562 = vrot.lane.b32.xlu0 %v550, 98
    %v563 = vpop.permute.xlu0 %562
    %564 = vrot.lane.b32.xlu0 %v551, 98
    %v565 = vpop.permute.xlu0 %564
    %vm566 = vcmask 801792
    %v567 = vsel %vm566, %v553, %v555
    %v568 = vsel %vm566, %v555, %v557
    %v569 = vsel %vm566, %v557, %v559
    %v570 = vsel %vm566, %v559, %v561
    %v571 = vsel %vm566, %v561, %v563
    %v572 = vsel %vm566, %v563, %v565
    %580 = vst [vmem:[#allocation4 + $0x38] sm:$0x80] %v567
    %581 = vst [vmem:[#allocation4 + $0x40] sm:$0x80] %v568
    %582 = vst [vmem:[#allocation4 + $0x48] sm:$0x80] %v569
    %583 = vst [vmem:[#allocation4 + $0x50] sm:$0x80] %v570
    %584 = vst [vmem:[#allocation4 + $0x58] sm:$0x80] %v571
    %585 = vst [vmem:[#allocation4 + $0x60] sm:$0x80] %v572
    %vm586 = vcmask 130055
    %587 = vst.msk [vmem:[#allocation4 + $0x68] sm:$0x80] %vm586, %v565
    %588 = vst [vmem:[#allocation4 + $0x70] sm:$0x3] %v567
    %589 = vst [vmem:[#allocation4 + $0x78] sm:$0x3] %v568
    %590 = vst [vmem:[#allocation4 + $0x80] sm:$0x3] %v569
    %591 = vst [vmem:[#allocation4 + $0x88] sm:$0x3] %v570
    %592 = vst [vmem:[#allocation4 + $0x90] sm:$0x3] %v571
    %593 = vst [vmem:[#allocation4 + $0x98] sm:$0x3] %v572
    %vm594 = vcmask 123904
    %595 = vst.msk [vmem:[#allocation4 + $0xa0] sm:$0x3] %vm594, %v565
    %v596 = vld [vmem:[#allocation2] sm:$0x7]
    %v597 = vld [vmem:[#allocation2 + $0x8] sm:$0x7]
    %v598 = vld [vmem:[#allocation2 + $0x10] sm:$0x7]
    %v599 = vld [vmem:[#allocation2 + $0x18] sm:$0x7]
    %v600 = vld [vmem:[#allocation2 + $0x20] sm:$0x7]
    %v601 = vld [vmem:[#allocation2 + $0x28] sm:$0x7]
    %v602 = vld [vmem:[#allocation2 + $0x30] sm:$0x7]
    %603 = vrot.lane.b32.xlu0 %v114, 56
    %v604 = vpop.permute.xlu0 %603
    %605 = vrot.lane.b32.xlu0 %v118, 56
    %v606 = vpop.permute.xlu0 %605
    %607 = vrot.lane.b32.xlu0 %v122, 56
    %v608 = vpop.permute.xlu0 %607
    %609 = vrot.lane.b32.xlu0 %v126, 56
    %v610 = vpop.permute.xlu0 %609
    %611 = vrot.lane.b32.xlu0 %v130, 56
    %v612 = vpop.permute.xlu0 %611
    %613 = vrot.lane.b32.xlu0 %v134, 56
    %v614 = vpop.permute.xlu0 %613
    %615 = vrot.lane.b32.xlu0 %v138, 56
    %v616 = vpop.permute.xlu0 %615
    %vm617 = vcmask 457728
    %v618 = vsel %vm617, %v604, %v606
    %v619 = vsel %vm617, %v606, %v608
    %v620 = vsel %vm617, %v608, %v610
    %v621 = vsel %vm617, %v610, %v612
    %v622 = vsel %vm617, %v612, %v614
    %v623 = vsel %vm617, %v614, %v616
    %v631 = vmul.f32 %v596, %v604
    %v632 = vmul.f32 %v597, %v618
    %v633 = vmul.f32 %v598, %v619
    %v634 = vmul.f32 %v599, %v620
    %v635 = vmul.f32 %v600, %v621
    %v636 = vmul.f32 %v601, %v622
    %v637 = vmul.f32 %v602, %v623
    %v645 = vrot.slane %v631, 6
    %v646 = vrot.slane %v632, 6
    %v647 = vrot.slane %v633, 6
    %v648 = vrot.slane %v634, 6
    %v649 = vrot.slane %v635, 6
    %v650 = vrot.slane %v636, 6
    %v651 = vrot.slane %v637, 6
    %652 = vrot.lane.b32.xlu0 %v645, 72
    %v653 = vpop.permute.xlu0 %652
    %654 = vrot.lane.b32.xlu0 %v646, 72
    %v655 = vpop.permute.xlu0 %654
    %656 = vrot.lane.b32.xlu0 %v647, 72
    %v657 = vpop.permute.xlu0 %656
    %658 = vrot.lane.b32.xlu0 %v648, 72
    %v659 = vpop.permute.xlu0 %658
    %660 = vrot.lane.b32.xlu0 %v649, 72
    %v661 = vpop.permute.xlu0 %660
    %662 = vrot.lane.b32.xlu0 %v650, 72
    %v663 = vpop.permute.xlu0 %662
    %664 = vrot.lane.b32.xlu0 %v651, 72
    %v665 = vpop.permute.xlu0 %664
    %vm666 = vcmask 588800
    %v667 = vsel %vm666, %v653, %v655
    %v668 = vsel %vm666, %v655, %v657
    %v669 = vsel %vm666, %v657, %v659
    %v670 = vsel %vm666, %v659, %v661
    %v671 = vsel %vm666, %v661, %v663
    %v672 = vsel %vm666, %v663, %v665
    %680 = vst [vmem:[#allocation4 + $0x70] sm:$0x1c] %v667
    %681 = vst [vmem:[#allocation4 + $0x78] sm:$0x1c] %v668
    %682 = vst [vmem:[#allocation4 + $0x80] sm:$0x1c] %v669
    %683 = vst [vmem:[#allocation4 + $0x88] sm:$0x1c] %v670
    %684 = vst [vmem:[#allocation4 + $0x90] sm:$0x1c] %v671
    %685 = vst [vmem:[#allocation4 + $0x98] sm:$0x1c] %v672
    %vm686 = vcmask 126978
    %687 = vst.msk [vmem:[#allocation4 + $0xa0] sm:$0x1c] %vm686, %v665
    %v688 = vld [vmem:[#allocation2] sm:$0x7]
    %v689 = vld [vmem:[#allocation2 + $0x8] sm:$0x7]
    %v690 = vld [vmem:[#allocation2 + $0x10] sm:$0x7]
    %v691 = vld [vmem:[#allocation2 + $0x18] sm:$0x7]
    %v692 = vld [vmem:[#allocation2 + $0x20] sm:$0x7]
    %v693 = vld [vmem:[#allocation2 + $0x28] sm:$0x7]
    %v694 = vld [vmem:[#allocation2 + $0x30] sm:$0x7]
    %v702 = vrot.slane %v688, 3
    %v703 = vrot.slane %v689, 3
    %v704 = vrot.slane %v690, 3
    %v705 = vrot.slane %v691, 3
    %v706 = vrot.slane %v692, 3
    %v707 = vrot.slane %v693, 3
    %v708 = vrot.slane %v694, 3
    %709 = vrot.lane.b32.xlu0 %v702, 71
    %v710 = vpop.permute.xlu0 %709
    %711 = vrot.lane.b32.xlu0 %v703, 71
    %v712 = vpop.permute.xlu0 %711
    %713 = vrot.lane.b32.xlu0 %v704, 71
    %v714 = vpop.permute.xlu0 %713
    %715 = vrot.lane.b32.xlu0 %v705, 71
    %v716 = vpop.permute.xlu0 %715
    %717 = vrot.lane.b32.xlu0 %v706, 71
    %v718 = vpop.permute.xlu0 %717
    %719 = vrot.lane.b32.xlu0 %v707, 71
    %v720 = vpop.permute.xlu0 %719
    %721 = vrot.lane.b32.xlu0 %v708, 71
    %v722 = vpop.permute.xlu0 %721
    %vm723 = vcmask 580608
    %v724 = vsel %vm723, %v710, %v712
    %v725 = vsel %vm723, %v712, %v714
    %v726 = vsel %vm723, %v714, %v716
    %v727 = vsel %vm723, %v716, %v718
    %v728 = vsel %vm723, %v718, %v720
    %v729 = vsel %vm723, %v720, %v722
    %737 = vst [vmem:[#allocation4 + $0x70] sm:$0xe0] %v724
    %738 = vst [vmem:[#allocation4 + $0x78] sm:$0xe0] %v725
    %739 = vst [vmem:[#allocation4 + $0x80] sm:$0xe0] %v726
    %740 = vst [vmem:[#allocation4 + $0x88] sm:$0xe0] %v727
    %741 = vst [vmem:[#allocation4 + $0x90] sm:$0xe0] %v728
    %742 = vst [vmem:[#allocation4 + $0x98] sm:$0xe0] %v729
    %vm743 = vcmask 130053
    %744 = vst.msk [vmem:[#allocation4 + $0xa0] sm:$0xe0] %vm743, %v722
    %v745 = vld [vmem:[#allocation2] sm:$0x7]
    %v746 = vld [vmem:[#allocation2 + $0x8] sm:$0x7]
    %v747 = vld [vmem:[#allocation2 + $0x10] sm:$0x7]
    %v748 = vld [vmem:[#allocation2 + $0x18] sm:$0x7]
    %v749 = vld [vmem:[#allocation2 + $0x20] sm:$0x7]
    %v750 = vld [vmem:[#allocation2 + $0x28] sm:$0x7]
    %v751 = vld [vmem:[#allocation2 + $0x30] sm:$0x7]
    %752 = vrot.lane.b32.xlu0 %v229, 58
    %v753 = vpop.permute.xlu0 %752
    %754 = vrot.lane.b32.xlu0 %v233, 58
    %v755 = vpop.permute.xlu0 %754
    %756 = vrot.lane.b32.xlu0 %v237, 58
    %v757 = vpop.permute.xlu0 %756
    %758 = vrot.lane.b32.xlu0 %v241, 58
    %v759 = vpop.permute.xlu0 %758
    %760 = vrot.lane.b32.xlu0 %v245, 58
    %v761 = vpop.permute.xlu0 %760
    %762 = vrot.lane.b32.xlu0 %v249, 58
    %v763 = vpop.permute.xlu0 %762
    %764 = vrot.lane.b32.xlu0 %v253, 58
    %v765 = vpop.permute.xlu0 %764
    %vm766 = vcmask 474112
    %v767 = vsel %vm766, %v753, %v755
    %v768 = vsel %vm766, %v755, %v757
    %v769 = vsel %vm766, %v757, %v759
    %v770 = vsel %vm766, %v759, %v761
    %v771 = vsel %vm766, %v761, %v763
    %v772 = vsel %vm766, %v763, %v765
    %v780 = vmul.f32 %v745, %v753
    %v781 = vmul.f32 %v746, %v767
    %v782 = vmul.f32 %v747, %v768
    %v783 = vmul.f32 %v748, %v769
    %v784 = vmul.f32 %v749, %v770
    %v785 = vmul.f32 %v750, %v771
    %v786 = vmul.f32 %v751, %v772
    %794 = vrot.lane.b32.xlu0 %v780, 70
    %v795 = vpop.permute.xlu0 %794
    %796 = vrot.lane.b32.xlu0 %v781, 70
    %v797 = vpop.permute.xlu0 %796
    %798 = vrot.lane.b32.xlu0 %v782, 70
    %v799 = vpop.permute.xlu0 %798
    %800 = vrot.lane.b32.xlu0 %v783, 70
    %v801 = vpop.permute.xlu0 %800
    %802 = vrot.lane.b32.xlu0 %v784, 70
    %v803 = vpop.permute.xlu0 %802
    %804 = vrot.lane.b32.xlu0 %v785, 70
    %v805 = vpop.permute.xlu0 %804
    %806 = vrot.lane.b32.xlu0 %v786, 70
    %v807 = vpop.permute.xlu0 %806
    %vm808 = vcmask 572416
    %v809 = vsel %vm808, %v795, %v797
    %v810 = vsel %vm808, %v797, %v799
    %v811 = vsel %vm808, %v799, %v801
    %v812 = vsel %vm808, %v801, %v803
    %v813 = vsel %vm808, %v803, %v805
    %v814 = vsel %vm808, %v805, %v807
    %822 = vst [vmem:[#allocation4 + $0xa8] sm:$0x7] %v809
    %823 = vst [vmem:[#allocation4 + $0xb0] sm:$0x7] %v810
    %824 = vst [vmem:[#allocation4 + $0xb8] sm:$0x7] %v811
    %825 = vst [vmem:[#allocation4 + $0xc0] sm:$0x7] %v812
    %826 = vst [vmem:[#allocation4 + $0xc8] sm:$0x7] %v813
    %827 = vst [vmem:[#allocation4 + $0xd0] sm:$0x7] %v814
    %828 = vst.msk [vmem:[#allocation4 + $0xd8] sm:$0x7] %vm159, %v807
    %v829 = vld [vmem:[#allocation4] sm:$0xff]
    %v830 = vld [vmem:[#allocation4 + $0x8] sm:$0xff]
    %v831 = vld [vmem:[#allocation4 + $0x10] sm:$0xff]
    %v832 = vld [vmem:[#allocation4 + $0x18] sm:$0xff]
    %v833 = vld [vmem:[#allocation4 + $0x20] sm:$0xff]
    %v834 = vld [vmem:[#allocation4 + $0x28] sm:$0xff]
    %v835 = vld [vmem:[#allocation4 + $0x30] sm:$0xff]
    %v836 = vld [vmem:[#allocation4 + $0x38] sm:$0xff]
    %v837 = vld [vmem:[#allocation4 + $0x40] sm:$0xff]
    %v838 = vld [vmem:[#allocation4 + $0x48] sm:$0xff]
    %v839 = vld [vmem:[#allocation4 + $0x50] sm:$0xff]
    %v840 = vld [vmem:[#allocation4 + $0x58] sm:$0xff]
    %v841 = vld [vmem:[#allocation4 + $0x60] sm:$0xff]
    %v842 = vld [vmem:[#allocation4 + $0x68] sm:$0xff]
    %v843 = vld [vmem:[#allocation4 + $0x70] sm:$0xff]
    %v844 = vld [vmem:[#allocation4 + $0x78] sm:$0xff]
    %v845 = vld [vmem:[#allocation4 + $0x80] sm:$0xff]
    %v846 = vld [vmem:[#allocation4 + $0x88] sm:$0xff]
    %v847 = vld [vmem:[#allocation4 + $0x90] sm:$0xff]
    %v848 = vld [vmem:[#allocation4 + $0x98] sm:$0xff]
    %v849 = vld [vmem:[#allocation4 + $0xa0] sm:$0xff]
    %v850 = vld [vmem:[#allocation4 + $0xa8] sm:$0x7]
    %v851 = vld [vmem:[#allocation4 + $0xb0] sm:$0x7]
    %v852 = vld [vmem:[#allocation4 + $0xb8] sm:$0x7]
    %v853 = vld [vmem:[#allocation4 + $0xc0] sm:$0x7]
    %v854 = vld [vmem:[#allocation4 + $0xc8] sm:$0x7]
    %v855 = vld [vmem:[#allocation4 + $0xd0] sm:$0x7]
    %v856 = vld [vmem:[#allocation4 + $0xd8] sm:$0x7]
    %v857 = vpack.c.bf16 %v836, %v829
    %v858 = vpack.c.bf16 %v837, %v830
    %v859 = vpack.c.bf16 %v838, %v831
    %v860 = vpack.c.bf16 %v839, %v832
    %v861 = vpack.c.bf16 %v840, %v833
    %v862 = vpack.c.bf16 %v841, %v834
    %v863 = vpack.c.bf16 %v842, %v835
    %v864 = vpack.c.bf16 %v850, %v843
    %v865 = vpack.c.bf16 %v851, %v844
    %v866 = vpack.c.bf16 %v852, %v845
    %v867 = vpack.c.bf16 %v853, %v846
    %v868 = vpack.c.bf16 %v854, %v847
    %v869 = vpack.c.bf16 %v855, %v848
    %v870 = vpack.c.bf16 %v856, %v849
    %v871 = vld [vmem:[%s1] sm:$0xf]
    %v872 = vld [vmem:[%s2] sm:$0xff]
    %874 = vset.pattern.permute.xlu0 0
    %875 = vperm.xlu0 %874, %v872
    %v876 = vpop.permute.xlu0 %875
    %vm878 = vcmask 220160
    %v880 = vsel %vm878, %v871, 0
    %vm882 = vcmask 1044480
    %vm883 = vcmask 1045504
    %v884 = vsel %vm882, 4294967295, 65535
    %v885 = vsel %vm883, %v884, 0
    %v887 = vand.u32 %v864, %v885
    %v890 = vand.u32 %v865, %v885
    %v893 = vand.u32 %v866, %v885
    %v896 = vand.u32 %v867, %v885
    %v899 = vand.u32 %v868, %v885
    %v902 = vand.u32 %v869, %v885
    %v905 = vand.u32 %v870, %v885
    %907 = vmatprep.subr.bf16.mxu0 %v858
    %908 = vmatpush1.bf16.msra.mxu0 %v857
    %909 = vmatprep.subr.bf16.mxu0 %v890
    %910 = vmatpush1.bf16.msra.mxu0 %v887
    %911 = vmatprep.subr.bf16.mxu0 0
    %912 = vmatpush1.bf16.msra.mxu0 0
    %913 = vmatprep.subr.bf16.mxu0 0
    %914 = vmatpush1.bf16.msra.mxu0 0
    %915 = vmatprep.subr.bf16.mxu0 0
    %916 = vmatpush1.bf16.msra.mxu0 0
    %917 = vmatprep.subr.bf16.mxu0 0
    %918 = vmatpush1.bf16.msra.mxu0 0
    %919 = vmatprep.subr.bf16.mxu0 0
    %920 = vmatpush1.bf16.msra.mxu0 0
    %921 = vmatprep.subr.bf16.mxu0 0
    %922 = vmatpush1.bf16.msra.mxu0 0
    %923 = vmatprep.subr.bf16.mxu0 0
    %924 = vmatpush1.bf16.msra.mxu0 0
    %925 = vmatprep.subr.bf16.mxu0 0
    %926 = vmatpush1.bf16.msra.mxu0 0
    %927 = vmatprep.subr.bf16.mxu0 0
    %928 = vmatpush1.bf16.msra.mxu0 0
    %929 = vmatprep.subr.bf16.mxu0 0
    %930 = vmatpush1.bf16.msra.mxu0 0
    %931 = vmatprep.subr.bf16.mxu0 0
    %932 = vmatpush1.bf16.msra.mxu0 0
    %933 = vmatprep.subr.bf16.mxu0 0
    %934 = vmatpush1.bf16.msra.mxu0 0
    %935 = vmatprep.subr.bf16.mxu0 0
    %936 = vmatpush1.bf16.msra.mxu0 0
    %937 = vmatprep.subr.bf16.mxu0 0
    %938 = vmatpush1.bf16.msra.mxu0 0
    %939 = vmatprep.mubr.bf16.mxu0 0
    %940 = vmatmul.mubr.bf16.gmra.mrb[0].mxu0 %v880
    %v941 = vpop.f32.mrb[0].mxu0
    %v942 = vadd.f32 %v876, %v941
    %v943 = vpop.f32.mrb[0].mxu0
    %v944 = vadd.f32 %v876, %v943
    %v945 = vpop.f32.mrb[0].mxu0
    %v946 = vpop.f32.mrb[0].mxu0
    %947 = vdwg.mxu0
    %948 = vmatprep.subr.bf16.mxu0 %v860
    %949 = vmatpush1.bf16.msra.mxu0 %v859
    %950 = vmatprep.subr.bf16.mxu0 %v896
    %951 = vmatpush1.bf16.msra.mxu0 %v893
    %952 = vmatprep.subr.bf16.mxu0 0
    %953 = vmatpush1.bf16.msra.mxu0 0
    %954 = vmatprep.subr.bf16.mxu0 0
    %955 = vmatpush1.bf16.msra.mxu0 0
    %956 = vmatprep.subr.bf16.mxu0 0
    %957 = vmatpush1.bf16.msra.mxu0 0
    %958 = vmatprep.subr.bf16.mxu0 0
    %959 = vmatpush1.bf16.msra.mxu0 0
    %960 = vmatprep.subr.bf16.mxu0 0
    %961 = vmatpush1.bf16.msra.mxu0 0
    %962 = vmatprep.subr.bf16.mxu0 0
    %963 = vmatpush1.bf16.msra.mxu0 0
    %964 = vmatprep.subr.bf16.mxu0 0
    %965 = vmatpush1.bf16.msra.mxu0 0
    %966 = vmatprep.subr.bf16.mxu0 0
    %967 = vmatpush1.bf16.msra.mxu0 0
    %968 = vmatprep.subr.bf16.mxu0 0
    %969 = vmatpush1.bf16.msra.mxu0 0
    %970 = vmatprep.subr.bf16.mxu0 0
    %971 = vmatpush1.bf16.msra.mxu0 0
    %972 = vmatprep.subr.bf16.mxu0 0
    %973 = vmatpush1.bf16.msra.mxu0 0
    %974 = vmatprep.subr.bf16.mxu0 0
    %975 = vmatpush1.bf16.msra.mxu0 0
    %976 = vmatprep.subr.bf16.mxu0 0
    %977 = vmatpush1.bf16.msra.mxu0 0
    %978 = vmatprep.subr.bf16.mxu0 0
    %979 = vmatpush1.bf16.msra.mxu0 0
    %980 = vmatprep.mubr.bf16.mxu0 0
    %981 = vmatmul.mubr.bf16.gmra.mrb[0].mxu0 %v880
    %v982 = vpop.f32.mrb[0].mxu0
    %v983 = vadd.f32 %v876, %v982
    %v984 = vpop.f32.mrb[0].mxu0
    %v985 = vadd.f32 %v876, %v984
    %v986 = vpop.f32.mrb[0].mxu0
    %v987 = vpop.f32.mrb[0].mxu0
    %988 = vdwg.mxu0
    %989 = vmatprep.subr.bf16.mxu0 %v862
    %990 = vmatpush1.bf16.msra.mxu0 %v861
    %991 = vmatprep.subr.bf16.mxu0 %v902
    %992 = vmatpush1.bf16.msra.mxu0 %v899
    %993 = vmatprep.subr.bf16.mxu0 0
    %994 = vmatpush1.bf16.msra.mxu0 0
    %995 = vmatprep.subr.bf16.mxu0 0
    %996 = vmatpush1.bf16.msra.mxu0 0
    %997 = vmatprep.subr.bf16.mxu0 0
    %998 = vmatpush1.bf16.msra.mxu0 0
    %999 = vmatprep.subr.bf16.mxu0 0
    %1000 = vmatpush1.bf16.msra.mxu0 0
    %1001 = vmatprep.subr.bf16.mxu0 0
    %1002 = vmatpush1.bf16.msra.mxu0 0
    %1003 = vmatprep.subr.bf16.mxu0 0
    %1004 = vmatpush1.bf16.msra.mxu0 0
    %1005 = vmatprep.subr.bf16.mxu0 0
    %1006 = vmatpush1.bf16.msra.mxu0 0
    %1007 = vmatprep.subr.bf16.mxu0 0
    %1008 = vmatpush1.bf16.msra.mxu0 0
    %1009 = vmatprep.subr.bf16.mxu0 0
    %1010 = vmatpush1.bf16.msra.mxu0 0
    %1011 = vmatprep.subr.bf16.mxu0 0
    %1012 = vmatpush1.bf16.msra.mxu0 0
    %1013 = vmatprep.subr.bf16.mxu0 0
    %1014 = vmatpush1.bf16.msra.mxu0 0
    %1015 = vmatprep.subr.bf16.mxu0 0
    %1016 = vmatpush1.bf16.msra.mxu0 0
    %1017 = vmatprep.subr.bf16.mxu0 0
    %1018 = vmatpush1.bf16.msra.mxu0 0
    %1019 = vmatprep.subr.bf16.mxu0 0
    %1020 = vmatpush1.bf16.msra.mxu0 0
    %1021 = vmatprep.mubr.bf16.mxu0 0
    %1022 = vmatmul.mubr.bf16.gmra.mrb[0].mxu0 %v880
    %v1023 = vpop.f32.mrb[0].mxu0
    %v1024 = vadd.f32 %v876, %v1023
    %v1025 = vpop.f32.mrb[0].mxu0
    %v1026 = vadd.f32 %v876, %v1025
    %v1027 = vpop.f32.mrb[0].mxu0
    %v1028 = vpop.f32.mrb[0].mxu0
    %1029 = vdwg.mxu0
    %1030 = vmatprep.subr.bf16.mxu0 0
    %1031 = vmatpush1.bf16.msra.mxu0 %v863
    %1032 = vmatprep.subr.bf16.mxu0 0
    %1033 = vmatpush1.bf16.msra.mxu0 %v905
    %1034 = vmatprep.subr.bf16.mxu0 0
    %1035 = vmatpush1.bf16.msra.mxu0 0
    %1036 = vmatprep.subr.bf16.mxu0 0
    %1037 = vmatpush1.bf16.msra.mxu0 0
    %1038 = vmatprep.subr.bf16.mxu0 0
    %1039 = vmatpush1.bf16.msra.mxu0 0
    %1040 = vmatprep.subr.bf16.mxu0 0
    %1041 = vmatpush1.bf16.msra.mxu0 0
    %1042 = vmatprep.subr.bf16.mxu0 0
    %1043 = vmatpush1.bf16.msra.mxu0 0
    %1044 = vmatprep.subr.bf16.mxu0 0
    %1045 = vmatpush1.bf16.msra.mxu0 0
    %1046 = vmatprep.subr.bf16.mxu0 0
    %1047 = vmatpush1.bf16.msra.mxu0 0
    %1048 = vmatprep.subr.bf16.mxu0 0
    %1049 = vmatpush1.bf16.msra.mxu0 0
    %1050 = vmatprep.subr.bf16.mxu0 0
    %1051 = vmatpush1.bf16.msra.mxu0 0
    %1052 = vmatprep.subr.bf16.mxu0 0
    %1053 = vmatpush1.bf16.msra.mxu0 0
    %1054 = vmatprep.subr.bf16.mxu0 0
    %1055 = vmatpush1.bf16.msra.mxu0 0
    %1056 = vmatprep.subr.bf16.mxu0 0
    %1057 = vmatpush1.bf16.msra.mxu0 0
    %1058 = vmatprep.subr.bf16.mxu0 0
    %1059 = vmatpush1.bf16.msra.mxu0 0
    %1060 = vmatprep.subr.bf16.mxu0 0
    %1061 = vmatpush1.bf16.msra.mxu0 0
    %1062 = vmatprep.mubr.bf16.mxu0 0
    %1063 = vmatmul.mubr.bf16.gmra.mrb[0].mxu0 %v880
    %v1064 = vpop.f32.mrb[0].mxu0
    %v1065 = vadd.f32 %v876, %v1064
    %v1066 = vpop.f32.mrb[0].mxu0
    %v1067 = vpop.f32.mrb[0].mxu0
    %v1068 = vpop.f32.mrb[0].mxu0
    %1069 = vdwg.mxu0
    %v1070 = vmax.f32 %v942, 0.0
    %v1071 = vmax.f32 %v944, 0.0
    %v1072 = vmax.f32 %v983, 0.0
    %v1073 = vmax.f32 %v985, 0.0
    %v1074 = vmax.f32 %v1024, 0.0
    %v1075 = vmax.f32 %v1026, 0.0
    %v1076 = vmax.f32 %v1065, 0.0
    %1084 = vrot.lane.b32.xlu0 %v1070, 29
    %v1085 = vpop.permute.xlu0 %1084
    %1086 = vrot.lane.b32.xlu0 %v1071, 29
    %v1087 = vpop.permute.xlu0 %1086
    %1088 = vrot.lane.b32.xlu0 %v1072, 29
    %v1089 = vpop.permute.xlu0 %1088
    %1090 = vrot.lane.b32.xlu0 %v1073, 29
    %v1091 = vpop.permute.xlu0 %1090
    %1092 = vrot.lane.b32.xlu0 %v1074, 29
    %v1093 = vpop.permute.xlu0 %1092
    %1094 = vrot.lane.b32.xlu0 %v1075, 29
    %v1095 = vpop.permute.xlu0 %1094
    %1096 = vrot.lane.b32.xlu0 %v1076, 29
    %v1097 = vpop.permute.xlu0 %1096
    %v1098 = vsel %vm53, %v1085, %v1087
    %v1099 = vsel %vm53, %v1087, %v1089
    %v1100 = vsel %vm53, %v1089, %v1091
    %v1101 = vsel %vm53, %v1091, %v1093
    %v1102 = vsel %vm53, %v1093, %v1095
    %v1103 = vsel %vm53, %v1095, %v1097
    %vm1111 = vcmask 1047784
    %1112 = vst.msk [vmem:[#allocation2] sm:$0xff] %vm1111, %v1085
    %1113 = vst [vmem:[#allocation2 + $0x8] sm:$0xff] %v1098
    %1114 = vst [vmem:[#allocation2 + $0x10] sm:$0xff] %v1099
    %1115 = vst [vmem:[#allocation2 + $0x18] sm:$0xff] %v1100
    %1116 = vst [vmem:[#allocation2 + $0x20] sm:$0xff] %v1101
    %1117 = vst [vmem:[#allocation2 + $0x28] sm:$0xff] %v1102
    %vm1118 = vcmask 367616
    %1119 = vst.msk [vmem:[#allocation2 + $0x30] sm:$0xff] %vm1118, %v1103
    %v1120 = vld [vmem:[%s12] ss:$2 sm:$0x7f]
    %v1121 = vld [vmem:[%s101] ss:$2 sm:$0x7f]
    %v1122 = vld [vmem:[#allocation2] sm:$0xff]
    %v1123 = vld [vmem:[#allocation2 + $0x8] sm:$0xff]
    %v1124 = vld [vmem:[#allocation2 + $0x10] sm:$0xff]
    %v1125 = vld [vmem:[#allocation2 + $0x18] sm:$0xff]
    %v1126 = vld [vmem:[#allocation2 + $0x20] sm:$0xff]
    %v1127 = vld [vmem:[#allocation2 + $0x28] sm:$0xff]
    %v1128 = vld [vmem:[#allocation2 + $0x30] sm:$0xff]
    %v1130 = vlaneseq
    %v1131 = vshrl.u32 %v1130, 7
    %v1132 = vsub.s32 0, %v1131
    %v1133 = vrot.slane %v1120, %v1132
    %v1134 = vlaneseq
    %v1135 = vshrl.u32 %v1134, 7
    %v1136 = vsub.s32 1, %v1135
    %v1137 = vrot.slane %v1120, %v1136
    %v1138 = vlaneseq
    %v1139 = vshrl.u32 %v1138, 7
    %v1140 = vsub.s32 2, %v1139
    %v1141 = vrot.slane %v1120, %v1140
    %v1142 = vlaneseq
    %v1143 = vshrl.u32 %v1142, 7
    %v1144 = vsub.s32 3, %v1143
    %v1145 = vrot.slane %v1120, %v1144
    %v1146 = vlaneseq
    %v1147 = vshrl.u32 %v1146, 7
    %v1148 = vsub.s32 4, %v1147
    %v1149 = vrot.slane %v1120, %v1148
    %v1150 = vlaneseq
    %v1151 = vshrl.u32 %v1150, 7
    %v1152 = vsub.s32 5, %v1151
    %v1153 = vrot.slane %v1120, %v1152
    %v1154 = vlaneseq
    %v1155 = vshrl.u32 %v1154, 7
    %v1156 = vsub.s32 6, %v1155
    %v1157 = vrot.slane %v1120, %v1156
    %v1165 = vmul.f32 %v1122, %v1133
    %v1166 = vmul.f32 %v1123, %v1137
    %v1167 = vmul.f32 %v1124, %v1141
    %v1168 = vmul.f32 %v1125, %v1145
    %v1169 = vmul.f32 %v1126, %v1149
    %v1170 = vmul.f32 %v1127, %v1153
    %v1171 = vmul.f32 %v1128, %v1157
    %1172 = vst [vmem:[#allocation4] sm:$0xff] %v1165
    %1173 = vst [vmem:[#allocation4 + $0x8] sm:$0xff] %v1166
    %1174 = vst [vmem:[#allocation4 + $0x10] sm:$0xff] %v1167
    %1175 = vst [vmem:[#allocation4 + $0x18] sm:$0xff] %v1168
    %1176 = vst [vmem:[#allocation4 + $0x20] sm:$0xff] %v1169
    %1177 = vst [vmem:[#allocation4 + $0x28] sm:$0xff] %v1170
    %vm1178 = vcmask 130048
    %1179 = vst.msk [vmem:[#allocation4 + $0x30] sm:$0xff] %vm1178, %v1171
    %v1180 = vld [vmem:[#allocation2] sm:$0xff]
    %v1181 = vld [vmem:[#allocation2 + $0x8] sm:$0xff]
    %v1182 = vld [vmem:[#allocation2 + $0x10] sm:$0xff]
    %v1183 = vld [vmem:[#allocation2 + $0x18] sm:$0xff]
    %v1184 = vld [vmem:[#allocation2 + $0x20] sm:$0xff]
    %v1185 = vld [vmem:[#allocation2 + $0x28] sm:$0xff]
    %v1186 = vld [vmem:[#allocation2 + $0x30] sm:$0xff]
    %1194 = vrot.lane.b32.xlu0 %v1180, 127
    %v1195 = vpop.permute.xlu0 %1194
    %1196 = vrot.lane.b32.xlu0 %v1181, 127
    %v1197 = vpop.permute.xlu0 %1196
    %1198 = vrot.lane.b32.xlu0 %v1182, 127
    %v1199 = vpop.permute.xlu0 %1198
    %1200 = vrot.lane.b32.xlu0 %v1183, 127
    %v1201 = vpop.permute.xlu0 %1200
    %1202 = vrot.lane.b32.xlu0 %v1184, 127
    %v1203 = vpop.permute.xlu0 %1202
    %1204 = vrot.lane.b32.xlu0 %v1185, 127
    %v1205 = vpop.permute.xlu0 %1204
    %1206 = vrot.lane.b32.xlu0 %v1186, 127
    %v1207 = vpop.permute.xlu0 %1206
    %v1208 = vsel %vm196, %v1195, %v1197
    %v1209 = vsel %vm196, %v1197, %v1199
    %v1210 = vsel %vm196, %v1199, %v1201
    %v1211 = vsel %vm196, %v1201, %v1203
    %v1212 = vsel %vm196, %v1203, %v1205
    %v1213 = vsel %vm196, %v1205, %v1207
    %1221 = vst [vmem:[#allocation4 + $0x38] sm:$0xff] %v1208
    %1222 = vst [vmem:[#allocation4 + $0x40] sm:$0xff] %v1209
    %1223 = vst [vmem:[#allocation4 + $0x48] sm:$0xff] %v1210
    %1224 = vst [vmem:[#allocation4 + $0x50] sm:$0xff] %v1211
    %1225 = vst [vmem:[#allocation4 + $0x58] sm:$0xff] %v1212
    %1226 = vst [vmem:[#allocation4 + $0x60] sm:$0xff] %v1213
    %1227 = vst.msk [vmem:[#allocation4 + $0x68] sm:$0xff] %vm1178, %v1207
    %v1228 = vld [vmem:[#allocation2] sm:$0xff]
    %v1229 = vld [vmem:[#allocation2 + $0x8] sm:$0xff]
    %v1230 = vld [vmem:[#allocation2 + $0x10] sm:$0xff]
    %v1231 = vld [vmem:[#allocation2 + $0x18] sm:$0xff]
    %v1232 = vld [vmem:[#allocation2 + $0x20] sm:$0xff]
    %v1233 = vld [vmem:[#allocation2 + $0x28] sm:$0xff]
    %v1234 = vld [vmem:[#allocation2 + $0x30] sm:$0xff]
    %v1236 = vlaneseq
    %v1237 = vshrl.u32 %v1236, 7
    %v1238 = vsub.s32 0, %v1237
    %v1239 = vrot.slane %v1121, %v1238
    %v1240 = vlaneseq
    %v1241 = vshrl.u32 %v1240, 7
    %v1242 = vsub.s32 1, %v1241
    %v1243 = vrot.slane %v1121, %v1242
    %v1244 = vlaneseq
    %v1245 = vshrl.u32 %v1244, 7
    %v1246 = vsub.s32 2, %v1245
    %v1247 = vrot.slane %v1121, %v1246
    %v1248 = vlaneseq
    %v1249 = vshrl.u32 %v1248, 7
    %v1250 = vsub.s32 3, %v1249
    %v1251 = vrot.slane %v1121, %v1250
    %v1252 = vlaneseq
    %v1253 = vshrl.u32 %v1252, 7
    %v1254 = vsub.s32 4, %v1253
    %v1255 = vrot.slane %v1121, %v1254
    %v1256 = vlaneseq
    %v1257 = vshrl.u32 %v1256, 7
    %v1258 = vsub.s32 5, %v1257
    %v1259 = vrot.slane %v1121, %v1258
    %v1260 = vlaneseq
    %v1261 = vshrl.u32 %v1260, 7
    %v1262 = vsub.s32 6, %v1261
    %v1263 = vrot.slane %v1121, %v1262
    %1264 = vrot.lane.b32.xlu0 %v1239, 2
    %v1265 = vpop.permute.xlu0 %1264
    %1266 = vrot.lane.b32.xlu0 %v1243, 2
    %v1267 = vpop.permute.xlu0 %1266
    %1268 = vrot.lane.b32.xlu0 %v1247, 2
    %v1269 = vpop.permute.xlu0 %1268
    %1270 = vrot.lane.b32.xlu0 %v1251, 2
    %v1271 = vpop.permute.xlu0 %1270
    %1272 = vrot.lane.b32.xlu0 %v1255, 2
    %v1273 = vpop.permute.xlu0 %1272
    %1274 = vrot.lane.b32.xlu0 %v1259, 2
    %v1275 = vpop.permute.xlu0 %1274
    %1276 = vrot.lane.b32.xlu0 %v1263, 2
    %v1277 = vpop.permute.xlu0 %1276
    %v1278 = vsel %vm268, %v1265, %v1267
    %v1279 = vsel %vm268, %v1267, %v1269
    %v1280 = vsel %vm268, %v1269, %v1271
    %v1281 = vsel %vm268, %v1271, %v1273
    %v1282 = vsel %vm268, %v1273, %v1275
    %v1283 = vsel %vm268, %v1275, %v1277
    %v1291 = vmul.f32 %v1228, %v1265
    %v1292 = vmul.f32 %v1229, %v1278
    %v1293 = vmul.f32 %v1230, %v1279
    %v1294 = vmul.f32 %v1231, %v1280
    %v1295 = vmul.f32 %v1232, %v1281
    %v1296 = vmul.f32 %v1233, %v1282
    %v1297 = vmul.f32 %v1234, %v1283
    %1305 = vrot.lane.b32.xlu0 %v1291, 126
    %v1306 = vpop.permute.xlu0 %1305
    %1307 = vrot.lane.b32.xlu0 %v1292, 126
    %v1308 = vpop.permute.xlu0 %1307
    %1309 = vrot.lane.b32.xlu0 %v1293, 126
    %v1310 = vpop.permute.xlu0 %1309
    %1311 = vrot.lane.b32.xlu0 %v1294, 126
    %v1312 = vpop.permute.xlu0 %1311
    %1313 = vrot.lane.b32.xlu0 %v1295, 126
    %v1314 = vpop.permute.xlu0 %1313
    %1315 = vrot.lane.b32.xlu0 %v1296, 126
    %v1316 = vpop.permute.xlu0 %1315
    %1317 = vrot.lane.b32.xlu0 %v1297, 126
    %v1318 = vpop.permute.xlu0 %1317
    %v1319 = vsel %vm317, %v1306, %v1308
    %v1320 = vsel %vm317, %v1308, %v1310
    %v1321 = vsel %vm317, %v1310, %v1312
    %v1322 = vsel %vm317, %v1312, %v1314
    %v1323 = vsel %vm317, %v1314, %v1316
    %v1324 = vsel %vm317, %v1316, %v1318
    %1332 = vst [vmem:[#allocation4 + $0x70] sm:$0xff] %v1319
    %1333 = vst [vmem:[#allocation4 + $0x78] sm:$0xff] %v1320
    %1334 = vst [vmem:[#allocation4 + $0x80] sm:$0xff] %v1321
    %1335 = vst [vmem:[#allocation4 + $0x88] sm:$0xff] %v1322
    %1336 = vst [vmem:[#allocation4 + $0x90] sm:$0xff] %v1323
    %1337 = vst [vmem:[#allocation4 + $0x98] sm:$0xff] %v1324
    %1338 = vst.msk [vmem:[#allocation4 + $0xa0] sm:$0xff] %vm1178, %v1318
    %v1339 = vld [vmem:[#allocation2] sm:$0xff]
    %v1340 = vld [vmem:[#allocation2 + $0x8] sm:$0xff]
    %v1341 = vld [vmem:[#allocation2 + $0x10] sm:$0xff]
    %v1342 = vld [vmem:[#allocation2 + $0x18] sm:$0xff]
    %v1343 = vld [vmem:[#allocation2 + $0x20] sm:$0xff]
    %v1344 = vld [vmem:[#allocation2 + $0x28] sm:$0xff]
    %v1345 = vld [vmem:[#allocation2 + $0x30] sm:$0xff]
    %1346 = vrot.lane.b32.xlu0 %v1133, 28
    %v1347 = vpop.permute.xlu0 %1346
    %1348 = vrot.lane.b32.xlu0 %v1137, 28
    %v1349 = vpop.permute.xlu0 %1348
    %1350 = vrot.lane.b32.xlu0 %v1141, 28
    %v1351 = vpop.permute.xlu0 %1350
    %1352 = vrot.lane.b32.xlu0 %v1145, 28
    %v1353 = vpop.permute.xlu0 %1352
    %1354 = vrot.lane.b32.xlu0 %v1149, 28
    %v1355 = vpop.permute.xlu0 %1354
    %1356 = vrot.lane.b32.xlu0 %v1153, 28
    %v1357 = vpop.permute.xlu0 %1356
    %1358 = vrot.lane.b32.xlu0 %v1157, 28
    %v1359 = vpop.permute.xlu0 %1358
    %v1360 = vsel %vm368, %v1347, %v1349
    %v1361 = vsel %vm368, %v1349, %v1351
    %v1362 = vsel %vm368, %v1351, %v1353
    %v1363 = vsel %vm368, %v1353, %v1355
    %v1364 = vsel %vm368, %v1355, %v1357
    %v1365 = vsel %vm368, %v1357, %v1359
    %v1373 = vmul.f32 %v1339, %v1347
    %v1374 = vmul.f32 %v1340, %v1360
    %v1375 = vmul.f32 %v1341, %v1361
    %v1376 = vmul.f32 %v1342, %v1362
    %v1377 = vmul.f32 %v1343, %v1363
    %v1378 = vmul.f32 %v1344, %v1364
    %v1379 = vmul.f32 %v1345, %v1365
    %1387 = vrot.lane.b32.xlu0 %v1373, 100
    %v1388 = vpop.permute.xlu0 %1387
    %1389 = vrot.lane.b32.xlu0 %v1374, 100
    %v1390 = vpop.permute.xlu0 %1389
    %1391 = vrot.lane.b32.xlu0 %v1375, 100
    %v1392 = vpop.permute.xlu0 %1391
    %1393 = vrot.lane.b32.xlu0 %v1376, 100
    %v1394 = vpop.permute.xlu0 %1393
    %1395 = vrot.lane.b32.xlu0 %v1377, 100
    %v1396 = vpop.permute.xlu0 %1395
    %1397 = vrot.lane.b32.xlu0 %v1378, 100
    %v1398 = vpop.permute.xlu0 %1397
    %1399 = vrot.lane.b32.xlu0 %v1379, 100
    %v1400 = vpop.permute.xlu0 %1399
    %v1401 = vsel %vm417, %v1388, %v1390
    %v1402 = vsel %vm417, %v1390, %v1392
    %v1403 = vsel %vm417, %v1392, %v1394
    %v1404 = vsel %vm417, %v1394, %v1396
    %v1405 = vsel %vm417, %v1396, %v1398
    %v1406 = vsel %vm417, %v1398, %v1400
    %1414 = vst [vmem:[#allocation4 + $0xa8] sm:$0xff] %v1401
    %1415 = vst [vmem:[#allocation4 + $0xb0] sm:$0xff] %v1402
    %1416 = vst [vmem:[#allocation4 + $0xb8] sm:$0xff] %v1403
    %1417 = vst [vmem:[#allocation4 + $0xc0] sm:$0xff] %v1404
    %1418 = vst [vmem:[#allocation4 + $0xc8] sm:$0xff] %v1405
    %1419 = vst [vmem:[#allocation4 + $0xd0] sm:$0xff] %v1406
    %1420 = vst.msk [vmem:[#allocation4 + $0xd8] sm:$0xff] %vm1178, %v1400
    %v1421 = vld [vmem:[#allocation2] sm:$0xff]
    %v1422 = vld [vmem:[#allocation2 + $0x8] sm:$0xff]
    %v1423 = vld [vmem:[#allocation2 + $0x10] sm:$0xff]
    %v1424 = vld [vmem:[#allocation2 + $0x18] sm:$0xff]
    %v1425 = vld [vmem:[#allocation2 + $0x20] sm:$0xff]
    %v1426 = vld [vmem:[#allocation2 + $0x28] sm:$0xff]
    %v1427 = vld [vmem:[#allocation2 + $0x30] sm:$0xff]
    %1435 = vrot.lane.b32.xlu0 %v1421, 99
    %v1436 = vpop.permute.xlu0 %1435
    %1437 = vrot.lane.b32.xlu0 %v1422, 99
    %v1438 = vpop.permute.xlu0 %1437
    %1439 = vrot.lane.b32.xlu0 %v1423, 99
    %v1440 = vpop.permute.xlu0 %1439
    %1441 = vrot.lane.b32.xlu0 %v1424, 99
    %v1442 = vpop.permute.xlu0 %1441
    %1443 = vrot.lane.b32.xlu0 %v1425, 99
    %v1444 = vpop.permute.xlu0 %1443
    %1445 = vrot.lane.b32.xlu0 %v1426, 99
    %v1446 = vpop.permute.xlu0 %1445
    %1447 = vrot.lane.b32.xlu0 %v1427, 99
    %v1448 = vpop.permute.xlu0 %1447
    %v1449 = vsel %vm474, %v1436, %v1438
    %v1450 = vsel %vm474, %v1438, %v1440
    %v1451 = vsel %vm474, %v1440, %v1442
    %v1452 = vsel %vm474, %v1442, %v1444
    %v1453 = vsel %vm474, %v1444, %v1446
    %v1454 = vsel %vm474, %v1446, %v1448
    %1462 = vst [vmem:[#allocation4 + $0xe0] sm:$0xff] %v1449
    %1463 = vst [vmem:[#allocation4 + $0xe8] sm:$0xff] %v1450
    %1464 = vst [vmem:[#allocation4 + $0xf0] sm:$0xff] %v1451
    %1465 = vst [vmem:[#allocation4 + $0xf8] sm:$0xff] %v1452
    %1466 = vst [vmem:[#allocation4 + $0x100] sm:$0xff] %v1453
    %1467 = vst [vmem:[#allocation4 + $0x108] sm:$0xff] %v1454
    %1468 = vst.msk [vmem:[#allocation4 + $0x110] sm:$0xff] %vm1178, %v1448
    %v1469 = vld [vmem:[#allocation2] sm:$0xff]
    %v1470 = vld [vmem:[#allocation2 + $0x8] sm:$0xff]
    %v1471 = vld [vmem:[#allocation2 + $0x10] sm:$0xff]
    %v1472 = vld [vmem:[#allocation2 + $0x18] sm:$0xff]
    %v1473 = vld [vmem:[#allocation2 + $0x20] sm:$0xff]
    %v1474 = vld [vmem:[#allocation2 + $0x28] sm:$0xff]
    %v1475 = vld [vmem:[#allocation2 + $0x30] sm:$0xff]
    %1476 = vrot.lane.b32.xlu0 %v1239, 30
    %v1477 = vpop.permute.xlu0 %1476
    %1478 = vrot.lane.b32.xlu0 %v1243, 30
    %v1479 = vpop.permute.xlu0 %1478
    %1480 = vrot.lane.b32.xlu0 %v1247, 30
    %v1481 = vpop.permute.xlu0 %1480
    %1482 = vrot.lane.b32.xlu0 %v1251, 30
    %v1483 = vpop.permute.xlu0 %1482
    %1484 = vrot.lane.b32.xlu0 %v1255, 30
    %v1485 = vpop.permute.xlu0 %1484
    %1486 = vrot.lane.b32.xlu0 %v1259, 30
    %v1487 = vpop.permute.xlu0 %1486
    %1488 = vrot.lane.b32.xlu0 %v1263, 30
    %v1489 = vpop.permute.xlu0 %1488
    %v1490 = vsel %vm517, %v1477, %v1479
    %v1491 = vsel %vm517, %v1479, %v1481
    %v1492 = vsel %vm517, %v1481, %v1483
    %v1493 = vsel %vm517, %v1483, %v1485
    %v1494 = vsel %vm517, %v1485, %v1487
    %v1495 = vsel %vm517, %v1487, %v1489
    %v1503 = vmul.f32 %v1469, %v1477
    %v1504 = vmul.f32 %v1470, %v1490
    %v1505 = vmul.f32 %v1471, %v1491
    %v1506 = vmul.f32 %v1472, %v1492
    %v1507 = vmul.f32 %v1473, %v1493
    %v1508 = vmul.f32 %v1474, %v1494
    %v1509 = vmul.f32 %v1475, %v1495
    %1517 = vrot.lane.b32.xlu0 %v1503, 98
    %v1518 = vpop.permute.xlu0 %1517
    %1519 = vrot.lane.b32.xlu0 %v1504, 98
    %v1520 = vpop.permute.xlu0 %1519
    %1521 = vrot.lane.b32.xlu0 %v1505, 98
    %v1522 = vpop.permute.xlu0 %1521
    %1523 = vrot.lane.b32.xlu0 %v1506, 98
    %v1524 = vpop.permute.xlu0 %1523
    %1525 = vrot.lane.b32.xlu0 %v1507, 98
    %v1526 = vpop.permute.xlu0 %1525
    %1527 = vrot.lane.b32.xlu0 %v1508, 98
    %v1528 = vpop.permute.xlu0 %1527
    %1529 = vrot.lane.b32.xlu0 %v1509, 98
    %v1530 = vpop.permute.xlu0 %1529
    %v1531 = vsel %vm566, %v1518, %v1520
    %v1532 = vsel %vm566, %v1520, %v1522
    %v1533 = vsel %vm566, %v1522, %v1524
    %v1534 = vsel %vm566, %v1524, %v1526
    %v1535 = vsel %vm566, %v1526, %v1528
    %v1536 = vsel %vm566, %v1528, %v1530
    %1544 = vst [vmem:[#allocation4 + $0x118] sm:$0xff] %v1531
    %1545 = vst [vmem:[#allocation4 + $0x120] sm:$0xff] %v1532
    %1546 = vst [vmem:[#allocation4 + $0x128] sm:$0xff] %v1533
    %1547 = vst [vmem:[#allocation4 + $0x130] sm:$0xff] %v1534
    %1548 = vst [vmem:[#allocation4 + $0x138] sm:$0xff] %v1535
    %1549 = vst [vmem:[#allocation4 + $0x140] sm:$0xff] %v1536
    %1550 = vst.msk [vmem:[#allocation4 + $0x148] sm:$0xff] %vm1178, %v1530
    %v1551 = vld [vmem:[#allocation2] sm:$0xff]
    %v1552 = vld [vmem:[#allocation2 + $0x8] sm:$0xff]
    %v1553 = vld [vmem:[#allocation2 + $0x10] sm:$0xff]
    %v1554 = vld [vmem:[#allocation2 + $0x18] sm:$0xff]
    %v1555 = vld [vmem:[#allocation2 + $0x20] sm:$0xff]
    %v1556 = vld [vmem:[#allocation2 + $0x28] sm:$0xff]
    %v1557 = vld [vmem:[#allocation2 + $0x30] sm:$0xff]
    %1558 = vrot.lane.b32.xlu0 %v1133, 56
    %v1559 = vpop.permute.xlu0 %1558
    %1560 = vrot.lane.b32.xlu0 %v1137, 56
    %v1561 = vpop.permute.xlu0 %1560
    %1562 = vrot.lane.b32.xlu0 %v1141, 56
    %v1563 = vpop.permute.xlu0 %1562
    %1564 = vrot.lane.b32.xlu0 %v1145, 56
    %v1565 = vpop.permute.xlu0 %1564
    %1566 = vrot.lane.b32.xlu0 %v1149, 56
    %v1567 = vpop.permute.xlu0 %1566
    %1568 = vrot.lane.b32.xlu0 %v1153, 56
    %v1569 = vpop.permute.xlu0 %1568
    %1570 = vrot.lane.b32.xlu0 %v1157, 56
    %v1571 = vpop.permute.xlu0 %1570
    %v1572 = vsel %vm617, %v1559, %v1561
    %v1573 = vsel %vm617, %v1561, %v1563
    %v1574 = vsel %vm617, %v1563, %v1565
    %v1575 = vsel %vm617, %v1565, %v1567
    %v1576 = vsel %vm617, %v1567, %v1569
    %v1577 = vsel %vm617, %v1569, %v1571
    %v1585 = vmul.f32 %v1551, %v1559
    %v1586 = vmul.f32 %v1552, %v1572
    %v1587 = vmul.f32 %v1553, %v1573
    %v1588 = vmul.f32 %v1554, %v1574
    %v1589 = vmul.f32 %v1555, %v1575
    %v1590 = vmul.f32 %v1556, %v1576
    %v1591 = vmul.f32 %v1557, %v1577
    %1599 = vrot.lane.b32.xlu0 %v1585, 72
    %v1600 = vpop.permute.xlu0 %1599
    %1601 = vrot.lane.b32.xlu0 %v1586, 72
    %v1602 = vpop.permute.xlu0 %1601
    %1603 = vrot.lane.b32.xlu0 %v1587, 72
    %v1604 = vpop.permute.xlu0 %1603
    %1605 = vrot.lane.b32.xlu0 %v1588, 72
    %v1606 = vpop.permute.xlu0 %1605
    %1607 = vrot.lane.b32.xlu0 %v1589, 72
    %v1608 = vpop.permute.xlu0 %1607
    %1609 = vrot.lane.b32.xlu0 %v1590, 72
    %v1610 = vpop.permute.xlu0 %1609
    %1611 = vrot.lane.b32.xlu0 %v1591, 72
    %v1612 = vpop.permute.xlu0 %1611
    %v1613 = vsel %vm666, %v1600, %v1602
    %v1614 = vsel %vm666, %v1602, %v1604
    %v1615 = vsel %vm666, %v1604, %v1606
    %v1616 = vsel %vm666, %v1606, %v1608
    %v1617 = vsel %vm666, %v1608, %v1610
    %v1618 = vsel %vm666, %v1610, %v1612
    %1626 = vst [vmem:[#allocation4 + $0x150] sm:$0xff] %v1613
    %1627 = vst [vmem:[#allocation4 + $0x158] sm:$0xff] %v1614
    %1628 = vst [vmem:[#allocation4 + $0x160] sm:$0xff] %v1615
    %1629 = vst [vmem:[#allocation4 + $0x168] sm:$0xff] %v1616
    %1630 = vst [vmem:[#allocation4 + $0x170] sm:$0xff] %v1617
    %1631 = vst [vmem:[#allocation4 + $0x178] sm:$0xff] %v1618
    %1632 = vst.msk [vmem:[#allocation4 + $0x180] sm:$0xff] %vm1178, %v1612
    %v1633 = vld [vmem:[#allocation2] sm:$0xff]
    %v1634 = vld [vmem:[#allocation2 + $0x8] sm:$0xff]
    %v1635 = vld [vmem:[#allocation2 + $0x10] sm:$0xff]
    %v1636 = vld [vmem:[#allocation2 + $0x18] sm:$0xff]
    %v1637 = vld [vmem:[#allocation2 + $0x20] sm:$0xff]
    %v1638 = vld [vmem:[#allocation2 + $0x28] sm:$0xff]
    %v1639 = vld [vmem:[#allocation2 + $0x30] sm:$0xff]
    %1647 = vrot.lane.b32.xlu0 %v1633, 71
    %v1648 = vpop.permute.xlu0 %1647
    %1649 = vrot.lane.b32.xlu0 %v1634, 71
    %v1650 = vpop.permute.xlu0 %1649
    %1651 = vrot.lane.b32.xlu0 %v1635, 71
    %v1652 = vpop.permute.xlu0 %1651
    %1653 = vrot.lane.b32.xlu0 %v1636, 71
    %v1654 = vpop.permute.xlu0 %1653
    %1655 = vrot.lane.b32.xlu0 %v1637, 71
    %v1656 = vpop.permute.xlu0 %1655
    %1657 = vrot.lane.b32.xlu0 %v1638, 71
    %v1658 = vpop.permute.xlu0 %1657
    %1659 = vrot.lane.b32.xlu0 %v1639, 71
    %v1660 = vpop.permute.xlu0 %1659
    %v1661 = vsel %vm723, %v1648, %v1650
    %v1662 = vsel %vm723, %v1650, %v1652
    %v1663 = vsel %vm723, %v1652, %v1654
    %v1664 = vsel %vm723, %v1654, %v1656
    %v1665 = vsel %vm723, %v1656, %v1658
    %v1666 = vsel %vm723, %v1658, %v1660
    %1674 = vst [vmem:[#allocation4 + $0x188] sm:$0xff] %v1661
    %1675 = vst [vmem:[#allocation4 + $0x190] sm:$0xff] %v1662
    %1676 = vst [vmem:[#allocation4 + $0x198] sm:$0xff] %v1663
    %1677 = vst [vmem:[#allocation4 + $0x1a0] sm:$0xff] %v1664
    %1678 = vst [vmem:[#allocation4 + $0x1a8] sm:$0xff] %v1665
    %1679 = vst [vmem:[#allocation4 + $0x1b0] sm:$0xff] %v1666
    %1680 = vst.msk [vmem:[#allocation4 + $0x1b8] sm:$0xff] %vm1178, %v1660
    %v1681 = vld [vmem:[#allocation2] sm:$0xff]
    %v1682 = vld [vmem:[#allocation2 + $0x8] sm:$0xff]
    %v1683 = vld [vmem:[#allocation2 + $0x10] sm:$0xff]
    %v1684 = vld [vmem:[#allocation2 + $0x18] sm:$0xff]
    %v1685 = vld [vmem:[#allocation2 + $0x20] sm:$0xff]
    %v1686 = vld [vmem:[#allocation2 + $0x28] sm:$0xff]
    %v1687 = vld [vmem:[#allocation2 + $0x30] sm:$0xff]
    %1688 = vrot.lane.b32.xlu0 %v1239, 58
    %v1689 = vpop.permute.xlu0 %1688
    %1690 = vrot.lane.b32.xlu0 %v1243, 58
    %v1691 = vpop.permute.xlu0 %1690
    %1692 = vrot.lane.b32.xlu0 %v1247, 58
    %v1693 = vpop.permute.xlu0 %1692
    %1694 = vrot.lane.b32.xlu0 %v1251, 58
    %v1695 = vpop.permute.xlu0 %1694
    %1696 = vrot.lane.b32.xlu0 %v1255, 58
    %v1697 = vpop.permute.xlu0 %1696
    %1698 = vrot.lane.b32.xlu0 %v1259, 58
    %v1699 = vpop.permute.xlu0 %1698
    %1700 = vrot.lane.b32.xlu0 %v1263, 58
    %v1701 = vpop.permute.xlu0 %1700
    %v1702 = vsel %vm766, %v1689, %v1691
    %v1703 = vsel %vm766, %v1691, %v1693
    %v1704 = vsel %vm766, %v1693, %v1695
    %v1705 = vsel %vm766, %v1695, %v1697
    %v1706 = vsel %vm766, %v1697, %v1699
    %v1707 = vsel %vm766, %v1699, %v1701
    %v1715 = vmul.f32 %v1681, %v1689
    %v1716 = vmul.f32 %v1682, %v1702
    %v1717 = vmul.f32 %v1683, %v1703
    %v1718 = vmul.f32 %v1684, %v1704
    %v1719 = vmul.f32 %v1685, %v1705
    %v1720 = vmul.f32 %v1686, %v1706
    %v1721 = vmul.f32 %v1687, %v1707
    %1729 = vrot.lane.b32.xlu0 %v1715, 70
    %v1730 = vpop.permute.xlu0 %1729
    %1731 = vrot.lane.b32.xlu0 %v1716, 70
    %v1732 = vpop.permute.xlu0 %1731
    %1733 = vrot.lane.b32.xlu0 %v1717, 70
    %v1734 = vpop.permute.xlu0 %1733
    %1735 = vrot.lane.b32.xlu0 %v1718, 70
    %v1736 = vpop.permute.xlu0 %1735
    %1737 = vrot.lane.b32.xlu0 %v1719, 70
    %v1738 = vpop.permute.xlu0 %1737
    %1739 = vrot.lane.b32.xlu0 %v1720, 70
    %v1740 = vpop.permute.xlu0 %1739
    %1741 = vrot.lane.b32.xlu0 %v1721, 70
    %v1742 = vpop.permute.xlu0 %1741
    %v1743 = vsel %vm808, %v1730, %v1732
    %v1744 = vsel %vm808, %v1732, %v1734
    %v1745 = vsel %vm808, %v1734, %v1736
    %v1746 = vsel %vm808, %v1736, %v1738
    %v1747 = vsel %vm808, %v1738, %v1740
    %v1748 = vsel %vm808, %v1740, %v1742
    %1756 = vst [vmem:[#allocation4 + $0x1c0] sm:$0xff] %v1743
    %1757 = vst [vmem:[#allocation4 + $0x1c8] sm:$0xff] %v1744
    %1758 = vst [vmem:[#allocation4 + $0x1d0] sm:$0xff] %v1745
    %1759 = vst [vmem:[#allocation4 + $0x1d8] sm:$0xff] %v1746
    %1760 = vst [vmem:[#allocation4 + $0x1e0] sm:$0xff] %v1747
    %1761 = vst [vmem:[#allocation4 + $0x1e8] sm:$0xff] %v1748
    %1762 = vst.msk [vmem:[#allocation4 + $0x1f0] sm:$0xff] %vm1178, %v1742
    %v1763 = vld [vmem:[#allocation4] sm:$0xff]
    %v1764 = vld [vmem:[#allocation4 + $0x8] sm:$0xff]
    %v1765 = vld [vmem:[#allocation4 + $0x10] sm:$0xff]
    %v1766 = vld [vmem:[#allocation4 + $0x18] sm:$0xff]
    %v1767 = vld [vmem:[#allocation4 + $0x20] sm:$0xff]
    %v1768 = vld [vmem:[#allocation4 + $0x28] sm:$0xff]
    %v1769 = vld [vmem:[#allocation4 + $0x30] sm:$0xff]
    %v1770 = vld [vmem:[#allocation4 + $0x38] sm:$0xff]
    %v1771 = vld [vmem:[#allocation4 + $0x40] sm:$0xff]
    %v1772 = vld [vmem:[#allocation4 + $0x48] sm:$0xff]
    %v1773 = vld [vmem:[#allocation4 + $0x50] sm:$0xff]
    %v1774 = vld [vmem:[#allocation4 + $0x58] sm:$0xff]
    %v1775 = vld [vmem:[#allocation4 + $0x60] sm:$0xff]
    %v1776 = vld [vmem:[#allocation4 + $0x68] sm:$0xff]
    %v1777 = vld [vmem:[#allocation4 + $0x70] sm:$0xff]
    %v1778 = vld [vmem:[#allocation4 + $0x78] sm:$0xff]
    %v1779 = vld [vmem:[#allocation4 + $0x80] sm:$0xff]
    %v1780 = vld [vmem:[#allocation4 + $0x88] sm:$0xff]
    %v1781 = vld [vmem:[#allocation4 + $0x90] sm:$0xff]
    %v1782 = vld [vmem:[#allocation4 + $0x98] sm:$0xff]
    %v1783 = vld [vmem:[#allocation4 + $0xa0] sm:$0xff]
    %v1784 = vld [vmem:[#allocation4 + $0xa8] sm:$0xff]
    %v1785 = vld [vmem:[#allocation4 + $0xb0] sm:$0xff]
    %v1786 = vld [vmem:[#allocation4 + $0xb8] sm:$0xff]
    %v1787 = vld [vmem:[#allocation4 + $0xc0] sm:$0xff]
    %v1788 = vld [vmem:[#allocation4 + $0xc8] sm:$0xff]
    %v1789 = vld [vmem:[#allocation4 + $0xd0] sm:$0xff]
    %v1790 = vld [vmem:[#allocation4 + $0xd8] sm:$0xff]
    %v1791 = vld [vmem:[#allocation4 + $0xe0] sm:$0xff]
    %v1792 = vld [vmem:[#allocation4 + $0xe8] sm:$0xff]
    %v1793 = vld [vmem:[#allocation4 + $0xf0] sm:$0xff]
    %v1794 = vld [vmem:[#allocation4 + $0xf8] sm:$0xff]
    %v1795 = vld [vmem:[#allocation4 + $0x100] sm:$0xff]
    %v1796 = vld [vmem:[#allocation4 + $0x108] sm:$0xff]
    %v1797 = vld [vmem:[#allocation4 + $0x110] sm:$0xff]
    %v1798 = vld [vmem:[#allocation4 + $0x118] sm:$0xff]
    %v1799 = vld [vmem:[#allocation4 + $0x120] sm:$0xff]
    %v1800 = vld [vmem:[#allocation4 + $0x128] sm:$0xff]
    %v1801 = vld [vmem:[#allocation4 + $0x130] sm:$0xff]
    %v1802 = vld [vmem:[#allocation4 + $0x138] sm:$0xff]
    %v1803 = vld [vmem:[#allocation4 + $0x140] sm:$0xff]
    %v1804 = vld [vmem:[#allocation4 + $0x148] sm:$0xff]
    %v1805 = vld [vmem:[#allocation4 + $0x150] sm:$0xff]
    %v1806 = vld [vmem:[#allocation4 + $0x158] sm:$0xff]
    %v1807 = vld [vmem:[#allocation4 + $0x160] sm:$0xff]
    %v1808 = vld [vmem:[#allocation4 + $0x168] sm:$0xff]
    %v1809 = vld [vmem:[#allocation4 + $0x170] sm:$0xff]
    %v1810 = vld [vmem:[#allocation4 + $0x178] sm:$0xff]
    %v1811 = vld [vmem:[#allocation4 + $0x180] sm:$0xff]
    %v1812 = vld [vmem:[#allocation4 + $0x188] sm:$0xff]
    %v1813 = vld [vmem:[#allocation4 + $0x190] sm:$0xff]
    %v1814 = vld [vmem:[#allocation4 + $0x198] sm:$0xff]
    %v1815 = vld [vmem:[#allocation4 + $0x1a0] sm:$0xff]
    %v1816 = vld [vmem:[#allocation4 + $0x1a8] sm:$0xff]
    %v1817 = vld [vmem:[#allocation4 + $0x1b0] sm:$0xff]
    %v1818 = vld [vmem:[#allocation4 + $0x1b8] sm:$0xff]
    %v1819 = vld [vmem:[#allocation4 + $0x1c0] sm:$0xff]
    %v1820 = vld [vmem:[#allocation4 + $0x1c8] sm:$0xff]
    %v1821 = vld [vmem:[#allocation4 + $0x1d0] sm:$0xff]
    %v1822 = vld [vmem:[#allocation4 + $0x1d8] sm:$0xff]
    %v1823 = vld [vmem:[#allocation4 + $0x1e0] sm:$0xff]
    %v1824 = vld [vmem:[#allocation4 + $0x1e8] sm:$0xff]
    %v1825 = vld [vmem:[#allocation4 + $0x1f0] sm:$0xff]
    %v1826 = vpack.c.bf16 %v1770, %v1763
    %v1827 = vpack.c.bf16 %v1771, %v1764
    %v1828 = vpack.c.bf16 %v1772, %v1765
    %v1829 = vpack.c.bf16 %v1773, %v1766
    %v1830 = vpack.c.bf16 %v1774, %v1767
    %v1831 = vpack.c.bf16 %v1775, %v1768
    %v1832 = vpack.c.bf16 %v1776, %v1769
    %v1833 = vpack.c.bf16 %v1784, %v1777
    %v1834 = vpack.c.bf16 %v1785, %v1778
    %v1835 = vpack.c.bf16 %v1786, %v1779
    %v1836 = vpack.c.bf16 %v1787, %v1780
    %v1837 = vpack.c.bf16 %v1788, %v1781
    %v1838 = vpack.c.bf16 %v1789, %v1782
    %v1839 = vpack.c.bf16 %v1790, %v1783
    %v1840 = vpack.c.bf16 %v1798, %v1791
    %v1841 = vpack.c.bf16 %v1799, %v1792
    %v1842 = vpack.c.bf16 %v1800, %v1793
    %v1843 = vpack.c.bf16 %v1801, %v1794
    %v1844 = vpack.c.bf16 %v1802, %v1795
    %v1845 = vpack.c.bf16 %v1803, %v1796
    %v1846 = vpack.c.bf16 %v1804, %v1797
    %v1847 = vpack.c.bf16 %v1812, %v1805
    %v1848 = vpack.c.bf16 %v1813, %v1806
    %v1849 = vpack.c.bf16 %v1814, %v1807
    %v1850 = vpack.c.bf16 %v1815, %v1808
    %v1851 = vpack.c.bf16 %v1816, %v1809
    %v1852 = vpack.c.bf16 %v1817, %v1810
    %v1853 = vpack.c.bf16 %v1818, %v1811
    %v1854 = vpack.c.bf16 %v1819, %v1819
    %v1855 = vpack.c.bf16 %v1820, %v1820
    %v1856 = vpack.c.bf16 %v1821, %v1821
    %v1857 = vpack.c.bf16 %v1822, %v1822
    %v1858 = vpack.c.bf16 %v1823, %v1823
    %v1859 = vpack.c.bf16 %v1824, %v1824
    %v1860 = vpack.c.bf16 %v1825, %v1825
    %v1861 = vld [vmem:[%s3] sm:$0xf]
    %v1862 = vld [vmem:[%s4] sm:$0xff]
    %1864 = vset.pattern.permute.xlu0 0
    %1865 = vperm.xlu0 %1864, %v1862
    %v1866 = vpop.permute.xlu0 %1865
    %v1869 = vsel %vm666, %v1861, 0
    %vm1871 = vcmask 1043456
    %v1873 = vsel %vm1871, %v1854, 0
    %v1876 = vsel %vm1871, %v1855, 0
    %v1879 = vsel %vm1871, %v1856, 0
    %v1882 = vsel %vm1871, %v1857, 0
    %v1885 = vsel %vm1871, %v1858, 0
    %v1888 = vsel %vm1871, %v1859, 0
    %v1891 = vsel %vm1871, %v1860, 0
    %1893 = vmatprep.subr.bf16.mxu0 %v1827
    %1894 = vmatpush1.bf16.msra.mxu0 %v1826
    %1895 = vmatprep.subr.bf16.mxu0 %v1834
    %1896 = vmatpush1.bf16.msra.mxu0 %v1833
    %1897 = vmatprep.subr.bf16.mxu0 %v1841
    %1898 = vmatpush1.bf16.msra.mxu0 %v1840
    %1899 = vmatprep.subr.bf16.mxu0 %v1848
    %1900 = vmatpush1.bf16.msra.mxu0 %v1847
    %1901 = vmatprep.subr.bf16.mxu0 %v1876
    %1902 = vmatpush1.bf16.msra.mxu0 %v1873
    %1903 = vmatprep.subr.bf16.mxu0 0
    %1904 = vmatpush1.bf16.msra.mxu0 0
    %1905 = vmatprep.subr.bf16.mxu0 0
    %1906 = vmatpush1.bf16.msra.mxu0 0
    %1907 = vmatprep.subr.bf16.mxu0 0
    %1908 = vmatpush1.bf16.msra.mxu0 0
    %1909 = vmatprep.subr.bf16.mxu0 0
    %1910 = vmatpush1.bf16.msra.mxu0 0
    %1911 = vmatprep.subr.bf16.mxu0 0
    %1912 = vmatpush1.bf16.msra.mxu0 0
    %1913 = vmatprep.subr.bf16.mxu0 0
    %1914 = vmatpush1.bf16.msra.mxu0 0
    %1915 = vmatprep.subr.bf16.mxu0 0
    %1916 = vmatpush1.bf16.msra.mxu0 0
    %1917 = vmatprep.subr.bf16.mxu0 0
    %1918 = vmatpush1.bf16.msra.mxu0 0
    %1919 = vmatprep.subr.bf16.mxu0 0
    %1920 = vmatpush1.bf16.msra.mxu0 0
    %1921 = vmatprep.subr.bf16.mxu0 0
    %1922 = vmatpush1.bf16.msra.mxu0 0
    %1923 = vmatprep.subr.bf16.mxu0 0
    %1924 = vmatpush1.bf16.msra.mxu0 0
    %1925 = vmatprep.mubr.bf16.mxu0 0
    %1926 = vmatmul.mubr.bf16.gmra.mrb[0].mxu0 %v1869
    %v1927 = vpop.f32.mrb[0].mxu0
    %v1928 = vadd.f32 %v1866, %v1927
    %v1929 = vpop.f32.mrb[0].mxu0
    %v1930 = vadd.f32 %v1866, %v1929
    %v1931 = vpop.f32.mrb[0].mxu0
    %v1932 = vpop.f32.mrb[0].mxu0
    %1933 = vdwg.mxu0
    %1934 = vmatprep.subr.bf16.mxu0 %v1829
    %1935 = vmatpush1.bf16.msra.mxu0 %v1828
    %1936 = vmatprep.subr.bf16.mxu0 %v1836
    %1937 = vmatpush1.bf16.msra.mxu0 %v1835
    %1938 = vmatprep.subr.bf16.mxu0 %v1843
    %1939 = vmatpush1.bf16.msra.mxu0 %v1842
    %1940 = vmatprep.subr.bf16.mxu0 %v1850
    %1941 = vmatpush1.bf16.msra.mxu0 %v1849
    %1942 = vmatprep.subr.bf16.mxu0 %v1882
    %1943 = vmatpush1.bf16.msra.mxu0 %v1879
    %1944 = vmatprep.subr.bf16.mxu0 0
    %1945 = vmatpush1.bf16.msra.mxu0 0
    %1946 = vmatprep.subr.bf16.mxu0 0
    %1947 = vmatpush1.bf16.msra.mxu0 0
    %1948 = vmatprep.subr.bf16.mxu0 0
    %1949 = vmatpush1.bf16.msra.mxu0 0
    %1950 = vmatprep.subr.bf16.mxu0 0
    %1951 = vmatpush1.bf16.msra.mxu0 0
    %1952 = vmatprep.subr.bf16.mxu0 0
    %1953 = vmatpush1.bf16.msra.mxu0 0
    %1954 = vmatprep.subr.bf16.mxu0 0
    %1955 = vmatpush1.bf16.msra.mxu0 0
    %1956 = vmatprep.subr.bf16.mxu0 0
    %1957 = vmatpush1.bf16.msra.mxu0 0
    %1958 = vmatprep.subr.bf16.mxu0 0
    %1959 = vmatpush1.bf16.msra.mxu0 0
    %1960 = vmatprep.subr.bf16.mxu0 0
    %1961 = vmatpush1.bf16.msra.mxu0 0
    %1962 = vmatprep.subr.bf16.mxu0 0
    %1963 = vmatpush1.bf16.msra.mxu0 0
    %1964 = vmatprep.subr.bf16.mxu0 0
    %1965 = vmatpush1.bf16.msra.mxu0 0
    %1966 = vmatprep.mubr.bf16.mxu0 0
    %1967 = vmatmul.mubr.bf16.gmra.mrb[0].mxu0 %v1869
    %v1968 = vpop.f32.mrb[0].mxu0
    %v1969 = vadd.f32 %v1866, %v1968
    %v1970 = vpop.f32.mrb[0].mxu0
    %v1971 = vadd.f32 %v1866, %v1970
    %v1972 = vpop.f32.mrb[0].mxu0
    %v1973 = vpop.f32.mrb[0].mxu0
    %1974 = vdwg.mxu0
    %1975 = vmatprep.subr.bf16.mxu0 %v1831
    %1976 = vmatpush1.bf16.msra.mxu0 %v1830
    %1977 = vmatprep.subr.bf16.mxu0 %v1838
    %1978 = vmatpush1.bf16.msra.mxu0 %v1837
    %1979 = vmatprep.subr.bf16.mxu0 %v1845
    %1980 = vmatpush1.bf16.msra.mxu0 %v1844
    %1981 = vmatprep.subr.bf16.mxu0 %v1852
    %1982 = vmatpush1.bf16.msra.mxu0 %v1851
    %1983 = vmatprep.subr.bf16.mxu0 %v1888
    %1984 = vmatpush1.bf16.msra.mxu0 %v1885
    %1985 = vmatprep.subr.bf16.mxu0 0
    %1986 = vmatpush1.bf16.msra.mxu0 0
    %1987 = vmatprep.subr.bf16.mxu0 0
    %1988 = vmatpush1.bf16.msra.mxu0 0
    %1989 = vmatprep.subr.bf16.mxu0 0
    %1990 = vmatpush1.bf16.msra.mxu0 0
    %1991 = vmatprep.subr.bf16.mxu0 0
    %1992 = vmatpush1.bf16.msra.mxu0 0
    %1993 = vmatprep.subr.bf16.mxu0 0
    %1994 = vmatpush1.bf16.msra.mxu0 0
    %1995 = vmatprep.subr.bf16.mxu0 0
    %1996 = vmatpush1.bf16.msra.mxu0 0
    %1997 = vmatprep.subr.bf16.mxu0 0
    %1998 = vmatpush1.bf16.msra.mxu0 0
    %1999 = vmatprep.subr.bf16.mxu0 0
    %2000 = vmatpush1.bf16.msra.mxu0 0
    %2001 = vmatprep.subr.bf16.mxu0 0
    %2002 = vmatpush1.bf16.msra.mxu0 0
    %2003 = vmatprep.subr.bf16.mxu0 0
    %2004 = vmatpush1.bf16.msra.mxu0 0
    %2005 = vmatprep.subr.bf16.mxu0 0
    %2006 = vmatpush1.bf16.msra.mxu0 0
    %2007 = vmatprep.mubr.bf16.mxu0 0
    %2008 = vmatmul.mubr.bf16.gmra.mrb[0].mxu0 %v1869
    %v2009 = vpop.f32.mrb[0].mxu0
    %v2010 = vadd.f32 %v1866, %v2009
    %v2011 = vpop.f32.mrb[0].mxu0
    %v2012 = vadd.f32 %v1866, %v2011
    %v2013 = vpop.f32.mrb[0].mxu0
    %v2014 = vpop.f32.mrb[0].mxu0
    %2015 = vdwg.mxu0
    %2016 = vmatprep.subr.bf16.mxu0 0
    %2017 = vmatpush1.bf16.msra.mxu0 %v1832
    %2018 = vmatprep.subr.bf16.mxu0 0
    %2019 = vmatpush1.bf16.msra.mxu0 %v1839
    %2020 = vmatprep.subr.bf16.mxu0 0
    %2021 = vmatpush1.bf16.msra.mxu0 %v1846
    %2022 = vmatprep.subr.bf16.mxu0 0
    %2023 = vmatpush1.bf16.msra.mxu0 %v1853
    %2024 = vmatprep.subr.bf16.mxu0 0
    %2025 = vmatpush1.bf16.msra.mxu0 %v1891
    %2026 = vmatprep.subr.bf16.mxu0 0
    %2027 = vmatpush1.bf16.msra.mxu0 0
    %2028 = vmatprep.subr.bf16.mxu0 0
    %2029 = vmatpush1.bf16.msra.mxu0 0
    %2030 = vmatprep.subr.bf16.mxu0 0
    %2031 = vmatpush1.bf16.msra.mxu0 0
    %2032 = vmatprep.subr.bf16.mxu0 0
    %2033 = vmatpush1.bf16.msra.mxu0 0
    %2034 = vmatprep.subr.bf16.mxu0 0
    %2035 = vmatpush1.bf16.msra.mxu0 0
    %2036 = vmatprep.subr.bf16.mxu0 0
    %2037 = vmatpush1.bf16.msra.mxu0 0
    %2038 = vmatprep.subr.bf16.mxu0 0
    %2039 = vmatpush1.bf16.msra.mxu0 0
    %2040 = vmatprep.subr.bf16.mxu0 0
    %2041 = vmatpush1.bf16.msra.mxu0 0
    %2042 = vmatprep.subr.bf16.mxu0 0
    %2043 = vmatpush1.bf16.msra.mxu0 0
    %2044 = vmatprep.subr.bf16.mxu0 0
    %2045 = vmatpush1.bf16.msra.mxu0 0
    %2046 = vmatprep.subr.bf16.mxu0 0
    %2047 = vmatpush1.bf16.msra.mxu0 0
    %2048 = vmatprep.mubr.bf16.mxu0 0
    %2049 = vmatmul.mubr.bf16.gmra.mrb[0].mxu0 %v1869
    %v2050 = vpop.f32.mrb[0].mxu0
    %v2051 = vadd.f32 %v1866, %v2050
    %v2052 = vpop.f32.mrb[0].mxu0
    %v2053 = vpop.f32.mrb[0].mxu0
    %v2054 = vpop.f32.mrb[0].mxu0
    %2055 = vdwg.mxu0
    %v2056 = vmax.f32 %v1928, 0.0
    %v2057 = vmax.f32 %v1930, 0.0
    %v2058 = vmax.f32 %v1969, 0.0
    %v2059 = vmax.f32 %v1971, 0.0
    %v2060 = vmax.f32 %v2010, 0.0
    %v2061 = vmax.f32 %v2012, 0.0
    %v2062 = vmax.f32 %v2051, 0.0
    %2070 = vrot.lane.b32.xlu0 %v2056, 29
    %v2071 = vpop.permute.xlu0 %2070
    %2072 = vrot.lane.b32.xlu0 %v2057, 29
    %v2073 = vpop.permute.xlu0 %2072
    %2074 = vrot.lane.b32.xlu0 %v2058, 29
    %v2075 = vpop.permute.xlu0 %2074
    %2076 = vrot.lane.b32.xlu0 %v2059, 29
    %v2077 = vpop.permute.xlu0 %2076
    %2078 = vrot.lane.b32.xlu0 %v2060, 29
    %v2079 = vpop.permute.xlu0 %2078
    %2080 = vrot.lane.b32.xlu0 %v2061, 29
    %v2081 = vpop.permute.xlu0 %2080
    %2082 = vrot.lane.b32.xlu0 %v2062, 29
    %v2083 = vpop.permute.xlu0 %2082
    %v2084 = vsel %vm53, %v2071, %v2073
    %v2085 = vsel %vm53, %v2073, %v2075
    %v2086 = vsel %vm53, %v2075, %v2077
    %v2087 = vsel %vm53, %v2077, %v2079
    %v2088 = vsel %vm53, %v2079, %v2081
    %v2089 = vsel %vm53, %v2081, %v2083
    %2097 = vst.msk [vmem:[#allocation2] sm:$0xff] %vm1111, %v2071
    %2098 = vst [vmem:[#allocation2 + $0x8] sm:$0xff] %v2084
    %2099 = vst [vmem:[#allocation2 + $0x10] sm:$0xff] %v2085
    %2100 = vst [vmem:[#allocation2 + $0x18] sm:$0xff] %v2086
    %2101 = vst [vmem:[#allocation2 + $0x20] sm:$0xff] %v2087
    %2102 = vst [vmem:[#allocation2 + $0x28] sm:$0xff] %v2088
    %2103 = vst.msk [vmem:[#allocation2 + $0x30] sm:$0xff] %vm1118, %v2089
    %v2104 = vld [vmem:[#allocation2] sm:$0xff]
    %v2105 = vld [vmem:[#allocation2 + $0x8] sm:$0xff]
    %v2106 = vld [vmem:[#allocation2 + $0x10] sm:$0xff]
    %v2107 = vld [vmem:[#allocation2 + $0x18] sm:$0xff]
    %v2108 = vld [vmem:[#allocation2 + $0x20] sm:$0xff]
    %v2109 = vld [vmem:[#allocation2 + $0x28] sm:$0xff]
    %v2110 = vld [vmem:[#allocation2 + $0x30] sm:$0xff]
    %2118 = vrot.lane.b32.xlu0 %v2104, 98
    %v2119 = vpop.permute.xlu0 %2118
    %2120 = vrot.lane.b32.xlu0 %v2105, 98
    %v2121 = vpop.permute.xlu0 %2120
    %2122 = vrot.lane.b32.xlu0 %v2106, 98
    %v2123 = vpop.permute.xlu0 %2122
    %2124 = vrot.lane.b32.xlu0 %v2107, 98
    %v2125 = vpop.permute.xlu0 %2124
    %2126 = vrot.lane.b32.xlu0 %v2108, 98
    %v2127 = vpop.permute.xlu0 %2126
    %2128 = vrot.lane.b32.xlu0 %v2109, 98
    %v2129 = vpop.permute.xlu0 %2128
    %2130 = vrot.lane.b32.xlu0 %v2110, 98
    %v2131 = vpop.permute.xlu0 %2130
    %v2132 = vsel %vm566, %v2119, %v2121
    %v2133 = vsel %vm566, %v2121, %v2123
    %v2134 = vsel %vm566, %v2123, %v2125
    %v2135 = vsel %vm566, %v2125, %v2127
    %v2136 = vsel %vm566, %v2127, %v2129
    %v2137 = vsel %vm566, %v2129, %v2131
    %v2145 = vmax.f32 %v2056, %v2132
    %v2146 = vmax.f32 %v2057, %v2133
    %v2147 = vmax.f32 %v2058, %v2134
    %v2148 = vmax.f32 %v2059, %v2135
    %v2149 = vmax.f32 %v2060, %v2136
    %v2150 = vmax.f32 %v2061, %v2137
    %v2151 = vmax.f32 %v2062, %v2131
    %2159 = vrot.lane.b32.xlu0 %v2145, 29
    %v2160 = vpop.permute.xlu0 %2159
    %2161 = vrot.lane.b32.xlu0 %v2146, 29
    %v2162 = vpop.permute.xlu0 %2161
    %2163 = vrot.lane.b32.xlu0 %v2147, 29
    %v2164 = vpop.permute.xlu0 %2163
    %2165 = vrot.lane.b32.xlu0 %v2148, 29
    %v2166 = vpop.permute.xlu0 %2165
    %2167 = vrot.lane.b32.xlu0 %v2149, 29
    %v2168 = vpop.permute.xlu0 %2167
    %2169 = vrot.lane.b32.xlu0 %v2150, 29
    %v2170 = vpop.permute.xlu0 %2169
    %2171 = vrot.lane.b32.xlu0 %v2151, 29
    %v2172 = vpop.permute.xlu0 %2171
    %v2173 = vsel %vm53, %v2160, %v2162
    %v2174 = vsel %vm53, %v2162, %v2164
    %v2175 = vsel %vm53, %v2164, %v2166
    %v2176 = vsel %vm53, %v2166, %v2168
    %v2177 = vsel %vm53, %v2168, %v2170
    %v2178 = vsel %vm53, %v2170, %v2172
    %2186 = vst.msk [vmem:[#allocation2] sm:$0xff] %vm1111, %v2160
    %2187 = vst [vmem:[#allocation2 + $0x8] sm:$0xff] %v2173
    %2188 = vst [vmem:[#allocation2 + $0x10] sm:$0xff] %v2174
    %2189 = vst [vmem:[#allocation2 + $0x18] sm:$0xff] %v2175
    %2190 = vst [vmem:[#allocation2 + $0x20] sm:$0xff] %v2176
    %2191 = vst [vmem:[#allocation2 + $0x28] sm:$0xff] %v2177
    %2192 = vst.msk [vmem:[#allocation2 + $0x30] sm:$0xff] %vm1118, %v2178
    %v2193 = vld [vmem:[#allocation2] sm:$0xff]
    %v2194 = vld [vmem:[#allocation2 + $0x8] sm:$0xff]
    %v2195 = vld [vmem:[#allocation2 + $0x10] sm:$0xff]
    %v2196 = vld [vmem:[#allocation2 + $0x18] sm:$0xff]
    %v2197 = vld [vmem:[#allocation2 + $0x20] sm:$0xff]
    %v2198 = vld [vmem:[#allocation2 + $0x28] sm:$0xff]
    %v2199 = vld [vmem:[#allocation2 + $0x30] sm:$0xff]
    %2207 = vrot.lane.b32.xlu0 %v2193, 71
    %v2208 = vpop.permute.xlu0 %2207
    %2209 = vrot.lane.b32.xlu0 %v2194, 71
    %v2210 = vpop.permute.xlu0 %2209
    %2211 = vrot.lane.b32.xlu0 %v2195, 71
    %v2212 = vpop.permute.xlu0 %2211
    %2213 = vrot.lane.b32.xlu0 %v2196, 71
    %v2214 = vpop.permute.xlu0 %2213
    %2215 = vrot.lane.b32.xlu0 %v2197, 71
    %v2216 = vpop.permute.xlu0 %2215
    %2217 = vrot.lane.b32.xlu0 %v2198, 71
    %v2218 = vpop.permute.xlu0 %2217
    %2219 = vrot.lane.b32.xlu0 %v2199, 71
    %v2220 = vpop.permute.xlu0 %2219
    %v2221 = vsel %vm723, %v2208, %v2210
    %v2222 = vsel %vm723, %v2210, %v2212
    %v2223 = vsel %vm723, %v2212, %v2214
    %v2224 = vsel %vm723, %v2214, %v2216
    %v2225 = vsel %vm723, %v2216, %v2218
    %v2226 = vsel %vm723, %v2218, %v2220
    %v2234 = vmax.f32 %v2145, %v2221
    %v2235 = vmax.f32 %v2146, %v2222
    %v2236 = vmax.f32 %v2147, %v2223
    %v2237 = vmax.f32 %v2148, %v2224
    %v2238 = vmax.f32 %v2149, %v2225
    %v2239 = vmax.f32 %v2150, %v2226
    %v2240 = vmax.f32 %v2151, %v2220
    %v2241 = vpack.c.bf16 %v2234, %v2234
    %v2242 = vpack.c.bf16 %v2235, %v2235
    %v2243 = vpack.c.bf16 %v2236, %v2236
    %v2244 = vpack.c.bf16 %v2237, %v2237
    %v2245 = vpack.c.bf16 %v2238, %v2238
    %v2246 = vpack.c.bf16 %v2239, %v2239
    %v2247 = vpack.c.bf16 %v2240, %v2240
    %v2248 = vld [vmem:[%s11] sm:$0xff]
    %v2249 = vld [vmem:[%s11 + $0x8] sm:$0xff]
    %v2250 = vld [vmem:[%s11 + $0x10] sm:$0xff]
    %v2251 = vld [vmem:[%s11 + $0x18] sm:$0xff]
    %v2252 = vld [vmem:[%s11 + $0x20] sm:$0xff]
    %v2253 = vld [vmem:[%s11 + $0x28] sm:$0xff]
    %v2254 = vld [vmem:[%s11 + $0x30] sm:$0xff]
    %v2255 = vld [vmem:[%s11 + $0x38] sm:$0xff]
    %v2256 = vld [vmem:[%s11 + $0x40] sm:$0xff]
    %v2257 = vld [vmem:[%s11 + $0x48] sm:$0xff]
    %v2258 = vld [vmem:[%s11 + $0x50] sm:$0xff]
    %v2259 = vld [vmem:[%s11 + $0x58] sm:$0xff]
    %v2260 = vld [vmem:[%s11 + $0x60] sm:$0xff]
    %v2261 = vld [vmem:[%s11 + $0x68] sm:$0xff]
    %v2262 = vld [vmem:[%s11 + $0x70] sm:$0xff]
    %v2263 = vld [vmem:[%s11 + $0x78] sm:$0xff]
    %v2264 = vld [vmem:[%s11 + $0x80] sm:$0xff]
    %v2265 = vld [vmem:[%s11 + $0x88] sm:$0xff]
    %v2266 = vld [vmem:[%s11 + $0x90] sm:$0xff]
    %v2267 = vld [vmem:[%s11 + $0x98] sm:$0xff]
    %v2268 = vld [vmem:[%s11 + $0xa0] sm:$0xff]
    %v2269 = vld [vmem:[%s11 + $0xa8] sm:$0xff]
    %v2270 = vld [vmem:[%s11 + $0xb0] sm:$0xff]
    %v2271 = vld [vmem:[%s11 + $0xb8] sm:$0xff]
    %v2272 = vld [vmem:[%s11 + $0xc0] sm:$0xff]
    %v2273 = vld [vmem:[%s11 + $0xc8] sm:$0xff]
    %v2274 = vld [vmem:[%s11 + $0xd0] sm:$0xff]
    %v2275 = vld [vmem:[%s11 + $0xd8] sm:$0xff]
    %v2276 = vld [vmem:[%s11 + $0xe0] sm:$0xff]
    %v2277 = vld [vmem:[%s11 + $0xe8] sm:$0xff]
    %v2278 = vld [vmem:[%s11 + $0xf0] sm:$0xff]
    %v2279 = vld [vmem:[%s11 + $0xf8] sm:$0xff]
    %v2280 = vld [vmem:[%s11 + $0x100] sm:$0xff]
    %v2281 = vld [vmem:[%s11 + $0x108] sm:$0xff]
    %v2282 = vld [vmem:[%s11 + $0x110] sm:$0xff]
    %v2283 = vld [vmem:[%s11 + $0x118] sm:$0xff]
    %v2284 = vld [vmem:[%s11 + $0x120] sm:$0xff]
    %v2285 = vld [vmem:[%s11 + $0x128] sm:$0xff]
    %v2286 = vld [vmem:[%s11 + $0x130] sm:$0xff]
    %v2287 = vld [vmem:[%s11 + $0x138] sm:$0xff]
    %v2288 = vld [vmem:[%s11 + $0x140] sm:$0xff]
    %v2289 = vld [vmem:[%s11 + $0x148] sm:$0xff]
    %v2290 = vld [vmem:[%s11 + $0x150] sm:$0xff]
    %v2291 = vld [vmem:[%s11 + $0x158] sm:$0xff]
    %v2292 = vld [vmem:[%s11 + $0x160] sm:$0xff]
    %v2293 = vld [vmem:[%s11 + $0x168] sm:$0xff]
    %v2294 = vld [vmem:[%s11 + $0x170] sm:$0xff]
    %v2295 = vld [vmem:[%s11 + $0x178] sm:$0xff]
    %v2296 = vld [vmem:[%s11 + $0x180] sm:$0xff]
    %v2297 = vld [vmem:[%s11 + $0x188] sm:$0xff]
    %v2298 = vld [vmem:[%s11 + $0x190] sm:$0xff]
    %v2299 = vld [vmem:[%s11 + $0x198] sm:$0xff]
    %v2300 = vld [vmem:[%s11 + $0x1a0] sm:$0xff]
    %v2301 = vld [vmem:[%s11 + $0x1a8] sm:$0xff]
    %v2302 = vld [vmem:[%s11 + $0x1b0] sm:$0xff]
    %v2303 = vld [vmem:[%s11 + $0x1b8] sm:$0xff]
    %v2304 = vld [vmem:[%s11 + $0x1c0] sm:$0xff]
    %v2305 = vld [vmem:[%s11 + $0x1c8] sm:$0xff]
    %v2306 = vld [vmem:[%s11 + $0x1d0] sm:$0xff]
    %v2307 = vld [vmem:[%s11 + $0x1d8] sm:$0xff]
    %v2308 = vld [vmem:[%s11 + $0x1e0] sm:$0xff]
    %v2309 = vld [vmem:[%s11 + $0x1e8] sm:$0xff]
    %v2310 = vld [vmem:[%s11 + $0x1f0] sm:$0xff]
    %v2311 = vld [vmem:[%s11 + $0x1f8] sm:$0xff]
    %v2312 = vld [vmem:[%s11 + $0x200] sm:$0xff]
    %v2313 = vld [vmem:[%s11 + $0x208] sm:$0xff]
    %v2314 = vld [vmem:[%s11 + $0x210] sm:$0xff]
    %v2315 = vld [vmem:[%s11 + $0x218] sm:$0xff]
    %v2316 = vld [vmem:[%s11 + $0x220] sm:$0xff]
    %v2317 = vld [vmem:[%s11 + $0x228] sm:$0xff]
    %v2318 = vld [vmem:[%s11 + $0x230] sm:$0xff]
    %v2319 = vld [vmem:[%s11 + $0x238] sm:$0xff]
    %v2320 = vld [vmem:[%s11 + $0x240] sm:$0xff]
    %v2321 = vld [vmem:[%s11 + $0x248] sm:$0xff]
    %v2322 = vld [vmem:[%s11 + $0x250] sm:$0xff]
    %v2323 = vld [vmem:[%s11 + $0x258] sm:$0xff]
    %v2324 = vld [vmem:[%s11 + $0x260] sm:$0xff]
    %v2325 = vld [vmem:[%s11 + $0x268] sm:$0xff]
    %v2326 = vld [vmem:[%s11 + $0x270] sm:$0xff]
    %v2327 = vld [vmem:[%s11 + $0x278] sm:$0xff]
    %v2328 = vld [vmem:[%s11 + $0x280] sm:$0xff]
    %v2329 = vld [vmem:[%s11 + $0x288] sm:$0xff]
    %v2330 = vld [vmem:[%s11 + $0x290] sm:$0xff]
    %v2331 = vld [vmem:[%s11 + $0x298] sm:$0xff]
    %v2332 = vld [vmem:[%s11 + $0x2a0] sm:$0xff]
    %v2333 = vld [vmem:[%s11 + $0x2a8] sm:$0xff]
    %v2334 = vld [vmem:[%s11 + $0x2b0] sm:$0xff]
    %v2335 = vld [vmem:[%s11 + $0x2b8] sm:$0xff]
    %v2336 = vld [vmem:[%s11 + $0x2c0] sm:$0xff]
    %v2337 = vld [vmem:[%s11 + $0x2c8] sm:$0xff]
    %v2338 = vld [vmem:[%s11 + $0x2d0] sm:$0xff]
    %v2339 = vld [vmem:[%s11 + $0x2d8] sm:$0xff]
    %v2340 = vld [vmem:[%s11 + $0x2e0] sm:$0xff]
    %v2341 = vld [vmem:[%s11 + $0x2e8] sm:$0xff]
    %v2342 = vld [vmem:[%s11 + $0x2f0] sm:$0xff]
    %v2343 = vld [vmem:[%s11 + $0x2f8] sm:$0xff]
    %v2344 = vld [vmem:[%s11 + $0x300] sm:$0xff]
    %v2345 = vld [vmem:[%s11 + $0x308] sm:$0xff]
    %v2444 = vunpack.c.l.b16 %v2248
    %v2445 = vunpack.c.h.b16 %v2248
    %v2446 = vunpack.c.l.b16 %v2249
    %v2447 = vunpack.c.h.b16 %v2249
    %v2448 = vunpack.c.l.b16 %v2250
    %v2449 = vunpack.c.h.b16 %v2250
    %v2450 = vunpack.c.l.b16 %v2251
    %v2451 = vunpack.c.h.b16 %v2251
    %v2452 = vunpack.c.l.b16 %v2252
    %v2453 = vunpack.c.h.b16 %v2252
    %v2454 = vunpack.c.l.b16 %v2253
    %v2455 = vunpack.c.h.b16 %v2253
    %v2456 = vunpack.c.l.b16 %v2254
    %v2457 = vunpack.c.h.b16 %v2254
    %v2458 = vunpack.c.l.b16 %v2255
    %v2459 = vunpack.c.h.b16 %v2255
    %v2460 = vunpack.c.l.b16 %v2256
    %v2461 = vunpack.c.h.b16 %v2256
    %v2462 = vunpack.c.l.b16 %v2257
    %v2463 = vunpack.c.h.b16 %v2257
    %v2464 = vunpack.c.l.b16 %v2258
    %v2465 = vunpack.c.h.b16 %v2258
    %v2466 = vunpack.c.l.b16 %v2259
    %v2467 = vunpack.c.h.b16 %v2259
    %v2468 = vunpack.c.l.b16 %v2260
    %v2469 = vunpack.c.h.b16 %v2260
    %v2470 = vunpack.c.l.b16 %v2261
    %v2471 = vunpack.c.h.b16 %v2261
    %v2472 = vunpack.c.l.b16 %v2262
    %v2473 = vunpack.c.h.b16 %v2262
    %v2474 = vunpack.c.l.b16 %v2263
    %v2475 = vunpack.c.h.b16 %v2263
    %v2476 = vunpack.c.l.b16 %v2264
    %v2477 = vunpack.c.h.b16 %v2264
    %v2478 = vunpack.c.l.b16 %v2265
    %v2479 = vunpack.c.h.b16 %v2265
    %v2480 = vunpack.c.l.b16 %v2266
    %v2481 = vunpack.c.h.b16 %v2266
    %v2482 = vunpack.c.l.b16 %v2267
    %v2483 = vunpack.c.h.b16 %v2267
    %v2484 = vunpack.c.l.b16 %v2268
    %v2485 = vunpack.c.h.b16 %v2268
    %v2486 = vunpack.c.l.b16 %v2269
    %v2487 = vunpack.c.h.b16 %v2269
    %v2488 = vunpack.c.l.b16 %v2270
    %v2489 = vunpack.c.h.b16 %v2270
    %v2490 = vunpack.c.l.b16 %v2271
    %v2491 = vunpack.c.h.b16 %v2271
    %v2492 = vunpack.c.l.b16 %v2272
    %v2493 = vunpack.c.h.b16 %v2272
    %v2494 = vunpack.c.l.b16 %v2273
    %v2495 = vunpack.c.h.b16 %v2273
    %v2496 = vunpack.c.l.b16 %v2274
    %v2497 = vunpack.c.h.b16 %v2274
    %v2498 = vunpack.c.l.b16 %v2275
    %v2499 = vunpack.c.h.b16 %v2275
    %v2500 = vunpack.c.l.b16 %v2276
    %v2501 = vunpack.c.h.b16 %v2276
    %v2502 = vunpack.c.l.b16 %v2277
    %v2503 = vunpack.c.h.b16 %v2277
    %v2504 = vunpack.c.l.b16 %v2278
    %v2505 = vunpack.c.h.b16 %v2278
    %v2506 = vunpack.c.l.b16 %v2279
    %v2507 = vunpack.c.h.b16 %v2279
    %v2508 = vunpack.c.l.b16 %v2280
    %v2509 = vunpack.c.h.b16 %v2280
    %v2510 = vunpack.c.l.b16 %v2281
    %v2511 = vunpack.c.h.b16 %v2281
    %v2512 = vunpack.c.l.b16 %v2282
    %v2513 = vunpack.c.h.b16 %v2282
    %v2514 = vunpack.c.l.b16 %v2283
    %v2515 = vunpack.c.h.b16 %v2283
    %v2516 = vunpack.c.l.b16 %v2284
    %v2517 = vunpack.c.h.b16 %v2284
    %v2518 = vunpack.c.l.b16 %v2285
    %v2519 = vunpack.c.h.b16 %v2285
    %v2520 = vunpack.c.l.b16 %v2286
    %v2521 = vunpack.c.h.b16 %v2286
    %v2522 = vunpack.c.l.b16 %v2287
    %v2523 = vunpack.c.h.b16 %v2287
    %v2524 = vunpack.c.l.b16 %v2288
    %v2525 = vunpack.c.h.b16 %v2288
    %v2526 = vunpack.c.l.b16 %v2289
    %v2527 = vunpack.c.h.b16 %v2289
    %v2528 = vunpack.c.l.b16 %v2290
    %v2529 = vunpack.c.h.b16 %v2290
    %v2530 = vunpack.c.l.b16 %v2291
    %v2531 = vunpack.c.h.b16 %v2291
    %v2532 = vunpack.c.l.b16 %v2292
    %v2533 = vunpack.c.h.b16 %v2292
    %v2534 = vunpack.c.l.b16 %v2293
    %v2535 = vunpack.c.h.b16 %v2293
    %v2536 = vunpack.c.l.b16 %v2294
    %v2537 = vunpack.c.h.b16 %v2294
    %v2538 = vunpack.c.l.b16 %v2295
    %v2539 = vunpack.c.h.b16 %v2295
    %v2540 = vunpack.c.l.b16 %v2296
    %v2541 = vunpack.c.h.b16 %v2296
    %v2542 = vunpack.c.l.b16 %v2297
    %v2543 = vunpack.c.h.b16 %v2297
    %v2544 = vunpack.c.l.b16 %v2298
    %v2545 = vunpack.c.h.b16 %v2298
    %v2546 = vunpack.c.l.b16 %v2299
    %v2547 = vunpack.c.h.b16 %v2299
    %v2548 = vunpack.c.l.b16 %v2300
    %v2549 = vunpack.c.h.b16 %v2300
    %v2550 = vunpack.c.l.b16 %v2301
    %v2551 = vunpack.c.h.b16 %v2301
    %v2552 = vunpack.c.l.b16 %v2302
    %v2553 = vunpack.c.h.b16 %v2302
    %v2554 = vunpack.c.l.b16 %v2303
    %v2555 = vunpack.c.h.b16 %v2303
    %v2556 = vunpack.c.l.b16 %v2304
    %v2557 = vunpack.c.h.b16 %v2304
    %v2558 = vunpack.c.l.b16 %v2305
    %v2559 = vunpack.c.h.b16 %v2305
    %v2560 = vunpack.c.l.b16 %v2306
    %v2561 = vunpack.c.h.b16 %v2306
    %v2562 = vunpack.c.l.b16 %v2307
    %v2563 = vunpack.c.h.b16 %v2307
    %v2564 = vunpack.c.l.b16 %v2308
    %v2565 = vunpack.c.h.b16 %v2308
    %v2566 = vunpack.c.l.b16 %v2309
    %v2567 = vunpack.c.h.b16 %v2309
    %v2568 = vunpack.c.l.b16 %v2310
    %v2569 = vunpack.c.h.b16 %v2310
    %v2570 = vunpack.c.l.b16 %v2311
    %v2571 = vunpack.c.h.b16 %v2311
    %v2572 = vunpack.c.l.b16 %v2312
    %v2573 = vunpack.c.h.b16 %v2312
    %v2574 = vunpack.c.l.b16 %v2313
    %v2575 = vunpack.c.h.b16 %v2313
    %v2576 = vunpack.c.l.b16 %v2314
    %v2577 = vunpack.c.h.b16 %v2314
    %v2578 = vunpack.c.l.b16 %v2315
    %v2579 = vunpack.c.h.b16 %v2315
    %v2580 = vunpack.c.l.b16 %v2316
    %v2581 = vunpack.c.h.b16 %v2316
    %v2582 = vunpack.c.l.b16 %v2317
    %v2583 = vunpack.c.h.b16 %v2317
    %v2584 = vunpack.c.l.b16 %v2318
    %v2585 = vunpack.c.h.b16 %v2318
    %v2586 = vunpack.c.l.b16 %v2319
    %v2587 = vunpack.c.h.b16 %v2319
    %v2588 = vunpack.c.l.b16 %v2320
    %v2589 = vunpack.c.h.b16 %v2320
    %v2590 = vunpack.c.l.b16 %v2321
    %v2591 = vunpack.c.h.b16 %v2321
    %v2592 = vunpack.c.l.b16 %v2322
    %v2593 = vunpack.c.h.b16 %v2322
    %v2594 = vunpack.c.l.b16 %v2323
    %v2595 = vunpack.c.h.b16 %v2323
    %v2596 = vunpack.c.l.b16 %v2324
    %v2597 = vunpack.c.h.b16 %v2324
    %v2598 = vunpack.c.l.b16 %v2325
    %v2599 = vunpack.c.h.b16 %v2325
    %v2600 = vunpack.c.l.b16 %v2326
    %v2601 = vunpack.c.h.b16 %v2326
    %v2602 = vunpack.c.l.b16 %v2327
    %v2603 = vunpack.c.h.b16 %v2327
    %v2604 = vunpack.c.l.b16 %v2328
    %v2605 = vunpack.c.h.b16 %v2328
    %v2606 = vunpack.c.l.b16 %v2329
    %v2607 = vunpack.c.h.b16 %v2329
    %v2608 = vunpack.c.l.b16 %v2330
    %v2609 = vunpack.c.h.b16 %v2330
    %v2610 = vunpack.c.l.b16 %v2331
    %v2611 = vunpack.c.h.b16 %v2331
    %v2612 = vunpack.c.l.b16 %v2332
    %v2613 = vunpack.c.h.b16 %v2332
    %v2614 = vunpack.c.l.b16 %v2333
    %v2615 = vunpack.c.h.b16 %v2333
    %v2616 = vunpack.c.l.b16 %v2334
    %v2617 = vunpack.c.h.b16 %v2334
    %v2618 = vunpack.c.l.b16 %v2335
    %v2619 = vunpack.c.h.b16 %v2335
    %v2620 = vunpack.c.l.b16 %v2336
    %v2621 = vunpack.c.h.b16 %v2336
    %v2622 = vunpack.c.l.b16 %v2337
    %v2623 = vunpack.c.h.b16 %v2337
    %v2624 = vunpack.c.l.b16 %v2338
    %v2625 = vunpack.c.h.b16 %v2338
    %v2626 = vunpack.c.l.b16 %v2339
    %v2627 = vunpack.c.h.b16 %v2339
    %v2628 = vunpack.c.l.b16 %v2340
    %v2629 = vunpack.c.h.b16 %v2340
    %v2630 = vunpack.c.l.b16 %v2341
    %v2631 = vunpack.c.h.b16 %v2341
    %v2632 = vunpack.c.l.b16 %v2342
    %v2633 = vunpack.c.h.b16 %v2342
    %v2634 = vunpack.c.l.b16 %v2343
    %v2635 = vunpack.c.h.b16 %v2343
    %v2636 = vunpack.c.l.b16 %v2344
    %v2637 = vunpack.c.h.b16 %v2344
    %v2638 = vunpack.c.l.b16 %v2345
    %v2639 = vunpack.c.h.b16 %v2345
    %v2640 = vpack.c.b16 %v2446, %v2444
    %v2641 = vpack.c.b16 %v2447, %v2445
    %v2642 = vpack.c.b16 %v2450, %v2448
    %v2643 = vpack.c.b16 %v2451, %v2449
    %v2644 = vpack.c.b16 %v2454, %v2452
    %v2645 = vpack.c.b16 %v2455, %v2453
    %v2646 = vpack.c.b16 %v2458, %v2456
    %v2647 = vpack.c.b16 %v2459, %v2457
    %v2648 = vpack.c.b16 %v2462, %v2460
    %v2649 = vpack.c.b16 %v2463, %v2461
    %v2650 = vpack.c.b16 %v2466, %v2464
    %v2651 = vpack.c.b16 %v2467, %v2465
    %v2652 = vpack.c.b16 %v2470, %v2468
    %v2653 = vpack.c.b16 %v2471, %v2469
    %v2654 = vpack.c.b16 %v2474, %v2472
    %v2655 = vpack.c.b16 %v2475, %v2473
    %v2656 = vpack.c.b16 %v2478, %v2476
    %v2657 = vpack.c.b16 %v2479, %v2477
    %v2658 = vpack.c.b16 %v2482, %v2480
    %v2659 = vpack.c.b16 %v2483, %v2481
    %v2660 = vpack.c.b16 %v2486, %v2484
    %v2661 = vpack.c.b16 %v2487, %v2485
    %v2662 = vpack.c.b16 %v2490, %v2488
    %v2663 = vpack.c.b16 %v2491, %v2489
    %v2664 = vpack.c.b16 %v2494, %v2492
    %v2665 = vpack.c.b16 %v2495, %v2493
    %v2666 = vpack.c.b16 %v2498, %v2496
    %v2667 = vpack.c.b16 %v2499, %v2497
    %v2668 = vpack.c.b16 %v2502, %v2500
    %v2669 = vpack.c.b16 %v2503, %v2501
    %v2670 = vpack.c.b16 %v2506, %v2504
    %v2671 = vpack.c.b16 %v2507, %v2505
    %v2672 = vpack.c.b16 %v2510, %v2508
    %v2673 = vpack.c.b16 %v2511, %v2509
    %v2674 = vpack.c.b16 %v2514, %v2512
    %v2675 = vpack.c.b16 %v2515, %v2513
    %v2676 = vpack.c.b16 %v2518, %v2516
    %v2677 = vpack.c.b16 %v2519, %v2517
    %v2678 = vpack.c.b16 %v2522, %v2520
    %v2679 = vpack.c.b16 %v2523, %v2521
    %v2680 = vpack.c.b16 %v2526, %v2524
    %v2681 = vpack.c.b16 %v2527, %v2525
    %v2682 = vpack.c.b16 %v2530, %v2528
    %v2683 = vpack.c.b16 %v2531, %v2529
    %v2684 = vpack.c.b16 %v2534, %v2532
    %v2685 = vpack.c.b16 %v2535, %v2533
    %v2686 = vpack.c.b16 %v2538, %v2536
    %v2687 = vpack.c.b16 %v2539, %v2537
    %v2688 = vpack.c.b16 %v2542, %v2540
    %v2689 = vpack.c.b16 %v2543, %v2541
    %v2690 = vpack.c.b16 %v2546, %v2544
    %v2691 = vpack.c.b16 %v2547, %v2545
    %v2692 = vpack.c.b16 %v2550, %v2548
    %v2693 = vpack.c.b16 %v2551, %v2549
    %v2694 = vpack.c.b16 %v2554, %v2552
    %v2695 = vpack.c.b16 %v2555, %v2553
    %v2696 = vpack.c.b16 %v2558, %v2556
    %v2697 = vpack.c.b16 %v2559, %v2557
    %v2698 = vpack.c.b16 %v2562, %v2560
    %v2699 = vpack.c.b16 %v2563, %v2561
    %v2700 = vpack.c.b16 %v2566, %v2564
    %v2701 = vpack.c.b16 %v2567, %v2565
    %v2702 = vpack.c.b16 %v2570, %v2568
    %v2703 = vpack.c.b16 %v2571, %v2569
    %v2704 = vpack.c.b16 %v2574, %v2572
    %v2705 = vpack.c.b16 %v2575, %v2573
    %v2706 = vpack.c.b16 %v2578, %v2576
    %v2707 = vpack.c.b16 %v2579, %v2577
    %v2708 = vpack.c.b16 %v2582, %v2580
    %v2709 = vpack.c.b16 %v2583, %v2581
    %v2710 = vpack.c.b16 %v2586, %v2584
    %v2711 = vpack.c.b16 %v2587, %v2585
    %v2712 = vpack.c.b16 %v2590, %v2588
    %v2713 = vpack.c.b16 %v2591, %v2589
    %v2714 = vpack.c.b16 %v2594, %v2592
    %v2715 = vpack.c.b16 %v2595, %v2593
    %v2716 = vpack.c.b16 %v2598, %v2596
    %v2717 = vpack.c.b16 %v2599, %v2597
    %v2718 = vpack.c.b16 %v2602, %v2600
    %v2719 = vpack.c.b16 %v2603, %v2601
    %v2720 = vpack.c.b16 %v2606, %v2604
    %v2721 = vpack.c.b16 %v2607, %v2605
    %v2722 = vpack.c.b16 %v2610, %v2608
    %v2723 = vpack.c.b16 %v2611, %v2609
    %v2724 = vpack.c.b16 %v2614, %v2612
    %v2725 = vpack.c.b16 %v2615, %v2613
    %v2726 = vpack.c.b16 %v2618, %v2616
    %v2727 = vpack.c.b16 %v2619, %v2617
    %v2728 = vpack.c.b16 %v2622, %v2620
    %v2729 = vpack.c.b16 %v2623, %v2621
    %v2730 = vpack.c.b16 %v2626, %v2624
    %v2731 = vpack.c.b16 %v2627, %v2625
    %v2732 = vpack.c.b16 %v2630, %v2628
    %v2733 = vpack.c.b16 %v2631, %v2629
    %v2734 = vpack.c.b16 %v2634, %v2632
    %v2735 = vpack.c.b16 %v2635, %v2633
    %v2736 = vpack.c.b16 %v2638, %v2636
    %v2737 = vpack.c.b16 %v2639, %v2637
    %v2837 = vsel %vm1178, %v2247, 0
    %2839 = vmatprep.subr.bf16.mxu0 %v2641
    %2840 = vmatpush1.bf16.msra.mxu0 %v2640
    %2841 = vmatprep.subr.bf16.mxu0 %v2643
    %2842 = vmatpush1.bf16.msra.mxu0 %v2642
    %2843 = vmatprep.subr.bf16.mxu0 %v2645
    %2844 = vmatpush1.bf16.msra.mxu0 %v2644
    %2845 = vmatprep.subr.bf16.mxu0 %v2647
    %2846 = vmatpush1.bf16.msra.mxu0 %v2646
    %2847 = vmatprep.subr.bf16.mxu0 %v2649
    %2848 = vmatpush1.bf16.msra.mxu0 %v2648
    %2849 = vmatprep.subr.bf16.mxu0 %v2651
    %2850 = vmatpush1.bf16.msra.mxu0 %v2650
    %2851 = vmatprep.subr.bf16.mxu0 %v2653
    %2852 = vmatpush1.bf16.msra.mxu0 %v2652
    %2853 = vmatprep.subr.bf16.mxu0 %v2655
    %2854 = vmatpush1.bf16.msra.mxu0 %v2654
    %2855 = vmatprep.subr.bf16.mxu0 %v2657
    %2856 = vmatpush1.bf16.msra.mxu0 %v2656
    %2857 = vmatprep.subr.bf16.mxu0 %v2659
    %2858 = vmatpush1.bf16.msra.mxu0 %v2658
    %2859 = vmatprep.subr.bf16.mxu0 %v2661
    %2860 = vmatpush1.bf16.msra.mxu0 %v2660
    %2861 = vmatprep.subr.bf16.mxu0 %v2663
    %2862 = vmatpush1.bf16.msra.mxu0 %v2662
    %2863 = vmatprep.subr.bf16.mxu0 %v2665
    %2864 = vmatpush1.bf16.msra.mxu0 %v2664
    %2865 = vmatprep.subr.bf16.mxu0 %v2667
    %2866 = vmatpush1.bf16.msra.mxu0 %v2666
    %2867 = vmatprep.subr.bf16.mxu0 %v2669
    %2868 = vmatpush1.bf16.msra.mxu0 %v2668
    %2869 = vmatprep.subr.bf16.mxu0 %v2671
    %2870 = vmatpush1.bf16.msra.mxu0 %v2670
    %2871 = vmatprep.mubr.bf16.mxu0 %v2242
    %2872 = vmatmul.mubr.bf16.gmra.mrb[0].mxu0 %v2241
    %v2873 = vpop.f32.mrb[0].mxu0
    %v2874 = vadd.f32 0.0, %v2873
    %v2875 = vpop.f32.mrb[0].mxu0
    %v2876 = vadd.f32 0.0, %v2875
    %v2877 = vpop.f32.mrb[0].mxu0
    %v2878 = vpop.f32.mrb[0].mxu0
    %2879 = vdwg.mxu0
    %2880 = vmatprep.subr.bf16.mxu0 %v2673
    %2881 = vmatpush1.bf16.msra.mxu0 %v2672
    %2882 = vmatprep.subr.bf16.mxu0 %v2675
    %2883 = vmatpush1.bf16.msra.mxu0 %v2674
    %2884 = vmatprep.subr.bf16.mxu0 %v2677
    %2885 = vmatpush1.bf16.msra.mxu0 %v2676
    %2886 = vmatprep.subr.bf16.mxu0 %v2679
    %2887 = vmatpush1.bf16.msra.mxu0 %v2678
    %2888 = vmatprep.subr.bf16.mxu0 %v2681
    %2889 = vmatpush1.bf16.msra.mxu0 %v2680
    %2890 = vmatprep.subr.bf16.mxu0 %v2683
    %2891 = vmatpush1.bf16.msra.mxu0 %v2682
    %2892 = vmatprep.subr.bf16.mxu0 %v2685
    %2893 = vmatpush1.bf16.msra.mxu0 %v2684
    %2894 = vmatprep.subr.bf16.mxu0 %v2687
    %2895 = vmatpush1.bf16.msra.mxu0 %v2686
    %2896 = vmatprep.subr.bf16.mxu0 %v2689
    %2897 = vmatpush1.bf16.msra.mxu0 %v2688
    %2898 = vmatprep.subr.bf16.mxu0 %v2691
    %2899 = vmatpush1.bf16.msra.mxu0 %v2690
    %2900 = vmatprep.subr.bf16.mxu0 %v2693
    %2901 = vmatpush1.bf16.msra.mxu0 %v2692
    %2902 = vmatprep.subr.bf16.mxu0 %v2695
    %2903 = vmatpush1.bf16.msra.mxu0 %v2694
    %2904 = vmatprep.subr.bf16.mxu0 %v2697
    %2905 = vmatpush1.bf16.msra.mxu0 %v2696
    %2906 = vmatprep.subr.bf16.mxu0 %v2699
    %2907 = vmatpush1.bf16.msra.mxu0 %v2698
    %2908 = vmatprep.subr.bf16.mxu0 %v2701
    %2909 = vmatpush1.bf16.msra.mxu0 %v2700
    %2910 = vmatprep.subr.bf16.mxu0 %v2703
    %2911 = vmatpush1.bf16.msra.mxu0 %v2702
    %2912 = vmatprep.mubr.bf16.mxu0 %v2244
    %2913 = vmatmul.mubr.bf16.gmra.mrb[0].mxu0 %v2243
    %v2914 = vpop.f32.mrb[0].mxu0
    %v2915 = vadd.f32 %v2874, %v2914
    %v2916 = vpop.f32.mrb[0].mxu0
    %v2917 = vadd.f32 %v2876, %v2916
    %v2918 = vpop.f32.mrb[0].mxu0
    %v2919 = vpop.f32.mrb[0].mxu0
    %2920 = vdwg.mxu0
    %2921 = vmatprep.subr.bf16.mxu0 %v2705
    %2922 = vmatpush1.bf16.msra.mxu0 %v2704
    %2923 = vmatprep.subr.bf16.mxu0 %v2707
    %2924 = vmatpush1.bf16.msra.mxu0 %v2706
    %2925 = vmatprep.subr.bf16.mxu0 %v2709
    %2926 = vmatpush1.bf16.msra.mxu0 %v2708
    %2927 = vmatprep.subr.bf16.mxu0 %v2711
    %2928 = vmatpush1.bf16.msra.mxu0 %v2710
    %2929 = vmatprep.subr.bf16.mxu0 %v2713
    %2930 = vmatpush1.bf16.msra.mxu0 %v2712
    %2931 = vmatprep.subr.bf16.mxu0 %v2715
    %2932 = vmatpush1.bf16.msra.mxu0 %v2714
    %2933 = vmatprep.subr.bf16.mxu0 %v2717
    %2934 = vmatpush1.bf16.msra.mxu0 %v2716
    %2935 = vmatprep.subr.bf16.mxu0 %v2719
    %2936 = vmatpush1.bf16.msra.mxu0 %v2718
    %2937 = vmatprep.subr.bf16.mxu0 %v2721
    %2938 = vmatpush1.bf16.msra.mxu0 %v2720
    %2939 = vmatprep.subr.bf16.mxu0 %v2723
    %2940 = vmatpush1.bf16.msra.mxu0 %v2722
    %2941 = vmatprep.subr.bf16.mxu0 %v2725
    %2942 = vmatpush1.bf16.msra.mxu0 %v2724
    %2943 = vmatprep.subr.bf16.mxu0 %v2727
    %2944 = vmatpush1.bf16.msra.mxu0 %v2726
    %2945 = vmatprep.subr.bf16.mxu0 %v2729
    %2946 = vmatpush1.bf16.msra.mxu0 %v2728
    %2947 = vmatprep.subr.bf16.mxu0 %v2731
    %2948 = vmatpush1.bf16.msra.mxu0 %v2730
    %2949 = vmatprep.subr.bf16.mxu0 %v2733
    %2950 = vmatpush1.bf16.msra.mxu0 %v2732
    %2951 = vmatprep.subr.bf16.mxu0 %v2735
    %2952 = vmatpush1.bf16.msra.mxu0 %v2734
    %2953 = vmatprep.mubr.bf16.mxu0 %v2246
    %2954 = vmatmul.mubr.bf16.gmra.mrb[0].mxu0 %v2245
    %v2955 = vpop.f32.mrb[0].mxu0
    %v2956 = vadd.f32 %v2915, %v2955
    %v2957 = vpop.f32.mrb[0].mxu0
    %v2958 = vadd.f32 %v2917, %v2957
    %v2959 = vpop.f32.mrb[0].mxu0
    %v2960 = vpop.f32.mrb[0].mxu0
    %2961 = vdwg.mxu0
    %2962 = vmatprep.subr.bf16.mxu0 %v2737
    %2963 = vmatpush1.bf16.msra.mxu0 %v2736
    %2964 = vmatprep.subr.bf16.mxu0 0
    %2965 = vmatpush1.bf16.msra.mxu0 0
    %2966 = vmatprep.subr.bf16.mxu0 0
    %2967 = vmatpush1.bf16.msra.mxu0 0
    %2968 = vmatprep.subr.bf16.mxu0 0
    %2969 = vmatpush1.bf16.msra.mxu0 0
    %2970 = vmatprep.subr.bf16.mxu0 0
    %2971 = vmatpush1.bf16.msra.mxu0 0
    %2972 = vmatprep.subr.bf16.mxu0 0
    %2973 = vmatpush1.bf16.msra.mxu0 0
    %2974 = vmatprep.subr.bf16.mxu0 0
    %2975 = vmatpush1.bf16.msra.mxu0 0
    %2976 = vmatprep.subr.bf16.mxu0 0
    %2977 = vmatpush1.bf16.msra.mxu0 0
    %2978 = vmatprep.subr.bf16.mxu0 0
    %2979 = vmatpush1.bf16.msra.mxu0 0
    %2980 = vmatprep.subr.bf16.mxu0 0
    %2981 = vmatpush1.bf16.msra.mxu0 0
    %2982 = vmatprep.subr.bf16.mxu0 0
    %2983 = vmatpush1.bf16.msra.mxu0 0
    %2984 = vmatprep.subr.bf16.mxu0 0
    %2985 = vmatpush1.bf16.msra.mxu0 0
    %2986 = vmatprep.subr.bf16.mxu0 0
    %2987 = vmatpush1.bf16.msra.mxu0 0
    %2988 = vmatprep.subr.bf16.mxu0 0
    %2989 = vmatpush1.bf16.msra.mxu0 0
    %2990 = vmatprep.subr.bf16.mxu0 0
    %2991 = vmatpush1.bf16.msra.mxu0 0
    %2992 = vmatprep.subr.bf16.mxu0 0
    %2993 = vmatpush1.bf16.msra.mxu0 0
    %2994 = vmatprep.mubr.bf16.mxu0 0
    %2995 = vmatmul.mubr.bf16.gmra.mrb[0].mxu0 %v2837
    %v2996 = vpop.f32.mrb[0].mxu0
    %v2997 = vadd.f32 %v2956, %v2996
    %v2998 = vpop.f32.mrb[0].mxu0
    %v2999 = vadd.f32 %v2958, %v2998
    %v3000 = vpop.f32.mrb[0].mxu0
    %v3001 = vpop.f32.mrb[0].mxu0
    %3002 = vdwg.mxu0
    %vm3003 = vcmask 121856
    %3004 = vst.msk [vmem:[#allocation3] sm:$0xff] %vm3003, 0.0
    %vm3005 = vcmask 802456
    %3006 = vst.msk [vmem:[#allocation3 + $0x8] sm:$0xff] %vm3005, 0.0
    %3009 = vrot.lane.b32.xlu0 %v2997, 15
    %v3010 = vpop.permute.xlu0 %3009
    %3011 = vrot.lane.b32.xlu0 %v2999, 15
    %v3012 = vpop.permute.xlu0 %3011
    %v3013 = vsel %vm3003, %v3010, %v3012
    %vm3016 = vcmask 1047672
    %3017 = vst.msk [vmem:[#allocation3] sm:$0xff] %vm3016, %v3010
    %vm3018 = vcmask 678912
    %3019 = vst.msk [vmem:[#allocation3 + $0x8] sm:$0xff] %vm3018, %v3013
    %v3020 = vld [vmem:[%s13] ss:$2 sm:$0x3]
    %s3021 = scalar_lea.vmem %s13, 1
    %v3022 = vld [vmem:[%s3021] ss:$2 sm:$0x3]
    %v3023 = vld [vmem:[#allocation3] sm:$0xff]
    %v3024 = vld [vmem:[#allocation3 + $0x8] sm:$0xff]
    %v3026 = vlaneseq
    %v3027 = vshrl.u32 %v3026, 7
    %v3028 = vsub.s32 0, %v3027
    %v3029 = vrot.slane %v3020, %v3028
    %v3030 = vlaneseq
    %v3031 = vshrl.u32 %v3030, 7
    %v3032 = vsub.s32 1, %v3031
    %v3033 = vrot.slane %v3020, %v3032
    %v3036 = vmul.f32 %v3023, %v3029
    %v3037 = vmul.f32 %v3024, %v3033
    %3038 = vst [vmem:[#allocation4] sm:$0xff] %v3036
    %vm3039 = vcmask 556032
    %3040 = vst.msk [vmem:[#allocation4 + $0x8] sm:$0xff] %vm3039, %v3037
    %v3041 = vld [vmem:[#allocation3] sm:$0xff]
    %v3042 = vld [vmem:[#allocation3 + $0x8] sm:$0xff]
    %3045 = vrot.lane.b32.xlu0 %v3041, 127
    %v3046 = vpop.permute.xlu0 %3045
    %3047 = vrot.lane.b32.xlu0 %v3042, 127
    %v3048 = vpop.permute.xlu0 %3047
    %v3049 = vsel %vm196, %v3046, %v3048
    %3052 = vst [vmem:[#allocation4 + $0x38] sm:$0xff] %v3049
    %3053 = vst.msk [vmem:[#allocation4 + $0x40] sm:$0xff] %vm3039, %v3048
    %v3054 = vld [vmem:[#allocation3] sm:$0xff]
    %v3055 = vld [vmem:[#allocation3 + $0x8] sm:$0xff]
    %v3057 = vlaneseq
    %v3058 = vshrl.u32 %v3057, 7
    %v3059 = vsub.s32 0, %v3058
    %v3060 = vrot.slane %v3022, %v3059
    %v3061 = vlaneseq
    %v3062 = vshrl.u32 %v3061, 7
    %v3063 = vsub.s32 1, %v3062
    %v3064 = vrot.slane %v3022, %v3063
    %3065 = vrot.lane.b32.xlu0 %v3060, 2
    %v3066 = vpop.permute.xlu0 %3065
    %3067 = vrot.lane.b32.xlu0 %v3064, 2
    %v3068 = vpop.permute.xlu0 %3067
    %v3069 = vsel %vm268, %v3066, %v3068
    %v3072 = vmul.f32 %v3054, %v3066
    %v3073 = vmul.f32 %v3055, %v3069
    %3076 = vrot.lane.b32.xlu0 %v3072, 126
    %v3077 = vpop.permute.xlu0 %3076
    %3078 = vrot.lane.b32.xlu0 %v3073, 126
    %v3079 = vpop.permute.xlu0 %3078
    %v3080 = vsel %vm317, %v3077, %v3079
    %3083 = vst [vmem:[#allocation4 + $0x70] sm:$0xff] %v3080
    %3084 = vst.msk [vmem:[#allocation4 + $0x78] sm:$0xff] %vm3039, %v3079
    %v3085 = vld [vmem:[#allocation3] sm:$0xff]
    %v3086 = vld [vmem:[#allocation3 + $0x8] sm:$0xff]
    %3087 = vrot.lane.b32.xlu0 %v3029, 14
    %v3088 = vpop.permute.xlu0 %3087
    %3089 = vrot.lane.b32.xlu0 %v3033, 14
    %v3090 = vpop.permute.xlu0 %3089
    %vm3091 = vcmask 113664
    %v3092 = vsel %vm3091, %v3088, %v3090
    %v3095 = vmul.f32 %v3085, %v3088
    %v3096 = vmul.f32 %v3086, %v3092
    %3099 = vrot.lane.b32.xlu0 %v3095, 114
    %v3100 = vpop.permute.xlu0 %3099
    %3101 = vrot.lane.b32.xlu0 %v3096, 114
    %v3102 = vpop.permute.xlu0 %3101
    %vm3103 = vcmask 932864
    %v3104 = vsel %vm3103, %v3100, %v3102
    %3107 = vst [vmem:[#allocation4 + $0xa8] sm:$0xff] %v3104
    %3108 = vst.msk [vmem:[#allocation4 + $0xb0] sm:$0xff] %vm3039, %v3102
    %v3109 = vld [vmem:[#allocation3] sm:$0xff]
    %v3110 = vld [vmem:[#allocation3 + $0x8] sm:$0xff]
    %3113 = vrot.lane.b32.xlu0 %v3109, 113
    %v3114 = vpop.permute.xlu0 %3113
    %3115 = vrot.lane.b32.xlu0 %v3110, 113
    %v3116 = vpop.permute.xlu0 %3115
    %vm3117 = vcmask 924672
    %v3118 = vsel %vm3117, %v3114, %v3116
    %3121 = vst [vmem:[#allocation4 + $0xe0] sm:$0xff] %v3118
    %3122 = vst.msk [vmem:[#allocation4 + $0xe8] sm:$0xff] %vm3039, %v3116
    %v3123 = vld [vmem:[#allocation3] sm:$0xff]
    %v3124 = vld [vmem:[#allocation3 + $0x8] sm:$0xff]
    %3125 = vrot.lane.b32.xlu0 %v3060, 16
    %v3126 = vpop.permute.xlu0 %3125
    %3127 = vrot.lane.b32.xlu0 %v3064, 16
    %v3128 = vpop.permute.xlu0 %3127
    %v3129 = vsel %vm1178, %v3126, %v3128
    %v3132 = vmul.f32 %v3123, %v3126
    %v3133 = vmul.f32 %v3124, %v3129
    %3136 = vrot.lane.b32.xlu0 %v3132, 112
    %v3137 = vpop.permute.xlu0 %3136
    %3138 = vrot.lane.b32.xlu0 %v3133, 112
    %v3139 = vpop.permute.xlu0 %3138
    %vm3140 = vcmask 916480
    %v3141 = vsel %vm3140, %v3137, %v3139
    %3144 = vst [vmem:[#allocation4 + $0x118] sm:$0xff] %v3141
    %3145 = vst.msk [vmem:[#allocation4 + $0x120] sm:$0xff] %vm3039, %v3139
    %v3146 = vld [vmem:[#allocation3] sm:$0xff]
    %v3147 = vld [vmem:[#allocation3 + $0x8] sm:$0xff]
    %3148 = vrot.lane.b32.xlu0 %v3029, 28
    %v3149 = vpop.permute.xlu0 %3148
    %3150 = vrot.lane.b32.xlu0 %v3033, 28
    %v3151 = vpop.permute.xlu0 %3150
    %v3152 = vsel %vm368, %v3149, %v3151
    %v3155 = vmul.f32 %v3146, %v3149
    %v3156 = vmul.f32 %v3147, %v3152
    %3159 = vrot.lane.b32.xlu0 %v3155, 100
    %v3160 = vpop.permute.xlu0 %3159
    %3161 = vrot.lane.b32.xlu0 %v3156, 100
    %v3162 = vpop.permute.xlu0 %3161
    %v3163 = vsel %vm417, %v3160, %v3162
    %3166 = vst [vmem:[#allocation4 + $0x150] sm:$0xff] %v3163
    %3167 = vst.msk [vmem:[#allocation4 + $0x158] sm:$0xff] %vm3039, %v3162
    %v3168 = vld [vmem:[#allocation3] sm:$0xff]
    %v3169 = vld [vmem:[#allocation3 + $0x8] sm:$0xff]
    %3172 = vrot.lane.b32.xlu0 %v3168, 99
    %v3173 = vpop.permute.xlu0 %3172
    %3174 = vrot.lane.b32.xlu0 %v3169, 99
    %v3175 = vpop.permute.xlu0 %3174
    %v3176 = vsel %vm474, %v3173, %v3175
    %3179 = vst [vmem:[#allocation4 + $0x188] sm:$0xff] %v3176
    %3180 = vst.msk [vmem:[#allocation4 + $0x190] sm:$0xff] %vm3039, %v3175
    %v3181 = vld [vmem:[#allocation3] sm:$0xff]
    %v3182 = vld [vmem:[#allocation3 + $0x8] sm:$0xff]
    %3183 = vrot.lane.b32.xlu0 %v3060, 30
    %v3184 = vpop.permute.xlu0 %3183
    %3185 = vrot.lane.b32.xlu0 %v3064, 30
    %v3186 = vpop.permute.xlu0 %3185
    %v3187 = vsel %vm517, %v3184, %v3186
    %v3190 = vmul.f32 %v3181, %v3184
    %v3191 = vmul.f32 %v3182, %v3187
    %3194 = vrot.lane.b32.xlu0 %v3190, 98
    %v3195 = vpop.permute.xlu0 %3194
    %3196 = vrot.lane.b32.xlu0 %v3191, 98
    %v3197 = vpop.permute.xlu0 %3196
    %v3198 = vsel %vm566, %v3195, %v3197
    %3201 = vst [vmem:[#allocation4 + $0x1c0] sm:$0xff] %v3198
    %3202 = vst.msk [vmem:[#allocation4 + $0x1c8] sm:$0xff] %vm3039, %v3197
    %v3203 = vld [vmem:[#allocation4] sm:$0xff]
    %v3204 = vld [vmem:[#allocation4 + $0x8] sm:$0xff]
    %v3205 = vld [vmem:[#allocation4 + $0x38] sm:$0xff]
    %v3206 = vld [vmem:[#allocation4 + $0x40] sm:$0xff]
    %v3207 = vld [vmem:[#allocation4 + $0x70] sm:$0xff]
    %v3208 = vld [vmem:[#allocation4 + $0x78] sm:$0xff]
    %v3209 = vld [vmem:[#allocation4 + $0xa8] sm:$0xff]
    %v3210 = vld [vmem:[#allocation4 + $0xb0] sm:$0xff]
    %v3211 = vld [vmem:[#allocation4 + $0xe0] sm:$0xff]
    %v3212 = vld [vmem:[#allocation4 + $0xe8] sm:$0xff]
    %v3213 = vld [vmem:[#allocation4 + $0x118] sm:$0xff]
    %v3214 = vld [vmem:[#allocation4 + $0x120] sm:$0xff]
    %v3215 = vld [vmem:[#allocation4 + $0x150] sm:$0xff]
    %v3216 = vld [vmem:[#allocation4 + $0x158] sm:$0xff]
    %v3217 = vld [vmem:[#allocation4 + $0x188] sm:$0xff]
    %v3218 = vld [vmem:[#allocation4 + $0x190] sm:$0xff]
    %v3219 = vld [vmem:[#allocation4 + $0x1c0] sm:$0xff]
    %v3220 = vld [vmem:[#allocation4 + $0x1c8] sm:$0xff]
    %v3221 = vpack.c.bf16 %v3205, %v3203
    %v3222 = vpack.c.bf16 %v3206, %v3204
    %v3223 = vpack.c.bf16 %v3209, %v3207
    %v3224 = vpack.c.bf16 %v3210, %v3208
    %v3225 = vpack.c.bf16 %v3213, %v3211
    %v3226 = vpack.c.bf16 %v3214, %v3212
    %v3227 = vpack.c.bf16 %v3217, %v3215
    %v3228 = vpack.c.bf16 %v3218, %v3216
    %v3229 = vpack.c.bf16 %v3219, %v3219
    %v3230 = vpack.c.bf16 %v3220, %v3220
    %v3231 = vld [vmem:[%s5] sm:$0xf]
    %v3232 = vld [vmem:[%s6] sm:$0xff]
    %3234 = vset.pattern.permute.xlu0 0
    %3235 = vperm.xlu0 %3234, %v3232
    %v3236 = vpop.permute.xlu0 %3235
    %v3239 = vsel %vm666, %v3231, 0
    %v3242 = vsel %vm1871, %v3229, 0
    %v3245 = vsel %vm1871, %v3230, 0
    %3247 = vmatprep.subr.bf16.mxu0 %v3222
    %3248 = vmatpush1.bf16.msra.mxu0 %v3221
    %3249 = vmatprep.subr.bf16.mxu0 %v3224
    %3250 = vmatpush1.bf16.msra.mxu0 %v3223
    %3251 = vmatprep.subr.bf16.mxu0 %v3226
    %3252 = vmatpush1.bf16.msra.mxu0 %v3225
    %3253 = vmatprep.subr.bf16.mxu0 %v3228
    %3254 = vmatpush1.bf16.msra.mxu0 %v3227
    %3255 = vmatprep.subr.bf16.mxu0 %v3245
    %3256 = vmatpush1.bf16.msra.mxu0 %v3242
    %3257 = vmatprep.subr.bf16.mxu0 0
    %3258 = vmatpush1.bf16.msra.mxu0 0
    %3259 = vmatprep.subr.bf16.mxu0 0
    %3260 = vmatpush1.bf16.msra.mxu0 0
    %3261 = vmatprep.subr.bf16.mxu0 0
    %3262 = vmatpush1.bf16.msra.mxu0 0
    %3263 = vmatprep.subr.bf16.mxu0 0
    %3264 = vmatpush1.bf16.msra.mxu0 0
    %3265 = vmatprep.subr.bf16.mxu0 0
    %3266 = vmatpush1.bf16.msra.mxu0 0
    %3267 = vmatprep.subr.bf16.mxu0 0
    %3268 = vmatpush1.bf16.msra.mxu0 0
    %3269 = vmatprep.subr.bf16.mxu0 0
    %3270 = vmatpush1.bf16.msra.mxu0 0
    %3271 = vmatprep.subr.bf16.mxu0 0
    %3272 = vmatpush1.bf16.msra.mxu0 0
    %3273 = vmatprep.subr.bf16.mxu0 0
    %3274 = vmatpush1.bf16.msra.mxu0 0
    %3275 = vmatprep.subr.bf16.mxu0 0
    %3276 = vmatpush1.bf16.msra.mxu0 0
    %3277 = vmatprep.subr.bf16.mxu0 0
    %3278 = vmatpush1.bf16.msra.mxu0 0
    %3279 = vmatprep.mubr.bf16.mxu0 0
    %3280 = vmatmul.mubr.bf16.gmra.mrb[0].mxu0 %v3239
    %v3281 = vpop.f32.mrb[0].mxu0
    %v3282 = vadd.f32 %v3236, %v3281
    %v3283 = vpop.f32.mrb[0].mxu0
    %v3284 = vadd.f32 %v3236, %v3283
    %v3285 = vpop.f32.mrb[0].mxu0
    %v3286 = vpop.f32.mrb[0].mxu0
    %3287 = vdwg.mxu0
    %v3288 = vmax.f32 %v3282, 0.0
    %v3289 = vmax.f32 %v3284, 0.0
    %3292 = vrot.lane.b32.xlu0 %v3288, 15
    %v3293 = vpop.permute.xlu0 %3292
    %3294 = vrot.lane.b32.xlu0 %v3289, 15
    %v3295 = vpop.permute.xlu0 %3294
    %v3296 = vsel %vm3003, %v3293, %v3295
    %3299 = vst.msk [vmem:[#allocation3] sm:$0xff] %vm3016, %v3293
    %3300 = vst.msk [vmem:[#allocation3 + $0x8] sm:$0xff] %vm3018, %v3296
    %v3301 = vld [vmem:[%s13] ss:$2 sm:$0x3]
    %v3302 = vld [vmem:[%s3021] ss:$2 sm:$0x3]
    %v3303 = vld [vmem:[#allocation3] sm:$0xff]
    %v3304 = vld [vmem:[#allocation3 + $0x8] sm:$0xff]
    %v3306 = vlaneseq
    %v3307 = vshrl.u32 %v3306, 7
    %v3308 = vsub.s32 0, %v3307
    %v3309 = vrot.slane %v3301, %v3308
    %v3310 = vlaneseq
    %v3311 = vshrl.u32 %v3310, 7
    %v3312 = vsub.s32 1, %v3311
    %v3313 = vrot.slane %v3301, %v3312
    %v3316 = vmul.f32 %v3303, %v3309
    %v3317 = vmul.f32 %v3304, %v3313
    %3318 = vst [vmem:[#allocation4] sm:$0xff] %v3316
    %3319 = vst.msk [vmem:[#allocation4 + $0x8] sm:$0xff] %vm3039, %v3317
    %v3320 = vld [vmem:[#allocation3] sm:$0xff]
    %v3321 = vld [vmem:[#allocation3 + $0x8] sm:$0xff]
    %3324 = vrot.lane.b32.xlu0 %v3320, 127
    %v3325 = vpop.permute.xlu0 %3324
    %3326 = vrot.lane.b32.xlu0 %v3321, 127
    %v3327 = vpop.permute.xlu0 %3326
    %v3328 = vsel %vm196, %v3325, %v3327
    %3331 = vst [vmem:[#allocation4 + $0x38] sm:$0xff] %v3328
    %3332 = vst.msk [vmem:[#allocation4 + $0x40] sm:$0xff] %vm3039, %v3327
    %v3333 = vld [vmem:[#allocation3] sm:$0xff]
    %v3334 = vld [vmem:[#allocation3 + $0x8] sm:$0xff]
    %v3336 = vlaneseq
    %v3337 = vshrl.u32 %v3336, 7
    %v3338 = vsub.s32 0, %v3337
    %v3339 = vrot.slane %v3302, %v3338
    %v3340 = vlaneseq
    %v3341 = vshrl.u32 %v3340, 7
    %v3342 = vsub.s32 1, %v3341
    %v3343 = vrot.slane %v3302, %v3342
    %3344 = vrot.lane.b32.xlu0 %v3339, 2
    %v3345 = vpop.permute.xlu0 %3344
    %3346 = vrot.lane.b32.xlu0 %v3343, 2
    %v3347 = vpop.permute.xlu0 %3346
    %v3348 = vsel %vm268, %v3345, %v3347
    %v3351 = vmul.f32 %v3333, %v3345
    %v3352 = vmul.f32 %v3334, %v3348
    %3355 = vrot.lane.b32.xlu0 %v3351, 126
    %v3356 = vpop.permute.xlu0 %3355
    %3357 = vrot.lane.b32.xlu0 %v3352, 126
    %v3358 = vpop.permute.xlu0 %3357
    %v3359 = vsel %vm317, %v3356, %v3358
    %3362 = vst [vmem:[#allocation4 + $0x70] sm:$0xff] %v3359
    %3363 = vst.msk [vmem:[#allocation4 + $0x78] sm:$0xff] %vm3039, %v3358
    %v3364 = vld [vmem:[#allocation3] sm:$0xff]
    %v3365 = vld [vmem:[#allocation3 + $0x8] sm:$0xff]
    %3366 = vrot.lane.b32.xlu0 %v3309, 14
    %v3367 = vpop.permute.xlu0 %3366
    %3368 = vrot.lane.b32.xlu0 %v3313, 14
    %v3369 = vpop.permute.xlu0 %3368
    %v3370 = vsel %vm3091, %v3367, %v3369
    %v3373 = vmul.f32 %v3364, %v3367
    %v3374 = vmul.f32 %v3365, %v3370
    %3377 = vrot.lane.b32.xlu0 %v3373, 114
    %v3378 = vpop.permute.xlu0 %3377
    %3379 = vrot.lane.b32.xlu0 %v3374, 114
    %v3380 = vpop.permute.xlu0 %3379
    %v3381 = vsel %vm3103, %v3378, %v3380
    %3384 = vst [vmem:[#allocation4 + $0xa8] sm:$0xff] %v3381
    %3385 = vst.msk [vmem:[#allocation4 + $0xb0] sm:$0xff] %vm3039, %v3380
    %v3386 = vld [vmem:[#allocation3] sm:$0xff]
    %v3387 = vld [vmem:[#allocation3 + $0x8] sm:$0xff]
    %3390 = vrot.lane.b32.xlu0 %v3386, 113
    %v3391 = vpop.permute.xlu0 %3390
    %3392 = vrot.lane.b32.xlu0 %v3387, 113
    %v3393 = vpop.permute.xlu0 %3392
    %v3394 = vsel %vm3117, %v3391, %v3393
    %3397 = vst [vmem:[#allocation4 + $0xe0] sm:$0xff] %v3394
    %3398 = vst.msk [vmem:[#allocation4 + $0xe8] sm:$0xff] %vm3039, %v3393
    %v3399 = vld [vmem:[#allocation3] sm:$0xff]
    %v3400 = vld [vmem:[#allocation3 + $0x8] sm:$0xff]
    %3401 = vrot.lane.b32.xlu0 %v3339, 16
    %v3402 = vpop.permute.xlu0 %3401
    %3403 = vrot.lane.b32.xlu0 %v3343, 16
    %v3404 = vpop.permute.xlu0 %3403
    %v3405 = vsel %vm1178, %v3402, %v3404
    %v3408 = vmul.f32 %v3399, %v3402
    %v3409 = vmul.f32 %v3400, %v3405
    %3412 = vrot.lane.b32.xlu0 %v3408, 112
    %v3413 = vpop.permute.xlu0 %3412
    %3414 = vrot.lane.b32.xlu0 %v3409, 112
    %v3415 = vpop.permute.xlu0 %3414
    %v3416 = vsel %vm3140, %v3413, %v3415
    %3419 = vst [vmem:[#allocation4 + $0x118] sm:$0xff] %v3416
    %3420 = vst.msk [vmem:[#allocation4 + $0x120] sm:$0xff] %vm3039, %v3415
    %v3421 = vld [vmem:[#allocation3] sm:$0xff]
    %v3422 = vld [vmem:[#allocation3 + $0x8] sm:$0xff]
    %3423 = vrot.lane.b32.xlu0 %v3309, 28
    %v3424 = vpop.permute.xlu0 %3423
    %3425 = vrot.lane.b32.xlu0 %v3313, 28
    %v3426 = vpop.permute.xlu0 %3425
    %v3427 = vsel %vm368, %v3424, %v3426
    %v3430 = vmul.f32 %v3421, %v3424
    %v3431 = vmul.f32 %v3422, %v3427
    %3434 = vrot.lane.b32.xlu0 %v3430, 100
    %v3435 = vpop.permute.xlu0 %3434
    %3436 = vrot.lane.b32.xlu0 %v3431, 100
    %v3437 = vpop.permute.xlu0 %3436
    %v3438 = vsel %vm417, %v3435, %v3437
    %3441 = vst [vmem:[#allocation4 + $0x150] sm:$0xff] %v3438
    %3442 = vst.msk [vmem:[#allocation4 + $0x158] sm:$0xff] %vm3039, %v3437
    %v3443 = vld [vmem:[#allocation3] sm:$0xff]
    %v3444 = vld [vmem:[#allocation3 + $0x8] sm:$0xff]
    %3447 = vrot.lane.b32.xlu0 %v3443, 99
    %v3448 = vpop.permute.xlu0 %3447
    %3449 = vrot.lane.b32.xlu0 %v3444, 99
    %v3450 = vpop.permute.xlu0 %3449
    %v3451 = vsel %vm474, %v3448, %v3450
    %3454 = vst [vmem:[#allocation4 + $0x188] sm:$0xff] %v3451
    %3455 = vst.msk [vmem:[#allocation4 + $0x190] sm:$0xff] %vm3039, %v3450
    %v3456 = vld [vmem:[#allocation3] sm:$0xff]
    %v3457 = vld [vmem:[#allocation3 + $0x8] sm:$0xff]
    %3458 = vrot.lane.b32.xlu0 %v3339, 30
    %v3459 = vpop.permute.xlu0 %3458
    %3460 = vrot.lane.b32.xlu0 %v3343, 30
    %v3461 = vpop.permute.xlu0 %3460
    %v3462 = vsel %vm517, %v3459, %v3461
    %v3465 = vmul.f32 %v3456, %v3459
    %v3466 = vmul.f32 %v3457, %v3462
    %3469 = vrot.lane.b32.xlu0 %v3465, 98
    %v3470 = vpop.permute.xlu0 %3469
    %3471 = vrot.lane.b32.xlu0 %v3466, 98
    %v3472 = vpop.permute.xlu0 %3471
    %v3473 = vsel %vm566, %v3470, %v3472
    %3476 = vst [vmem:[#allocation4 + $0x1c0] sm:$0xff] %v3473
    %3477 = vst.msk [vmem:[#allocation4 + $0x1c8] sm:$0xff] %vm3039, %v3472
    %v3478 = vld [vmem:[#allocation4] sm:$0xff]
    %v3479 = vld [vmem:[#allocation4 + $0x8] sm:$0xff]
    %v3480 = vld [vmem:[#allocation4 + $0x38] sm:$0xff]
    %v3481 = vld [vmem:[#allocation4 + $0x40] sm:$0xff]
    %v3482 = vld [vmem:[#allocation4 + $0x70] sm:$0xff]
    %v3483 = vld [vmem:[#allocation4 + $0x78] sm:$0xff]
    %v3484 = vld [vmem:[#allocation4 + $0xa8] sm:$0xff]
    %v3485 = vld [vmem:[#allocation4 + $0xb0] sm:$0xff]
    %v3486 = vld [vmem:[#allocation4 + $0xe0] sm:$0xff]
    %v3487 = vld [vmem:[#allocation4 + $0xe8] sm:$0xff]
    %v3488 = vld [vmem:[#allocation4 + $0x118] sm:$0xff]
    %v3489 = vld [vmem:[#allocation4 + $0x120] sm:$0xff]
    %v3490 = vld [vmem:[#allocation4 + $0x150] sm:$0xff]
    %v3491 = vld [vmem:[#allocation4 + $0x158] sm:$0xff]
    %v3492 = vld [vmem:[#allocation4 + $0x188] sm:$0xff]
    %v3493 = vld [vmem:[#allocation4 + $0x190] sm:$0xff]
    %v3494 = vld [vmem:[#allocation4 + $0x1c0] sm:$0xff]
    %v3495 = vld [vmem:[#allocation4 + $0x1c8] sm:$0xff]
    %v3496 = vpack.c.bf16 %v3480, %v3478
    %v3497 = vpack.c.bf16 %v3481, %v3479
    %v3498 = vpack.c.bf16 %v3484, %v3482
    %v3499 = vpack.c.bf16 %v3485, %v3483
    %v3500 = vpack.c.bf16 %v3488, %v3486
    %v3501 = vpack.c.bf16 %v3489, %v3487
    %v3502 = vpack.c.bf16 %v3492, %v3490
    %v3503 = vpack.c.bf16 %v3493, %v3491
    %v3504 = vpack.c.bf16 %v3494, %v3494
    %v3505 = vpack.c.bf16 %v3495, %v3495
    %v3506 = vld [vmem:[%s7] sm:$0xf]
    %v3507 = vld [vmem:[%s8] sm:$0xff]
    %3509 = vset.pattern.permute.xlu0 0
    %3510 = vperm.xlu0 %3509, %v3507
    %v3511 = vpop.permute.xlu0 %3510
    %v3514 = vsel %vm666, %v3506, 0
    %v3517 = vsel %vm1871, %v3504, 0
    %v3520 = vsel %vm1871, %v3505, 0
    %3522 = vmatprep.subr.bf16.mxu0 %v3497
    %3523 = vmatpush1.bf16.msra.mxu0 %v3496
    %3524 = vmatprep.subr.bf16.mxu0 %v3499
    %3525 = vmatpush1.bf16.msra.mxu0 %v3498
    %3526 = vmatprep.subr.bf16.mxu0 %v3501
    %3527 = vmatpush1.bf16.msra.mxu0 %v3500
    %3528 = vmatprep.subr.bf16.mxu0 %v3503
    %3529 = vmatpush1.bf16.msra.mxu0 %v3502
    %3530 = vmatprep.subr.bf16.mxu0 %v3520
    %3531 = vmatpush1.bf16.msra.mxu0 %v3517
    %3532 = vmatprep.subr.bf16.mxu0 0
    %3533 = vmatpush1.bf16.msra.mxu0 0
    %3534 = vmatprep.subr.bf16.mxu0 0
    %3535 = vmatpush1.bf16.msra.mxu0 0
    %3536 = vmatprep.subr.bf16.mxu0 0
    %3537 = vmatpush1.bf16.msra.mxu0 0
    %3538 = vmatprep.subr.bf16.mxu0 0
    %3539 = vmatpush1.bf16.msra.mxu0 0
    %3540 = vmatprep.subr.bf16.mxu0 0
    %3541 = vmatpush1.bf16.msra.mxu0 0
    %3542 = vmatprep.subr.bf16.mxu0 0
    %3543 = vmatpush1.bf16.msra.mxu0 0
    %3544 = vmatprep.subr.bf16.mxu0 0
    %3545 = vmatpush1.bf16.msra.mxu0 0
    %3546 = vmatprep.subr.bf16.mxu0 0
    %3547 = vmatpush1.bf16.msra.mxu0 0
    %3548 = vmatprep.subr.bf16.mxu0 0
    %3549 = vmatpush1.bf16.msra.mxu0 0
    %3550 = vmatprep.subr.bf16.mxu0 0
    %3551 = vmatpush1.bf16.msra.mxu0 0
    %3552 = vmatprep.subr.bf16.mxu0 0
    %3553 = vmatpush1.bf16.msra.mxu0 0
    %3554 = vmatprep.mubr.bf16.mxu0 0
    %3555 = vmatmul.mubr.bf16.gmra.mrb[0].mxu0 %v3514
    %v3556 = vpop.f32.mrb[0].mxu0
    %v3557 = vadd.f32 %v3511, %v3556
    %v3558 = vpop.f32.mrb[0].mxu0
    %v3559 = vadd.f32 %v3511, %v3558
    %v3560 = vpop.f32.mrb[0].mxu0
    %v3561 = vpop.f32.mrb[0].mxu0
    %3562 = vdwg.mxu0
    %v3563 = vmax.f32 %v3557, 0.0
    %v3564 = vmax.f32 %v3559, 0.0
    %3567 = vrot.lane.b32.xlu0 %v3563, 15
    %v3568 = vpop.permute.xlu0 %3567
    %3569 = vrot.lane.b32.xlu0 %v3564, 15
    %v3570 = vpop.permute.xlu0 %3569
    %v3571 = vsel %vm3003, %v3568, %v3570
    %3574 = vst.msk [vmem:[#allocation3] sm:$0xff] %vm3016, %v3568
    %3575 = vst.msk [vmem:[#allocation3 + $0x8] sm:$0xff] %vm3018, %v3571
    %v3576 = vld [vmem:[#allocation3] sm:$0xff]
    %v3577 = vld [vmem:[#allocation3 + $0x8] sm:$0xff]
    %3580 = vrot.lane.b32.xlu0 %v3576, 112
    %v3581 = vpop.permute.xlu0 %3580
    %3582 = vrot.lane.b32.xlu0 %v3577, 112
    %v3583 = vpop.permute.xlu0 %3582
    %v3584 = vsel %vm3140, %v3581, %v3583
    %v3587 = vmax.f32 %v3563, %v3584
    %v3588 = vmax.f32 %v3564, %v3583
    %3591 = vrot.lane.b32.xlu0 %v3587, 15
    %v3592 = vpop.permute.xlu0 %3591
    %3593 = vrot.lane.b32.xlu0 %v3588, 15
    %v3594 = vpop.permute.xlu0 %3593
    %v3595 = vsel %vm3003, %v3592, %v3594
    %3598 = vst.msk [vmem:[#allocation3] sm:$0xff] %vm3016, %v3592
    %3599 = vst.msk [vmem:[#allocation3 + $0x8] sm:$0xff] %vm3018, %v3595
    %v3600 = vld [vmem:[#allocation3] sm:$0xff]
    %v3601 = vld [vmem:[#allocation3 + $0x8] sm:$0xff]
    %3604 = vrot.lane.b32.xlu0 %v3600, 99
    %v3605 = vpop.permute.xlu0 %3604
    %3606 = vrot.lane.b32.xlu0 %v3601, 99
    %v3607 = vpop.permute.xlu0 %3606
    %v3608 = vsel %vm474, %v3605, %v3607
    %v3611 = vmax.f32 %v3587, %v3608
    %v3612 = vmax.f32 %v3588, %v3607
    %v3615 = vcombine.low %v3611, %v3612
    %v3617 = vunpack.c.l.s4 1966171168
    %v3618 = vunpack.c.0.s8 %v3617
    %v3619 = vlaneseq
    %v3620 = vshrl.u32 %v3619, 7
    %v3621 = vsub.s32 %v3618, %v3620
    %v3622 = vrot.slane %v3615, %v3621
    %v3624 = vunpack.c.l.s4 1966171168
    %v3625 = vunpack.c.0.s8 %v3624
    %v3626 = vlaneseq
    %v3627 = vshrl.u32 %v3626, 7
    %v3628 = vsub.s32 %v3625, %v3627
    %v3629 = vrot.slane %v3622, %v3628
    %v3631 = vlaneseq
    %vm3632 = vcmp.ge.s32.totalorder %v3631, 0
    %vm3633 = vcmp.lt.s32.totalorder %v3631, 196
    %vm3634 = vmand %vm3632, %vm3633
    %3635 = vst.msk [vmem:[#allocation5] ss:$2 sm:$0x3] %vm3634, %v3629
    %v3636 = vcombine.high %v3622, %v3622
    %v3638 = vunpack.c.l.s4 1966171168
    %v3639 = vunpack.c.0.s8 %v3638
    %v3640 = vlaneseq
    %v3641 = vshrl.u32 %v3640, 7
    %v3642 = vsub.s32 %v3639, %v3641
    %v3643 = vrot.slane %v3636, %v3642
    %3644 = vrot.lane.b32.xlu0 %v3643, 68
    %v3645 = vpop.permute.xlu0 %3644
    %v3646 = vrot.slane %v3645, 7
    %v3647 = vsel %vm3039, %v3646, %v3645
    %vm3649 = vcmp.ge.s32.totalorder %v3631, 68
    %vm3650 = vcmp.lt.s32.totalorder %v3631, 264
    %vm3651 = vmand %vm3649, %vm3650
    %s3652 = scalar_lea.vmem [#allocation5], 2
    %3653 = vst.msk [vmem:[%s3652] ss:$2 sm:$0x7] %vm3651, %v3647
    %v3654 = vcombine.high %v3629, %v3629
    %3655 = vrot.lane.b32.xlu0 %v3654, 8
    %v3656 = vpop.permute.xlu0 %3655
    %v3657 = vrot.slane %v3656, 7
    %vm3658 = vcmask 64512
    %v3659 = vsel %vm3658, %v3657, %v3656
    %vm3661 = vcmp.ge.s32.totalorder %v3631, 8
    %vm3662 = vcmp.lt.s32.totalorder %v3631, 204
    %vm3663 = vmand %vm3661, %vm3662
    %s3664 = scalar_lea.vmem [#allocation5], 6
    %3665 = vst.msk [vmem:[%s3664] ss:$2 sm:$0x3] %vm3663, %v3659
    %v3666 = vcombine.high %v3643, %v3643
    %3667 = vrot.lane.b32.xlu0 %v3666, 76
    %v3668 = vpop.permute.xlu0 %3667
    %v3669 = vrot.slane %v3668, 7
    %vm3670 = vcmask 621568
    %v3671 = vsel %vm3670, %v3669, %v3668
    %vm3673 = vcmp.ge.s32.totalorder %v3631, 76
    %vm3674 = vcmp.lt.s32.totalorder %v3631, 272
    %vm3675 = vmand %vm3673, %vm3674
    %s3676 = scalar_lea.vmem [#allocation5], 8
    %3677 = vst.msk [vmem:[%s3676] ss:$2 sm:$0x7] %vm3675, %v3671
    %v3678 = vcombine.high %v3611, %v3612
    %v3680 = vunpack.c.l.s4 1966171168
    %v3681 = vunpack.c.0.s8 %v3680
    %v3682 = vlaneseq
    %v3683 = vshrl.u32 %v3682, 7
    %v3684 = vsub.s32 %v3681, %v3683
    %v3685 = vrot.slane %v3678, %v3684
    %v3687 = vunpack.c.l.s4 1966171168
    %v3688 = vunpack.c.0.s8 %v3687
    %v3689 = vlaneseq
    %v3690 = vshrl.u32 %v3689, 7
    %v3691 = vsub.s32 %v3688, %v3690
    %v3692 = vrot.slane %v3685, %v3691
    %3693 = vrot.lane.b32.xlu0 %v3692, 16
    %v3694 = vpop.permute.xlu0 %3693
    %v3695 = vrot.slane %v3694, 7
    %v3696 = vsel %vm1178, %v3695, %v3694
    %vm3698 = vcmp.ge.s32.totalorder %v3631, 16
    %vm3699 = vcmp.lt.s32.totalorder %v3631, 212
    %vm3700 = vmand %vm3698, %vm3699
    %s3701 = scalar_lea.vmem [#allocation5], 12
    %3702 = vst.msk [vmem:[%s3701] ss:$2 sm:$0x3] %vm3700, %v3696
    %v3703 = vcombine.high %v3685, %v3685
    %v3705 = vunpack.c.l.s4 1966171168
    %v3706 = vunpack.c.0.s8 %v3705
    %v3707 = vlaneseq
    %v3708 = vshrl.u32 %v3707, 7
    %v3709 = vsub.s32 %v3706, %v3708
    %v3710 = vrot.slane %v3703, %v3709
    %3711 = vrot.lane.b32.xlu0 %v3710, 84
    %v3712 = vpop.permute.xlu0 %3711
    %v3713 = vrot.slane %v3712, 7
    %vm3714 = vcmask 687104
    %v3715 = vsel %vm3714, %v3713, %v3712
    %vm3717 = vcmp.ge.s32.totalorder %v3631, 84
    %vm3718 = vcmp.lt.s32.totalorder %v3631, 280
    %vm3719 = vmand %vm3717, %vm3718
    %s3720 = scalar_lea.vmem [#allocation5], 14
    %3721 = vst.msk [vmem:[%s3720] ss:$2 sm:$0x7] %vm3719, %v3715
    %v3722 = vcombine.high %v3692, %v3692
    %3723 = vrot.lane.b32.xlu0 %v3722, 24
    %v3724 = vpop.permute.xlu0 %3723
    %v3725 = vrot.slane %v3724, 7
    %vm3726 = vcmask 195584
    %v3727 = vsel %vm3726, %v3725, %v3724
    %vm3729 = vcmp.ge.s32.totalorder %v3631, 24
    %vm3730 = vcmp.lt.s32.totalorder %v3631, 220
    %vm3731 = vmand %vm3729, %vm3730
    %s3732 = scalar_lea.vmem [#allocation5], 18
    %3733 = vst.msk [vmem:[%s3732] ss:$2 sm:$0x3] %vm3731, %v3727
    %v3734 = vcombine.high %v3710, %v3710
    %3735 = vrot.lane.b32.xlu0 %v3734, 92
    %v3736 = vpop.permute.xlu0 %3735
    %v3737 = vrot.slane %v3736, 7
    %vm3738 = vcmask 752640
    %v3739 = vsel %vm3738, %v3737, %v3736
    %vm3741 = vcmp.ge.s32.totalorder %v3631, 92
    %vm3742 = vcmp.lt.s32.totalorder %v3631, 288
    %vm3743 = vmand %vm3741, %vm3742
    %s3744 = scalar_lea.vmem [#allocation5], 20
    %3745 = vst.msk [vmem:[%s3744] ss:$2 sm:$0x7] %vm3743, %v3739
    %s3746 = scalar_lea.vmem %s0, 28
    %v3747 = vld [vmem:[%s3746] sm:$0x77]
    %v3748 = vld [vmem:[%s3746 + $0x8] sm:$0x77]
    %v3749 = vld [vmem:[%s3746 + $0x10] sm:$0x77]
    %v3750 = vld [vmem:[%s3746 + $0x18] sm:$0x7]
    %v3755 = vcombine.high %v3747, %v3747
    %v3756 = vcombine.high %v3748, %v3748
    %v3757 = vcombine.high %v3749, %v3749
    %3758 = vrot.lane.b32.xlu0 %v3747, 29
    %v3759 = vpop.permute.xlu0 %3758
    %3760 = vrot.lane.b32.xlu0 %v3755, 29
    %v3761 = vpop.permute.xlu0 %3760
    %3762 = vrot.lane.b32.xlu0 %v3748, 29
    %v3763 = vpop.permute.xlu0 %3762
    %3764 = vrot.lane.b32.xlu0 %v3756, 29
    %v3765 = vpop.permute.xlu0 %3764
    %3766 = vrot.lane.b32.xlu0 %v3749, 29
    %v3767 = vpop.permute.xlu0 %3766
    %3768 = vrot.lane.b32.xlu0 %v3757, 29
    %v3769 = vpop.permute.xlu0 %3768
    %3770 = vrot.lane.b32.xlu0 %v3750, 29
    %v3771 = vpop.permute.xlu0 %3770
    %v3772 = vsel %vm53, %v3759, %v3761
    %v3773 = vsel %vm53, %v3761, %v3763
    %v3774 = vsel %vm53, %v3763, %v3765
    %v3775 = vsel %vm53, %v3765, %v3767
    %v3776 = vsel %vm53, %v3767, %v3769
    %v3777 = vsel %vm53, %v3769, %v3771
    %3785 = vst.msk [vmem:[#allocation2] sm:$0x7] %vm91, %v3759
    %3786 = vst [vmem:[#allocation2 + $0x8] sm:$0x7] %v3772
    %3787 = vst [vmem:[#allocation2 + $0x10] sm:$0x7] %v3773
    %3788 = vst [vmem:[#allocation2 + $0x18] sm:$0x7] %v3774
    %3789 = vst [vmem:[#allocation2 + $0x20] sm:$0x7] %v3775
    %3790 = vst [vmem:[#allocation2 + $0x28] sm:$0x7] %v3776
    %3791 = vst.msk [vmem:[#allocation2 + $0x30] sm:$0x7] %vm98, %v3777
    %v3792 = vld [vmem:[%s12] ss:$2 sm:$0x7f]
    %v3793 = vld [vmem:[%s101] ss:$2 sm:$0x7f]
    %v3794 = vld [vmem:[#allocation2] sm:$0x7]
    %v3795 = vld [vmem:[#allocation2 + $0x8] sm:$0x7]
    %v3796 = vld [vmem:[#allocation2 + $0x10] sm:$0x7]
    %v3797 = vld [vmem:[#allocation2 + $0x18] sm:$0x7]
    %v3798 = vld [vmem:[#allocation2 + $0x20] sm:$0x7]
    %v3799 = vld [vmem:[#allocation2 + $0x28] sm:$0x7]
    %v3800 = vld [vmem:[#allocation2 + $0x30] sm:$0x7]
    %v3802 = vlaneseq
    %v3803 = vshrl.u32 %v3802, 7
    %v3804 = vsub.s32 0, %v3803
    %v3805 = vrot.slane %v3792, %v3804
    %v3806 = vlaneseq
    %v3807 = vshrl.u32 %v3806, 7
    %v3808 = vsub.s32 1, %v3807
    %v3809 = vrot.slane %v3792, %v3808
    %v3810 = vlaneseq
    %v3811 = vshrl.u32 %v3810, 7
    %v3812 = vsub.s32 2, %v3811
    %v3813 = vrot.slane %v3792, %v3812
    %v3814 = vlaneseq
    %v3815 = vshrl.u32 %v3814, 7
    %v3816 = vsub.s32 3, %v3815
    %v3817 = vrot.slane %v3792, %v3816
    %v3818 = vlaneseq
    %v3819 = vshrl.u32 %v3818, 7
    %v3820 = vsub.s32 4, %v3819
    %v3821 = vrot.slane %v3792, %v3820
    %v3822 = vlaneseq
    %v3823 = vshrl.u32 %v3822, 7
    %v3824 = vsub.s32 5, %v3823
    %v3825 = vrot.slane %v3792, %v3824
    %v3826 = vlaneseq
    %v3827 = vshrl.u32 %v3826, 7
    %v3828 = vsub.s32 6, %v3827
    %v3829 = vrot.slane %v3792, %v3828
    %v3837 = vmul.f32 %v3794, %v3805
    %v3838 = vmul.f32 %v3795, %v3809
    %v3839 = vmul.f32 %v3796, %v3813
    %v3840 = vmul.f32 %v3797, %v3817
    %v3841 = vmul.f32 %v3798, %v3821
    %v3842 = vmul.f32 %v3799, %v3825
    %v3843 = vmul.f32 %v3800, %v3829
    %3844 = vst [vmem:[#allocation4] sm:$0x7] %v3837
    %3845 = vst [vmem:[#allocation4 + $0x8] sm:$0x7] %v3838
    %3846 = vst [vmem:[#allocation4 + $0x10] sm:$0x7] %v3839
    %3847 = vst [vmem:[#allocation4 + $0x18] sm:$0x7] %v3840
    %3848 = vst [vmem:[#allocation4 + $0x20] sm:$0x7] %v3841
    %3849 = vst [vmem:[#allocation4 + $0x28] sm:$0x7] %v3842
    %3850 = vst.msk [vmem:[#allocation4 + $0x30] sm:$0x7] %vm159, %v3843
    %v3851 = vld [vmem:[#allocation2] sm:$0x7]
    %v3852 = vld [vmem:[#allocation2 + $0x8] sm:$0x7]
    %v3853 = vld [vmem:[#allocation2 + $0x10] sm:$0x7]
    %v3854 = vld [vmem:[#allocation2 + $0x18] sm:$0x7]
    %v3855 = vld [vmem:[#allocation2 + $0x20] sm:$0x7]
    %v3856 = vld [vmem:[#allocation2 + $0x28] sm:$0x7]
    %v3857 = vld [vmem:[#allocation2 + $0x30] sm:$0x7]
    %v3865 = vrot.slane %v3851, 5
    %v3866 = vrot.slane %v3852, 5
    %v3867 = vrot.slane %v3853, 5
    %v3868 = vrot.slane %v3854, 5
    %v3869 = vrot.slane %v3855, 5
    %v3870 = vrot.slane %v3856, 5
    %v3871 = vrot.slane %v3857, 5
    %3872 = vrot.lane.b32.xlu0 %v3865, 127
    %v3873 = vpop.permute.xlu0 %3872
    %3874 = vrot.lane.b32.xlu0 %v3866, 127
    %v3875 = vpop.permute.xlu0 %3874
    %3876 = vrot.lane.b32.xlu0 %v3867, 127
    %v3877 = vpop.permute.xlu0 %3876
    %3878 = vrot.lane.b32.xlu0 %v3868, 127
    %v3879 = vpop.permute.xlu0 %3878
    %3880 = vrot.lane.b32.xlu0 %v3869, 127
    %v3881 = vpop.permute.xlu0 %3880
    %3882 = vrot.lane.b32.xlu0 %v3870, 127
    %v3883 = vpop.permute.xlu0 %3882
    %3884 = vrot.lane.b32.xlu0 %v3871, 127
    %v3885 = vpop.permute.xlu0 %3884
    %v3886 = vsel %vm196, %v3873, %v3875
    %v3887 = vsel %vm196, %v3875, %v3877
    %v3888 = vsel %vm196, %v3877, %v3879
    %v3889 = vsel %vm196, %v3879, %v3881
    %v3890 = vsel %vm196, %v3881, %v3883
    %v3891 = vsel %vm196, %v3883, %v3885
    %3899 = vst [vmem:[#allocation4] sm:$0x38] %v3886
    %3900 = vst [vmem:[#allocation4 + $0x8] sm:$0x38] %v3887
    %3901 = vst [vmem:[#allocation4 + $0x10] sm:$0x38] %v3888
    %3902 = vst [vmem:[#allocation4 + $0x18] sm:$0x38] %v3889
    %3903 = vst [vmem:[#allocation4 + $0x20] sm:$0x38] %v3890
    %3904 = vst [vmem:[#allocation4 + $0x28] sm:$0x38] %v3891
    %3905 = vst.msk [vmem:[#allocation4 + $0x30] sm:$0x38] %vm216, %v3885
    %v3906 = vld [vmem:[#allocation2] sm:$0x7]
    %v3907 = vld [vmem:[#allocation2 + $0x8] sm:$0x7]
    %v3908 = vld [vmem:[#allocation2 + $0x10] sm:$0x7]
    %v3909 = vld [vmem:[#allocation2 + $0x18] sm:$0x7]
    %v3910 = vld [vmem:[#allocation2 + $0x20] sm:$0x7]
    %v3911 = vld [vmem:[#allocation2 + $0x28] sm:$0x7]
    %v3912 = vld [vmem:[#allocation2 + $0x30] sm:$0x7]
    %v3914 = vlaneseq
    %v3915 = vshrl.u32 %v3914, 7
    %v3916 = vsub.s32 0, %v3915
    %v3917 = vrot.slane %v3793, %v3916
    %v3918 = vlaneseq
    %v3919 = vshrl.u32 %v3918, 7
    %v3920 = vsub.s32 1, %v3919
    %v3921 = vrot.slane %v3793, %v3920
    %v3922 = vlaneseq
    %v3923 = vshrl.u32 %v3922, 7
    %v3924 = vsub.s32 2, %v3923
    %v3925 = vrot.slane %v3793, %v3924
    %v3926 = vlaneseq
    %v3927 = vshrl.u32 %v3926, 7
    %v3928 = vsub.s32 3, %v3927
    %v3929 = vrot.slane %v3793, %v3928
    %v3930 = vlaneseq
    %v3931 = vshrl.u32 %v3930, 7
    %v3932 = vsub.s32 4, %v3931
    %v3933 = vrot.slane %v3793, %v3932
    %v3934 = vlaneseq
    %v3935 = vshrl.u32 %v3934, 7
    %v3936 = vsub.s32 5, %v3935
    %v3937 = vrot.slane %v3793, %v3936
    %v3938 = vlaneseq
    %v3939 = vshrl.u32 %v3938, 7
    %v3940 = vsub.s32 6, %v3939
    %v3941 = vrot.slane %v3793, %v3940
    %3942 = vrot.lane.b32.xlu0 %v3917, 2
    %v3943 = vpop.permute.xlu0 %3942
    %3944 = vrot.lane.b32.xlu0 %v3921, 2
    %v3945 = vpop.permute.xlu0 %3944
    %3946 = vrot.lane.b32.xlu0 %v3925, 2
    %v3947 = vpop.permute.xlu0 %3946
    %3948 = vrot.lane.b32.xlu0 %v3929, 2
    %v3949 = vpop.permute.xlu0 %3948
    %3950 = vrot.lane.b32.xlu0 %v3933, 2
    %v3951 = vpop.permute.xlu0 %3950
    %3952 = vrot.lane.b32.xlu0 %v3937, 2
    %v3953 = vpop.permute.xlu0 %3952
    %3954 = vrot.lane.b32.xlu0 %v3941, 2
    %v3955 = vpop.permute.xlu0 %3954
    %v3956 = vsel %vm268, %v3943, %v3945
    %v3957 = vsel %vm268, %v3945, %v3947
    %v3958 = vsel %vm268, %v3947, %v3949
    %v3959 = vsel %vm268, %v3949, %v3951
    %v3960 = vsel %vm268, %v3951, %v3953
    %v3961 = vsel %vm268, %v3953, %v3955
    %v3969 = vmul.f32 %v3906, %v3943
    %v3970 = vmul.f32 %v3907, %v3956
    %v3971 = vmul.f32 %v3908, %v3957
    %v3972 = vmul.f32 %v3909, %v3958
    %v3973 = vmul.f32 %v3910, %v3959
    %v3974 = vmul.f32 %v3911, %v3960
    %v3975 = vmul.f32 %v3912, %v3961
    %v3983 = vrot.slane %v3969, 2
    %v3984 = vrot.slane %v3970, 2
    %v3985 = vrot.slane %v3971, 2
    %v3986 = vrot.slane %v3972, 2
    %v3987 = vrot.slane %v3973, 2
    %v3988 = vrot.slane %v3974, 2
    %v3989 = vrot.slane %v3975, 2
    %3990 = vrot.lane.b32.xlu0 %v3983, 126
    %v3991 = vpop.permute.xlu0 %3990
    %3992 = vrot.lane.b32.xlu0 %v3984, 126
    %v3993 = vpop.permute.xlu0 %3992
    %3994 = vrot.lane.b32.xlu0 %v3985, 126
    %v3995 = vpop.permute.xlu0 %3994
    %3996 = vrot.lane.b32.xlu0 %v3986, 126
    %v3997 = vpop.permute.xlu0 %3996
    %3998 = vrot.lane.b32.xlu0 %v3987, 126
    %v3999 = vpop.permute.xlu0 %3998
    %4000 = vrot.lane.b32.xlu0 %v3988, 126
    %v4001 = vpop.permute.xlu0 %4000
    %4002 = vrot.lane.b32.xlu0 %v3989, 126
    %v4003 = vpop.permute.xlu0 %4002
    %v4004 = vsel %vm317, %v3991, %v3993
    %v4005 = vsel %vm317, %v3993, %v3995
    %v4006 = vsel %vm317, %v3995, %v3997
    %v4007 = vsel %vm317, %v3997, %v3999
    %v4008 = vsel %vm317, %v3999, %v4001
    %v4009 = vsel %vm317, %v4001, %v4003
    %4017 = vst [vmem:[#allocation4] sm:$0xc0] %v4004
    %4018 = vst [vmem:[#allocation4 + $0x8] sm:$0xc0] %v4005
    %4019 = vst [vmem:[#allocation4 + $0x10] sm:$0xc0] %v4006
    %4020 = vst [vmem:[#allocation4 + $0x18] sm:$0xc0] %v4007
    %4021 = vst [vmem:[#allocation4 + $0x20] sm:$0xc0] %v4008
    %4022 = vst [vmem:[#allocation4 + $0x28] sm:$0xc0] %v4009
    %4023 = vst.msk [vmem:[#allocation4 + $0x30] sm:$0xc0] %vm337, %v4003
    %4024 = vst [vmem:[#allocation4 + $0x38] sm:$0x1] %v4004
    %4025 = vst [vmem:[#allocation4 + $0x40] sm:$0x1] %v4005
    %4026 = vst [vmem:[#allocation4 + $0x48] sm:$0x1] %v4006
    %4027 = vst [vmem:[#allocation4 + $0x50] sm:$0x1] %v4007
    %4028 = vst [vmem:[#allocation4 + $0x58] sm:$0x1] %v4008
    %4029 = vst [vmem:[#allocation4 + $0x60] sm:$0x1] %v4009
    %4030 = vst.msk [vmem:[#allocation4 + $0x68] sm:$0x1] %vm345, %v4003
    %v4031 = vld [vmem:[#allocation2] sm:$0x7]
    %v4032 = vld [vmem:[#allocation2 + $0x8] sm:$0x7]
    %v4033 = vld [vmem:[#allocation2 + $0x10] sm:$0x7]
    %v4034 = vld [vmem:[#allocation2 + $0x18] sm:$0x7]
    %v4035 = vld [vmem:[#allocation2 + $0x20] sm:$0x7]
    %v4036 = vld [vmem:[#allocation2 + $0x28] sm:$0x7]
    %v4037 = vld [vmem:[#allocation2 + $0x30] sm:$0x7]
    %4038 = vrot.lane.b32.xlu0 %v3805, 28
    %v4039 = vpop.permute.xlu0 %4038
    %4040 = vrot.lane.b32.xlu0 %v3809, 28
    %v4041 = vpop.permute.xlu0 %4040
    %4042 = vrot.lane.b32.xlu0 %v3813, 28
    %v4043 = vpop.permute.xlu0 %4042
    %4044 = vrot.lane.b32.xlu0 %v3817, 28
    %v4045 = vpop.permute.xlu0 %4044
    %4046 = vrot.lane.b32.xlu0 %v3821, 28
    %v4047 = vpop.permute.xlu0 %4046
    %4048 = vrot.lane.b32.xlu0 %v3825, 28
    %v4049 = vpop.permute.xlu0 %4048
    %4050 = vrot.lane.b32.xlu0 %v3829, 28
    %v4051 = vpop.permute.xlu0 %4050
    %v4052 = vsel %vm368, %v4039, %v4041
    %v4053 = vsel %vm368, %v4041, %v4043
    %v4054 = vsel %vm368, %v4043, %v4045
    %v4055 = vsel %vm368, %v4045, %v4047
    %v4056 = vsel %vm368, %v4047, %v4049
    %v4057 = vsel %vm368, %v4049, %v4051
    %v4065 = vmul.f32 %v4031, %v4039
    %v4066 = vmul.f32 %v4032, %v4052
    %v4067 = vmul.f32 %v4033, %v4053
    %v4068 = vmul.f32 %v4034, %v4054
    %v4069 = vmul.f32 %v4035, %v4055
    %v4070 = vmul.f32 %v4036, %v4056
    %v4071 = vmul.f32 %v4037, %v4057
    %v4079 = vrot.slane %v4065, 7
    %v4080 = vrot.slane %v4066, 7
    %v4081 = vrot.slane %v4067, 7
    %v4082 = vrot.slane %v4068, 7
    %v4083 = vrot.slane %v4069, 7
    %v4084 = vrot.slane %v4070, 7
    %v4085 = vrot.slane %v4071, 7
    %4086 = vrot.lane.b32.xlu0 %v4079, 100
    %v4087 = vpop.permute.xlu0 %4086
    %4088 = vrot.lane.b32.xlu0 %v4080, 100
    %v4089 = vpop.permute.xlu0 %4088
    %4090 = vrot.lane.b32.xlu0 %v4081, 100
    %v4091 = vpop.permute.xlu0 %4090
    %4092 = vrot.lane.b32.xlu0 %v4082, 100
    %v4093 = vpop.permute.xlu0 %4092
    %4094 = vrot.lane.b32.xlu0 %v4083, 100
    %v4095 = vpop.permute.xlu0 %4094
    %4096 = vrot.lane.b32.xlu0 %v4084, 100
    %v4097 = vpop.permute.xlu0 %4096
    %4098 = vrot.lane.b32.xlu0 %v4085, 100
    %v4099 = vpop.permute.xlu0 %4098
    %v4100 = vsel %vm417, %v4087, %v4089
    %v4101 = vsel %vm417, %v4089, %v4091
    %v4102 = vsel %vm417, %v4091, %v4093
    %v4103 = vsel %vm417, %v4093, %v4095
    %v4104 = vsel %vm417, %v4095, %v4097
    %v4105 = vsel %vm417, %v4097, %v4099
    %4113 = vst [vmem:[#allocation4 + $0x38] sm:$0xe] %v4100
    %4114 = vst [vmem:[#allocation4 + $0x40] sm:$0xe] %v4101
    %4115 = vst [vmem:[#allocation4 + $0x48] sm:$0xe] %v4102
    %4116 = vst [vmem:[#allocation4 + $0x50] sm:$0xe] %v4103
    %4117 = vst [vmem:[#allocation4 + $0x58] sm:$0xe] %v4104
    %4118 = vst [vmem:[#allocation4 + $0x60] sm:$0xe] %v4105
    %4119 = vst.msk [vmem:[#allocation4 + $0x68] sm:$0xe] %vm437, %v4099
    %v4120 = vld [vmem:[#allocation2] sm:$0x7]
    %v4121 = vld [vmem:[#allocation2 + $0x8] sm:$0x7]
    %v4122 = vld [vmem:[#allocation2 + $0x10] sm:$0x7]
    %v4123 = vld [vmem:[#allocation2 + $0x18] sm:$0x7]
    %v4124 = vld [vmem:[#allocation2 + $0x20] sm:$0x7]
    %v4125 = vld [vmem:[#allocation2 + $0x28] sm:$0x7]
    %v4126 = vld [vmem:[#allocation2 + $0x30] sm:$0x7]
    %v4134 = vrot.slane %v4120, 4
    %v4135 = vrot.slane %v4121, 4
    %v4136 = vrot.slane %v4122, 4
    %v4137 = vrot.slane %v4123, 4
    %v4138 = vrot.slane %v4124, 4
    %v4139 = vrot.slane %v4125, 4
    %v4140 = vrot.slane %v4126, 4
    %4141 = vrot.lane.b32.xlu0 %v4134, 99
    %v4142 = vpop.permute.xlu0 %4141
    %4143 = vrot.lane.b32.xlu0 %v4135, 99
    %v4144 = vpop.permute.xlu0 %4143
    %4145 = vrot.lane.b32.xlu0 %v4136, 99
    %v4146 = vpop.permute.xlu0 %4145
    %4147 = vrot.lane.b32.xlu0 %v4137, 99
    %v4148 = vpop.permute.xlu0 %4147
    %4149 = vrot.lane.b32.xlu0 %v4138, 99
    %v4150 = vpop.permute.xlu0 %4149
    %4151 = vrot.lane.b32.xlu0 %v4139, 99
    %v4152 = vpop.permute.xlu0 %4151
    %4153 = vrot.lane.b32.xlu0 %v4140, 99
    %v4154 = vpop.permute.xlu0 %4153
    %v4155 = vsel %vm474, %v4142, %v4144
    %v4156 = vsel %vm474, %v4144, %v4146
    %v4157 = vsel %vm474, %v4146, %v4148
    %v4158 = vsel %vm474, %v4148, %v4150
    %v4159 = vsel %vm474, %v4150, %v4152
    %v4160 = vsel %vm474, %v4152, %v4154
    %4168 = vst [vmem:[#allocation4 + $0x38] sm:$0x70] %v4155
    %4169 = vst [vmem:[#allocation4 + $0x40] sm:$0x70] %v4156
    %4170 = vst [vmem:[#allocation4 + $0x48] sm:$0x70] %v4157
    %4171 = vst [vmem:[#allocation4 + $0x50] sm:$0x70] %v4158
    %4172 = vst [vmem:[#allocation4 + $0x58] sm:$0x70] %v4159
    %4173 = vst [vmem:[#allocation4 + $0x60] sm:$0x70] %v4160
    %4174 = vst.msk [vmem:[#allocation4 + $0x68] sm:$0x70] %vm494, %v4154
    %v4175 = vld [vmem:[#allocation2] sm:$0x7]
    %v4176 = vld [vmem:[#allocation2 + $0x8] sm:$0x7]
    %v4177 = vld [vmem:[#allocation2 + $0x10] sm:$0x7]
    %v4178 = vld [vmem:[#allocation2 + $0x18] sm:$0x7]
    %v4179 = vld [vmem:[#allocation2 + $0x20] sm:$0x7]
    %v4180 = vld [vmem:[#allocation2 + $0x28] sm:$0x7]
    %v4181 = vld [vmem:[#allocation2 + $0x30] sm:$0x7]
    %4182 = vrot.lane.b32.xlu0 %v3917, 30
    %v4183 = vpop.permute.xlu0 %4182
    %4184 = vrot.lane.b32.xlu0 %v3921, 30
    %v4185 = vpop.permute.xlu0 %4184
    %4186 = vrot.lane.b32.xlu0 %v3925, 30
    %v4187 = vpop.permute.xlu0 %4186
    %4188 = vrot.lane.b32.xlu0 %v3929, 30
    %v4189 = vpop.permute.xlu0 %4188
    %4190 = vrot.lane.b32.xlu0 %v3933, 30
    %v4191 = vpop.permute.xlu0 %4190
    %4192 = vrot.lane.b32.xlu0 %v3937, 30
    %v4193 = vpop.permute.xlu0 %4192
    %4194 = vrot.lane.b32.xlu0 %v3941, 30
    %v4195 = vpop.permute.xlu0 %4194
    %v4196 = vsel %vm517, %v4183, %v4185
    %v4197 = vsel %vm517, %v4185, %v4187
    %v4198 = vsel %vm517, %v4187, %v4189
    %v4199 = vsel %vm517, %v4189, %v4191
    %v4200 = vsel %vm517, %v4191, %v4193
    %v4201 = vsel %vm517, %v4193, %v4195
    %v4209 = vmul.f32 %v4175, %v4183
    %v4210 = vmul.f32 %v4176, %v4196
    %v4211 = vmul.f32 %v4177, %v4197
    %v4212 = vmul.f32 %v4178, %v4198
    %v4213 = vmul.f32 %v4179, %v4199
    %v4214 = vmul.f32 %v4180, %v4200
    %v4215 = vmul.f32 %v4181, %v4201
    %v4223 = vrot.slane %v4209, 1
    %v4224 = vrot.slane %v4210, 1
    %v4225 = vrot.slane %v4211, 1
    %v4226 = vrot.slane %v4212, 1
    %v4227 = vrot.slane %v4213, 1
    %v4228 = vrot.slane %v4214, 1
    %v4229 = vrot.slane %v4215, 1
    %4230 = vrot.lane.b32.xlu0 %v4223, 98
    %v4231 = vpop.permute.xlu0 %4230
    %4232 = vrot.lane.b32.xlu0 %v4224, 98
    %v4233 = vpop.permute.xlu0 %4232
    %4234 = vrot.lane.b32.xlu0 %v4225, 98
    %v4235 = vpop.permute.xlu0 %4234
    %4236 = vrot.lane.b32.xlu0 %v4226, 98
    %v4237 = vpop.permute.xlu0 %4236
    %4238 = vrot.lane.b32.xlu0 %v4227, 98
    %v4239 = vpop.permute.xlu0 %4238
    %4240 = vrot.lane.b32.xlu0 %v4228, 98
    %v4241 = vpop.permute.xlu0 %4240
    %4242 = vrot.lane.b32.xlu0 %v4229, 98
    %v4243 = vpop.permute.xlu0 %4242
    %v4244 = vsel %vm566, %v4231, %v4233
    %v4245 = vsel %vm566, %v4233, %v4235
    %v4246 = vsel %vm566, %v4235, %v4237
    %v4247 = vsel %vm566, %v4237, %v4239
    %v4248 = vsel %vm566, %v4239, %v4241
    %v4249 = vsel %vm566, %v4241, %v4243
    %4257 = vst [vmem:[#allocation4 + $0x38] sm:$0x80] %v4244
    %4258 = vst [vmem:[#allocation4 + $0x40] sm:$0x80] %v4245
    %4259 = vst [vmem:[#allocation4 + $0x48] sm:$0x80] %v4246
    %4260 = vst [vmem:[#allocation4 + $0x50] sm:$0x80] %v4247
    %4261 = vst [vmem:[#allocation4 + $0x58] sm:$0x80] %v4248
    %4262 = vst [vmem:[#allocation4 + $0x60] sm:$0x80] %v4249
    %4263 = vst.msk [vmem:[#allocation4 + $0x68] sm:$0x80] %vm586, %v4243
    %4264 = vst [vmem:[#allocation4 + $0x70] sm:$0x3] %v4244
    %4265 = vst [vmem:[#allocation4 + $0x78] sm:$0x3] %v4245
    %4266 = vst [vmem:[#allocation4 + $0x80] sm:$0x3] %v4246
    %4267 = vst [vmem:[#allocation4 + $0x88] sm:$0x3] %v4247
    %4268 = vst [vmem:[#allocation4 + $0x90] sm:$0x3] %v4248
    %4269 = vst [vmem:[#allocation4 + $0x98] sm:$0x3] %v4249
    %4270 = vst.msk [vmem:[#allocation4 + $0xa0] sm:$0x3] %vm594, %v4243
    %v4271 = vld [vmem:[#allocation2] sm:$0x7]
    %v4272 = vld [vmem:[#allocation2 + $0x8] sm:$0x7]
    %v4273 = vld [vmem:[#allocation2 + $0x10] sm:$0x7]
    %v4274 = vld [vmem:[#allocation2 + $0x18] sm:$0x7]
    %v4275 = vld [vmem:[#allocation2 + $0x20] sm:$0x7]
    %v4276 = vld [vmem:[#allocation2 + $0x28] sm:$0x7]
    %v4277 = vld [vmem:[#allocation2 + $0x30] sm:$0x7]
    %4278 = vrot.lane.b32.xlu0 %v3805, 56
    %v4279 = vpop.permute.xlu0 %4278
    %4280 = vrot.lane.b32.xlu0 %v3809, 56
    %v4281 = vpop.permute.xlu0 %4280
    %4282 = vrot.lane.b32.xlu0 %v3813, 56
    %v4283 = vpop.permute.xlu0 %4282
    %4284 = vrot.lane.b32.xlu0 %v3817, 56
    %v4285 = vpop.permute.xlu0 %4284
    %4286 = vrot.lane.b32.xlu0 %v3821, 56
    %v4287 = vpop.permute.xlu0 %4286
    %4288 = vrot.lane.b32.xlu0 %v3825, 56
    %v4289 = vpop.permute.xlu0 %4288
    %4290 = vrot.lane.b32.xlu0 %v3829, 56
    %v4291 = vpop.permute.xlu0 %4290
    %v4292 = vsel %vm617, %v4279, %v4281
    %v4293 = vsel %vm617, %v4281, %v4283
    %v4294 = vsel %vm617, %v4283, %v4285
    %v4295 = vsel %vm617, %v4285, %v4287
    %v4296 = vsel %vm617, %v4287, %v4289
    %v4297 = vsel %vm617, %v4289, %v4291
    %v4305 = vmul.f32 %v4271, %v4279
    %v4306 = vmul.f32 %v4272, %v4292
    %v4307 = vmul.f32 %v4273, %v4293
    %v4308 = vmul.f32 %v4274, %v4294
    %v4309 = vmul.f32 %v4275, %v4295
    %v4310 = vmul.f32 %v4276, %v4296
    %v4311 = vmul.f32 %v4277, %v4297
    %v4319 = vrot.slane %v4305, 6
    %v4320 = vrot.slane %v4306, 6
    %v4321 = vrot.slane %v4307, 6
    %v4322 = vrot.slane %v4308, 6
    %v4323 = vrot.slane %v4309, 6
    %v4324 = vrot.slane %v4310, 6
    %v4325 = vrot.slane %v4311, 6
    %4326 = vrot.lane.b32.xlu0 %v4319, 72
    %v4327 = vpop.permute.xlu0 %4326
    %4328 = vrot.lane.b32.xlu0 %v4320, 72
    %v4329 = vpop.permute.xlu0 %4328
    %4330 = vrot.lane.b32.xlu0 %v4321, 72
    %v4331 = vpop.permute.xlu0 %4330
    %4332 = vrot.lane.b32.xlu0 %v4322, 72
    %v4333 = vpop.permute.xlu0 %4332
    %4334 = vrot.lane.b32.xlu0 %v4323, 72
    %v4335 = vpop.permute.xlu0 %4334
    %4336 = vrot.lane.b32.xlu0 %v4324, 72
    %v4337 = vpop.permute.xlu0 %4336
    %4338 = vrot.lane.b32.xlu0 %v4325, 72
    %v4339 = vpop.permute.xlu0 %4338
    %v4340 = vsel %vm666, %v4327, %v4329
    %v4341 = vsel %vm666, %v4329, %v4331
    %v4342 = vsel %vm666, %v4331, %v4333
    %v4343 = vsel %vm666, %v4333, %v4335
    %v4344 = vsel %vm666, %v4335, %v4337
    %v4345 = vsel %vm666, %v4337, %v4339
    %4353 = vst [vmem:[#allocation4 + $0x70] sm:$0x1c] %v4340
    %4354 = vst [vmem:[#allocation4 + $0x78] sm:$0x1c] %v4341
    %4355 = vst [vmem:[#allocation4 + $0x80] sm:$0x1c] %v4342
    %4356 = vst [vmem:[#allocation4 + $0x88] sm:$0x1c] %v4343
    %4357 = vst [vmem:[#allocation4 + $0x90] sm:$0x1c] %v4344
    %4358 = vst [vmem:[#allocation4 + $0x98] sm:$0x1c] %v4345
    %4359 = vst.msk [vmem:[#allocation4 + $0xa0] sm:$0x1c] %vm686, %v4339
    %v4360 = vld [vmem:[#allocation2] sm:$0x7]
    %v4361 = vld [vmem:[#allocation2 + $0x8] sm:$0x7]
    %v4362 = vld [vmem:[#allocation2 + $0x10] sm:$0x7]
    %v4363 = vld [vmem:[#allocation2 + $0x18] sm:$0x7]
    %v4364 = vld [vmem:[#allocation2 + $0x20] sm:$0x7]
    %v4365 = vld [vmem:[#allocation2 + $0x28] sm:$0x7]
    %v4366 = vld [vmem:[#allocation2 + $0x30] sm:$0x7]
    %v4374 = vrot.slane %v4360, 3
    %v4375 = vrot.slane %v4361, 3
    %v4376 = vrot.slane %v4362, 3
    %v4377 = vrot.slane %v4363, 3
    %v4378 = vrot.slane %v4364, 3
    %v4379 = vrot.slane %v4365, 3
    %v4380 = vrot.slane %v4366, 3
    %4381 = vrot.lane.b32.xlu0 %v4374, 71
    %v4382 = vpop.permute.xlu0 %4381
    %4383 = vrot.lane.b32.xlu0 %v4375, 71
    %v4384 = vpop.permute.xlu0 %4383
    %4385 = vrot.lane.b32.xlu0 %v4376, 71
    %v4386 = vpop.permute.xlu0 %4385
    %4387 = vrot.lane.b32.xlu0 %v4377, 71
    %v4388 = vpop.permute.xlu0 %4387
    %4389 = vrot.lane.b32.xlu0 %v4378, 71
    %v4390 = vpop.permute.xlu0 %4389
    %4391 = vrot.lane.b32.xlu0 %v4379, 71
    %v4392 = vpop.permute.xlu0 %4391
    %4393 = vrot.lane.b32.xlu0 %v4380, 71
    %v4394 = vpop.permute.xlu0 %4393
    %v4395 = vsel %vm723, %v4382, %v4384
    %v4396 = vsel %vm723, %v4384, %v4386
    %v4397 = vsel %vm723, %v4386, %v4388
    %v4398 = vsel %vm723, %v4388, %v4390
    %v4399 = vsel %vm723, %v4390, %v4392
    %v4400 = vsel %vm723, %v4392, %v4394
    %4408 = vst [vmem:[#allocation4 + $0x70] sm:$0xe0] %v4395
    %4409 = vst [vmem:[#allocation4 + $0x78] sm:$0xe0] %v4396
    %4410 = vst [vmem:[#allocation4 + $0x80] sm:$0xe0] %v4397
    %4411 = vst [vmem:[#allocation4 + $0x88] sm:$0xe0] %v4398
    %4412 = vst [vmem:[#allocation4 + $0x90] sm:$0xe0] %v4399
    %4413 = vst [vmem:[#allocation4 + $0x98] sm:$0xe0] %v4400
    %4414 = vst.msk [vmem:[#allocation4 + $0xa0] sm:$0xe0] %vm743, %v4394
    %v4415 = vld [vmem:[#allocation2] sm:$0x7]
    %v4416 = vld [vmem:[#allocation2 + $0x8] sm:$0x7]
    %v4417 = vld [vmem:[#allocation2 + $0x10] sm:$0x7]
    %v4418 = vld [vmem:[#allocation2 + $0x18] sm:$0x7]
    %v4419 = vld [vmem:[#allocation2 + $0x20] sm:$0x7]
    %v4420 = vld [vmem:[#allocation2 + $0x28] sm:$0x7]
    %v4421 = vld [vmem:[#allocation2 + $0x30] sm:$0x7]
    %4422 = vrot.lane.b32.xlu0 %v3917, 58
    %v4423 = vpop.permute.xlu0 %4422
    %4424 = vrot.lane.b32.xlu0 %v3921, 58
    %v4425 = vpop.permute.xlu0 %4424
    %4426 = vrot.lane.b32.xlu0 %v3925, 58
    %v4427 = vpop.permute.xlu0 %4426
    %4428 = vrot.lane.b32.xlu0 %v3929, 58
    %v4429 = vpop.permute.xlu0 %4428
    %4430 = vrot.lane.b32.xlu0 %v3933, 58
    %v4431 = vpop.permute.xlu0 %4430
    %4432 = vrot.lane.b32.xlu0 %v3937, 58
    %v4433 = vpop.permute.xlu0 %4432
    %4434 = vrot.lane.b32.xlu0 %v3941, 58
    %v4435 = vpop.permute.xlu0 %4434
    %v4436 = vsel %vm766, %v4423, %v4425
    %v4437 = vsel %vm766, %v4425, %v4427
    %v4438 = vsel %vm766, %v4427, %v4429
    %v4439 = vsel %vm766, %v4429, %v4431
    %v4440 = vsel %vm766, %v4431, %v4433
    %v4441 = vsel %vm766, %v4433, %v4435
    %v4449 = vmul.f32 %v4415, %v4423
    %v4450 = vmul.f32 %v4416, %v4436
    %v4451 = vmul.f32 %v4417, %v4437
    %v4452 = vmul.f32 %v4418, %v4438
    %v4453 = vmul.f32 %v4419, %v4439
    %v4454 = vmul.f32 %v4420, %v4440
    %v4455 = vmul.f32 %v4421, %v4441
    %4463 = vrot.lane.b32.xlu0 %v4449, 70
    %v4464 = vpop.permute.xlu0 %4463
    %4465 = vrot.lane.b32.xlu0 %v4450, 70
    %v4466 = vpop.permute.xlu0 %4465
    %4467 = vrot.lane.b32.xlu0 %v4451, 70
    %v4468 = vpop.permute.xlu0 %4467
    %4469 = vrot.lane.b32.xlu0 %v4452, 70
    %v4470 = vpop.permute.xlu0 %4469
    %4471 = vrot.lane.b32.xlu0 %v4453, 70
    %v4472 = vpop.permute.xlu0 %4471
    %4473 = vrot.lane.b32.xlu0 %v4454, 70
    %v4474 = vpop.permute.xlu0 %4473
    %4475 = vrot.lane.b32.xlu0 %v4455, 70
    %v4476 = vpop.permute.xlu0 %4475
    %v4477 = vsel %vm808, %v4464, %v4466
    %v4478 = vsel %vm808, %v4466, %v4468
    %v4479 = vsel %vm808, %v4468, %v4470
    %v4480 = vsel %vm808, %v4470, %v4472
    %v4481 = vsel %vm808, %v4472, %v4474
    %v4482 = vsel %vm808, %v4474, %v4476
    %4490 = vst [vmem:[#allocation4 + $0xa8] sm:$0x7] %v4477
    %4491 = vst [vmem:[#allocation4 + $0xb0] sm:$0x7] %v4478
    %4492 = vst [vmem:[#allocation4 + $0xb8] sm:$0x7] %v4479
    %4493 = vst [vmem:[#allocation4 + $0xc0] sm:$0x7] %v4480
    %4494 = vst [vmem:[#allocation4 + $0xc8] sm:$0x7] %v4481
    %4495 = vst [vmem:[#allocation4 + $0xd0] sm:$0x7] %v4482
    %4496 = vst.msk [vmem:[#allocation4 + $0xd8] sm:$0x7] %vm159, %v4476
    %v4497 = vld [vmem:[#allocation4] sm:$0xff]
    %v4498 = vld [vmem:[#allocation4 + $0x8] sm:$0xff]
    %v4499 = vld [vmem:[#allocation4 + $0x10] sm:$0xff]
    %v4500 = vld [vmem:[#allocation4 + $0x18] sm:$0xff]
    %v4501 = vld [vmem:[#allocation4 + $0x20] sm:$0xff]
    %v4502 = vld [vmem:[#allocation4 + $0x28] sm:$0xff]
    %v4503 = vld [vmem:[#allocation4 + $0x30] sm:$0xff]
    %v4504 = vld [vmem:[#allocation4 + $0x38] sm:$0xff]
    %v4505 = vld [vmem:[#allocation4 + $0x40] sm:$0xff]
    %v4506 = vld [vmem:[#allocation4 + $0x48] sm:$0xff]
    %v4507 = vld [vmem:[#allocation4 + $0x50] sm:$0xff]
    %v4508 = vld [vmem:[#allocation4 + $0x58] sm:$0xff]
    %v4509 = vld [vmem:[#allocation4 + $0x60] sm:$0xff]
    %v4510 = vld [vmem:[#allocation4 + $0x68] sm:$0xff]
    %v4511 = vld [vmem:[#allocation4 + $0x70] sm:$0xff]
    %v4512 = vld [vmem:[#allocation4 + $0x78] sm:$0xff]
    %v4513 = vld [vmem:[#allocation4 + $0x80] sm:$0xff]
    %v4514 = vld [vmem:[#allocation4 + $0x88] sm:$0xff]
    %v4515 = vld [vmem:[#allocation4 + $0x90] sm:$0xff]
    %v4516 = vld [vmem:[#allocation4 + $0x98] sm:$0xff]
    %v4517 = vld [vmem:[#allocation4 + $0xa0] sm:$0xff]
    %v4518 = vld [vmem:[#allocation4 + $0xa8] sm:$0x7]
    %v4519 = vld [vmem:[#allocation4 + $0xb0] sm:$0x7]
    %v4520 = vld [vmem:[#allocation4 + $0xb8] sm:$0x7]
    %v4521 = vld [vmem:[#allocation4 + $0xc0] sm:$0x7]
    %v4522 = vld [vmem:[#allocation4 + $0xc8] sm:$0x7]
    %v4523 = vld [vmem:[#allocation4 + $0xd0] sm:$0x7]
    %v4524 = vld [vmem:[#allocation4 + $0xd8] sm:$0x7]
    %v4525 = vpack.c.bf16 %v4504, %v4497
    %v4526 = vpack.c.bf16 %v4505, %v4498
    %v4527 = vpack.c.bf16 %v4506, %v4499
    %v4528 = vpack.c.bf16 %v4507, %v4500
    %v4529 = vpack.c.bf16 %v4508, %v4501
    %v4530 = vpack.c.bf16 %v4509, %v4502
    %v4531 = vpack.c.bf16 %v4510, %v4503
    %v4532 = vpack.c.bf16 %v4518, %v4511
    %v4533 = vpack.c.bf16 %v4519, %v4512
    %v4534 = vpack.c.bf16 %v4520, %v4513
    %v4535 = vpack.c.bf16 %v4521, %v4514
    %v4536 = vpack.c.bf16 %v4522, %v4515
    %v4537 = vpack.c.bf16 %v4523, %v4516
    %v4538 = vpack.c.bf16 %v4524, %v4517
    %v4539 = vld [vmem:[%s1] sm:$0xf]
    %v4540 = vld [vmem:[%s2] sm:$0xff]
    %4542 = vset.pattern.permute.xlu0 0
    %4543 = vperm.xlu0 %4542, %v4540
    %v4544 = vpop.permute.xlu0 %4543
    %v4547 = vsel %vm878, %v4539, 0
    %v4550 = vand.u32 %v4532, %v885
    %v4553 = vand.u32 %v4533, %v885
    %v4556 = vand.u32 %v4534, %v885
    %v4559 = vand.u32 %v4535, %v885
    %v4562 = vand.u32 %v4536, %v885
    %v4565 = vand.u32 %v4537, %v885
    %v4568 = vand.u32 %v4538, %v885
    %4570 = vmatprep.subr.bf16.mxu0 %v4526
    %4571 = vmatpush1.bf16.msra.mxu0 %v4525
    %4572 = vmatprep.subr.bf16.mxu0 %v4553
    %4573 = vmatpush1.bf16.msra.mxu0 %v4550
    %4574 = vmatprep.subr.bf16.mxu0 0
    %4575 = vmatpush1.bf16.msra.mxu0 0
    %4576 = vmatprep.subr.bf16.mxu0 0
    %4577 = vmatpush1.bf16.msra.mxu0 0
    %4578 = vmatprep.subr.bf16.mxu0 0
    %4579 = vmatpush1.bf16.msra.mxu0 0
    %4580 = vmatprep.subr.bf16.mxu0 0
    %4581 = vmatpush1.bf16.msra.mxu0 0
    %4582 = vmatprep.subr.bf16.mxu0 0
    %4583 = vmatpush1.bf16.msra.mxu0 0
    %4584 = vmatprep.subr.bf16.mxu0 0
    %4585 = vmatpush1.bf16.msra.mxu0 0
    %4586 = vmatprep.subr.bf16.mxu0 0
    %4587 = vmatpush1.bf16.msra.mxu0 0
    %4588 = vmatprep.subr.bf16.mxu0 0
    %4589 = vmatpush1.bf16.msra.mxu0 0
    %4590 = vmatprep.subr.bf16.mxu0 0
    %4591 = vmatpush1.bf16.msra.mxu0 0
    %4592 = vmatprep.subr.bf16.mxu0 0
    %4593 = vmatpush1.bf16.msra.mxu0 0
    %4594 = vmatprep.subr.bf16.mxu0 0
    %4595 = vmatpush1.bf16.msra.mxu0 0
    %4596 = vmatprep.subr.bf16.mxu0 0
    %4597 = vmatpush1.bf16.msra.mxu0 0
    %4598 = vmatprep.subr.bf16.mxu0 0
    %4599 = vmatpush1.bf16.msra.mxu0 0
    %4600 = vmatprep.subr.bf16.mxu0 0
    %4601 = vmatpush1.bf16.msra.mxu0 0
    %4602 = vmatprep.mubr.bf16.mxu0 0
    %4603 = vmatmul.mubr.bf16.gmra.mrb[0].mxu0 %v4547
    %v4604 = vpop.f32.mrb[0].mxu0
    %v4605 = vadd.f32 %v4544, %v4604
    %v4606 = vpop.f32.mrb[0].mxu0
    %v4607 = vadd.f32 %v4544, %v4606
    %v4608 = vpop.f32.mrb[0].mxu0
    %v4609 = vpop.f32.mrb[0].mxu0
    %4610 = vdwg.mxu0
    %4611 = vmatprep.subr.bf16.mxu0 %v4528
    %4612 = vmatpush1.bf16.msra.mxu0 %v4527
    %4613 = vmatprep.subr.bf16.mxu0 %v4559
    %4614 = vmatpush1.bf16.msra.mxu0 %v4556
    %4615 = vmatprep.subr.bf16.mxu0 0
    %4616 = vmatpush1.bf16.msra.mxu0 0
    %4617 = vmatprep.subr.bf16.mxu0 0
    %4618 = vmatpush1.bf16.msra.mxu0 0
    %4619 = vmatprep.subr.bf16.mxu0 0
    %4620 = vmatpush1.bf16.msra.mxu0 0
    %4621 = vmatprep.subr.bf16.mxu0 0
    %4622 = vmatpush1.bf16.msra.mxu0 0
    %4623 = vmatprep.subr.bf16.mxu0 0
    %4624 = vmatpush1.bf16.msra.mxu0 0
    %4625 = vmatprep.subr.bf16.mxu0 0
    %4626 = vmatpush1.bf16.msra.mxu0 0
    %4627 = vmatprep.subr.bf16.mxu0 0
    %4628 = vmatpush1.bf16.msra.mxu0 0
    %4629 = vmatprep.subr.bf16.mxu0 0
    %4630 = vmatpush1.bf16.msra.mxu0 0
    %4631 = vmatprep.subr.bf16.mxu0 0
    %4632 = vmatpush1.bf16.msra.mxu0 0
    %4633 = vmatprep.subr.bf16.mxu0 0
    %4634 = vmatpush1.bf16.msra.mxu0 0
    %4635 = vmatprep.subr.bf16.mxu0 0
    %4636 = vmatpush1.bf16.msra.mxu0 0
    %4637 = vmatprep.subr.bf16.mxu0 0
    %4638 = vmatpush1.bf16.msra.mxu0 0
    %4639 = vmatprep.subr.bf16.mxu0 0
    %4640 = vmatpush1.bf16.msra.mxu0 0
    %4641 = vmatprep.subr.bf16.mxu0 0
    %4642 = vmatpush1.bf16.msra.mxu0 0
    %4643 = vmatprep.mubr.bf16.mxu0 0
    %4644 = vmatmul.mubr.bf16.gmra.mrb[0].mxu0 %v4547
    %v4645 = vpop.f32.mrb[0].mxu0
    %v4646 = vadd.f32 %v4544, %v4645
    %v4647 = vpop.f32.mrb[0].mxu0
    %v4648 = vadd.f32 %v4544, %v4647
    %v4649 = vpop.f32.mrb[0].mxu0
    %v4650 = vpop.f32.mrb[0].mxu0
    %4651 = vdwg.mxu0
    %4652 = vmatprep.subr.bf16.mxu0 %v4530
    %4653 = vmatpush1.bf16.msra.mxu0 %v4529
    %4654 = vmatprep.subr.bf16.mxu0 %v4565
    %4655 = vmatpush1.bf16.msra.mxu0 %v4562
    %4656 = vmatprep.subr.bf16.mxu0 0
    %4657 = vmatpush1.bf16.msra.mxu0 0
    %4658 = vmatprep.subr.bf16.mxu0 0
    %4659 = vmatpush1.bf16.msra.mxu0 0
    %4660 = vmatprep.subr.bf16.mxu0 0
    %4661 = vmatpush1.bf16.msra.mxu0 0
    %4662 = vmatprep.subr.bf16.mxu0 0
    %4663 = vmatpush1.bf16.msra.mxu0 0
    %4664 = vmatprep.subr.bf16.mxu0 0
    %4665 = vmatpush1.bf16.msra.mxu0 0
    %4666 = vmatprep.subr.bf16.mxu0 0
    %4667 = vmatpush1.bf16.msra.mxu0 0
    %4668 = vmatprep.subr.bf16.mxu0 0
    %4669 = vmatpush1.bf16.msra.mxu0 0
    %4670 = vmatprep.subr.bf16.mxu0 0
    %4671 = vmatpush1.bf16.msra.mxu0 0
    %4672 = vmatprep.subr.bf16.mxu0 0
    %4673 = vmatpush1.bf16.msra.mxu0 0
    %4674 = vmatprep.subr.bf16.mxu0 0
    %4675 = vmatpush1.bf16.msra.mxu0 0
    %4676 = vmatprep.subr.bf16.mxu0 0
    %4677 = vmatpush1.bf16.msra.mxu0 0
    %4678 = vmatprep.subr.bf16.mxu0 0
    %4679 = vmatpush1.bf16.msra.mxu0 0
    %4680 = vmatprep.subr.bf16.mxu0 0
    %4681 = vmatpush1.bf16.msra.mxu0 0
    %4682 = vmatprep.subr.bf16.mxu0 0
    %4683 = vmatpush1.bf16.msra.mxu0 0
    %4684 = vmatprep.mubr.bf16.mxu0 0
    %4685 = vmatmul.mubr.bf16.gmra.mrb[0].mxu0 %v4547
    %v4686 = vpop.f32.mrb[0].mxu0
    %v4687 = vadd.f32 %v4544, %v4686
    %v4688 = vpop.f32.mrb[0].mxu0
    %v4689 = vadd.f32 %v4544, %v4688
    %v4690 = vpop.f32.mrb[0].mxu0
    %v4691 = vpop.f32.mrb[0].mxu0
    %4692 = vdwg.mxu0
    %4693 = vmatprep.subr.bf16.mxu0 0
    %4694 = vmatpush1.bf16.msra.mxu0 %v4531
    %4695 = vmatprep.subr.bf16.mxu0 0
    %4696 = vmatpush1.bf16.msra.mxu0 %v4568
    %4697 = vmatprep.subr.bf16.mxu0 0
    %4698 = vmatpush1.bf16.msra.mxu0 0
    %4699 = vmatprep.subr.bf16.mxu0 0
    %4700 = vmatpush1.bf16.msra.mxu0 0
    %4701 = vmatprep.subr.bf16.mxu0 0
    %4702 = vmatpush1.bf16.msra.mxu0 0
    %4703 = vmatprep.subr.bf16.mxu0 0
    %4704 = vmatpush1.bf16.msra.mxu0 0
    %4705 = vmatprep.subr.bf16.mxu0 0
    %4706 = vmatpush1.bf16.msra.mxu0 0
    %4707 = vmatprep.subr.bf16.mxu0 0
    %4708 = vmatpush1.bf16.msra.mxu0 0
    %4709 = vmatprep.subr.bf16.mxu0 0
    %4710 = vmatpush1.bf16.msra.mxu0 0
    %4711 = vmatprep.subr.bf16.mxu0 0
    %4712 = vmatpush1.bf16.msra.mxu0 0
    %4713 = vmatprep.subr.bf16.mxu0 0
    %4714 = vmatpush1.bf16.msra.mxu0 0
    %4715 = vmatprep.subr.bf16.mxu0 0
    %4716 = vmatpush1.bf16.msra.mxu0 0
    %4717 = vmatprep.subr.bf16.mxu0 0
    %4718 = vmatpush1.bf16.msra.mxu0 0
    %4719 = vmatprep.subr.bf16.mxu0 0
    %4720 = vmatpush1.bf16.msra.mxu0 0
    %4721 = vmatprep.subr.bf16.mxu0 0
    %4722 = vmatpush1.bf16.msra.mxu0 0
    %4723 = vmatprep.subr.bf16.mxu0 0
    %4724 = vmatpush1.bf16.msra.mxu0 0
    %4725 = vmatprep.mubr.bf16.mxu0 0
    %4726 = vmatmul.mubr.bf16.gmra.mrb[0].mxu0 %v4547
    %v4727 = vpop.f32.mrb[0].mxu0
    %v4728 = vadd.f32 %v4544, %v4727
    %v4729 = vpop.f32.mrb[0].mxu0
    %v4730 = vpop.f32.mrb[0].mxu0
    %v4731 = vpop.f32.mrb[0].mxu0
    %4732 = vdwg.mxu0
    %v4733 = vmax.f32 %v4605, 0.0
    %v4734 = vmax.f32 %v4607, 0.0
    %v4735 = vmax.f32 %v4646, 0.0
    %v4736 = vmax.f32 %v4648, 0.0
    %v4737 = vmax.f32 %v4687, 0.0
    %v4738 = vmax.f32 %v4689, 0.0
    %v4739 = vmax.f32 %v4728, 0.0
    %4747 = vrot.lane.b32.xlu0 %v4733, 29
    %v4748 = vpop.permute.xlu0 %4747
    %4749 = vrot.lane.b32.xlu0 %v4734, 29
    %v4750 = vpop.permute.xlu0 %4749
    %4751 = vrot.lane.b32.xlu0 %v4735, 29
    %v4752 = vpop.permute.xlu0 %4751
    %4753 = vrot.lane.b32.xlu0 %v4736, 29
    %v4754 = vpop.permute.xlu0 %4753
    %4755 = vrot.lane.b32.xlu0 %v4737, 29
    %v4756 = vpop.permute.xlu0 %4755
    %4757 = vrot.lane.b32.xlu0 %v4738, 29
    %v4758 = vpop.permute.xlu0 %4757
    %4759 = vrot.lane.b32.xlu0 %v4739, 29
    %v4760 = vpop.permute.xlu0 %4759
    %v4761 = vsel %vm53, %v4748, %v4750
    %v4762 = vsel %vm53, %v4750, %v4752
    %v4763 = vsel %vm53, %v4752, %v4754
    %v4764 = vsel %vm53, %v4754, %v4756
    %v4765 = vsel %vm53, %v4756, %v4758
    %v4766 = vsel %vm53, %v4758, %v4760
    %4774 = vst.msk [vmem:[#allocation2] sm:$0xff] %vm1111, %v4748
    %4775 = vst [vmem:[#allocation2 + $0x8] sm:$0xff] %v4761
    %4776 = vst [vmem:[#allocation2 + $0x10] sm:$0xff] %v4762
    %4777 = vst [vmem:[#allocation2 + $0x18] sm:$0xff] %v4763
    %4778 = vst [vmem:[#allocation2 + $0x20] sm:$0xff] %v4764
    %4779 = vst [vmem:[#allocation2 + $0x28] sm:$0xff] %v4765
    %4780 = vst.msk [vmem:[#allocation2 + $0x30] sm:$0xff] %vm1118, %v4766
    %v4781 = vld [vmem:[%s12] ss:$2 sm:$0x7f]
    %v4782 = vld [vmem:[%s101] ss:$2 sm:$0x7f]
    %v4783 = vld [vmem:[#allocation2] sm:$0xff]
    %v4784 = vld [vmem:[#allocation2 + $0x8] sm:$0xff]
    %v4785 = vld [vmem:[#allocation2 + $0x10] sm:$0xff]
    %v4786 = vld [vmem:[#allocation2 + $0x18] sm:$0xff]
    %v4787 = vld [vmem:[#allocation2 + $0x20] sm:$0xff]
    %v4788 = vld [vmem:[#allocation2 + $0x28] sm:$0xff]
    %v4789 = vld [vmem:[#allocation2 + $0x30] sm:$0xff]
    %v4791 = vlaneseq
    %v4792 = vshrl.u32 %v4791, 7
    %v4793 = vsub.s32 0, %v4792
    %v4794 = vrot.slane %v4781, %v4793
    %v4795 = vlaneseq
    %v4796 = vshrl.u32 %v4795, 7
    %v4797 = vsub.s32 1, %v4796
    %v4798 = vrot.slane %v4781, %v4797
    %v4799 = vlaneseq
    %v4800 = vshrl.u32 %v4799, 7
    %v4801 = vsub.s32 2, %v4800
    %v4802 = vrot.slane %v4781, %v4801
    %v4803 = vlaneseq
    %v4804 = vshrl.u32 %v4803, 7
    %v4805 = vsub.s32 3, %v4804
    %v4806 = vrot.slane %v4781, %v4805
    %v4807 = vlaneseq
    %v4808 = vshrl.u32 %v4807, 7
    %v4809 = vsub.s32 4, %v4808
    %v4810 = vrot.slane %v4781, %v4809
    %v4811 = vlaneseq
    %v4812 = vshrl.u32 %v4811, 7
    %v4813 = vsub.s32 5, %v4812
    %v4814 = vrot.slane %v4781, %v4813
    %v4815 = vlaneseq
    %v4816 = vshrl.u32 %v4815, 7
    %v4817 = vsub.s32 6, %v4816
    %v4818 = vrot.slane %v4781, %v4817
    %v4826 = vmul.f32 %v4783, %v4794
    %v4827 = vmul.f32 %v4784, %v4798
    %v4828 = vmul.f32 %v4785, %v4802
    %v4829 = vmul.f32 %v4786, %v4806
    %v4830 = vmul.f32 %v4787, %v4810
    %v4831 = vmul.f32 %v4788, %v4814
    %v4832 = vmul.f32 %v4789, %v4818
    %4833 = vst [vmem:[#allocation4] sm:$0xff] %v4826
    %4834 = vst [vmem:[#allocation4 + $0x8] sm:$0xff] %v4827
    %4835 = vst [vmem:[#allocation4 + $0x10] sm:$0xff] %v4828
    %4836 = vst [vmem:[#allocation4 + $0x18] sm:$0xff] %v4829
    %4837 = vst [vmem:[#allocation4 + $0x20] sm:$0xff] %v4830
    %4838 = vst [vmem:[#allocation4 + $0x28] sm:$0xff] %v4831
    %4839 = vst.msk [vmem:[#allocation4 + $0x30] sm:$0xff] %vm1178, %v4832
    %v4840 = vld [vmem:[#allocation2] sm:$0xff]
    %v4841 = vld [vmem:[#allocation2 + $0x8] sm:$0xff]
    %v4842 = vld [vmem:[#allocation2 + $0x10] sm:$0xff]
    %v4843 = vld [vmem:[#allocation2 + $0x18] sm:$0xff]
    %v4844 = vld [vmem:[#allocation2 + $0x20] sm:$0xff]
    %v4845 = vld [vmem:[#allocation2 + $0x28] sm:$0xff]
    %v4846 = vld [vmem:[#allocation2 + $0x30] sm:$0xff]
    %4854 = vrot.lane.b32.xlu0 %v4840, 127
    %v4855 = vpop.permute.xlu0 %4854
    %4856 = vrot.lane.b32.xlu0 %v4841, 127
    %v4857 = vpop.permute.xlu0 %4856
    %4858 = vrot.lane.b32.xlu0 %v4842, 127
    %v4859 = vpop.permute.xlu0 %4858
    %4860 = vrot.lane.b32.xlu0 %v4843, 127
    %v4861 = vpop.permute.xlu0 %4860
    %4862 = vrot.lane.b32.xlu0 %v4844, 127
    %v4863 = vpop.permute.xlu0 %4862
    %4864 = vrot.lane.b32.xlu0 %v4845, 127
    %v4865 = vpop.permute.xlu0 %4864
    %4866 = vrot.lane.b32.xlu0 %v4846, 127
    %v4867 = vpop.permute.xlu0 %4866
    %v4868 = vsel %vm196, %v4855, %v4857
    %v4869 = vsel %vm196, %v4857, %v4859
    %v4870 = vsel %vm196, %v4859, %v4861
    %v4871 = vsel %vm196, %v4861, %v4863
    %v4872 = vsel %vm196, %v4863, %v4865
    %v4873 = vsel %vm196, %v4865, %v4867
    %4881 = vst [vmem:[#allocation4 + $0x38] sm:$0xff] %v4868
    %4882 = vst [vmem:[#allocation4 + $0x40] sm:$0xff] %v4869
    %4883 = vst [vmem:[#allocation4 + $0x48] sm:$0xff] %v4870
    %4884 = vst [vmem:[#allocation4 + $0x50] sm:$0xff] %v4871
    %4885 = vst [vmem:[#allocation4 + $0x58] sm:$0xff] %v4872
    %4886 = vst [vmem:[#allocation4 + $0x60] sm:$0xff] %v4873
    %4887 = vst.msk [vmem:[#allocation4 + $0x68] sm:$0xff] %vm1178, %v4867
    %v4888 = vld [vmem:[#allocation2] sm:$0xff]
    %v4889 = vld [vmem:[#allocation2 + $0x8] sm:$0xff]
    %v4890 = vld [vmem:[#allocation2 + $0x10] sm:$0xff]
    %v4891 = vld [vmem:[#allocation2 + $0x18] sm:$0xff]
    %v4892 = vld [vmem:[#allocation2 + $0x20] sm:$0xff]
    %v4893 = vld [vmem:[#allocation2 + $0x28] sm:$0xff]
    %v4894 = vld [vmem:[#allocation2 + $0x30] sm:$0xff]
    %v4896 = vlaneseq
    %v4897 = vshrl.u32 %v4896, 7
    %v4898 = vsub.s32 0, %v4897
    %v4899 = vrot.slane %v4782, %v4898
    %v4900 = vlaneseq
    %v4901 = vshrl.u32 %v4900, 7
    %v4902 = vsub.s32 1, %v4901
    %v4903 = vrot.slane %v4782, %v4902
    %v4904 = vlaneseq
    %v4905 = vshrl.u32 %v4904, 7
    %v4906 = vsub.s32 2, %v4905
    %v4907 = vrot.slane %v4782, %v4906
    %v4908 = vlaneseq
    %v4909 = vshrl.u32 %v4908, 7
    %v4910 = vsub.s32 3, %v4909
    %v4911 = vrot.slane %v4782, %v4910
    %v4912 = vlaneseq
    %v4913 = vshrl.u32 %v4912, 7
    %v4914 = vsub.s32 4, %v4913
    %v4915 = vrot.slane %v4782, %v4914
    %v4916 = vlaneseq
    %v4917 = vshrl.u32 %v4916, 7
    %v4918 = vsub.s32 5, %v4917
    %v4919 = vrot.slane %v4782, %v4918
    %v4920 = vlaneseq
    %v4921 = vshrl.u32 %v4920, 7
    %v4922 = vsub.s32 6, %v4921
    %v4923 = vrot.slane %v4782, %v4922
    %4924 = vrot.lane.b32.xlu0 %v4899, 2
    %v4925 = vpop.permute.xlu0 %4924
    %4926 = vrot.lane.b32.xlu0 %v4903, 2
    %v4927 = vpop.permute.xlu0 %4926
    %4928 = vrot.lane.b32.xlu0 %v4907, 2
    %v4929 = vpop.permute.xlu0 %4928
    %4930 = vrot.lane.b32.xlu0 %v4911, 2
    %v4931 = vpop.permute.xlu0 %4930
    %4932 = vrot.lane.b32.xlu0 %v4915, 2
    %v4933 = vpop.permute.xlu0 %4932
    %4934 = vrot.lane.b32.xlu0 %v4919, 2
    %v4935 = vpop.permute.xlu0 %4934
    %4936 = vrot.lane.b32.xlu0 %v4923, 2
    %v4937 = vpop.permute.xlu0 %4936
    %v4938 = vsel %vm268, %v4925, %v4927
    %v4939 = vsel %vm268, %v4927, %v4929
    %v4940 = vsel %vm268, %v4929, %v4931
    %v4941 = vsel %vm268, %v4931, %v4933
    %v4942 = vsel %vm268, %v4933, %v4935
    %v4943 = vsel %vm268, %v4935, %v4937
    %v4951 = vmul.f32 %v4888, %v4925
    %v4952 = vmul.f32 %v4889, %v4938
    %v4953 = vmul.f32 %v4890, %v4939
    %v4954 = vmul.f32 %v4891, %v4940
    %v4955 = vmul.f32 %v4892, %v4941
    %v4956 = vmul.f32 %v4893, %v4942
    %v4957 = vmul.f32 %v4894, %v4943
    %4965 = vrot.lane.b32.xlu0 %v4951, 126
    %v4966 = vpop.permute.xlu0 %4965
    %4967 = vrot.lane.b32.xlu0 %v4952, 126
    %v4968 = vpop.permute.xlu0 %4967
    %4969 = vrot.lane.b32.xlu0 %v4953, 126
    %v4970 = vpop.permute.xlu0 %4969
    %4971 = vrot.lane.b32.xlu0 %v4954, 126
    %v4972 = vpop.permute.xlu0 %4971
    %4973 = vrot.lane.b32.xlu0 %v4955, 126
    %v4974 = vpop.permute.xlu0 %4973
    %4975 = vrot.lane.b32.xlu0 %v4956, 126
    %v4976 = vpop.permute.xlu0 %4975
    %4977 = vrot.lane.b32.xlu0 %v4957, 126
    %v4978 = vpop.permute.xlu0 %4977
    %v4979 = vsel %vm317, %v4966, %v4968
    %v4980 = vsel %vm317, %v4968, %v4970
    %v4981 = vsel %vm317, %v4970, %v4972
    %v4982 = vsel %vm317, %v4972, %v4974
    %v4983 = vsel %vm317, %v4974, %v4976
    %v4984 = vsel %vm317, %v4976, %v4978
    %4992 = vst [vmem:[#allocation4 + $0x70] sm:$0xff] %v4979
    %4993 = vst [vmem:[#allocation4 + $0x78] sm:$0xff] %v4980
    %4994 = vst [vmem:[#allocation4 + $0x80] sm:$0xff] %v4981
    %4995 = vst [vmem:[#allocation4 + $0x88] sm:$0xff] %v4982
    %4996 = vst [vmem:[#allocation4 + $0x90] sm:$0xff] %v4983
    %4997 = vst [vmem:[#allocation4 + $0x98] sm:$0xff] %v4984
    %4998 = vst.msk [vmem:[#allocation4 + $0xa0] sm:$0xff] %vm1178, %v4978
    %v4999 = vld [vmem:[#allocation2] sm:$0xff]
    %v5000 = vld [vmem:[#allocation2 + $0x8] sm:$0xff]
    %v5001 = vld [vmem:[#allocation2 + $0x10] sm:$0xff]
    %v5002 = vld [vmem:[#allocation2 + $0x18] sm:$0xff]
    %v5003 = vld [vmem:[#allocation2 + $0x20] sm:$0xff]
    %v5004 = vld [vmem:[#allocation2 + $0x28] sm:$0xff]
    %v5005 = vld [vmem:[#allocation2 + $0x30] sm:$0xff]
    %5006 = vrot.lane.b32.xlu0 %v4794, 28
    %v5007 = vpop.permute.xlu0 %5006
    %5008 = vrot.lane.b32.xlu0 %v4798, 28
    %v5009 = vpop.permute.xlu0 %5008
    %5010 = vrot.lane.b32.xlu0 %v4802, 28
    %v5011 = vpop.permute.xlu0 %5010
    %5012 = vrot.lane.b32.xlu0 %v4806, 28
    %v5013 = vpop.permute.xlu0 %5012
    %5014 = vrot.lane.b32.xlu0 %v4810, 28
    %v5015 = vpop.permute.xlu0 %5014
    %5016 = vrot.lane.b32.xlu0 %v4814, 28
    %v5017 = vpop.permute.xlu0 %5016
    %5018 = vrot.lane.b32.xlu0 %v4818, 28
    %v5019 = vpop.permute.xlu0 %5018
    %v5020 = vsel %vm368, %v5007, %v5009
    %v5021 = vsel %vm368, %v5009, %v5011
    %v5022 = vsel %vm368, %v5011, %v5013
    %v5023 = vsel %vm368, %v5013, %v5015
    %v5024 = vsel %vm368, %v5015, %v5017
    %v5025 = vsel %vm368, %v5017, %v5019
    %v5033 = vmul.f32 %v4999, %v5007
    %v5034 = vmul.f32 %v5000, %v5020
    %v5035 = vmul.f32 %v5001, %v5021
    %v5036 = vmul.f32 %v5002, %v5022
    %v5037 = vmul.f32 %v5003, %v5023
    %v5038 = vmul.f32 %v5004, %v5024
    %v5039 = vmul.f32 %v5005, %v5025
    %5047 = vrot.lane.b32.xlu0 %v5033, 100
    %v5048 = vpop.permute.xlu0 %5047
    %5049 = vrot.lane.b32.xlu0 %v5034, 100
    %v5050 = vpop.permute.xlu0 %5049
    %5051 = vrot.lane.b32.xlu0 %v5035, 100
    %v5052 = vpop.permute.xlu0 %5051
    %5053 = vrot.lane.b32.xlu0 %v5036, 100
    %v5054 = vpop.permute.xlu0 %5053
    %5055 = vrot.lane.b32.xlu0 %v5037, 100
    %v5056 = vpop.permute.xlu0 %5055
    %5057 = vrot.lane.b32.xlu0 %v5038, 100
    %v5058 = vpop.permute.xlu0 %5057
    %5059 = vrot.lane.b32.xlu0 %v5039, 100
    %v5060 = vpop.permute.xlu0 %5059
    %v5061 = vsel %vm417, %v5048, %v5050
    %v5062 = vsel %vm417, %v5050, %v5052
    %v5063 = vsel %vm417, %v5052, %v5054
    %v5064 = vsel %vm417, %v5054, %v5056
    %v5065 = vsel %vm417, %v5056, %v5058
    %v5066 = vsel %vm417, %v5058, %v5060
    %5074 = vst [vmem:[#allocation4 + $0xa8] sm:$0xff] %v5061
    %5075 = vst [vmem:[#allocation4 + $0xb0] sm:$0xff] %v5062
    %5076 = vst [vmem:[#allocation4 + $0xb8] sm:$0xff] %v5063
    %5077 = vst [vmem:[#allocation4 + $0xc0] sm:$0xff] %v5064
    %5078 = vst [vmem:[#allocation4 + $0xc8] sm:$0xff] %v5065
    %5079 = vst [vmem:[#allocation4 + $0xd0] sm:$0xff] %v5066
    %5080 = vst.msk [vmem:[#allocation4 + $0xd8] sm:$0xff] %vm1178, %v5060
    %v5081 = vld [vmem:[#allocation2] sm:$0xff]
    %v5082 = vld [vmem:[#allocation2 + $0x8] sm:$0xff]
    %v5083 = vld [vmem:[#allocation2 + $0x10] sm:$0xff]
    %v5084 = vld [vmem:[#allocation2 + $0x18] sm:$0xff]
    %v5085 = vld [vmem:[#allocation2 + $0x20] sm:$0xff]
    %v5086 = vld [vmem:[#allocation2 + $0x28] sm:$0xff]
    %v5087 = vld [vmem:[#allocation2 + $0x30] sm:$0xff]
    %5095 = vrot.lane.b32.xlu0 %v5081, 99
    %v5096 = vpop.permute.xlu0 %5095
    %5097 = vrot.lane.b32.xlu0 %v5082, 99
    %v5098 = vpop.permute.xlu0 %5097
    %5099 = vrot.lane.b32.xlu0 %v5083, 99
    %v5100 = vpop.permute.xlu0 %5099
    %5101 = vrot.lane.b32.xlu0 %v5084, 99
    %v5102 = vpop.permute.xlu0 %5101
    %5103 = vrot.lane.b32.xlu0 %v5085, 99
    %v5104 = vpop.permute.xlu0 %5103
    %5105 = vrot.lane.b32.xlu0 %v5086, 99
    %v5106 = vpop.permute.xlu0 %5105
    %5107 = vrot.lane.b32.xlu0 %v5087, 99
    %v5108 = vpop.permute.xlu0 %5107
    %v5109 = vsel %vm474, %v5096, %v5098
    %v5110 = vsel %vm474, %v5098, %v5100
    %v5111 = vsel %vm474, %v5100, %v5102
    %v5112 = vsel %vm474, %v5102, %v5104
    %v5113 = vsel %vm474, %v5104, %v5106
    %v5114 = vsel %vm474, %v5106, %v5108
    %5122 = vst [vmem:[#allocation4 + $0xe0] sm:$0xff] %v5109
    %5123 = vst [vmem:[#allocation4 + $0xe8] sm:$0xff] %v5110
    %5124 = vst [vmem:[#allocation4 + $0xf0] sm:$0xff] %v5111
    %5125 = vst [vmem:[#allocation4 + $0xf8] sm:$0xff] %v5112
    %5126 = vst [vmem:[#allocation4 + $0x100] sm:$0xff] %v5113
    %5127 = vst [vmem:[#allocation4 + $0x108] sm:$0xff] %v5114
    %5128 = vst.msk [vmem:[#allocation4 + $0x110] sm:$0xff] %vm1178, %v5108
    %v5129 = vld [vmem:[#allocation2] sm:$0xff]
    %v5130 = vld [vmem:[#allocation2 + $0x8] sm:$0xff]
    %v5131 = vld [vmem:[#allocation2 + $0x10] sm:$0xff]
    %v5132 = vld [vmem:[#allocation2 + $0x18] sm:$0xff]
    %v5133 = vld [vmem:[#allocation2 + $0x20] sm:$0xff]
    %v5134 = vld [vmem:[#allocation2 + $0x28] sm:$0xff]
    %v5135 = vld [vmem:[#allocation2 + $0x30] sm:$0xff]
    %5136 = vrot.lane.b32.xlu0 %v4899, 30
    %v5137 = vpop.permute.xlu0 %5136
    %5138 = vrot.lane.b32.xlu0 %v4903, 30
    %v5139 = vpop.permute.xlu0 %5138
    %5140 = vrot.lane.b32.xlu0 %v4907, 30
    %v5141 = vpop.permute.xlu0 %5140
    %5142 = vrot.lane.b32.xlu0 %v4911, 30
    %v5143 = vpop.permute.xlu0 %5142
    %5144 = vrot.lane.b32.xlu0 %v4915, 30
    %v5145 = vpop.permute.xlu0 %5144
    %5146 = vrot.lane.b32.xlu0 %v4919, 30
    %v5147 = vpop.permute.xlu0 %5146
    %5148 = vrot.lane.b32.xlu0 %v4923, 30
    %v5149 = vpop.permute.xlu0 %5148
    %v5150 = vsel %vm517, %v5137, %v5139
    %v5151 = vsel %vm517, %v5139, %v5141
    %v5152 = vsel %vm517, %v5141, %v5143
    %v5153 = vsel %vm517, %v5143, %v5145
    %v5154 = vsel %vm517, %v5145, %v5147
    %v5155 = vsel %vm517, %v5147, %v5149
    %v5163 = vmul.f32 %v5129, %v5137
    %v5164 = vmul.f32 %v5130, %v5150
    %v5165 = vmul.f32 %v5131, %v5151
    %v5166 = vmul.f32 %v5132, %v5152
    %v5167 = vmul.f32 %v5133, %v5153
    %v5168 = vmul.f32 %v5134, %v5154
    %v5169 = vmul.f32 %v5135, %v5155
    %5177 = vrot.lane.b32.xlu0 %v5163, 98
    %v5178 = vpop.permute.xlu0 %5177
    %5179 = vrot.lane.b32.xlu0 %v5164, 98
    %v5180 = vpop.permute.xlu0 %5179
    %5181 = vrot.lane.b32.xlu0 %v5165, 98
    %v5182 = vpop.permute.xlu0 %5181
    %5183 = vrot.lane.b32.xlu0 %v5166, 98
    %v5184 = vpop.permute.xlu0 %5183
    %5185 = vrot.lane.b32.xlu0 %v5167, 98
    %v5186 = vpop.permute.xlu0 %5185
    %5187 = vrot.lane.b32.xlu0 %v5168, 98
    %v5188 = vpop.permute.xlu0 %5187
    %5189 = vrot.lane.b32.xlu0 %v5169, 98
    %v5190 = vpop.permute.xlu0 %5189
    %v5191 = vsel %vm566, %v5178, %v5180
    %v5192 = vsel %vm566, %v5180, %v5182
    %v5193 = vsel %vm566, %v5182, %v5184
    %v5194 = vsel %vm566, %v5184, %v5186
    %v5195 = vsel %vm566, %v5186, %v5188
    %v5196 = vsel %vm566, %v5188, %v5190
    %5204 = vst [vmem:[#allocation4 + $0x118] sm:$0xff] %v5191
    %5205 = vst [vmem:[#allocation4 + $0x120] sm:$0xff] %v5192
    %5206 = vst [vmem:[#allocation4 + $0x128] sm:$0xff] %v5193
    %5207 = vst [vmem:[#allocation4 + $0x130] sm:$0xff] %v5194
    %5208 = vst [vmem:[#allocation4 + $0x138] sm:$0xff] %v5195
    %5209 = vst [vmem:[#allocation4 + $0x140] sm:$0xff] %v5196
    %5210 = vst.msk [vmem:[#allocation4 + $0x148] sm:$0xff] %vm1178, %v5190
    %v5211 = vld [vmem:[#allocation2] sm:$0xff]
    %v5212 = vld [vmem:[#allocation2 + $0x8] sm:$0xff]
    %v5213 = vld [vmem:[#allocation2 + $0x10] sm:$0xff]
    %v5214 = vld [vmem:[#allocation2 + $0x18] sm:$0xff]
    %v5215 = vld [vmem:[#allocation2 + $0x20] sm:$0xff]
    %v5216 = vld [vmem:[#allocation2 + $0x28] sm:$0xff]
    %v5217 = vld [vmem:[#allocation2 + $0x30] sm:$0xff]
    %5218 = vrot.lane.b32.xlu0 %v4794, 56
    %v5219 = vpop.permute.xlu0 %5218
    %5220 = vrot.lane.b32.xlu0 %v4798, 56
    %v5221 = vpop.permute.xlu0 %5220
    %5222 = vrot.lane.b32.xlu0 %v4802, 56
    %v5223 = vpop.permute.xlu0 %5222
    %5224 = vrot.lane.b32.xlu0 %v4806, 56
    %v5225 = vpop.permute.xlu0 %5224
    %5226 = vrot.lane.b32.xlu0 %v4810, 56
    %v5227 = vpop.permute.xlu0 %5226
    %5228 = vrot.lane.b32.xlu0 %v4814, 56
    %v5229 = vpop.permute.xlu0 %5228
    %5230 = vrot.lane.b32.xlu0 %v4818, 56
    %v5231 = vpop.permute.xlu0 %5230
    %v5232 = vsel %vm617, %v5219, %v5221
    %v5233 = vsel %vm617, %v5221, %v5223
    %v5234 = vsel %vm617, %v5223, %v5225
    %v5235 = vsel %vm617, %v5225, %v5227
    %v5236 = vsel %vm617, %v5227, %v5229
    %v5237 = vsel %vm617, %v5229, %v5231
    %v5245 = vmul.f32 %v5211, %v5219
    %v5246 = vmul.f32 %v5212, %v5232
    %v5247 = vmul.f32 %v5213, %v5233
    %v5248 = vmul.f32 %v5214, %v5234
    %v5249 = vmul.f32 %v5215, %v5235
    %v5250 = vmul.f32 %v5216, %v5236
    %v5251 = vmul.f32 %v5217, %v5237
    %5259 = vrot.lane.b32.xlu0 %v5245, 72
    %v5260 = vpop.permute.xlu0 %5259
    %5261 = vrot.lane.b32.xlu0 %v5246, 72
    %v5262 = vpop.permute.xlu0 %5261
    %5263 = vrot.lane.b32.xlu0 %v5247, 72
    %v5264 = vpop.permute.xlu0 %5263
    %5265 = vrot.lane.b32.xlu0 %v5248, 72
    %v5266 = vpop.permute.xlu0 %5265
    %5267 = vrot.lane.b32.xlu0 %v5249, 72
    %v5268 = vpop.permute.xlu0 %5267
    %5269 = vrot.lane.b32.xlu0 %v5250, 72
    %v5270 = vpop.permute.xlu0 %5269
    %5271 = vrot.lane.b32.xlu0 %v5251, 72
    %v5272 = vpop.permute.xlu0 %5271
    %v5273 = vsel %vm666, %v5260, %v5262
    %v5274 = vsel %vm666, %v5262, %v5264
    %v5275 = vsel %vm666, %v5264, %v5266
    %v5276 = vsel %vm666, %v5266, %v5268
    %v5277 = vsel %vm666, %v5268, %v5270
    %v5278 = vsel %vm666, %v5270, %v5272
    %5286 = vst [vmem:[#allocation4 + $0x150] sm:$0xff] %v5273
    %5287 = vst [vmem:[#allocation4 + $0x158] sm:$0xff] %v5274
    %5288 = vst [vmem:[#allocation4 + $0x160] sm:$0xff] %v5275
    %5289 = vst [vmem:[#allocation4 + $0x168] sm:$0xff] %v5276
    %5290 = vst [vmem:[#allocation4 + $0x170] sm:$0xff] %v5277
    %5291 = vst [vmem:[#allocation4 + $0x178] sm:$0xff] %v5278
    %5292 = vst.msk [vmem:[#allocation4 + $0x180] sm:$0xff] %vm1178, %v5272
    %v5293 = vld [vmem:[#allocation2] sm:$0xff]
    %v5294 = vld [vmem:[#allocation2 + $0x8] sm:$0xff]
    %v5295 = vld [vmem:[#allocation2 + $0x10] sm:$0xff]
    %v5296 = vld [vmem:[#allocation2 + $0x18] sm:$0xff]
    %v5297 = vld [vmem:[#allocation2 + $0x20] sm:$0xff]
    %v5298 = vld [vmem:[#allocation2 + $0x28] sm:$0xff]
    %v5299 = vld [vmem:[#allocation2 + $0x30] sm:$0xff]
    %5307 = vrot.lane.b32.xlu0 %v5293, 71
    %v5308 = vpop.permute.xlu0 %5307
    %5309 = vrot.lane.b32.xlu0 %v5294, 71
    %v5310 = vpop.permute.xlu0 %5309
    %5311 = vrot.lane.b32.xlu0 %v5295, 71
    %v5312 = vpop.permute.xlu0 %5311
    %5313 = vrot.lane.b32.xlu0 %v5296, 71
    %v5314 = vpop.permute.xlu0 %5313
    %5315 = vrot.lane.b32.xlu0 %v5297, 71
    %v5316 = vpop.permute.xlu0 %5315
    %5317 = vrot.lane.b32.xlu0 %v5298, 71
    %v5318 = vpop.permute.xlu0 %5317
    %5319 = vrot.lane.b32.xlu0 %v5299, 71
    %v5320 = vpop.permute.xlu0 %5319
    %v5321 = vsel %vm723, %v5308, %v5310
    %v5322 = vsel %vm723, %v5310, %v5312
    %v5323 = vsel %vm723, %v5312, %v5314
    %v5324 = vsel %vm723, %v5314, %v5316
    %v5325 = vsel %vm723, %v5316, %v5318
    %v5326 = vsel %vm723, %v5318, %v5320
    %5334 = vst [vmem:[#allocation4 + $0x188] sm:$0xff] %v5321
    %5335 = vst [vmem:[#allocation4 + $0x190] sm:$0xff] %v5322
    %5336 = vst [vmem:[#allocation4 + $0x198] sm:$0xff] %v5323
    %5337 = vst [vmem:[#allocation4 + $0x1a0] sm:$0xff] %v5324
    %5338 = vst [vmem:[#allocation4 + $0x1a8] sm:$0xff] %v5325
    %5339 = vst [vmem:[#allocation4 + $0x1b0] sm:$0xff] %v5326
    %5340 = vst.msk [vmem:[#allocation4 + $0x1b8] sm:$0xff] %vm1178, %v5320
    %v5341 = vld [vmem:[#allocation2] sm:$0xff]
    %v5342 = vld [vmem:[#allocation2 + $0x8] sm:$0xff]
    %v5343 = vld [vmem:[#allocation2 + $0x10] sm:$0xff]
    %v5344 = vld [vmem:[#allocation2 + $0x18] sm:$0xff]
    %v5345 = vld [vmem:[#allocation2 + $0x20] sm:$0xff]
    %v5346 = vld [vmem:[#allocation2 + $0x28] sm:$0xff]
    %v5347 = vld [vmem:[#allocation2 + $0x30] sm:$0xff]
    %5348 = vrot.lane.b32.xlu0 %v4899, 58
    %v5349 = vpop.permute.xlu0 %5348
    %5350 = vrot.lane.b32.xlu0 %v4903, 58
    %v5351 = vpop.permute.xlu0 %5350
    %5352 = vrot.lane.b32.xlu0 %v4907, 58
    %v5353 = vpop.permute.xlu0 %5352
    %5354 = vrot.lane.b32.xlu0 %v4911, 58
    %v5355 = vpop.permute.xlu0 %5354
    %5356 = vrot.lane.b32.xlu0 %v4915, 58
    %v5357 = vpop.permute.xlu0 %5356
    %5358 = vrot.lane.b32.xlu0 %v4919, 58
    %v5359 = vpop.permute.xlu0 %5358
    %5360 = vrot.lane.b32.xlu0 %v4923, 58
    %v5361 = vpop.permute.xlu0 %5360
    %v5362 = vsel %vm766, %v5349, %v5351
    %v5363 = vsel %vm766, %v5351, %v5353
    %v5364 = vsel %vm766, %v5353, %v5355
    %v5365 = vsel %vm766, %v5355, %v5357
    %v5366 = vsel %vm766, %v5357, %v5359
    %v5367 = vsel %vm766, %v5359, %v5361
    %v5375 = vmul.f32 %v5341, %v5349
    %v5376 = vmul.f32 %v5342, %v5362
    %v5377 = vmul.f32 %v5343, %v5363
    %v5378 = vmul.f32 %v5344, %v5364
    %v5379 = vmul.f32 %v5345, %v5365
    %v5380 = vmul.f32 %v5346, %v5366
    %v5381 = vmul.f32 %v5347, %v5367
    %5389 = vrot.lane.b32.xlu0 %v5375, 70
    %v5390 = vpop.permute.xlu0 %5389
    %5391 = vrot.lane.b32.xlu0 %v5376, 70
    %v5392 = vpop.permute.xlu0 %5391
    %5393 = vrot.lane.b32.xlu0 %v5377, 70
    %v5394 = vpop.permute.xlu0 %5393
    %5395 = vrot.lane.b32.xlu0 %v5378, 70
    %v5396 = vpop.permute.xlu0 %5395
    %5397 = vrot.lane.b32.xlu0 %v5379, 70
    %v5398 = vpop.permute.xlu0 %5397
    %5399 = vrot.lane.b32.xlu0 %v5380, 70
    %v5400 = vpop.permute.xlu0 %5399
    %5401 = vrot.lane.b32.xlu0 %v5381, 70
    %v5402 = vpop.permute.xlu0 %5401
    %v5403 = vsel %vm808, %v5390, %v5392
    %v5404 = vsel %vm808, %v5392, %v5394
    %v5405 = vsel %vm808, %v5394, %v5396
    %v5406 = vsel %vm808, %v5396, %v5398
    %v5407 = vsel %vm808, %v5398, %v5400
    %v5408 = vsel %vm808, %v5400, %v5402
    %5416 = vst [vmem:[#allocation4 + $0x1c0] sm:$0xff] %v5403
    %5417 = vst [vmem:[#allocation4 + $0x1c8] sm:$0xff] %v5404
    %5418 = vst [vmem:[#allocation4 + $0x1d0] sm:$0xff] %v5405
    %5419 = vst [vmem:[#allocation4 + $0x1d8] sm:$0xff] %v5406
    %5420 = vst [vmem:[#allocation4 + $0x1e0] sm:$0xff] %v5407
    %5421 = vst [vmem:[#allocation4 + $0x1e8] sm:$0xff] %v5408
    %5422 = vst.msk [vmem:[#allocation4 + $0x1f0] sm:$0xff] %vm1178, %v5402
    %v5423 = vld [vmem:[#allocation4] sm:$0xff]
    %v5424 = vld [vmem:[#allocation4 + $0x8] sm:$0xff]
    %v5425 = vld [vmem:[#allocation4 + $0x10] sm:$0xff]
    %v5426 = vld [vmem:[#allocation4 + $0x18] sm:$0xff]
    %v5427 = vld [vmem:[#allocation4 + $0x20] sm:$0xff]
    %v5428 = vld [vmem:[#allocation4 + $0x28] sm:$0xff]
    %v5429 = vld [vmem:[#allocation4 + $0x30] sm:$0xff]
    %v5430 = vld [vmem:[#allocation4 + $0x38] sm:$0xff]
    %v5431 = vld [vmem:[#allocation4 + $0x40] sm:$0xff]
    %v5432 = vld [vmem:[#allocation4 + $0x48] sm:$0xff]
    %v5433 = vld [vmem:[#allocation4 + $0x50] sm:$0xff]
    %v5434 = vld [vmem:[#allocation4 + $0x58] sm:$0xff]
    %v5435 = vld [vmem:[#allocation4 + $0x60] sm:$0xff]
    %v5436 = vld [vmem:[#allocation4 + $0x68] sm:$0xff]
    %v5437 = vld [vmem:[#allocation4 + $0x70] sm:$0xff]
    %v5438 = vld [vmem:[#allocation4 + $0x78] sm:$0xff]
    %v5439 = vld [vmem:[#allocation4 + $0x80] sm:$0xff]
    %v5440 = vld [vmem:[#allocation4 + $0x88] sm:$0xff]
    %v5441 = vld [vmem:[#allocation4 + $0x90] sm:$0xff]
    %v5442 = vld [vmem:[#allocation4 + $0x98] sm:$0xff]
    %v5443 = vld [vmem:[#allocation4 + $0xa0] sm:$0xff]
    %v5444 = vld [vmem:[#allocation4 + $0xa8] sm:$0xff]
    %v5445 = vld [vmem:[#allocation4 + $0xb0] sm:$0xff]
    %v5446 = vld [vmem:[#allocation4 + $0xb8] sm:$0xff]
    %v5447 = vld [vmem:[#allocation4 + $0xc0] sm:$0xff]
    %v5448 = vld [vmem:[#allocation4 + $0xc8] sm:$0xff]
    %v5449 = vld [vmem:[#allocation4 + $0xd0] sm:$0xff]
    %v5450 = vld [vmem:[#allocation4 + $0xd8] sm:$0xff]
    %v5451 = vld [vmem:[#allocation4 + $0xe0] sm:$0xff]
    %v5452 = vld [vmem:[#allocation4 + $0xe8] sm:$0xff]
    %v5453 = vld [vmem:[#allocation4 + $0xf0] sm:$0xff]
    %v5454 = vld [vmem:[#allocation4 + $0xf8] sm:$0xff]
    %v5455 = vld [vmem:[#allocation4 + $0x100] sm:$0xff]
    %v5456 = vld [vmem:[#allocation4 + $0x108] sm:$0xff]
    %v5457 = vld [vmem:[#allocation4 + $0x110] sm:$0xff]
    %v5458 = vld [vmem:[#allocation4 + $0x118] sm:$0xff]
    %v5459 = vld [vmem:[#allocation4 + $0x120] sm:$0xff]
    %v5460 = vld [vmem:[#allocation4 + $0x128] sm:$0xff]
    %v5461 = vld [vmem:[#allocation4 + $0x130] sm:$0xff]
    %v5462 = vld [vmem:[#allocation4 + $0x138] sm:$0xff]
    %v5463 = vld [vmem:[#allocation4 + $0x140] sm:$0xff]
    %v5464 = vld [vmem:[#allocation4 + $0x148] sm:$0xff]
    %v5465 = vld [vmem:[#allocation4 + $0x150] sm:$0xff]
    %v5466 = vld [vmem:[#allocation4 + $0x158] sm:$0xff]
    %v5467 = vld [vmem:[#allocation4 + $0x160] sm:$0xff]
    %v5468 = vld [vmem:[#allocation4 + $0x168] sm:$0xff]
    %v5469 = vld [vmem:[#allocation4 + $0x170] sm:$0xff]
    %v5470 = vld [vmem:[#allocation4 + $0x178] sm:$0xff]
    %v5471 = vld [vmem:[#allocation4 + $0x180] sm:$0xff]
    %v5472 = vld [vmem:[#allocation4 + $0x188] sm:$0xff]
    %v5473 = vld [vmem:[#allocation4 + $0x190] sm:$0xff]
    %v5474 = vld [vmem:[#allocation4 + $0x198] sm:$0xff]
    %v5475 = vld [vmem:[#allocation4 + $0x1a0] sm:$0xff]
    %v5476 = vld [vmem:[#allocation4 + $0x1a8] sm:$0xff]
    %v5477 = vld [vmem:[#allocation4 + $0x1b0] sm:$0xff]
    %v5478 = vld [vmem:[#allocation4 + $0x1b8] sm:$0xff]
    %v5479 = vld [vmem:[#allocation4 + $0x1c0] sm:$0xff]
    %v5480 = vld [vmem:[#allocation4 + $0x1c8] sm:$0xff]
    %v5481 = vld [vmem:[#allocation4 + $0x1d0] sm:$0xff]
    %v5482 = vld [vmem:[#allocation4 + $0x1d8] sm:$0xff]
    %v5483 = vld [vmem:[#allocation4 + $0x1e0] sm:$0xff]
    %v5484 = vld [vmem:[#allocation4 + $0x1e8] sm:$0xff]
    %v5485 = vld [vmem:[#allocation4 + $0x1f0] sm:$0xff]
    %v5486 = vpack.c.bf16 %v5430, %v5423
    %v5487 = vpack.c.bf16 %v5431, %v5424
    %v5488 = vpack.c.bf16 %v5432, %v5425
    %v5489 = vpack.c.bf16 %v5433, %v5426
    %v5490 = vpack.c.bf16 %v5434, %v5427
    %v5491 = vpack.c.bf16 %v5435, %v5428
    %v5492 = vpack.c.bf16 %v5436, %v5429
    %v5493 = vpack.c.bf16 %v5444, %v5437
    %v5494 = vpack.c.bf16 %v5445, %v5438
    %v5495 = vpack.c.bf16 %v5446, %v5439
    %v5496 = vpack.c.bf16 %v5447, %v5440
    %v5497 = vpack.c.bf16 %v5448, %v5441
    %v5498 = vpack.c.bf16 %v5449, %v5442
    %v5499 = vpack.c.bf16 %v5450, %v5443
    %v5500 = vpack.c.bf16 %v5458, %v5451
    %v5501 = vpack.c.bf16 %v5459, %v5452
    %v5502 = vpack.c.bf16 %v5460, %v5453
    %v5503 = vpack.c.bf16 %v5461, %v5454
    %v5504 = vpack.c.bf16 %v5462, %v5455
    %v5505 = vpack.c.bf16 %v5463, %v5456
    %v5506 = vpack.c.bf16 %v5464, %v5457
    %v5507 = vpack.c.bf16 %v5472, %v5465
    %v5508 = vpack.c.bf16 %v5473, %v5466
    %v5509 = vpack.c.bf16 %v5474, %v5467
    %v5510 = vpack.c.bf16 %v5475, %v5468
    %v5511 = vpack.c.bf16 %v5476, %v5469
    %v5512 = vpack.c.bf16 %v5477, %v5470
    %v5513 = vpack.c.bf16 %v5478, %v5471
    %v5514 = vpack.c.bf16 %v5479, %v5479
    %v5515 = vpack.c.bf16 %v5480, %v5480
    %v5516 = vpack.c.bf16 %v5481, %v5481
    %v5517 = vpack.c.bf16 %v5482, %v5482
    %v5518 = vpack.c.bf16 %v5483, %v5483
    %v5519 = vpack.c.bf16 %v5484, %v5484
    %v5520 = vpack.c.bf16 %v5485, %v5485
    %v5521 = vld [vmem:[%s3] sm:$0xf]
    %v5522 = vld [vmem:[%s4] sm:$0xff]
    %5524 = vset.pattern.permute.xlu0 0
    %5525 = vperm.xlu0 %5524, %v5522
    %v5526 = vpop.permute.xlu0 %5525
    %v5529 = vsel %vm666, %v5521, 0
    %v5532 = vsel %vm1871, %v5514, 0
    %v5535 = vsel %vm1871, %v5515, 0
    %v5538 = vsel %vm1871, %v5516, 0
    %v5541 = vsel %vm1871, %v5517, 0
    %v5544 = vsel %vm1871, %v5518, 0
    %v5547 = vsel %vm1871, %v5519, 0
    %v5550 = vsel %vm1871, %v5520, 0
    %5552 = vmatprep.subr.bf16.mxu0 %v5487
    %5553 = vmatpush1.bf16.msra.mxu0 %v5486
    %5554 = vmatprep.subr.bf16.mxu0 %v5494
    %5555 = vmatpush1.bf16.msra.mxu0 %v5493
    %5556 = vmatprep.subr.bf16.mxu0 %v5501
    %5557 = vmatpush1.bf16.msra.mxu0 %v5500
    %5558 = vmatprep.subr.bf16.mxu0 %v5508
    %5559 = vmatpush1.bf16.msra.mxu0 %v5507
    %5560 = vmatprep.subr.bf16.mxu0 %v5535
    %5561 = vmatpush1.bf16.msra.mxu0 %v5532
    %5562 = vmatprep.subr.bf16.mxu0 0
    %5563 = vmatpush1.bf16.msra.mxu0 0
    %5564 = vmatprep.subr.bf16.mxu0 0
    %5565 = vmatpush1.bf16.msra.mxu0 0
    %5566 = vmatprep.subr.bf16.mxu0 0
    %5567 = vmatpush1.bf16.msra.mxu0 0
    %5568 = vmatprep.subr.bf16.mxu0 0
    %5569 = vmatpush1.bf16.msra.mxu0 0
    %5570 = vmatprep.subr.bf16.mxu0 0
    %5571 = vmatpush1.bf16.msra.mxu0 0
    %5572 = vmatprep.subr.bf16.mxu0 0
    %5573 = vmatpush1.bf16.msra.mxu0 0
    %5574 = vmatprep.subr.bf16.mxu0 0
    %5575 = vmatpush1.bf16.msra.mxu0 0
    %5576 = vmatprep.subr.bf16.mxu0 0
    %5577 = vmatpush1.bf16.msra.mxu0 0
    %5578 = vmatprep.subr.bf16.mxu0 0
    %5579 = vmatpush1.bf16.msra.mxu0 0
    %5580 = vmatprep.subr.bf16.mxu0 0
    %5581 = vmatpush1.bf16.msra.mxu0 0
    %5582 = vmatprep.subr.bf16.mxu0 0
    %5583 = vmatpush1.bf16.msra.mxu0 0
    %5584 = vmatprep.mubr.bf16.mxu0 0
    %5585 = vmatmul.mubr.bf16.gmra.mrb[0].mxu0 %v5529
    %v5586 = vpop.f32.mrb[0].mxu0
    %v5587 = vadd.f32 %v5526, %v5586
    %v5588 = vpop.f32.mrb[0].mxu0
    %v5589 = vadd.f32 %v5526, %v5588
    %v5590 = vpop.f32.mrb[0].mxu0
    %v5591 = vpop.f32.mrb[0].mxu0
    %5592 = vdwg.mxu0
    %5593 = vmatprep.subr.bf16.mxu0 %v5489
    %5594 = vmatpush1.bf16.msra.mxu0 %v5488
    %5595 = vmatprep.subr.bf16.mxu0 %v5496
    %5596 = vmatpush1.bf16.msra.mxu0 %v5495
    %5597 = vmatprep.subr.bf16.mxu0 %v5503
    %5598 = vmatpush1.bf16.msra.mxu0 %v5502
    %5599 = vmatprep.subr.bf16.mxu0 %v5510
    %5600 = vmatpush1.bf16.msra.mxu0 %v5509
    %5601 = vmatprep.subr.bf16.mxu0 %v5541
    %5602 = vmatpush1.bf16.msra.mxu0 %v5538
    %5603 = vmatprep.subr.bf16.mxu0 0
    %5604 = vmatpush1.bf16.msra.mxu0 0
    %5605 = vmatprep.subr.bf16.mxu0 0
    %5606 = vmatpush1.bf16.msra.mxu0 0
    %5607 = vmatprep.subr.bf16.mxu0 0
    %5608 = vmatpush1.bf16.msra.mxu0 0
    %5609 = vmatprep.subr.bf16.mxu0 0
    %5610 = vmatpush1.bf16.msra.mxu0 0
    %5611 = vmatprep.subr.bf16.mxu0 0
    %5612 = vmatpush1.bf16.msra.mxu0 0
    %5613 = vmatprep.subr.bf16.mxu0 0
    %5614 = vmatpush1.bf16.msra.mxu0 0
    %5615 = vmatprep.subr.bf16.mxu0 0
    %5616 = vmatpush1.bf16.msra.mxu0 0
    %5617 = vmatprep.subr.bf16.mxu0 0
    %5618 = vmatpush1.bf16.msra.mxu0 0
    %5619 = vmatprep.subr.bf16.mxu0 0
    %5620 = vmatpush1.bf16.msra.mxu0 0
    %5621 = vmatprep.subr.bf16.mxu0 0
    %5622 = vmatpush1.bf16.msra.mxu0 0
    %5623 = vmatprep.subr.bf16.mxu0 0
    %5624 = vmatpush1.bf16.msra.mxu0 0
    %5625 = vmatprep.mubr.bf16.mxu0 0
    %5626 = vmatmul.mubr.bf16.gmra.mrb[0].mxu0 %v5529
    %v5627 = vpop.f32.mrb[0].mxu0
    %v5628 = vadd.f32 %v5526, %v5627
    %v5629 = vpop.f32.mrb[0].mxu0
    %v5630 = vadd.f32 %v5526, %v5629
    %v5631 = vpop.f32.mrb[0].mxu0
    %v5632 = vpop.f32.mrb[0].mxu0
    %5633 = vdwg.mxu0
    %5634 = vmatprep.subr.bf16.mxu0 %v5491
    %5635 = vmatpush1.bf16.msra.mxu0 %v5490
    %5636 = vmatprep.subr.bf16.mxu0 %v5498
    %5637 = vmatpush1.bf16.msra.mxu0 %v5497
    %5638 = vmatprep.subr.bf16.mxu0 %v5505
    %5639 = vmatpush1.bf16.msra.mxu0 %v5504
    %5640 = vmatprep.subr.bf16.mxu0 %v5512
    %5641 = vmatpush1.bf16.msra.mxu0 %v5511
    %5642 = vmatprep.subr.bf16.mxu0 %v5547
    %5643 = vmatpush1.bf16.msra.mxu0 %v5544
    %5644 = vmatprep.subr.bf16.mxu0 0
    %5645 = vmatpush1.bf16.msra.mxu0 0
    %5646 = vmatprep.subr.bf16.mxu0 0
    %5647 = vmatpush1.bf16.msra.mxu0 0
    %5648 = vmatprep.subr.bf16.mxu0 0
    %5649 = vmatpush1.bf16.msra.mxu0 0
    %5650 = vmatprep.subr.bf16.mxu0 0
    %5651 = vmatpush1.bf16.msra.mxu0 0
    %5652 = vmatprep.subr.bf16.mxu0 0
    %5653 = vmatpush1.bf16.msra.mxu0 0
    %5654 = vmatprep.subr.bf16.mxu0 0
    %5655 = vmatpush1.bf16.msra.mxu0 0
    %5656 = vmatprep.subr.bf16.mxu0 0
    %5657 = vmatpush1.bf16.msra.mxu0 0
    %5658 = vmatprep.subr.bf16.mxu0 0
    %5659 = vmatpush1.bf16.msra.mxu0 0
    %5660 = vmatprep.subr.bf16.mxu0 0
    %5661 = vmatpush1.bf16.msra.mxu0 0
    %5662 = vmatprep.subr.bf16.mxu0 0
    %5663 = vmatpush1.bf16.msra.mxu0 0
    %5664 = vmatprep.subr.bf16.mxu0 0
    %5665 = vmatpush1.bf16.msra.mxu0 0
    %5666 = vmatprep.mubr.bf16.mxu0 0
    %5667 = vmatmul.mubr.bf16.gmra.mrb[0].mxu0 %v5529
    %v5668 = vpop.f32.mrb[0].mxu0
    %v5669 = vadd.f32 %v5526, %v5668
    %v5670 = vpop.f32.mrb[0].mxu0
    %v5671 = vadd.f32 %v5526, %v5670
    %v5672 = vpop.f32.mrb[0].mxu0
    %v5673 = vpop.f32.mrb[0].mxu0
    %5674 = vdwg.mxu0
    %5675 = vmatprep.subr.bf16.mxu0 0
    %5676 = vmatpush1.bf16.msra.mxu0 %v5492
    %5677 = vmatprep.subr.bf16.mxu0 0
    %5678 = vmatpush1.bf16.msra.mxu0 %v5499
    %5679 = vmatprep.subr.bf16.mxu0 0
    %5680 = vmatpush1.bf16.msra.mxu0 %v5506
    %5681 = vmatprep.subr.bf16.mxu0 0
    %5682 = vmatpush1.bf16.msra.mxu0 %v5513
    %5683 = vmatprep.subr.bf16.mxu0 0
    %5684 = vmatpush1.bf16.msra.mxu0 %v5550
    %5685 = vmatprep.subr.bf16.mxu0 0
    %5686 = vmatpush1.bf16.msra.mxu0 0
    %5687 = vmatprep.subr.bf16.mxu0 0
    %5688 = vmatpush1.bf16.msra.mxu0 0
    %5689 = vmatprep.subr.bf16.mxu0 0
    %5690 = vmatpush1.bf16.msra.mxu0 0
    %5691 = vmatprep.subr.bf16.mxu0 0
    %5692 = vmatpush1.bf16.msra.mxu0 0
    %5693 = vmatprep.subr.bf16.mxu0 0
    %5694 = vmatpush1.bf16.msra.mxu0 0
    %5695 = vmatprep.subr.bf16.mxu0 0
    %5696 = vmatpush1.bf16.msra.mxu0 0
    %5697 = vmatprep.subr.bf16.mxu0 0
    %5698 = vmatpush1.bf16.msra.mxu0 0
    %5699 = vmatprep.subr.bf16.mxu0 0
    %5700 = vmatpush1.bf16.msra.mxu0 0
    %5701 = vmatprep.subr.bf16.mxu0 0
    %5702 = vmatpush1.bf16.msra.mxu0 0
    %5703 = vmatprep.subr.bf16.mxu0 0
    %5704 = vmatpush1.bf16.msra.mxu0 0
    %5705 = vmatprep.subr.bf16.mxu0 0
    %5706 = vmatpush1.bf16.msra.mxu0 0
    %5707 = vmatprep.mubr.bf16.mxu0 0
    %5708 = vmatmul.mubr.bf16.gmra.mrb[0].mxu0 %v5529
    %v5709 = vpop.f32.mrb[0].mxu0
    %v5710 = vadd.f32 %v5526, %v5709
    %v5711 = vpop.f32.mrb[0].mxu0
    %v5712 = vpop.f32.mrb[0].mxu0
    %v5713 = vpop.f32.mrb[0].mxu0
    %5714 = vdwg.mxu0
    %v5715 = vmax.f32 %v5587, 0.0
    %v5716 = vmax.f32 %v5589, 0.0
    %v5717 = vmax.f32 %v5628, 0.0
    %v5718 = vmax.f32 %v5630, 0.0
    %v5719 = vmax.f32 %v5669, 0.0
    %v5720 = vmax.f32 %v5671, 0.0
    %v5721 = vmax.f32 %v5710, 0.0
    %5729 = vrot.lane.b32.xlu0 %v5715, 29
    %v5730 = vpop.permute.xlu0 %5729
    %5731 = vrot.lane.b32.xlu0 %v5716, 29
    %v5732 = vpop.permute.xlu0 %5731
    %5733 = vrot.lane.b32.xlu0 %v5717, 29
    %v5734 = vpop.permute.xlu0 %5733
    %5735 = vrot.lane.b32.xlu0 %v5718, 29
    %v5736 = vpop.permute.xlu0 %5735
    %5737 = vrot.lane.b32.xlu0 %v5719, 29
    %v5738 = vpop.permute.xlu0 %5737
    %5739 = vrot.lane.b32.xlu0 %v5720, 29
    %v5740 = vpop.permute.xlu0 %5739
    %5741 = vrot.lane.b32.xlu0 %v5721, 29
    %v5742 = vpop.permute.xlu0 %5741
    %v5743 = vsel %vm53, %v5730, %v5732
    %v5744 = vsel %vm53, %v5732, %v5734
    %v5745 = vsel %vm53, %v5734, %v5736
    %v5746 = vsel %vm53, %v5736, %v5738
    %v5747 = vsel %vm53, %v5738, %v5740
    %v5748 = vsel %vm53, %v5740, %v5742
    %5756 = vst.msk [vmem:[#allocation2] sm:$0xff] %vm1111, %v5730
    %5757 = vst [vmem:[#allocation2 + $0x8] sm:$0xff] %v5743
    %5758 = vst [vmem:[#allocation2 + $0x10] sm:$0xff] %v5744
    %5759 = vst [vmem:[#allocation2 + $0x18] sm:$0xff] %v5745
    %5760 = vst [vmem:[#allocation2 + $0x20] sm:$0xff] %v5746
    %5761 = vst [vmem:[#allocation2 + $0x28] sm:$0xff] %v5747
    %5762 = vst.msk [vmem:[#allocation2 + $0x30] sm:$0xff] %vm1118, %v5748
    %v5763 = vld [vmem:[#allocation2] sm:$0xff]
    %v5764 = vld [vmem:[#allocation2 + $0x8] sm:$0xff]
    %v5765 = vld [vmem:[#allocation2 + $0x10] sm:$0xff]
    %v5766 = vld [vmem:[#allocation2 + $0x18] sm:$0xff]
    %v5767 = vld [vmem:[#allocation2 + $0x20] sm:$0xff]
    %v5768 = vld [vmem:[#allocation2 + $0x28] sm:$0xff]
    %v5769 = vld [vmem:[#allocation2 + $0x30] sm:$0xff]
    %5777 = vrot.lane.b32.xlu0 %v5763, 98
    %v5778 = vpop.permute.xlu0 %5777
    %5779 = vrot.lane.b32.xlu0 %v5764, 98
    %v5780 = vpop.permute.xlu0 %5779
    %5781 = vrot.lane.b32.xlu0 %v5765, 98
    %v5782 = vpop.permute.xlu0 %5781
    %5783 = vrot.lane.b32.xlu0 %v5766, 98
    %v5784 = vpop.permute.xlu0 %5783
    %5785 = vrot.lane.b32.xlu0 %v5767, 98
    %v5786 = vpop.permute.xlu0 %5785
    %5787 = vrot.lane.b32.xlu0 %v5768, 98
    %v5788 = vpop.permute.xlu0 %5787
    %5789 = vrot.lane.b32.xlu0 %v5769, 98
    %v5790 = vpop.permute.xlu0 %5789
    %v5791 = vsel %vm566, %v5778, %v5780
    %v5792 = vsel %vm566, %v5780, %v5782
    %v5793 = vsel %vm566, %v5782, %v5784
    %v5794 = vsel %vm566, %v5784, %v5786
    %v5795 = vsel %vm566, %v5786, %v5788
    %v5796 = vsel %vm566, %v5788, %v5790
    %v5804 = vmax.f32 %v5715, %v5791
    %v5805 = vmax.f32 %v5716, %v5792
    %v5806 = vmax.f32 %v5717, %v5793
    %v5807 = vmax.f32 %v5718, %v5794
    %v5808 = vmax.f32 %v5719, %v5795
    %v5809 = vmax.f32 %v5720, %v5796
    %v5810 = vmax.f32 %v5721, %v5790
    %5818 = vrot.lane.b32.xlu0 %v5804, 29
    %v5819 = vpop.permute.xlu0 %5818
    %5820 = vrot.lane.b32.xlu0 %v5805, 29
    %v5821 = vpop.permute.xlu0 %5820
    %5822 = vrot.lane.b32.xlu0 %v5806, 29
    %v5823 = vpop.permute.xlu0 %5822
    %5824 = vrot.lane.b32.xlu0 %v5807, 29
    %v5825 = vpop.permute.xlu0 %5824
    %5826 = vrot.lane.b32.xlu0 %v5808, 29
    %v5827 = vpop.permute.xlu0 %5826
    %5828 = vrot.lane.b32.xlu0 %v5809, 29
    %v5829 = vpop.permute.xlu0 %5828
    %5830 = vrot.lane.b32.xlu0 %v5810, 29
    %v5831 = vpop.permute.xlu0 %5830
    %v5832 = vsel %vm53, %v5819, %v5821
    %v5833 = vsel %vm53, %v5821, %v5823
    %v5834 = vsel %vm53, %v5823, %v5825
    %v5835 = vsel %vm53, %v5825, %v5827
    %v5836 = vsel %vm53, %v5827, %v5829
    %v5837 = vsel %vm53, %v5829, %v5831
    %5845 = vst.msk [vmem:[#allocation2] sm:$0xff] %vm1111, %v5819
    %5846 = vst [vmem:[#allocation2 + $0x8] sm:$0xff] %v5832
    %5847 = vst [vmem:[#allocation2 + $0x10] sm:$0xff] %v5833
    %5848 = vst [vmem:[#allocation2 + $0x18] sm:$0xff] %v5834
    %5849 = vst [vmem:[#allocation2 + $0x20] sm:$0xff] %v5835
    %5850 = vst [vmem:[#allocation2 + $0x28] sm:$0xff] %v5836
    %5851 = vst.msk [vmem:[#allocation2 + $0x30] sm:$0xff] %vm1118, %v5837
    %v5852 = vld [vmem:[#allocation2] sm:$0xff]
    %v5853 = vld [vmem:[#allocation2 + $0x8] sm:$0xff]
    %v5854 = vld [vmem:[#allocation2 + $0x10] sm:$0xff]
    %v5855 = vld [vmem:[#allocation2 + $0x18] sm:$0xff]
    %v5856 = vld [vmem:[#allocation2 + $0x20] sm:$0xff]
    %v5857 = vld [vmem:[#allocation2 + $0x28] sm:$0xff]
    %v5858 = vld [vmem:[#allocation2 + $0x30] sm:$0xff]
    %5866 = vrot.lane.b32.xlu0 %v5852, 71
    %v5867 = vpop.permute.xlu0 %5866
    %5868 = vrot.lane.b32.xlu0 %v5853, 71
    %v5869 = vpop.permute.xlu0 %5868
    %5870 = vrot.lane.b32.xlu0 %v5854, 71
    %v5871 = vpop.permute.xlu0 %5870
    %5872 = vrot.lane.b32.xlu0 %v5855, 71
    %v5873 = vpop.permute.xlu0 %5872
    %5874 = vrot.lane.b32.xlu0 %v5856, 71
    %v5875 = vpop.permute.xlu0 %5874
    %5876 = vrot.lane.b32.xlu0 %v5857, 71
    %v5877 = vpop.permute.xlu0 %5876
    %5878 = vrot.lane.b32.xlu0 %v5858, 71
    %v5879 = vpop.permute.xlu0 %5878
    %v5880 = vsel %vm723, %v5867, %v5869
    %v5881 = vsel %vm723, %v5869, %v5871
    %v5882 = vsel %vm723, %v5871, %v5873
    %v5883 = vsel %vm723, %v5873, %v5875
    %v5884 = vsel %vm723, %v5875, %v5877
    %v5885 = vsel %vm723, %v5877, %v5879
    %v5893 = vmax.f32 %v5804, %v5880
    %v5894 = vmax.f32 %v5805, %v5881
    %v5895 = vmax.f32 %v5806, %v5882
    %v5896 = vmax.f32 %v5807, %v5883
    %v5897 = vmax.f32 %v5808, %v5884
    %v5898 = vmax.f32 %v5809, %v5885
    %v5899 = vmax.f32 %v5810, %v5879
    %v5900 = vpack.c.bf16 %v5893, %v5893
    %v5901 = vpack.c.bf16 %v5894, %v5894
    %v5902 = vpack.c.bf16 %v5895, %v5895
    %v5903 = vpack.c.bf16 %v5896, %v5896
    %v5904 = vpack.c.bf16 %v5897, %v5897
    %v5905 = vpack.c.bf16 %v5898, %v5898
    %v5906 = vpack.c.bf16 %v5899, %v5899
    %v5907 = vld [vmem:[%s11] sm:$0xff]
    %v5908 = vld [vmem:[%s11 + $0x8] sm:$0xff]
    %v5909 = vld [vmem:[%s11 + $0x10] sm:$0xff]
    %v5910 = vld [vmem:[%s11 + $0x18] sm:$0xff]
    %v5911 = vld [vmem:[%s11 + $0x20] sm:$0xff]
    %v5912 = vld [vmem:[%s11 + $0x28] sm:$0xff]
    %v5913 = vld [vmem:[%s11 + $0x30] sm:$0xff]
    %v5914 = vld [vmem:[%s11 + $0x38] sm:$0xff]
    %v5915 = vld [vmem:[%s11 + $0x40] sm:$0xff]
    %v5916 = vld [vmem:[%s11 + $0x48] sm:$0xff]
    %v5917 = vld [vmem:[%s11 + $0x50] sm:$0xff]
    %v5918 = vld [vmem:[%s11 + $0x58] sm:$0xff]
    %v5919 = vld [vmem:[%s11 + $0x60] sm:$0xff]
    %v5920 = vld [vmem:[%s11 + $0x68] sm:$0xff]
    %v5921 = vld [vmem:[%s11 + $0x70] sm:$0xff]
    %v5922 = vld [vmem:[%s11 + $0x78] sm:$0xff]
    %v5923 = vld [vmem:[%s11 + $0x80] sm:$0xff]
    %v5924 = vld [vmem:[%s11 + $0x88] sm:$0xff]
    %v5925 = vld [vmem:[%s11 + $0x90] sm:$0xff]
    %v5926 = vld [vmem:[%s11 + $0x98] sm:$0xff]
    %v5927 = vld [vmem:[%s11 + $0xa0] sm:$0xff]
    %v5928 = vld [vmem:[%s11 + $0xa8] sm:$0xff]
    %v5929 = vld [vmem:[%s11 + $0xb0] sm:$0xff]
    %v5930 = vld [vmem:[%s11 + $0xb8] sm:$0xff]
    %v5931 = vld [vmem:[%s11 + $0xc0] sm:$0xff]
    %v5932 = vld [vmem:[%s11 + $0xc8] sm:$0xff]
    %v5933 = vld [vmem:[%s11 + $0xd0] sm:$0xff]
    %v5934 = vld [vmem:[%s11 + $0xd8] sm:$0xff]
    %v5935 = vld [vmem:[%s11 + $0xe0] sm:$0xff]
    %v5936 = vld [vmem:[%s11 + $0xe8] sm:$0xff]
    %v5937 = vld [vmem:[%s11 + $0xf0] sm:$0xff]
    %v5938 = vld [vmem:[%s11 + $0xf8] sm:$0xff]
    %v5939 = vld [vmem:[%s11 + $0x100] sm:$0xff]
    %v5940 = vld [vmem:[%s11 + $0x108] sm:$0xff]
    %v5941 = vld [vmem:[%s11 + $0x110] sm:$0xff]
    %v5942 = vld [vmem:[%s11 + $0x118] sm:$0xff]
    %v5943 = vld [vmem:[%s11 + $0x120] sm:$0xff]
    %v5944 = vld [vmem:[%s11 + $0x128] sm:$0xff]
    %v5945 = vld [vmem:[%s11 + $0x130] sm:$0xff]
    %v5946 = vld [vmem:[%s11 + $0x138] sm:$0xff]
    %v5947 = vld [vmem:[%s11 + $0x140] sm:$0xff]
    %v5948 = vld [vmem:[%s11 + $0x148] sm:$0xff]
    %v5949 = vld [vmem:[%s11 + $0x150] sm:$0xff]
    %v5950 = vld [vmem:[%s11 + $0x158] sm:$0xff]
    %v5951 = vld [vmem:[%s11 + $0x160] sm:$0xff]
    %v5952 = vld [vmem:[%s11 + $0x168] sm:$0xff]
    %v5953 = vld [vmem:[%s11 + $0x170] sm:$0xff]
    %v5954 = vld [vmem:[%s11 + $0x178] sm:$0xff]
    %v5955 = vld [vmem:[%s11 + $0x180] sm:$0xff]
    %v5956 = vld [vmem:[%s11 + $0x188] sm:$0xff]
    %v5957 = vld [vmem:[%s11 + $0x190] sm:$0xff]
    %v5958 = vld [vmem:[%s11 + $0x198] sm:$0xff]
    %v5959 = vld [vmem:[%s11 + $0x1a0] sm:$0xff]
    %v5960 = vld [vmem:[%s11 + $0x1a8] sm:$0xff]
    %v5961 = vld [vmem:[%s11 + $0x1b0] sm:$0xff]
    %v5962 = vld [vmem:[%s11 + $0x1b8] sm:$0xff]
    %v5963 = vld [vmem:[%s11 + $0x1c0] sm:$0xff]
    %v5964 = vld [vmem:[%s11 + $0x1c8] sm:$0xff]
    %v5965 = vld [vmem:[%s11 + $0x1d0] sm:$0xff]
    %v5966 = vld [vmem:[%s11 + $0x1d8] sm:$0xff]
    %v5967 = vld [vmem:[%s11 + $0x1e0] sm:$0xff]
    %v5968 = vld [vmem:[%s11 + $0x1e8] sm:$0xff]
    %v5969 = vld [vmem:[%s11 + $0x1f0] sm:$0xff]
    %v5970 = vld [vmem:[%s11 + $0x1f8] sm:$0xff]
    %v5971 = vld [vmem:[%s11 + $0x200] sm:$0xff]
    %v5972 = vld [vmem:[%s11 + $0x208] sm:$0xff]
    %v5973 = vld [vmem:[%s11 + $0x210] sm:$0xff]
    %v5974 = vld [vmem:[%s11 + $0x218] sm:$0xff]
    %v5975 = vld [vmem:[%s11 + $0x220] sm:$0xff]
    %v5976 = vld [vmem:[%s11 + $0x228] sm:$0xff]
    %v5977 = vld [vmem:[%s11 + $0x230] sm:$0xff]
    %v5978 = vld [vmem:[%s11 + $0x238] sm:$0xff]
    %v5979 = vld [vmem:[%s11 + $0x240] sm:$0xff]
    %v5980 = vld [vmem:[%s11 + $0x248] sm:$0xff]
    %v5981 = vld [vmem:[%s11 + $0x250] sm:$0xff]
    %v5982 = vld [vmem:[%s11 + $0x258] sm:$0xff]
    %v5983 = vld [vmem:[%s11 + $0x260] sm:$0xff]
    %v5984 = vld [vmem:[%s11 + $0x268] sm:$0xff]
    %v5985 = vld [vmem:[%s11 + $0x270] sm:$0xff]
    %v5986 = vld [vmem:[%s11 + $0x278] sm:$0xff]
    %v5987 = vld [vmem:[%s11 + $0x280] sm:$0xff]
    %v5988 = vld [vmem:[%s11 + $0x288] sm:$0xff]
    %v5989 = vld [vmem:[%s11 + $0x290] sm:$0xff]
    %v5990 = vld [vmem:[%s11 + $0x298] sm:$0xff]
    %v5991 = vld [vmem:[%s11 + $0x2a0] sm:$0xff]
    %v5992 = vld [vmem:[%s11 + $0x2a8] sm:$0xff]
    %v5993 = vld [vmem:[%s11 + $0x2b0] sm:$0xff]
    %v5994 = vld [vmem:[%s11 + $0x2b8] sm:$0xff]
    %v5995 = vld [vmem:[%s11 + $0x2c0] sm:$0xff]
    %v5996 = vld [vmem:[%s11 + $0x2c8] sm:$0xff]
    %v5997 = vld [vmem:[%s11 + $0x2d0] sm:$0xff]
    %v5998 = vld [vmem:[%s11 + $0x2d8] sm:$0xff]
    %v5999 = vld [vmem:[%s11 + $0x2e0] sm:$0xff]
    %v6000 = vld [vmem:[%s11 + $0x2e8] sm:$0xff]
    %v6001 = vld [vmem:[%s11 + $0x2f0] sm:$0xff]
    %v6002 = vld [vmem:[%s11 + $0x2f8] sm:$0xff]
    %v6003 = vld [vmem:[%s11 + $0x300] sm:$0xff]
    %v6004 = vld [vmem:[%s11 + $0x308] sm:$0xff]
    %v6103 = vunpack.c.l.b16 %v5907
    %v6104 = vunpack.c.h.b16 %v5907
    %v6105 = vunpack.c.l.b16 %v5908
    %v6106 = vunpack.c.h.b16 %v5908
    %v6107 = vunpack.c.l.b16 %v5909
    %v6108 = vunpack.c.h.b16 %v5909
    %v6109 = vunpack.c.l.b16 %v5910
    %v6110 = vunpack.c.h.b16 %v5910
    %v6111 = vunpack.c.l.b16 %v5911
    %v6112 = vunpack.c.h.b16 %v5911
    %v6113 = vunpack.c.l.b16 %v5912
    %v6114 = vunpack.c.h.b16 %v5912
    %v6115 = vunpack.c.l.b16 %v5913
    %v6116 = vunpack.c.h.b16 %v5913
    %v6117 = vunpack.c.l.b16 %v5914
    %v6118 = vunpack.c.h.b16 %v5914
    %v6119 = vunpack.c.l.b16 %v5915
    %v6120 = vunpack.c.h.b16 %v5915
    %v6121 = vunpack.c.l.b16 %v5916
    %v6122 = vunpack.c.h.b16 %v5916
    %v6123 = vunpack.c.l.b16 %v5917
    %v6124 = vunpack.c.h.b16 %v5917
    %v6125 = vunpack.c.l.b16 %v5918
    %v6126 = vunpack.c.h.b16 %v5918
    %v6127 = vunpack.c.l.b16 %v5919
    %v6128 = vunpack.c.h.b16 %v5919
    %v6129 = vunpack.c.l.b16 %v5920
    %v6130 = vunpack.c.h.b16 %v5920
    %v6131 = vunpack.c.l.b16 %v5921
    %v6132 = vunpack.c.h.b16 %v5921
    %v6133 = vunpack.c.l.b16 %v5922
    %v6134 = vunpack.c.h.b16 %v5922
    %v6135 = vunpack.c.l.b16 %v5923
    %v6136 = vunpack.c.h.b16 %v5923
    %v6137 = vunpack.c.l.b16 %v5924
    %v6138 = vunpack.c.h.b16 %v5924
    %v6139 = vunpack.c.l.b16 %v5925
    %v6140 = vunpack.c.h.b16 %v5925
    %v6141 = vunpack.c.l.b16 %v5926
    %v6142 = vunpack.c.h.b16 %v5926
    %v6143 = vunpack.c.l.b16 %v5927
    %v6144 = vunpack.c.h.b16 %v5927
    %v6145 = vunpack.c.l.b16 %v5928
    %v6146 = vunpack.c.h.b16 %v5928
    %v6147 = vunpack.c.l.b16 %v5929
    %v6148 = vunpack.c.h.b16 %v5929
    %v6149 = vunpack.c.l.b16 %v5930
    %v6150 = vunpack.c.h.b16 %v5930
    %v6151 = vunpack.c.l.b16 %v5931
    %v6152 = vunpack.c.h.b16 %v5931
    %v6153 = vunpack.c.l.b16 %v5932
    %v6154 = vunpack.c.h.b16 %v5932
    %v6155 = vunpack.c.l.b16 %v5933
    %v6156 = vunpack.c.h.b16 %v5933
    %v6157 = vunpack.c.l.b16 %v5934
    %v6158 = vunpack.c.h.b16 %v5934
    %v6159 = vunpack.c.l.b16 %v5935
    %v6160 = vunpack.c.h.b16 %v5935
    %v6161 = vunpack.c.l.b16 %v5936
    %v6162 = vunpack.c.h.b16 %v5936
    %v6163 = vunpack.c.l.b16 %v5937
    %v6164 = vunpack.c.h.b16 %v5937
    %v6165 = vunpack.c.l.b16 %v5938
    %v6166 = vunpack.c.h.b16 %v5938
    %v6167 = vunpack.c.l.b16 %v5939
    %v6168 = vunpack.c.h.b16 %v5939
    %v6169 = vunpack.c.l.b16 %v5940
    %v6170 = vunpack.c.h.b16 %v5940
    %v6171 = vunpack.c.l.b16 %v5941
    %v6172 = vunpack.c.h.b16 %v5941
    %v6173 = vunpack.c.l.b16 %v5942
    %v6174 = vunpack.c.h.b16 %v5942
    %v6175 = vunpack.c.l.b16 %v5943
    %v6176 = vunpack.c.h.b16 %v5943
    %v6177 = vunpack.c.l.b16 %v5944
    %v6178 = vunpack.c.h.b16 %v5944
    %v6179 = vunpack.c.l.b16 %v5945
    %v6180 = vunpack.c.h.b16 %v5945
    %v6181 = vunpack.c.l.b16 %v5946
    %v6182 = vunpack.c.h.b16 %v5946
    %v6183 = vunpack.c.l.b16 %v5947
    %v6184 = vunpack.c.h.b16 %v5947
    %v6185 = vunpack.c.l.b16 %v5948
    %v6186 = vunpack.c.h.b16 %v5948
    %v6187 = vunpack.c.l.b16 %v5949
    %v6188 = vunpack.c.h.b16 %v5949
    %v6189 = vunpack.c.l.b16 %v5950
    %v6190 = vunpack.c.h.b16 %v5950
    %v6191 = vunpack.c.l.b16 %v5951
    %v6192 = vunpack.c.h.b16 %v5951
    %v6193 = vunpack.c.l.b16 %v5952
    %v6194 = vunpack.c.h.b16 %v5952
    %v6195 = vunpack.c.l.b16 %v5953
    %v6196 = vunpack.c.h.b16 %v5953
    %v6197 = vunpack.c.l.b16 %v5954
    %v6198 = vunpack.c.h.b16 %v5954
    %v6199 = vunpack.c.l.b16 %v5955
    %v6200 = vunpack.c.h.b16 %v5955
    %v6201 = vunpack.c.l.b16 %v5956
    %v6202 = vunpack.c.h.b16 %v5956
    %v6203 = vunpack.c.l.b16 %v5957
    %v6204 = vunpack.c.h.b16 %v5957
    %v6205 = vunpack.c.l.b16 %v5958
    %v6206 = vunpack.c.h.b16 %v5958
    %v6207 = vunpack.c.l.b16 %v5959
    %v6208 = vunpack.c.h.b16 %v5959
    %v6209 = vunpack.c.l.b16 %v5960
    %v6210 = vunpack.c.h.b16 %v5960
    %v6211 = vunpack.c.l.b16 %v5961
    %v6212 = vunpack.c.h.b16 %v5961
    %v6213 = vunpack.c.l.b16 %v5962
    %v6214 = vunpack.c.h.b16 %v5962
    %v6215 = vunpack.c.l.b16 %v5963
    %v6216 = vunpack.c.h.b16 %v5963
    %v6217 = vunpack.c.l.b16 %v5964
    %v6218 = vunpack.c.h.b16 %v5964
    %v6219 = vunpack.c.l.b16 %v5965
    %v6220 = vunpack.c.h.b16 %v5965
    %v6221 = vunpack.c.l.b16 %v5966
    %v6222 = vunpack.c.h.b16 %v5966
    %v6223 = vunpack.c.l.b16 %v5967
    %v6224 = vunpack.c.h.b16 %v5967
    %v6225 = vunpack.c.l.b16 %v5968
    %v6226 = vunpack.c.h.b16 %v5968
    %v6227 = vunpack.c.l.b16 %v5969
    %v6228 = vunpack.c.h.b16 %v5969
    %v6229 = vunpack.c.l.b16 %v5970
    %v6230 = vunpack.c.h.b16 %v5970
    %v6231 = vunpack.c.l.b16 %v5971
    %v6232 = vunpack.c.h.b16 %v5971
    %v6233 = vunpack.c.l.b16 %v5972
    %v6234 = vunpack.c.h.b16 %v5972
    %v6235 = vunpack.c.l.b16 %v5973
    %v6236 = vunpack.c.h.b16 %v5973
    %v6237 = vunpack.c.l.b16 %v5974
    %v6238 = vunpack.c.h.b16 %v5974
    %v6239 = vunpack.c.l.b16 %v5975
    %v6240 = vunpack.c.h.b16 %v5975
    %v6241 = vunpack.c.l.b16 %v5976
    %v6242 = vunpack.c.h.b16 %v5976
    %v6243 = vunpack.c.l.b16 %v5977
    %v6244 = vunpack.c.h.b16 %v5977
    %v6245 = vunpack.c.l.b16 %v5978
    %v6246 = vunpack.c.h.b16 %v5978
    %v6247 = vunpack.c.l.b16 %v5979
    %v6248 = vunpack.c.h.b16 %v5979
    %v6249 = vunpack.c.l.b16 %v5980
    %v6250 = vunpack.c.h.b16 %v5980
    %v6251 = vunpack.c.l.b16 %v5981
    %v6252 = vunpack.c.h.b16 %v5981
    %v6253 = vunpack.c.l.b16 %v5982
    %v6254 = vunpack.c.h.b16 %v5982
    %v6255 = vunpack.c.l.b16 %v5983
    %v6256 = vunpack.c.h.b16 %v5983
    %v6257 = vunpack.c.l.b16 %v5984
    %v6258 = vunpack.c.h.b16 %v5984
    %v6259 = vunpack.c.l.b16 %v5985
    %v6260 = vunpack.c.h.b16 %v5985
    %v6261 = vunpack.c.l.b16 %v5986
    %v6262 = vunpack.c.h.b16 %v5986
    %v6263 = vunpack.c.l.b16 %v5987
    %v6264 = vunpack.c.h.b16 %v5987
    %v6265 = vunpack.c.l.b16 %v5988
    %v6266 = vunpack.c.h.b16 %v5988
    %v6267 = vunpack.c.l.b16 %v5989
    %v6268 = vunpack.c.h.b16 %v5989
    %v6269 = vunpack.c.l.b16 %v5990
    %v6270 = vunpack.c.h.b16 %v5990
    %v6271 = vunpack.c.l.b16 %v5991
    %v6272 = vunpack.c.h.b16 %v5991
    %v6273 = vunpack.c.l.b16 %v5992
    %v6274 = vunpack.c.h.b16 %v5992
    %v6275 = vunpack.c.l.b16 %v5993
    %v6276 = vunpack.c.h.b16 %v5993
    %v6277 = vunpack.c.l.b16 %v5994
    %v6278 = vunpack.c.h.b16 %v5994
    %v6279 = vunpack.c.l.b16 %v5995
    %v6280 = vunpack.c.h.b16 %v5995
    %v6281 = vunpack.c.l.b16 %v5996
    %v6282 = vunpack.c.h.b16 %v5996
    %v6283 = vunpack.c.l.b16 %v5997
    %v6284 = vunpack.c.h.b16 %v5997
    %v6285 = vunpack.c.l.b16 %v5998
    %v6286 = vunpack.c.h.b16 %v5998
    %v6287 = vunpack.c.l.b16 %v5999
    %v6288 = vunpack.c.h.b16 %v5999
    %v6289 = vunpack.c.l.b16 %v6000
    %v6290 = vunpack.c.h.b16 %v6000
    %v6291 = vunpack.c.l.b16 %v6001
    %v6292 = vunpack.c.h.b16 %v6001
    %v6293 = vunpack.c.l.b16 %v6002
    %v6294 = vunpack.c.h.b16 %v6002
    %v6295 = vunpack.c.l.b16 %v6003
    %v6296 = vunpack.c.h.b16 %v6003
    %v6297 = vunpack.c.l.b16 %v6004
    %v6298 = vunpack.c.h.b16 %v6004
    %v6299 = vpack.c.b16 %v6105, %v6103
    %v6300 = vpack.c.b16 %v6106, %v6104
    %v6301 = vpack.c.b16 %v6109, %v6107
    %v6302 = vpack.c.b16 %v6110, %v6108
    %v6303 = vpack.c.b16 %v6113, %v6111
    %v6304 = vpack.c.b16 %v6114, %v6112
    %v6305 = vpack.c.b16 %v6117, %v6115
    %v6306 = vpack.c.b16 %v6118, %v6116
    %v6307 = vpack.c.b16 %v6121, %v6119
    %v6308 = vpack.c.b16 %v6122, %v6120
    %v6309 = vpack.c.b16 %v6125, %v6123
    %v6310 = vpack.c.b16 %v6126, %v6124
    %v6311 = vpack.c.b16 %v6129, %v6127
    %v6312 = vpack.c.b16 %v6130, %v6128
    %v6313 = vpack.c.b16 %v6133, %v6131
    %v6314 = vpack.c.b16 %v6134, %v6132
    %v6315 = vpack.c.b16 %v6137, %v6135
    %v6316 = vpack.c.b16 %v6138, %v6136
    %v6317 = vpack.c.b16 %v6141, %v6139
    %v6318 = vpack.c.b16 %v6142, %v6140
    %v6319 = vpack.c.b16 %v6145, %v6143
    %v6320 = vpack.c.b16 %v6146, %v6144
    %v6321 = vpack.c.b16 %v6149, %v6147
    %v6322 = vpack.c.b16 %v6150, %v6148
    %v6323 = vpack.c.b16 %v6153, %v6151
    %v6324 = vpack.c.b16 %v6154, %v6152
    %v6325 = vpack.c.b16 %v6157, %v6155
    %v6326 = vpack.c.b16 %v6158, %v6156
    %v6327 = vpack.c.b16 %v6161, %v6159
    %v6328 = vpack.c.b16 %v6162, %v6160
    %v6329 = vpack.c.b16 %v6165, %v6163
    %v6330 = vpack.c.b16 %v6166, %v6164
    %v6331 = vpack.c.b16 %v6169, %v6167
    %v6332 = vpack.c.b16 %v6170, %v6168
    %v6333 = vpack.c.b16 %v6173, %v6171
    %v6334 = vpack.c.b16 %v6174, %v6172
    %v6335 = vpack.c.b16 %v6177, %v6175
    %v6336 = vpack.c.b16 %v6178, %v6176
    %v6337 = vpack.c.b16 %v6181, %v6179
    %v6338 = vpack.c.b16 %v6182, %v6180
    %v6339 = vpack.c.b16 %v6185, %v6183
    %v6340 = vpack.c.b16 %v6186, %v6184
    %v6341 = vpack.c.b16 %v6189, %v6187
    %v6342 = vpack.c.b16 %v6190, %v6188
    %v6343 = vpack.c.b16 %v6193, %v6191
    %v6344 = vpack.c.b16 %v6194, %v6192
    %v6345 = vpack.c.b16 %v6197, %v6195
    %v6346 = vpack.c.b16 %v6198, %v6196
    %v6347 = vpack.c.b16 %v6201, %v6199
    %v6348 = vpack.c.b16 %v6202, %v6200
    %v6349 = vpack.c.b16 %v6205, %v6203
    %v6350 = vpack.c.b16 %v6206, %v6204
    %v6351 = vpack.c.b16 %v6209, %v6207
    %v6352 = vpack.c.b16 %v6210, %v6208
    %v6353 = vpack.c.b16 %v6213, %v6211
    %v6354 = vpack.c.b16 %v6214, %v6212
    %v6355 = vpack.c.b16 %v6217, %v6215
    %v6356 = vpack.c.b16 %v6218, %v6216
    %v6357 = vpack.c.b16 %v6221, %v6219
    %v6358 = vpack.c.b16 %v6222, %v6220
    %v6359 = vpack.c.b16 %v6225, %v6223
    %v6360 = vpack.c.b16 %v6226, %v6224
    %v6361 = vpack.c.b16 %v6229, %v6227
    %v6362 = vpack.c.b16 %v6230, %v6228
    %v6363 = vpack.c.b16 %v6233, %v6231
    %v6364 = vpack.c.b16 %v6234, %v6232
    %v6365 = vpack.c.b16 %v6237, %v6235
    %v6366 = vpack.c.b16 %v6238, %v6236
    %v6367 = vpack.c.b16 %v6241, %v6239
    %v6368 = vpack.c.b16 %v6242, %v6240
    %v6369 = vpack.c.b16 %v6245, %v6243
    %v6370 = vpack.c.b16 %v6246, %v6244
    %v6371 = vpack.c.b16 %v6249, %v6247
    %v6372 = vpack.c.b16 %v6250, %v6248
    %v6373 = vpack.c.b16 %v6253, %v6251
    %v6374 = vpack.c.b16 %v6254, %v6252
    %v6375 = vpack.c.b16 %v6257, %v6255
    %v6376 = vpack.c.b16 %v6258, %v6256
    %v6377 = vpack.c.b16 %v6261, %v6259
    %v6378 = vpack.c.b16 %v6262, %v6260
    %v6379 = vpack.c.b16 %v6265, %v6263
    %v6380 = vpack.c.b16 %v6266, %v6264
    %v6381 = vpack.c.b16 %v6269, %v6267
    %v6382 = vpack.c.b16 %v6270, %v6268
    %v6383 = vpack.c.b16 %v6273, %v6271
    %v6384 = vpack.c.b16 %v6274, %v6272
    %v6385 = vpack.c.b16 %v6277, %v6275
    %v6386 = vpack.c.b16 %v6278, %v6276
    %v6387 = vpack.c.b16 %v6281, %v6279
    %v6388 = vpack.c.b16 %v6282, %v6280
    %v6389 = vpack.c.b16 %v6285, %v6283
    %v6390 = vpack.c.b16 %v6286, %v6284
    %v6391 = vpack.c.b16 %v6289, %v6287
    %v6392 = vpack.c.b16 %v6290, %v6288
    %v6393 = vpack.c.b16 %v6293, %v6291
    %v6394 = vpack.c.b16 %v6294, %v6292
    %v6395 = vpack.c.b16 %v6297, %v6295
    %v6396 = vpack.c.b16 %v6298, %v6296
    %v6496 = vsel %vm1178, %v5906, 0
    %6498 = vmatprep.subr.bf16.mxu0 %v6300
    %6499 = vmatpush1.bf16.msra.mxu0 %v6299
    %6500 = vmatprep.subr.bf16.mxu0 %v6302
    %6501 = vmatpush1.bf16.msra.mxu0 %v6301
    %6502 = vmatprep.subr.bf16.mxu0 %v6304
    %6503 = vmatpush1.bf16.msra.mxu0 %v6303
    %6504 = vmatprep.subr.bf16.mxu0 %v6306
    %6505 = vmatpush1.bf16.msra.mxu0 %v6305
    %6506 = vmatprep.subr.bf16.mxu0 %v6308
    %6507 = vmatpush1.bf16.msra.mxu0 %v6307
    %6508 = vmatprep.subr.bf16.mxu0 %v6310
    %6509 = vmatpush1.bf16.msra.mxu0 %v6309
    %6510 = vmatprep.subr.bf16.mxu0 %v6312
    %6511 = vmatpush1.bf16.msra.mxu0 %v6311
    %6512 = vmatprep.subr.bf16.mxu0 %v6314
    %6513 = vmatpush1.bf16.msra.mxu0 %v6313
    %6514 = vmatprep.subr.bf16.mxu0 %v6316
    %6515 = vmatpush1.bf16.msra.mxu0 %v6315
    %6516 = vmatprep.subr.bf16.mxu0 %v6318
    %6517 = vmatpush1.bf16.msra.mxu0 %v6317
    %6518 = vmatprep.subr.bf16.mxu0 %v6320
    %6519 = vmatpush1.bf16.msra.mxu0 %v6319
    %6520 = vmatprep.subr.bf16.mxu0 %v6322
    %6521 = vmatpush1.bf16.msra.mxu0 %v6321
    %6522 = vmatprep.subr.bf16.mxu0 %v6324
    %6523 = vmatpush1.bf16.msra.mxu0 %v6323
    %6524 = vmatprep.subr.bf16.mxu0 %v6326
    %6525 = vmatpush1.bf16.msra.mxu0 %v6325
    %6526 = vmatprep.subr.bf16.mxu0 %v6328
    %6527 = vmatpush1.bf16.msra.mxu0 %v6327
    %6528 = vmatprep.subr.bf16.mxu0 %v6330
    %6529 = vmatpush1.bf16.msra.mxu0 %v6329
    %6530 = vmatprep.mubr.bf16.mxu0 %v5901
    %6531 = vmatmul.mubr.bf16.gmra.mrb[0].mxu0 %v5900
    %v6532 = vpop.f32.mrb[0].mxu0
    %v6533 = vadd.f32 0.0, %v6532
    %v6534 = vpop.f32.mrb[0].mxu0
    %v6535 = vadd.f32 0.0, %v6534
    %v6536 = vpop.f32.mrb[0].mxu0
    %v6537 = vpop.f32.mrb[0].mxu0
    %6538 = vdwg.mxu0
    %6539 = vmatprep.subr.bf16.mxu0 %v6332
    %6540 = vmatpush1.bf16.msra.mxu0 %v6331
    %6541 = vmatprep.subr.bf16.mxu0 %v6334
    %6542 = vmatpush1.bf16.msra.mxu0 %v6333
    %6543 = vmatprep.subr.bf16.mxu0 %v6336
    %6544 = vmatpush1.bf16.msra.mxu0 %v6335
    %6545 = vmatprep.subr.bf16.mxu0 %v6338
    %6546 = vmatpush1.bf16.msra.mxu0 %v6337
    %6547 = vmatprep.subr.bf16.mxu0 %v6340
    %6548 = vmatpush1.bf16.msra.mxu0 %v6339
    %6549 = vmatprep.subr.bf16.mxu0 %v6342
    %6550 = vmatpush1.bf16.msra.mxu0 %v6341
    %6551 = vmatprep.subr.bf16.mxu0 %v6344
    %6552 = vmatpush1.bf16.msra.mxu0 %v6343
    %6553 = vmatprep.subr.bf16.mxu0 %v6346
    %6554 = vmatpush1.bf16.msra.mxu0 %v6345
    %6555 = vmatprep.subr.bf16.mxu0 %v6348
    %6556 = vmatpush1.bf16.msra.mxu0 %v6347
    %6557 = vmatprep.subr.bf16.mxu0 %v6350
    %6558 = vmatpush1.bf16.msra.mxu0 %v6349
    %6559 = vmatprep.subr.bf16.mxu0 %v6352
    %6560 = vmatpush1.bf16.msra.mxu0 %v6351
    %6561 = vmatprep.subr.bf16.mxu0 %v6354
    %6562 = vmatpush1.bf16.msra.mxu0 %v6353
    %6563 = vmatprep.subr.bf16.mxu0 %v6356
    %6564 = vmatpush1.bf16.msra.mxu0 %v6355
    %6565 = vmatprep.subr.bf16.mxu0 %v6358
    %6566 = vmatpush1.bf16.msra.mxu0 %v6357
    %6567 = vmatprep.subr.bf16.mxu0 %v6360
    %6568 = vmatpush1.bf16.msra.mxu0 %v6359
    %6569 = vmatprep.subr.bf16.mxu0 %v6362
    %6570 = vmatpush1.bf16.msra.mxu0 %v6361
    %6571 = vmatprep.mubr.bf16.mxu0 %v5903
    %6572 = vmatmul.mubr.bf16.gmra.mrb[0].mxu0 %v5902
    %v6573 = vpop.f32.mrb[0].mxu0
    %v6574 = vadd.f32 %v6533, %v6573
    %v6575 = vpop.f32.mrb[0].mxu0
    %v6576 = vadd.f32 %v6535, %v6575
    %v6577 = vpop.f32.mrb[0].mxu0
    %v6578 = vpop.f32.mrb[0].mxu0
    %6579 = vdwg.mxu0
    %6580 = vmatprep.subr.bf16.mxu0 %v6364
    %6581 = vmatpush1.bf16.msra.mxu0 %v6363
    %6582 = vmatprep.subr.bf16.mxu0 %v6366
    %6583 = vmatpush1.bf16.msra.mxu0 %v6365
    %6584 = vmatprep.subr.bf16.mxu0 %v6368
    %6585 = vmatpush1.bf16.msra.mxu0 %v6367
    %6586 = vmatprep.subr.bf16.mxu0 %v6370
    %6587 = vmatpush1.bf16.msra.mxu0 %v6369
    %6588 = vmatprep.subr.bf16.mxu0 %v6372
    %6589 = vmatpush1.bf16.msra.mxu0 %v6371
    %6590 = vmatprep.subr.bf16.mxu0 %v6374
    %6591 = vmatpush1.bf16.msra.mxu0 %v6373
    %6592 = vmatprep.subr.bf16.mxu0 %v6376
    %6593 = vmatpush1.bf16.msra.mxu0 %v6375
    %6594 = vmatprep.subr.bf16.mxu0 %v6378
    %6595 = vmatpush1.bf16.msra.mxu0 %v6377
    %6596 = vmatprep.subr.bf16.mxu0 %v6380
    %6597 = vmatpush1.bf16.msra.mxu0 %v6379
    %6598 = vmatprep.subr.bf16.mxu0 %v6382
    %6599 = vmatpush1.bf16.msra.mxu0 %v6381
    %6600 = vmatprep.subr.bf16.mxu0 %v6384
    %6601 = vmatpush1.bf16.msra.mxu0 %v6383
    %6602 = vmatprep.subr.bf16.mxu0 %v6386
    %6603 = vmatpush1.bf16.msra.mxu0 %v6385
    %6604 = vmatprep.subr.bf16.mxu0 %v6388
    %6605 = vmatpush1.bf16.msra.mxu0 %v6387
    %6606 = vmatprep.subr.bf16.mxu0 %v6390
    %6607 = vmatpush1.bf16.msra.mxu0 %v6389
    %6608 = vmatprep.subr.bf16.mxu0 %v6392
    %6609 = vmatpush1.bf16.msra.mxu0 %v6391
    %6610 = vmatprep.subr.bf16.mxu0 %v6394
    %6611 = vmatpush1.bf16.msra.mxu0 %v6393
    %6612 = vmatprep.mubr.bf16.mxu0 %v5905
    %6613 = vmatmul.mubr.bf16.gmra.mrb[0].mxu0 %v5904
    %v6614 = vpop.f32.mrb[0].mxu0
    %v6615 = vadd.f32 %v6574, %v6614
    %v6616 = vpop.f32.mrb[0].mxu0
    %v6617 = vadd.f32 %v6576, %v6616
    %v6618 = vpop.f32.mrb[0].mxu0
    %v6619 = vpop.f32.mrb[0].mxu0
    %6620 = vdwg.mxu0
    %6621 = vmatprep.subr.bf16.mxu0 %v6396
    %6622 = vmatpush1.bf16.msra.mxu0 %v6395
    %6623 = vmatprep.subr.bf16.mxu0 0
    %6624 = vmatpush1.bf16.msra.mxu0 0
    %6625 = vmatprep.subr.bf16.mxu0 0
    %6626 = vmatpush1.bf16.msra.mxu0 0
    %6627 = vmatprep.subr.bf16.mxu0 0
    %6628 = vmatpush1.bf16.msra.mxu0 0
    %6629 = vmatprep.subr.bf16.mxu0 0
    %6630 = vmatpush1.bf16.msra.mxu0 0
    %6631 = vmatprep.subr.bf16.mxu0 0
    %6632 = vmatpush1.bf16.msra.mxu0 0
    %6633 = vmatprep.subr.bf16.mxu0 0
    %6634 = vmatpush1.bf16.msra.mxu0 0
    %6635 = vmatprep.subr.bf16.mxu0 0
    %6636 = vmatpush1.bf16.msra.mxu0 0
    %6637 = vmatprep.subr.bf16.mxu0 0
    %6638 = vmatpush1.bf16.msra.mxu0 0
    %6639 = vmatprep.subr.bf16.mxu0 0
    %6640 = vmatpush1.bf16.msra.mxu0 0
    %6641 = vmatprep.subr.bf16.mxu0 0
    %6642 = vmatpush1.bf16.msra.mxu0 0
    %6643 = vmatprep.subr.bf16.mxu0 0
    %6644 = vmatpush1.bf16.msra.mxu0 0
    %6645 = vmatprep.subr.bf16.mxu0 0
    %6646 = vmatpush1.bf16.msra.mxu0 0
    %6647 = vmatprep.subr.bf16.mxu0 0
    %6648 = vmatpush1.bf16.msra.mxu0 0
    %6649 = vmatprep.subr.bf16.mxu0 0
    %6650 = vmatpush1.bf16.msra.mxu0 0
    %6651 = vmatprep.subr.bf16.mxu0 0
    %6652 = vmatpush1.bf16.msra.mxu0 0
    %6653 = vmatprep.mubr.bf16.mxu0 0
    %6654 = vmatmul.mubr.bf16.gmra.mrb[0].mxu0 %v6496
    %v6655 = vpop.f32.mrb[0].mxu0
    %v6656 = vadd.f32 %v6615, %v6655
    %v6657 = vpop.f32.mrb[0].mxu0
    %v6658 = vadd.f32 %v6617, %v6657
    %v6659 = vpop.f32.mrb[0].mxu0
    %v6660 = vpop.f32.mrb[0].mxu0
    %6661 = vdwg.mxu0
    %6664 = vrot.lane.b32.xlu0 %v6656, 15
    %v6665 = vpop.permute.xlu0 %6664
    %6666 = vrot.lane.b32.xlu0 %v6658, 15
    %v6667 = vpop.permute.xlu0 %6666
    %v6668 = vsel %vm3003, %v6665, %v6667
    %6671 = vst.msk [vmem:[#allocation3] sm:$0xff] %vm3016, %v6665
    %6672 = vst.msk [vmem:[#allocation3 + $0x8] sm:$0xff] %vm3018, %v6668
    %v6673 = vld [vmem:[%s13] ss:$2 sm:$0x3]
    %v6674 = vld [vmem:[%s3021] ss:$2 sm:$0x3]
    %v6675 = vld [vmem:[#allocation3] sm:$0xff]
    %v6676 = vld [vmem:[#allocation3 + $0x8] sm:$0xff]
    %v6678 = vlaneseq
    %v6679 = vshrl.u32 %v6678, 7
    %v6680 = vsub.s32 0, %v6679
    %v6681 = vrot.slane %v6673, %v6680
    %v6682 = vlaneseq
    %v6683 = vshrl.u32 %v6682, 7
    %v6684 = vsub.s32 1, %v6683
    %v6685 = vrot.slane %v6673, %v6684
    %v6688 = vmul.f32 %v6675, %v6681
    %v6689 = vmul.f32 %v6676, %v6685
    %6690 = vst [vmem:[#allocation4] sm:$0xff] %v6688
    %6691 = vst.msk [vmem:[#allocation4 + $0x8] sm:$0xff] %vm3039, %v6689
    %v6692 = vld [vmem:[#allocation3] sm:$0xff]
    %v6693 = vld [vmem:[#allocation3 + $0x8] sm:$0xff]
    %6696 = vrot.lane.b32.xlu0 %v6692, 127
    %v6697 = vpop.permute.xlu0 %6696
    %6698 = vrot.lane.b32.xlu0 %v6693, 127
    %v6699 = vpop.permute.xlu0 %6698
    %v6700 = vsel %vm196, %v6697, %v6699
    %6703 = vst [vmem:[#allocation4 + $0x38] sm:$0xff] %v6700
    %6704 = vst.msk [vmem:[#allocation4 + $0x40] sm:$0xff] %vm3039, %v6699
    %v6705 = vld [vmem:[#allocation3] sm:$0xff]
    %v6706 = vld [vmem:[#allocation3 + $0x8] sm:$0xff]
    %v6708 = vlaneseq
    %v6709 = vshrl.u32 %v6708, 7
    %v6710 = vsub.s32 0, %v6709
    %v6711 = vrot.slane %v6674, %v6710
    %v6712 = vlaneseq
    %v6713 = vshrl.u32 %v6712, 7
    %v6714 = vsub.s32 1, %v6713
    %v6715 = vrot.slane %v6674, %v6714
    %6716 = vrot.lane.b32.xlu0 %v6711, 2
    %v6717 = vpop.permute.xlu0 %6716
    %6718 = vrot.lane.b32.xlu0 %v6715, 2
    %v6719 = vpop.permute.xlu0 %6718
    %v6720 = vsel %vm268, %v6717, %v6719
    %v6723 = vmul.f32 %v6705, %v6717
    %v6724 = vmul.f32 %v6706, %v6720
    %6727 = vrot.lane.b32.xlu0 %v6723, 126
    %v6728 = vpop.permute.xlu0 %6727
    %6729 = vrot.lane.b32.xlu0 %v6724, 126
    %v6730 = vpop.permute.xlu0 %6729
    %v6731 = vsel %vm317, %v6728, %v6730
    %6734 = vst [vmem:[#allocation4 + $0x70] sm:$0xff] %v6731
    %6735 = vst.msk [vmem:[#allocation4 + $0x78] sm:$0xff] %vm3039, %v6730
    %v6736 = vld [vmem:[#allocation3] sm:$0xff]
    %v6737 = vld [vmem:[#allocation3 + $0x8] sm:$0xff]
    %6738 = vrot.lane.b32.xlu0 %v6681, 14
    %v6739 = vpop.permute.xlu0 %6738
    %6740 = vrot.lane.b32.xlu0 %v6685, 14
    %v6741 = vpop.permute.xlu0 %6740
    %v6742 = vsel %vm3091, %v6739, %v6741
    %v6745 = vmul.f32 %v6736, %v6739
    %v6746 = vmul.f32 %v6737, %v6742
    %6749 = vrot.lane.b32.xlu0 %v6745, 114
    %v6750 = vpop.permute.xlu0 %6749
    %6751 = vrot.lane.b32.xlu0 %v6746, 114
    %v6752 = vpop.permute.xlu0 %6751
    %v6753 = vsel %vm3103, %v6750, %v6752
    %6756 = vst [vmem:[#allocation4 + $0xa8] sm:$0xff] %v6753
    %6757 = vst.msk [vmem:[#allocation4 + $0xb0] sm:$0xff] %vm3039, %v6752
    %v6758 = vld [vmem:[#allocation3] sm:$0xff]
    %v6759 = vld [vmem:[#allocation3 + $0x8] sm:$0xff]
    %6762 = vrot.lane.b32.xlu0 %v6758, 113
    %v6763 = vpop.permute.xlu0 %6762
    %6764 = vrot.lane.b32.xlu0 %v6759, 113
    %v6765 = vpop.permute.xlu0 %6764
    %v6766 = vsel %vm3117, %v6763, %v6765
    %6769 = vst [vmem:[#allocation4 + $0xe0] sm:$0xff] %v6766
    %6770 = vst.msk [vmem:[#allocation4 + $0xe8] sm:$0xff] %vm3039, %v6765
    %v6771 = vld [vmem:[#allocation3] sm:$0xff]
    %v6772 = vld [vmem:[#allocation3 + $0x8] sm:$0xff]
    %6773 = vrot.lane.b32.xlu0 %v6711, 16
    %v6774 = vpop.permute.xlu0 %6773
    %6775 = vrot.lane.b32.xlu0 %v6715, 16
    %v6776 = vpop.permute.xlu0 %6775
    %v6777 = vsel %vm1178, %v6774, %v6776
    %v6780 = vmul.f32 %v6771, %v6774
    %v6781 = vmul.f32 %v6772, %v6777
    %6784 = vrot.lane.b32.xlu0 %v6780, 112
    %v6785 = vpop.permute.xlu0 %6784
    %6786 = vrot.lane.b32.xlu0 %v6781, 112
    %v6787 = vpop.permute.xlu0 %6786
    %v6788 = vsel %vm3140, %v6785, %v6787
    %6791 = vst [vmem:[#allocation4 + $0x118] sm:$0xff] %v6788
    %6792 = vst.msk [vmem:[#allocation4 + $0x120] sm:$0xff] %vm3039, %v6787
    %v6793 = vld [vmem:[#allocation3] sm:$0xff]
    %v6794 = vld [vmem:[#allocation3 + $0x8] sm:$0xff]
    %6795 = vrot.lane.b32.xlu0 %v6681, 28
    %v6796 = vpop.permute.xlu0 %6795
    %6797 = vrot.lane.b32.xlu0 %v6685, 28
    %v6798 = vpop.permute.xlu0 %6797
    %v6799 = vsel %vm368, %v6796, %v6798
    %v6802 = vmul.f32 %v6793, %v6796
    %v6803 = vmul.f32 %v6794, %v6799
    %6806 = vrot.lane.b32.xlu0 %v6802, 100
    %v6807 = vpop.permute.xlu0 %6806
    %6808 = vrot.lane.b32.xlu0 %v6803, 100
    %v6809 = vpop.permute.xlu0 %6808
    %v6810 = vsel %vm417, %v6807, %v6809
    %6813 = vst [vmem:[#allocation4 + $0x150] sm:$0xff] %v6810
    %6814 = vst.msk [vmem:[#allocation4 + $0x158] sm:$0xff] %vm3039, %v6809
    %v6815 = vld [vmem:[#allocation3] sm:$0xff]
    %v6816 = vld [vmem:[#allocation3 + $0x8] sm:$0xff]
    %6819 = vrot.lane.b32.xlu0 %v6815, 99
    %v6820 = vpop.permute.xlu0 %6819
    %6821 = vrot.lane.b32.xlu0 %v6816, 99
    %v6822 = vpop.permute.xlu0 %6821
    %v6823 = vsel %vm474, %v6820, %v6822
    %6826 = vst [vmem:[#allocation4 + $0x188] sm:$0xff] %v6823
    %6827 = vst.msk [vmem:[#allocation4 + $0x190] sm:$0xff] %vm3039, %v6822
    %v6828 = vld [vmem:[#allocation3] sm:$0xff]
    %v6829 = vld [vmem:[#allocation3 + $0x8] sm:$0xff]
    %6830 = vrot.lane.b32.xlu0 %v6711, 30
    %v6831 = vpop.permute.xlu0 %6830
    %6832 = vrot.lane.b32.xlu0 %v6715, 30
    %v6833 = vpop.permute.xlu0 %6832
    %v6834 = vsel %vm517, %v6831, %v6833
    %v6837 = vmul.f32 %v6828, %v6831
    %v6838 = vmul.f32 %v6829, %v6834
    %6841 = vrot.lane.b32.xlu0 %v6837, 98
    %v6842 = vpop.permute.xlu0 %6841
    %6843 = vrot.lane.b32.xlu0 %v6838, 98
    %v6844 = vpop.permute.xlu0 %6843
    %v6845 = vsel %vm566, %v6842, %v6844
    %6848 = vst [vmem:[#allocation4 + $0x1c0] sm:$0xff] %v6845
    %6849 = vst.msk [vmem:[#allocation4 + $0x1c8] sm:$0xff] %vm3039, %v6844
    %v6850 = vld [vmem:[#allocation4] sm:$0xff]
    %v6851 = vld [vmem:[#allocation4 + $0x8] sm:$0xff]
    %v6852 = vld [vmem:[#allocation4 + $0x38] sm:$0xff]
    %v6853 = vld [vmem:[#allocation4 + $0x40] sm:$0xff]
    %v6854 = vld [vmem:[#allocation4 + $0x70] sm:$0xff]
    %v6855 = vld [vmem:[#allocation4 + $0x78] sm:$0xff]
    %v6856 = vld [vmem:[#allocation4 + $0xa8] sm:$0xff]
    %v6857 = vld [vmem:[#allocation4 + $0xb0] sm:$0xff]
    %v6858 = vld [vmem:[#allocation4 + $0xe0] sm:$0xff]
    %v6859 = vld [vmem:[#allocation4 + $0xe8] sm:$0xff]
    %v6860 = vld [vmem:[#allocation4 + $0x118] sm:$0xff]
    %v6861 = vld [vmem:[#allocation4 + $0x120] sm:$0xff]
    %v6862 = vld [vmem:[#allocation4 + $0x150] sm:$0xff]
    %v6863 = vld [vmem:[#allocation4 + $0x158] sm:$0xff]
    %v6864 = vld [vmem:[#allocation4 + $0x188] sm:$0xff]
    %v6865 = vld [vmem:[#allocation4 + $0x190] sm:$0xff]
    %v6866 = vld [vmem:[#allocation4 + $0x1c0] sm:$0xff]
    %v6867 = vld [vmem:[#allocation4 + $0x1c8] sm:$0xff]
    %v6868 = vpack.c.bf16 %v6852, %v6850
    %v6869 = vpack.c.bf16 %v6853, %v6851
    %v6870 = vpack.c.bf16 %v6856, %v6854
    %v6871 = vpack.c.bf16 %v6857, %v6855
    %v6872 = vpack.c.bf16 %v6860, %v6858
    %v6873 = vpack.c.bf16 %v6861, %v6859
    %v6874 = vpack.c.bf16 %v6864, %v6862
    %v6875 = vpack.c.bf16 %v6865, %v6863
    %v6876 = vpack.c.bf16 %v6866, %v6866
    %v6877 = vpack.c.bf16 %v6867, %v6867
    %v6878 = vld [vmem:[%s5] sm:$0xf]
    %v6879 = vld [vmem:[%s6] sm:$0xff]
    %6881 = vset.pattern.permute.xlu0 0
    %6882 = vperm.xlu0 %6881, %v6879
    %v6883 = vpop.permute.xlu0 %6882
    %v6886 = vsel %vm666, %v6878, 0
    %v6889 = vsel %vm1871, %v6876, 0
    %v6892 = vsel %vm1871, %v6877, 0
    %6894 = vmatprep.subr.bf16.mxu0 %v6869
    %6895 = vmatpush1.bf16.msra.mxu0 %v6868
    %6896 = vmatprep.subr.bf16.mxu0 %v6871
    %6897 = vmatpush1.bf16.msra.mxu0 %v6870
    %6898 = vmatprep.subr.bf16.mxu0 %v6873
    %6899 = vmatpush1.bf16.msra.mxu0 %v6872
    %6900 = vmatprep.subr.bf16.mxu0 %v6875
    %6901 = vmatpush1.bf16.msra.mxu0 %v6874
    %6902 = vmatprep.subr.bf16.mxu0 %v6892
    %6903 = vmatpush1.bf16.msra.mxu0 %v6889
    %6904 = vmatprep.subr.bf16.mxu0 0
    %6905 = vmatpush1.bf16.msra.mxu0 0
    %6906 = vmatprep.subr.bf16.mxu0 0
    %6907 = vmatpush1.bf16.msra.mxu0 0
    %6908 = vmatprep.subr.bf16.mxu0 0
    %6909 = vmatpush1.bf16.msra.mxu0 0
    %6910 = vmatprep.subr.bf16.mxu0 0
    %6911 = vmatpush1.bf16.msra.mxu0 0
    %6912 = vmatprep.subr.bf16.mxu0 0
    %6913 = vmatpush1.bf16.msra.mxu0 0
    %6914 = vmatprep.subr.bf16.mxu0 0
    %6915 = vmatpush1.bf16.msra.mxu0 0
    %6916 = vmatprep.subr.bf16.mxu0 0
    %6917 = vmatpush1.bf16.msra.mxu0 0
    %6918 = vmatprep.subr.bf16.mxu0 0
    %6919 = vmatpush1.bf16.msra.mxu0 0
    %6920 = vmatprep.subr.bf16.mxu0 0
    %6921 = vmatpush1.bf16.msra.mxu0 0
    %6922 = vmatprep.subr.bf16.mxu0 0
    %6923 = vmatpush1.bf16.msra.mxu0 0
    %6924 = vmatprep.subr.bf16.mxu0 0
    %6925 = vmatpush1.bf16.msra.mxu0 0
    %6926 = vmatprep.mubr.bf16.mxu0 0
    %6927 = vmatmul.mubr.bf16.gmra.mrb[0].mxu0 %v6886
    %v6928 = vpop.f32.mrb[0].mxu0
    %v6929 = vadd.f32 %v6883, %v6928
    %v6930 = vpop.f32.mrb[0].mxu0
    %v6931 = vadd.f32 %v6883, %v6930
    %v6932 = vpop.f32.mrb[0].mxu0
    %v6933 = vpop.f32.mrb[0].mxu0
    %6934 = vdwg.mxu0
    %v6935 = vmax.f32 %v6929, 0.0
    %v6936 = vmax.f32 %v6931, 0.0
    %6939 = vrot.lane.b32.xlu0 %v6935, 15
    %v6940 = vpop.permute.xlu0 %6939
    %6941 = vrot.lane.b32.xlu0 %v6936, 15
    %v6942 = vpop.permute.xlu0 %6941
    %v6943 = vsel %vm3003, %v6940, %v6942
    %6946 = vst.msk [vmem:[#allocation3] sm:$0xff] %vm3016, %v6940
    %6947 = vst.msk [vmem:[#allocation3 + $0x8] sm:$0xff] %vm3018, %v6943
    %v6948 = vld [vmem:[%s13] ss:$2 sm:$0x3]
    %v6949 = vld [vmem:[%s3021] ss:$2 sm:$0x3]
    %v6950 = vld [vmem:[#allocation3] sm:$0xff]
    %v6951 = vld [vmem:[#allocation3 + $0x8] sm:$0xff]
    %v6953 = vlaneseq
    %v6954 = vshrl.u32 %v6953, 7
    %v6955 = vsub.s32 0, %v6954
    %v6956 = vrot.slane %v6948, %v6955
    %v6957 = vlaneseq
    %v6958 = vshrl.u32 %v6957, 7
    %v6959 = vsub.s32 1, %v6958
    %v6960 = vrot.slane %v6948, %v6959
    %v6963 = vmul.f32 %v6950, %v6956
    %v6964 = vmul.f32 %v6951, %v6960
    %6965 = vst [vmem:[#allocation4] sm:$0xff] %v6963
    %6966 = vst.msk [vmem:[#allocation4 + $0x8] sm:$0xff] %vm3039, %v6964
    %v6967 = vld [vmem:[#allocation3] sm:$0xff]
    %v6968 = vld [vmem:[#allocation3 + $0x8] sm:$0xff]
    %6971 = vrot.lane.b32.xlu0 %v6967, 127
    %v6972 = vpop.permute.xlu0 %6971
    %6973 = vrot.lane.b32.xlu0 %v6968, 127
    %v6974 = vpop.permute.xlu0 %6973
    %v6975 = vsel %vm196, %v6972, %v6974
    %6978 = vst [vmem:[#allocation4 + $0x38] sm:$0xff] %v6975
    %6979 = vst.msk [vmem:[#allocation4 + $0x40] sm:$0xff] %vm3039, %v6974
    %v6980 = vld [vmem:[#allocation3] sm:$0xff]
    %v6981 = vld [vmem:[#allocation3 + $0x8] sm:$0xff]
    %v6983 = vlaneseq
    %v6984 = vshrl.u32 %v6983, 7
    %v6985 = vsub.s32 0, %v6984
    %v6986 = vrot.slane %v6949, %v6985
    %v6987 = vlaneseq
    %v6988 = vshrl.u32 %v6987, 7
    %v6989 = vsub.s32 1, %v6988
    %v6990 = vrot.slane %v6949, %v6989
    %6991 = vrot.lane.b32.xlu0 %v6986, 2
    %v6992 = vpop.permute.xlu0 %6991
    %6993 = vrot.lane.b32.xlu0 %v6990, 2
    %v6994 = vpop.permute.xlu0 %6993
    %v6995 = vsel %vm268, %v6992, %v6994
    %v6998 = vmul.f32 %v6980, %v6992
    %v6999 = vmul.f32 %v6981, %v6995
    %7002 = vrot.lane.b32.xlu0 %v6998, 126
    %v7003 = vpop.permute.xlu0 %7002
    %7004 = vrot.lane.b32.xlu0 %v6999, 126
    %v7005 = vpop.permute.xlu0 %7004
    %v7006 = vsel %vm317, %v7003, %v7005
    %7009 = vst [vmem:[#allocation4 + $0x70] sm:$0xff] %v7006
    %7010 = vst.msk [vmem:[#allocation4 + $0x78] sm:$0xff] %vm3039, %v7005
    %v7011 = vld [vmem:[#allocation3] sm:$0xff]
    %v7012 = vld [vmem:[#allocation3 + $0x8] sm:$0xff]
    %7013 = vrot.lane.b32.xlu0 %v6956, 14
    %v7014 = vpop.permute.xlu0 %7013
    %7015 = vrot.lane.b32.xlu0 %v6960, 14
    %v7016 = vpop.permute.xlu0 %7015
    %v7017 = vsel %vm3091, %v7014, %v7016
    %v7020 = vmul.f32 %v7011, %v7014
    %v7021 = vmul.f32 %v7012, %v7017
    %7024 = vrot.lane.b32.xlu0 %v7020, 114
    %v7025 = vpop.permute.xlu0 %7024
    %7026 = vrot.lane.b32.xlu0 %v7021, 114
    %v7027 = vpop.permute.xlu0 %7026
    %v7028 = vsel %vm3103, %v7025, %v7027
    %7031 = vst [vmem:[#allocation4 + $0xa8] sm:$0xff] %v7028
    %7032 = vst.msk [vmem:[#allocation4 + $0xb0] sm:$0xff] %vm3039, %v7027
    %v7033 = vld [vmem:[#allocation3] sm:$0xff]
    %v7034 = vld [vmem:[#allocation3 + $0x8] sm:$0xff]
    %7037 = vrot.lane.b32.xlu0 %v7033, 113
    %v7038 = vpop.permute.xlu0 %7037
    %7039 = vrot.lane.b32.xlu0 %v7034, 113
    %v7040 = vpop.permute.xlu0 %7039
    %v7041 = vsel %vm3117, %v7038, %v7040
    %7044 = vst [vmem:[#allocation4 + $0xe0] sm:$0xff] %v7041
    %7045 = vst.msk [vmem:[#allocation4 + $0xe8] sm:$0xff] %vm3039, %v7040
    %v7046 = vld [vmem:[#allocation3] sm:$0xff]
    %v7047 = vld [vmem:[#allocation3 + $0x8] sm:$0xff]
    %7048 = vrot.lane.b32.xlu0 %v6986, 16
    %v7049 = vpop.permute.xlu0 %7048
    %7050 = vrot.lane.b32.xlu0 %v6990, 16
    %v7051 = vpop.permute.xlu0 %7050
    %v7052 = vsel %vm1178, %v7049, %v7051
    %v7055 = vmul.f32 %v7046, %v7049
    %v7056 = vmul.f32 %v7047, %v7052
    %7059 = vrot.lane.b32.xlu0 %v7055, 112
    %v7060 = vpop.permute.xlu0 %7059
    %7061 = vrot.lane.b32.xlu0 %v7056, 112
    %v7062 = vpop.permute.xlu0 %7061
    %v7063 = vsel %vm3140, %v7060, %v7062
    %7066 = vst [vmem:[#allocation4 + $0x118] sm:$0xff] %v7063
    %7067 = vst.msk [vmem:[#allocation4 + $0x120] sm:$0xff] %vm3039, %v7062
    %v7068 = vld [vmem:[#allocation3] sm:$0xff]
    %v7069 = vld [vmem:[#allocation3 + $0x8] sm:$0xff]
    %7070 = vrot.lane.b32.xlu0 %v6956, 28
    %v7071 = vpop.permute.xlu0 %7070
    %7072 = vrot.lane.b32.xlu0 %v6960, 28
    %v7073 = vpop.permute.xlu0 %7072
    %v7074 = vsel %vm368, %v7071, %v7073
    %v7077 = vmul.f32 %v7068, %v7071
    %v7078 = vmul.f32 %v7069, %v7074
    %7081 = vrot.lane.b32.xlu0 %v7077, 100
    %v7082 = vpop.permute.xlu0 %7081
    %7083 = vrot.lane.b32.xlu0 %v7078, 100
    %v7084 = vpop.permute.xlu0 %7083
    %v7085 = vsel %vm417, %v7082, %v7084
    %7088 = vst [vmem:[#allocation4 + $0x150] sm:$0xff] %v7085
    %7089 = vst.msk [vmem:[#allocation4 + $0x158] sm:$0xff] %vm3039, %v7084
    %v7090 = vld [vmem:[#allocation3] sm:$0xff]
    %v7091 = vld [vmem:[#allocation3 + $0x8] sm:$0xff]
    %7094 = vrot.lane.b32.xlu0 %v7090, 99
    %v7095 = vpop.permute.xlu0 %7094
    %7096 = vrot.lane.b32.xlu0 %v7091, 99
    %v7097 = vpop.permute.xlu0 %7096
    %v7098 = vsel %vm474, %v7095, %v7097
    %7101 = vst [vmem:[#allocation4 + $0x188] sm:$0xff] %v7098
    %7102 = vst.msk [vmem:[#allocation4 + $0x190] sm:$0xff] %vm3039, %v7097
    %v7103 = vld [vmem:[#allocation3] sm:$0xff]
    %v7104 = vld [vmem:[#allocation3 + $0x8] sm:$0xff]
    %7105 = vrot.lane.b32.xlu0 %v6986, 30
    %v7106 = vpop.permute.xlu0 %7105
    %7107 = vrot.lane.b32.xlu0 %v6990, 30
    %v7108 = vpop.permute.xlu0 %7107
    %v7109 = vsel %vm517, %v7106, %v7108
    %v7112 = vmul.f32 %v7103, %v7106
    %v7113 = vmul.f32 %v7104, %v7109
    %7116 = vrot.lane.b32.xlu0 %v7112, 98
    %v7117 = vpop.permute.xlu0 %7116
    %7118 = vrot.lane.b32.xlu0 %v7113, 98
    %v7119 = vpop.permute.xlu0 %7118
    %v7120 = vsel %vm566, %v7117, %v7119
    %7123 = vst [vmem:[#allocation4 + $0x1c0] sm:$0xff] %v7120
    %7124 = vst.msk [vmem:[#allocation4 + $0x1c8] sm:$0xff] %vm3039, %v7119
    %v7125 = vld [vmem:[#allocation4] sm:$0xff]
    %v7126 = vld [vmem:[#allocation4 + $0x8] sm:$0xff]
    %v7127 = vld [vmem:[#allocation4 + $0x38] sm:$0xff]
    %v7128 = vld [vmem:[#allocation4 + $0x40] sm:$0xff]
    %v7129 = vld [vmem:[#allocation4 + $0x70] sm:$0xff]
    %v7130 = vld [vmem:[#allocation4 + $0x78] sm:$0xff]
    %v7131 = vld [vmem:[#allocation4 + $0xa8] sm:$0xff]
    %v7132 = vld [vmem:[#allocation4 + $0xb0] sm:$0xff]
    %v7133 = vld [vmem:[#allocation4 + $0xe0] sm:$0xff]
    %v7134 = vld [vmem:[#allocation4 + $0xe8] sm:$0xff]
    %v7135 = vld [vmem:[#allocation4 + $0x118] sm:$0xff]
    %v7136 = vld [vmem:[#allocation4 + $0x120] sm:$0xff]
    %v7137 = vld [vmem:[#allocation4 + $0x150] sm:$0xff]
    %v7138 = vld [vmem:[#allocation4 + $0x158] sm:$0xff]
    %v7139 = vld [vmem:[#allocation4 + $0x188] sm:$0xff]
    %v7140 = vld [vmem:[#allocation4 + $0x190] sm:$0xff]
    %v7141 = vld [vmem:[#allocation4 + $0x1c0] sm:$0xff]
    %v7142 = vld [vmem:[#allocation4 + $0x1c8] sm:$0xff]
    %v7143 = vpack.c.bf16 %v7127, %v7125
    %v7144 = vpack.c.bf16 %v7128, %v7126
    %v7145 = vpack.c.bf16 %v7131, %v7129
    %v7146 = vpack.c.bf16 %v7132, %v7130
    %v7147 = vpack.c.bf16 %v7135, %v7133
    %v7148 = vpack.c.bf16 %v7136, %v7134
    %v7149 = vpack.c.bf16 %v7139, %v7137
    %v7150 = vpack.c.bf16 %v7140, %v7138
    %v7151 = vpack.c.bf16 %v7141, %v7141
    %v7152 = vpack.c.bf16 %v7142, %v7142
    %v7153 = vld [vmem:[%s7] sm:$0xf]
    %v7154 = vld [vmem:[%s8] sm:$0xff]
    %7156 = vset.pattern.permute.xlu0 0
    %7157 = vperm.xlu0 %7156, %v7154
    %v7158 = vpop.permute.xlu0 %7157
    %v7161 = vsel %vm666, %v7153, 0
    %v7164 = vsel %vm1871, %v7151, 0
    %v7167 = vsel %vm1871, %v7152, 0
    %7169 = vmatprep.subr.bf16.mxu0 %v7144
    %7170 = vmatpush1.bf16.msra.mxu0 %v7143
    %7171 = vmatprep.subr.bf16.mxu0 %v7146
    %7172 = vmatpush1.bf16.msra.mxu0 %v7145
    %7173 = vmatprep.subr.bf16.mxu0 %v7148
    %7174 = vmatpush1.bf16.msra.mxu0 %v7147
    %7175 = vmatprep.subr.bf16.mxu0 %v7150
    %7176 = vmatpush1.bf16.msra.mxu0 %v7149
    %7177 = vmatprep.subr.bf16.mxu0 %v7167
    %7178 = vmatpush1.bf16.msra.mxu0 %v7164
    %7179 = vmatprep.subr.bf16.mxu0 0
    %7180 = vmatpush1.bf16.msra.mxu0 0
    %7181 = vmatprep.subr.bf16.mxu0 0
    %7182 = vmatpush1.bf16.msra.mxu0 0
    %7183 = vmatprep.subr.bf16.mxu0 0
    %7184 = vmatpush1.bf16.msra.mxu0 0
    %7185 = vmatprep.subr.bf16.mxu0 0
    %7186 = vmatpush1.bf16.msra.mxu0 0
    %7187 = vmatprep.subr.bf16.mxu0 0
    %7188 = vmatpush1.bf16.msra.mxu0 0
    %7189 = vmatprep.subr.bf16.mxu0 0
    %7190 = vmatpush1.bf16.msra.mxu0 0
    %7191 = vmatprep.subr.bf16.mxu0 0
    %7192 = vmatpush1.bf16.msra.mxu0 0
    %7193 = vmatprep.subr.bf16.mxu0 0
    %7194 = vmatpush1.bf16.msra.mxu0 0
    %7195 = vmatprep.subr.bf16.mxu0 0
    %7196 = vmatpush1.bf16.msra.mxu0 0
    %7197 = vmatprep.subr.bf16.mxu0 0
    %7198 = vmatpush1.bf16.msra.mxu0 0
    %7199 = vmatprep.subr.bf16.mxu0 0
    %7200 = vmatpush1.bf16.msra.mxu0 0
    %7201 = vmatprep.mubr.bf16.mxu0 0
    %7202 = vmatmul.mubr.bf16.gmra.mrb[0].mxu0 %v7161
    %v7203 = vpop.f32.mrb[0].mxu0
    %v7204 = vadd.f32 %v7158, %v7203
    %v7205 = vpop.f32.mrb[0].mxu0
    %v7206 = vadd.f32 %v7158, %v7205
    %v7207 = vpop.f32.mrb[0].mxu0
    %v7208 = vpop.f32.mrb[0].mxu0
    %7209 = vdwg.mxu0
    %v7210 = vmax.f32 %v7204, 0.0
    %v7211 = vmax.f32 %v7206, 0.0
    %7214 = vrot.lane.b32.xlu0 %v7210, 15
    %v7215 = vpop.permute.xlu0 %7214
    %7216 = vrot.lane.b32.xlu0 %v7211, 15
    %v7217 = vpop.permute.xlu0 %7216
    %v7218 = vsel %vm3003, %v7215, %v7217
    %7221 = vst.msk [vmem:[#allocation3] sm:$0xff] %vm3016, %v7215
    %7222 = vst.msk [vmem:[#allocation3 + $0x8] sm:$0xff] %vm3018, %v7218
    %v7223 = vld [vmem:[#allocation3] sm:$0xff]
    %v7224 = vld [vmem:[#allocation3 + $0x8] sm:$0xff]
    %7227 = vrot.lane.b32.xlu0 %v7223, 112
    %v7228 = vpop.permute.xlu0 %7227
    %7229 = vrot.lane.b32.xlu0 %v7224, 112
    %v7230 = vpop.permute.xlu0 %7229
    %v7231 = vsel %vm3140, %v7228, %v7230
    %v7234 = vmax.f32 %v7210, %v7231
    %v7235 = vmax.f32 %v7211, %v7230
    %7238 = vrot.lane.b32.xlu0 %v7234, 15
    %v7239 = vpop.permute.xlu0 %7238
    %7240 = vrot.lane.b32.xlu0 %v7235, 15
    %v7241 = vpop.permute.xlu0 %7240
    %v7242 = vsel %vm3003, %v7239, %v7241
    %7245 = vst.msk [vmem:[#allocation3] sm:$0xff] %vm3016, %v7239
    %7246 = vst.msk [vmem:[#allocation3 + $0x8] sm:$0xff] %vm3018, %v7242
    %v7247 = vld [vmem:[#allocation3] sm:$0xff]
    %v7248 = vld [vmem:[#allocation3 + $0x8] sm:$0xff]
    %7251 = vrot.lane.b32.xlu0 %v7247, 99
    %v7252 = vpop.permute.xlu0 %7251
    %7253 = vrot.lane.b32.xlu0 %v7248, 99
    %v7254 = vpop.permute.xlu0 %7253
    %v7255 = vsel %vm474, %v7252, %v7254
    %v7258 = vmax.f32 %v7234, %v7255
    %v7259 = vmax.f32 %v7235, %v7254
    %v7262 = vcombine.low %v7258, %v7259
    %v7264 = vunpack.c.l.s4 1966171168
    %v7265 = vunpack.c.0.s8 %v7264
    %v7266 = vlaneseq
    %v7267 = vshrl.u32 %v7266, 7
    %v7268 = vsub.s32 %v7265, %v7267
    %v7269 = vrot.slane %v7262, %v7268
    %v7271 = vunpack.c.l.s4 1966171168
    %v7272 = vunpack.c.0.s8 %v7271
    %v7273 = vlaneseq
    %v7274 = vshrl.u32 %v7273, 7
    %v7275 = vsub.s32 %v7272, %v7274
    %v7276 = vrot.slane %v7269, %v7275
    %s7278 = scalar_lea.vmem [#allocation5], 1
    %7279 = vst.msk [vmem:[%s7278] ss:$2 sm:$0x3] %vm3634, %v7276
    %v7280 = vcombine.high %v7269, %v7269
    %v7282 = vunpack.c.l.s4 1966171168
    %v7283 = vunpack.c.0.s8 %v7282
    %v7284 = vlaneseq
    %v7285 = vshrl.u32 %v7284, 7
    %v7286 = vsub.s32 %v7283, %v7285
    %v7287 = vrot.slane %v7280, %v7286
    %7288 = vrot.lane.b32.xlu0 %v7287, 68
    %v7289 = vpop.permute.xlu0 %7288
    %v7290 = vrot.slane %v7289, 7
    %v7291 = vsel %vm3039, %v7290, %v7289
    %s7293 = scalar_lea.vmem [#allocation5], 3
    %7294 = vst.msk [vmem:[%s7293] ss:$2 sm:$0x7] %vm3651, %v7291
    %v7295 = vcombine.high %v7276, %v7276
    %7296 = vrot.lane.b32.xlu0 %v7295, 8
    %v7297 = vpop.permute.xlu0 %7296
    %v7298 = vrot.slane %v7297, 7
    %v7299 = vsel %vm3658, %v7298, %v7297
    %s7301 = scalar_lea.vmem [#allocation5], 7
    %7302 = vst.msk [vmem:[%s7301] ss:$2 sm:$0x3] %vm3663, %v7299
    %v7303 = vcombine.high %v7287, %v7287
    %7304 = vrot.lane.b32.xlu0 %v7303, 76
    %v7305 = vpop.permute.xlu0 %7304
    %v7306 = vrot.slane %v7305, 7
    %v7307 = vsel %vm3670, %v7306, %v7305
    %s7309 = scalar_lea.vmem [#allocation5], 9
    %7310 = vst.msk [vmem:[%s7309] ss:$2 sm:$0x7] %vm3675, %v7307
    %v7311 = vcombine.high %v7258, %v7259
    %v7313 = vunpack.c.l.s4 1966171168
    %v7314 = vunpack.c.0.s8 %v7313
    %v7315 = vlaneseq
    %v7316 = vshrl.u32 %v7315, 7
    %v7317 = vsub.s32 %v7314, %v7316
    %v7318 = vrot.slane %v7311, %v7317
    %v7320 = vunpack.c.l.s4 1966171168
    %v7321 = vunpack.c.0.s8 %v7320
    %v7322 = vlaneseq
    %v7323 = vshrl.u32 %v7322, 7
    %v7324 = vsub.s32 %v7321, %v7323
    %v7325 = vrot.slane %v7318, %v7324
    %7326 = vrot.lane.b32.xlu0 %v7325, 16
    %v7327 = vpop.permute.xlu0 %7326
    %v7328 = vrot.slane %v7327, 7
    %v7329 = vsel %vm1178, %v7328, %v7327
    %s7331 = scalar_lea.vmem [#allocation5], 13
    %7332 = vst.msk [vmem:[%s7331] ss:$2 sm:$0x3] %vm3700, %v7329
    %v7333 = vcombine.high %v7318, %v7318
    %v7335 = vunpack.c.l.s4 1966171168
    %v7336 = vunpack.c.0.s8 %v7335
    %v7337 = vlaneseq
    %v7338 = vshrl.u32 %v7337, 7
    %v7339 = vsub.s32 %v7336, %v7338
    %v7340 = vrot.slane %v7333, %v7339
    %7341 = vrot.lane.b32.xlu0 %v7340, 84
    %v7342 = vpop.permute.xlu0 %7341
    %v7343 = vrot.slane %v7342, 7
    %v7344 = vsel %vm3714, %v7343, %v7342
    %s7346 = scalar_lea.vmem [#allocation5], 15
    %7347 = vst.msk [vmem:[%s7346] ss:$2 sm:$0x7] %vm3719, %v7344
    %v7348 = vcombine.high %v7325, %v7325
    %7349 = vrot.lane.b32.xlu0 %v7348, 24
    %v7350 = vpop.permute.xlu0 %7349
    %v7351 = vrot.slane %v7350, 7
    %v7352 = vsel %vm3726, %v7351, %v7350
    %s7354 = scalar_lea.vmem [#allocation5], 19
    %7355 = vst.msk [vmem:[%s7354] ss:$2 sm:$0x3] %vm3731, %v7352
    %v7356 = vcombine.high %v7340, %v7340
    %7357 = vrot.lane.b32.xlu0 %v7356, 92
    %v7358 = vpop.permute.xlu0 %7357
    %v7359 = vrot.slane %v7358, 7
    %v7360 = vsel %vm3738, %v7359, %v7358
    %s7362 = scalar_lea.vmem [#allocation5], 21
    %7363 = vst.msk [vmem:[%s7362] ss:$2 sm:$0x7] %vm3743, %v7360
    %v7364 = vld [vmem:[#allocation5] sm:$0xff]
    %v7365 = vld [vmem:[#allocation5 + $0x8] sm:$0xff]
    %v7366 = vld [vmem:[#allocation5 + $0x10] sm:$0xff]
    %v7367 = vld [vmem:[#allocation5 + $0x18] sm:$0x3]
    %v7372 = vcombine.high %v7364, %v7364
    %v7374 = vunpack.c.l.s4 1983009808
    %v7375 = vunpack.c.0.s8 %v7374
    %v7376 = vlaneseq
    %v7377 = vshrl.u32 %v7376, 7
    %v7378 = vsub.s32 %v7375, %v7377
    %v7379 = vrot.slane %v7364, %v7378
    %v7381 = vunpack.c.l.s4 1983009808
    %v7382 = vunpack.c.0.s8 %v7381
    %v7383 = vlaneseq
    %v7384 = vshrl.u32 %v7383, 7
    %v7385 = vsub.s32 %v7382, %v7384
    %v7386 = vrot.slane %v7372, %v7385
    %v7387 = vcombine.high %v7379, %v7379
    %v7388 = vcombine.high %v7386, %v7386
    %v7389 = vcombine.high %v7365, %v7365
    %v7391 = vunpack.c.l.s4 1983009808
    %v7392 = vunpack.c.0.s8 %v7391
    %v7393 = vlaneseq
    %v7394 = vshrl.u32 %v7393, 7
    %v7395 = vsub.s32 %v7392, %v7394
    %v7396 = vrot.slane %v7365, %v7395
    %v7398 = vunpack.c.l.s4 1983009808
    %v7399 = vunpack.c.0.s8 %v7398
    %v7400 = vlaneseq
    %v7401 = vshrl.u32 %v7400, 7
    %v7402 = vsub.s32 %v7399, %v7401
    %v7403 = vrot.slane %v7389, %v7402
    %v7404 = vcombine.high %v7396, %v7396
    %v7405 = vcombine.high %v7403, %v7403
    %v7406 = vcombine.high %v7366, %v7366
    %v7408 = vunpack.c.l.s4 1983009808
    %v7409 = vunpack.c.0.s8 %v7408
    %v7410 = vlaneseq
    %v7411 = vshrl.u32 %v7410, 7
    %v7412 = vsub.s32 %v7409, %v7411
    %v7413 = vrot.slane %v7366, %v7412
    %v7415 = vunpack.c.l.s4 1983009808
    %v7416 = vunpack.c.0.s8 %v7415
    %v7417 = vlaneseq
    %v7418 = vshrl.u32 %v7417, 7
    %v7419 = vsub.s32 %v7416, %v7418
    %v7420 = vrot.slane %v7406, %v7419
    %v7421 = vcombine.high %v7413, %v7413
    %v7422 = vcombine.high %v7420, %v7420
    %v7424 = vunpack.c.l.s4 1983009808
    %v7425 = vunpack.c.0.s8 %v7424
    %v7426 = vlaneseq
    %v7427 = vshrl.u32 %v7426, 7
    %v7428 = vsub.s32 %v7425, %v7427
    %v7429 = vrot.slane %v7367, %v7428
    %v7443 = vpack.c.bf16 %v7379, %v7379
    %v7444 = vpack.c.bf16 %v7387, %v7387
    %v7445 = vpack.c.bf16 %v7386, %v7386
    %v7446 = vpack.c.bf16 %v7388, %v7388
    %v7447 = vpack.c.bf16 %v7396, %v7396
    %v7448 = vpack.c.bf16 %v7404, %v7404
    %v7449 = vpack.c.bf16 %v7403, %v7403
    %v7450 = vpack.c.bf16 %v7405, %v7405
    %v7451 = vpack.c.bf16 %v7413, %v7413
    %v7452 = vpack.c.bf16 %v7421, %v7421
    %v7453 = vpack.c.bf16 %v7420, %v7420
    %v7454 = vpack.c.bf16 %v7422, %v7422
    %v7455 = vpack.c.bf16 %v7429, %v7429
    %v7456 = vld [vmem:[%s9] sm:$0xf]
    %v7457 = vld [vmem:[%s9 + $0x4] sm:$0xf]
    %v7458 = vld [vmem:[%s9 + $0x8] sm:$0xf]
    %v7459 = vld [vmem:[%s9 + $0xc] sm:$0xf]
    %v7460 = vld [vmem:[%s9 + $0x10] sm:$0xf]
    %v7461 = vld [vmem:[%s9 + $0x14] sm:$0xf]
    %v7462 = vld [vmem:[%s9 + $0x18] sm:$0xf]
    %v7463 = vld [vmem:[%s9 + $0x1c] sm:$0xf]
    %v7464 = vld [vmem:[%s9 + $0x20] sm:$0xf]
    %v7465 = vld [vmem:[%s9 + $0x24] sm:$0xf]
    %v7466 = vld [vmem:[%s9 + $0x28] sm:$0xf]
    %v7467 = vld [vmem:[%s9 + $0x2c] sm:$0xf]
    %v7468 = vld [vmem:[%s9 + $0x30] sm:$0xf]
    %v7469 = vld [vmem:[%s9 + $0x34] sm:$0xf]
    %v7470 = vld [vmem:[%s9 + $0x38] sm:$0xf]
    %v7471 = vld [vmem:[%s9 + $0x3c] sm:$0xf]
    %v7472 = vld [vmem:[%s9 + $0x40] sm:$0xf]
    %v7473 = vld [vmem:[%s9 + $0x44] sm:$0xf]
    %v7474 = vld [vmem:[%s9 + $0x48] sm:$0xf]
    %v7475 = vld [vmem:[%s9 + $0x4c] sm:$0xf]
    %v7476 = vld [vmem:[%s9 + $0x50] sm:$0xf]
    %v7477 = vld [vmem:[%s9 + $0x54] sm:$0xf]
    %v7478 = vld [vmem:[%s9 + $0x58] sm:$0xf]
    %v7479 = vld [vmem:[%s9 + $0x5c] sm:$0xf]
    %v7480 = vld [vmem:[%s9 + $0x60] sm:$0xf]
    %v7481 = vld [vmem:[%s9 + $0x64] sm:$0xf]
    %v7482 = vld [vmem:[%s9 + $0x68] sm:$0xf]
    %v7483 = vld [vmem:[%s9 + $0x6c] sm:$0xf]
    %v7484 = vld [vmem:[%s9 + $0x70] sm:$0xf]
    %v7485 = vld [vmem:[%s9 + $0x74] sm:$0xf]
    %v7486 = vld [vmem:[%s9 + $0x78] sm:$0xf]
    %v7487 = vld [vmem:[%s9 + $0x7c] sm:$0xf]
    %v7488 = vld [vmem:[%s9 + $0x80] sm:$0xf]
    %v7489 = vld [vmem:[%s9 + $0x84] sm:$0xf]
    %v7490 = vld [vmem:[%s9 + $0x88] sm:$0xf]
    %v7491 = vld [vmem:[%s9 + $0x8c] sm:$0xf]
    %v7492 = vld [vmem:[%s9 + $0x90] sm:$0xf]
    %v7493 = vld [vmem:[%s9 + $0x94] sm:$0xf]
    %v7494 = vld [vmem:[%s9 + $0x98] sm:$0xf]
    %v7495 = vld [vmem:[%s9 + $0x9c] sm:$0xf]
    %v7496 = vld [vmem:[%s9 + $0xa0] sm:$0xf]
    %v7497 = vld [vmem:[%s9 + $0xa4] sm:$0xf]
    %v7498 = vld [vmem:[%s9 + $0xa8] sm:$0xf]
    %v7499 = vld [vmem:[%s9 + $0xac] sm:$0xf]
    %v7500 = vld [vmem:[%s9 + $0xb0] sm:$0xf]
    %v7501 = vld [vmem:[%s9 + $0xb4] sm:$0xf]
    %v7502 = vld [vmem:[%s9 + $0xb8] sm:$0xf]
    %v7503 = vld [vmem:[%s9 + $0xbc] sm:$0xf]
    %v7504 = vld [vmem:[%s9 + $0xc0] sm:$0xf]
    %v7505 = vld [vmem:[%s9 + $0xc4] sm:$0xf]
    %v7506 = vld [vmem:[%s9 + $0xc8] sm:$0xf]
    %v7507 = vld [vmem:[%s9 + $0xcc] sm:$0xf]
    %v7508 = vld [vmem:[%s9 + $0xd0] sm:$0xf]
    %v7509 = vld [vmem:[%s9 + $0xd4] sm:$0xf]
    %v7510 = vld [vmem:[%s9 + $0xd8] sm:$0xf]
    %v7511 = vld [vmem:[%s9 + $0xdc] sm:$0xf]
    %v7512 = vld [vmem:[%s9 + $0xe0] sm:$0xf]
    %v7513 = vld [vmem:[%s9 + $0xe4] sm:$0xf]
    %v7514 = vld [vmem:[%s9 + $0xe8] sm:$0xf]
    %v7515 = vld [vmem:[%s9 + $0xec] sm:$0xf]
    %v7516 = vld [vmem:[%s9 + $0xf0] sm:$0xf]
    %v7517 = vld [vmem:[%s9 + $0xf4] sm:$0xf]
    %v7518 = vld [vmem:[%s9 + $0xf8] sm:$0xf]
    %v7519 = vld [vmem:[%s9 + $0xfc] sm:$0xf]
    %v7520 = vld [vmem:[%s9 + $0x100] sm:$0xf]
    %v7521 = vld [vmem:[%s9 + $0x104] sm:$0xf]
    %v7522 = vld [vmem:[%s9 + $0x108] sm:$0xf]
    %v7523 = vld [vmem:[%s9 + $0x10c] sm:$0xf]
    %v7524 = vld [vmem:[%s9 + $0x110] sm:$0xf]
    %v7525 = vld [vmem:[%s9 + $0x114] sm:$0xf]
    %v7526 = vld [vmem:[%s9 + $0x118] sm:$0xf]
    %v7527 = vld [vmem:[%s9 + $0x11c] sm:$0xf]
    %v7528 = vld [vmem:[%s9 + $0x120] sm:$0xf]
    %v7529 = vld [vmem:[%s9 + $0x124] sm:$0xf]
    %v7530 = vld [vmem:[%s9 + $0x128] sm:$0xf]
    %v7531 = vld [vmem:[%s9 + $0x12c] sm:$0xf]
    %v7532 = vld [vmem:[%s9 + $0x130] sm:$0xf]
    %v7533 = vld [vmem:[%s9 + $0x134] sm:$0xf]
    %v7534 = vld [vmem:[%s9 + $0x138] sm:$0xf]
    %v7535 = vld [vmem:[%s9 + $0x13c] sm:$0xf]
    %v7536 = vld [vmem:[%s9 + $0x140] sm:$0xf]
    %v7537 = vld [vmem:[%s9 + $0x144] sm:$0xf]
    %v7538 = vld [vmem:[%s9 + $0x148] sm:$0xf]
    %v7539 = vld [vmem:[%s9 + $0x14c] sm:$0xf]
    %v7540 = vld [vmem:[%s9 + $0x150] sm:$0xf]
    %v7541 = vld [vmem:[%s9 + $0x154] sm:$0xf]
    %v7542 = vld [vmem:[%s9 + $0x158] sm:$0xf]
    %v7543 = vld [vmem:[%s9 + $0x15c] sm:$0xf]
    %v7544 = vld [vmem:[%s9 + $0x160] sm:$0xf]
    %v7545 = vld [vmem:[%s9 + $0x164] sm:$0xf]
    %v7546 = vld [vmem:[%s9 + $0x168] sm:$0xf]
    %v7547 = vld [vmem:[%s9 + $0x16c] sm:$0xf]
    %v7548 = vld [vmem:[%s9 + $0x170] sm:$0xf]
    %v7549 = vld [vmem:[%s9 + $0x174] sm:$0xf]
    %v7550 = vld [vmem:[%s9 + $0x178] sm:$0xf]
    %v7551 = vld [vmem:[%s9 + $0x17c] sm:$0xf]
    %v7552 = vld [vmem:[%s9 + $0x180] sm:$0xf]
    %v7553 = vld [vmem:[%s9 + $0x184] sm:$0xf]
    %v7554 = vld [vmem:[%s9 + $0x188] sm:$0xf]
    %v7555 = vld [vmem:[%s9 + $0x18c] sm:$0xf]
    %v7556 = vld [vmem:[%s9 + $0x190] sm:$0xf]
    %v7557 = vld [vmem:[%s9 + $0x194] sm:$0xf]
    %v7558 = vld [vmem:[%s9 + $0x198] sm:$0xf]
    %v7559 = vld [vmem:[%s9 + $0x19c] sm:$0xf]
    %v7560 = vld [vmem:[%s9 + $0x1a0] sm:$0xf]
    %v7561 = vld [vmem:[%s9 + $0x1a4] sm:$0xf]
    %v7562 = vld [vmem:[%s9 + $0x1a8] sm:$0xf]
    %v7563 = vld [vmem:[%s9 + $0x1ac] sm:$0xf]
    %v7564 = vld [vmem:[%s9 + $0x1b0] sm:$0xf]
    %v7565 = vld [vmem:[%s9 + $0x1b4] sm:$0xf]
    %v7566 = vld [vmem:[%s9 + $0x1b8] sm:$0xf]
    %v7567 = vld [vmem:[%s9 + $0x1bc] sm:$0xf]
    %v7568 = vld [vmem:[%s9 + $0x1c0] sm:$0xf]
    %v7569 = vld [vmem:[%s9 + $0x1c4] sm:$0xf]
    %v7570 = vld [vmem:[%s9 + $0x1c8] sm:$0xf]
    %v7571 = vld [vmem:[%s9 + $0x1cc] sm:$0xf]
    %v7572 = vld [vmem:[%s9 + $0x1d0] sm:$0xf]
    %v7573 = vld [vmem:[%s9 + $0x1d4] sm:$0xf]
    %v7574 = vld [vmem:[%s9 + $0x1d8] sm:$0xf]
    %v7575 = vld [vmem:[%s9 + $0x1dc] sm:$0xf]
    %v7576 = vld [vmem:[%s9 + $0x1e0] sm:$0xf]
    %v7577 = vld [vmem:[%s9 + $0x1e4] sm:$0xf]
    %v7578 = vld [vmem:[%s9 + $0x1e8] sm:$0xf]
    %v7579 = vld [vmem:[%s9 + $0x1ec] sm:$0xf]
    %v7580 = vld [vmem:[%s9 + $0x1f0] sm:$0xf]
    %v7581 = vld [vmem:[%s9 + $0x1f4] sm:$0xf]
    %v7582 = vld [vmem:[%s9 + $0x1f8] sm:$0xf]
    %v7583 = vld [vmem:[%s9 + $0x1fc] sm:$0xf]
    %v7584 = vld [vmem:[%s9 + $0x200] sm:$0xf]
    %v7585 = vld [vmem:[%s9 + $0x204] sm:$0xf]
    %v7586 = vld [vmem:[%s9 + $0x208] sm:$0xf]
    %v7587 = vld [vmem:[%s9 + $0x20c] sm:$0xf]
    %v7588 = vld [vmem:[%s9 + $0x210] sm:$0xf]
    %v7589 = vld [vmem:[%s9 + $0x214] sm:$0xf]
    %v7590 = vld [vmem:[%s9 + $0x218] sm:$0xf]
    %v7591 = vld [vmem:[%s9 + $0x21c] sm:$0xf]
    %v7592 = vld [vmem:[%s9 + $0x220] sm:$0xf]
    %v7593 = vld [vmem:[%s9 + $0x224] sm:$0xf]
    %v7594 = vld [vmem:[%s9 + $0x228] sm:$0xf]
    %v7595 = vld [vmem:[%s9 + $0x22c] sm:$0xf]
    %v7596 = vld [vmem:[%s9 + $0x230] sm:$0xf]
    %v7597 = vld [vmem:[%s9 + $0x234] sm:$0xf]
    %v7598 = vld [vmem:[%s9 + $0x238] sm:$0xf]
    %v7599 = vld [vmem:[%s9 + $0x23c] sm:$0xf]
    %v7600 = vld [vmem:[%s9 + $0x240] sm:$0xf]
    %v7601 = vld [vmem:[%s9 + $0x244] sm:$0xf]
    %v7602 = vld [vmem:[%s9 + $0x248] sm:$0xf]
    %v7603 = vld [vmem:[%s9 + $0x24c] sm:$0xf]
    %v7604 = vld [vmem:[%s9 + $0x250] sm:$0xf]
    %v7605 = vld [vmem:[%s9 + $0x254] sm:$0xf]
    %v7606 = vld [vmem:[%s9 + $0x258] sm:$0xf]
    %v7607 = vld [vmem:[%s9 + $0x25c] sm:$0xf]
    %v7608 = vld [vmem:[%s9 + $0x260] sm:$0xf]
    %v7609 = vld [vmem:[%s9 + $0x264] sm:$0xf]
    %v7610 = vld [vmem:[%s9 + $0x268] sm:$0xf]
    %v7611 = vld [vmem:[%s9 + $0x26c] sm:$0xf]
    %v7612 = vld [vmem:[%s9 + $0x270] sm:$0xf]
    %v7613 = vld [vmem:[%s9 + $0x274] sm:$0xf]
    %v7614 = vld [vmem:[%s9 + $0x278] sm:$0xf]
    %v7615 = vld [vmem:[%s9 + $0x27c] sm:$0xf]
    %v7616 = vld [vmem:[%s9 + $0x280] sm:$0xf]
    %v7617 = vld [vmem:[%s9 + $0x284] sm:$0xf]
    %v7618 = vld [vmem:[%s9 + $0x288] sm:$0xf]
    %v7619 = vld [vmem:[%s9 + $0x28c] sm:$0xf]
    %v7620 = vld [vmem:[%s9 + $0x290] sm:$0xf]
    %v7621 = vld [vmem:[%s9 + $0x294] sm:$0xf]
    %v7622 = vld [vmem:[%s9 + $0x298] sm:$0xf]
    %v7623 = vld [vmem:[%s9 + $0x29c] sm:$0xf]
    %v7624 = vld [vmem:[%s9 + $0x2a0] sm:$0xf]
    %v7625 = vld [vmem:[%s9 + $0x2a4] sm:$0xf]
    %v7626 = vld [vmem:[%s9 + $0x2a8] sm:$0xf]
    %v7627 = vld [vmem:[%s9 + $0x2ac] sm:$0xf]
    %v7628 = vld [vmem:[%s9 + $0x2b0] sm:$0xf]
    %v7629 = vld [vmem:[%s9 + $0x2b4] sm:$0xf]
    %v7630 = vld [vmem:[%s9 + $0x2b8] sm:$0xf]
    %v7631 = vld [vmem:[%s9 + $0x2bc] sm:$0xf]
    %v7632 = vld [vmem:[%s9 + $0x2c0] sm:$0xf]
    %v7633 = vld [vmem:[%s9 + $0x2c4] sm:$0xf]
    %v7634 = vld [vmem:[%s9 + $0x2c8] sm:$0xf]
    %v7635 = vld [vmem:[%s9 + $0x2cc] sm:$0xf]
    %v7636 = vld [vmem:[%s9 + $0x2d0] sm:$0xf]
    %v7637 = vld [vmem:[%s9 + $0x2d4] sm:$0xf]
    %v7638 = vld [vmem:[%s9 + $0x2d8] sm:$0xf]
    %v7639 = vld [vmem:[%s9 + $0x2dc] sm:$0xf]
    %v7640 = vld [vmem:[%s9 + $0x2e0] sm:$0xf]
    %v7641 = vld [vmem:[%s9 + $0x2e4] sm:$0xf]
    %v7642 = vld [vmem:[%s9 + $0x2e8] sm:$0xf]
    %v7643 = vld [vmem:[%s9 + $0x2ec] sm:$0xf]
    %v7644 = vld [vmem:[%s9 + $0x2f0] sm:$0xf]
    %v7645 = vld [vmem:[%s9 + $0x2f4] sm:$0xf]
    %v7646 = vld [vmem:[%s9 + $0x2f8] sm:$0xf]
    %v7647 = vld [vmem:[%s9 + $0x2fc] sm:$0xf]
    %v7648 = vld [vmem:[%s9 + $0x300] sm:$0xf]
    %v7649 = vld [vmem:[%s9 + $0x304] sm:$0xf]
    %v7650 = vld [vmem:[%s9 + $0x308] sm:$0xf]
    %v7651 = vld [vmem:[%s9 + $0x30c] sm:$0xf]
    %v7652 = vld [vmem:[%s10] sm:$0x1]
    %v7654 = vlaneseq
    %v7655 = vshrl.u32 %v7654, 7
    %v7656 = vsub.s32 0, %v7655
    %v7657 = vrot.slane %v7652, %v7656
    %v7855 = vunpack.c.l.b16 %v7456
    %v7856 = vunpack.c.l.b16 %v7457
    %v7857 = vunpack.c.l.b16 %v7458
    %v7858 = vunpack.c.l.b16 %v7459
    %v7859 = vunpack.c.l.b16 %v7460
    %v7860 = vunpack.c.l.b16 %v7461
    %v7861 = vunpack.c.l.b16 %v7462
    %v7862 = vunpack.c.l.b16 %v7463
    %v7863 = vunpack.c.l.b16 %v7464
    %v7864 = vunpack.c.l.b16 %v7465
    %v7865 = vunpack.c.l.b16 %v7466
    %v7866 = vunpack.c.l.b16 %v7467
    %v7867 = vunpack.c.l.b16 %v7468
    %v7868 = vunpack.c.l.b16 %v7469
    %v7869 = vunpack.c.l.b16 %v7470
    %v7870 = vunpack.c.l.b16 %v7471
    %v7871 = vunpack.c.l.b16 %v7472
    %v7872 = vunpack.c.l.b16 %v7473
    %v7873 = vunpack.c.l.b16 %v7474
    %v7874 = vunpack.c.l.b16 %v7475
    %v7875 = vunpack.c.l.b16 %v7476
    %v7876 = vunpack.c.l.b16 %v7477
    %v7877 = vunpack.c.l.b16 %v7478
    %v7878 = vunpack.c.l.b16 %v7479
    %v7879 = vunpack.c.l.b16 %v7480
    %v7880 = vunpack.c.l.b16 %v7481
    %v7881 = vunpack.c.l.b16 %v7482
    %v7882 = vunpack.c.l.b16 %v7483
    %v7883 = vunpack.c.l.b16 %v7484
    %v7884 = vunpack.c.l.b16 %v7485
    %v7885 = vunpack.c.l.b16 %v7486
    %v7886 = vunpack.c.l.b16 %v7487
    %v7887 = vunpack.c.l.b16 %v7488
    %v7888 = vunpack.c.l.b16 %v7489
    %v7889 = vunpack.c.l.b16 %v7490
    %v7890 = vunpack.c.l.b16 %v7491
    %v7891 = vunpack.c.l.b16 %v7492
    %v7892 = vunpack.c.l.b16 %v7493
    %v7893 = vunpack.c.l.b16 %v7494
    %v7894 = vunpack.c.l.b16 %v7495
    %v7895 = vunpack.c.l.b16 %v7496
    %v7896 = vunpack.c.l.b16 %v7497
    %v7897 = vunpack.c.l.b16 %v7498
    %v7898 = vunpack.c.l.b16 %v7499
    %v7899 = vunpack.c.l.b16 %v7500
    %v7900 = vunpack.c.l.b16 %v7501
    %v7901 = vunpack.c.l.b16 %v7502
    %v7902 = vunpack.c.l.b16 %v7503
    %v7903 = vunpack.c.l.b16 %v7504
    %v7904 = vunpack.c.l.b16 %v7505
    %v7905 = vunpack.c.l.b16 %v7506
    %v7906 = vunpack.c.l.b16 %v7507
    %v7907 = vunpack.c.l.b16 %v7508
    %v7908 = vunpack.c.l.b16 %v7509
    %v7909 = vunpack.c.l.b16 %v7510
    %v7910 = vunpack.c.l.b16 %v7511
    %v7911 = vunpack.c.l.b16 %v7512
    %v7912 = vunpack.c.l.b16 %v7513
    %v7913 = vunpack.c.l.b16 %v7514
    %v7914 = vunpack.c.l.b16 %v7515
    %v7915 = vunpack.c.l.b16 %v7516
    %v7916 = vunpack.c.l.b16 %v7517
    %v7917 = vunpack.c.l.b16 %v7518
    %v7918 = vunpack.c.l.b16 %v7519
    %v7919 = vunpack.c.l.b16 %v7520
    %v7920 = vunpack.c.l.b16 %v7521
    %v7921 = vunpack.c.l.b16 %v7522
    %v7922 = vunpack.c.l.b16 %v7523
    %v7923 = vunpack.c.l.b16 %v7524
    %v7924 = vunpack.c.l.b16 %v7525
    %v7925 = vunpack.c.l.b16 %v7526
    %v7926 = vunpack.c.l.b16 %v7527
    %v7927 = vunpack.c.l.b16 %v7528
    %v7928 = vunpack.c.l.b16 %v7529
    %v7929 = vunpack.c.l.b16 %v7530
    %v7930 = vunpack.c.l.b16 %v7531
    %v7931 = vunpack.c.l.b16 %v7532
    %v7932 = vunpack.c.l.b16 %v7533
    %v7933 = vunpack.c.l.b16 %v7534
    %v7934 = vunpack.c.l.b16 %v7535
    %v7935 = vunpack.c.l.b16 %v7536
    %v7936 = vunpack.c.l.b16 %v7537
    %v7937 = vunpack.c.l.b16 %v7538
    %v7938 = vunpack.c.l.b16 %v7539
    %v7939 = vunpack.c.l.b16 %v7540
    %v7940 = vunpack.c.l.b16 %v7541
    %v7941 = vunpack.c.l.b16 %v7542
    %v7942 = vunpack.c.l.b16 %v7543
    %v7943 = vunpack.c.l.b16 %v7544
    %v7944 = vunpack.c.l.b16 %v7545
    %v7945 = vunpack.c.l.b16 %v7546
    %v7946 = vunpack.c.l.b16 %v7547
    %v7947 = vunpack.c.l.b16 %v7548
    %v7948 = vunpack.c.l.b16 %v7549
    %v7949 = vunpack.c.l.b16 %v7550
    %v7950 = vunpack.c.l.b16 %v7551
    %v7951 = vunpack.c.l.b16 %v7552
    %v7952 = vunpack.c.l.b16 %v7553
    %v7953 = vunpack.c.l.b16 %v7554
    %v7954 = vunpack.c.l.b16 %v7555
    %v7955 = vunpack.c.l.b16 %v7556
    %v7956 = vunpack.c.l.b16 %v7557
    %v7957 = vunpack.c.l.b16 %v7558
    %v7958 = vunpack.c.l.b16 %v7559
    %v7959 = vunpack.c.l.b16 %v7560
    %v7960 = vunpack.c.l.b16 %v7561
    %v7961 = vunpack.c.l.b16 %v7562
    %v7962 = vunpack.c.l.b16 %v7563
    %v7963 = vunpack.c.l.b16 %v7564
    %v7964 = vunpack.c.l.b16 %v7565
    %v7965 = vunpack.c.l.b16 %v7566
    %v7966 = vunpack.c.l.b16 %v7567
    %v7967 = vunpack.c.l.b16 %v7568
    %v7968 = vunpack.c.l.b16 %v7569
    %v7969 = vunpack.c.l.b16 %v7570
    %v7970 = vunpack.c.l.b16 %v7571
    %v7971 = vunpack.c.l.b16 %v7572
    %v7972 = vunpack.c.l.b16 %v7573
    %v7973 = vunpack.c.l.b16 %v7574
    %v7974 = vunpack.c.l.b16 %v7575
    %v7975 = vunpack.c.l.b16 %v7576
    %v7976 = vunpack.c.l.b16 %v7577
    %v7977 = vunpack.c.l.b16 %v7578
    %v7978 = vunpack.c.l.b16 %v7579
    %v7979 = vunpack.c.l.b16 %v7580
    %v7980 = vunpack.c.l.b16 %v7581
    %v7981 = vunpack.c.l.b16 %v7582
    %v7982 = vunpack.c.l.b16 %v7583
    %v7983 = vunpack.c.l.b16 %v7584
    %v7984 = vunpack.c.l.b16 %v7585
    %v7985 = vunpack.c.l.b16 %v7586
    %v7986 = vunpack.c.l.b16 %v7587
    %v7987 = vunpack.c.l.b16 %v7588
    %v7988 = vunpack.c.l.b16 %v7589
    %v7989 = vunpack.c.l.b16 %v7590
    %v7990 = vunpack.c.l.b16 %v7591
    %v7991 = vunpack.c.l.b16 %v7592
    %v7992 = vunpack.c.l.b16 %v7593
    %v7993 = vunpack.c.l.b16 %v7594
    %v7994 = vunpack.c.l.b16 %v7595
    %v7995 = vunpack.c.l.b16 %v7596
    %v7996 = vunpack.c.l.b16 %v7597
    %v7997 = vunpack.c.l.b16 %v7598
    %v7998 = vunpack.c.l.b16 %v7599
    %v7999 = vunpack.c.l.b16 %v7600
    %v8000 = vunpack.c.l.b16 %v7601
    %v8001 = vunpack.c.l.b16 %v7602
    %v8002 = vunpack.c.l.b16 %v7603
    %v8003 = vunpack.c.l.b16 %v7604
    %v8004 = vunpack.c.l.b16 %v7605
    %v8005 = vunpack.c.l.b16 %v7606
    %v8006 = vunpack.c.l.b16 %v7607
    %v8007 = vunpack.c.l.b16 %v7608
    %v8008 = vunpack.c.l.b16 %v7609
    %v8009 = vunpack.c.l.b16 %v7610
    %v8010 = vunpack.c.l.b16 %v7611
    %v8011 = vunpack.c.l.b16 %v7612
    %v8012 = vunpack.c.l.b16 %v7613
    %v8013 = vunpack.c.l.b16 %v7614
    %v8014 = vunpack.c.l.b16 %v7615
    %v8015 = vunpack.c.l.b16 %v7616
    %v8016 = vunpack.c.l.b16 %v7617
    %v8017 = vunpack.c.l.b16 %v7618
    %v8018 = vunpack.c.l.b16 %v7619
    %v8019 = vunpack.c.l.b16 %v7620
    %v8020 = vunpack.c.l.b16 %v7621
    %v8021 = vunpack.c.l.b16 %v7622
    %v8022 = vunpack.c.l.b16 %v7623
    %v8023 = vunpack.c.l.b16 %v7624
    %v8024 = vunpack.c.l.b16 %v7625
    %v8025 = vunpack.c.l.b16 %v7626
    %v8026 = vunpack.c.l.b16 %v7627
    %v8027 = vunpack.c.l.b16 %v7628
    %v8028 = vunpack.c.l.b16 %v7629
    %v8029 = vunpack.c.l.b16 %v7630
    %v8030 = vunpack.c.l.b16 %v7631
    %v8031 = vunpack.c.l.b16 %v7632
    %v8032 = vunpack.c.l.b16 %v7633
    %v8033 = vunpack.c.l.b16 %v7634
    %v8034 = vunpack.c.l.b16 %v7635
    %v8035 = vunpack.c.l.b16 %v7636
    %v8036 = vunpack.c.l.b16 %v7637
    %v8037 = vunpack.c.l.b16 %v7638
    %v8038 = vunpack.c.l.b16 %v7639
    %v8039 = vunpack.c.l.b16 %v7640
    %v8040 = vunpack.c.l.b16 %v7641
    %v8041 = vunpack.c.l.b16 %v7642
    %v8042 = vunpack.c.l.b16 %v7643
    %v8043 = vunpack.c.l.b16 %v7644
    %v8044 = vunpack.c.l.b16 %v7645
    %v8045 = vunpack.c.l.b16 %v7646
    %v8046 = vunpack.c.l.b16 %v7647
    %v8047 = vunpack.c.l.b16 %v7648
    %v8048 = vunpack.c.l.b16 %v7649
    %v8049 = vunpack.c.l.b16 %v7650
    %v8050 = vunpack.c.l.b16 %v7651
    %v8051 = vpack.c.b16 %v7856, %v7855
    %v8052 = vpack.c.b16 %v7858, %v7857
    %v8053 = vpack.c.b16 %v7860, %v7859
    %v8054 = vpack.c.b16 %v7862, %v7861
    %v8055 = vpack.c.b16 %v7864, %v7863
    %v8056 = vpack.c.b16 %v7866, %v7865
    %v8057 = vpack.c.b16 %v7868, %v7867
    %v8058 = vpack.c.b16 %v7870, %v7869
    %v8059 = vpack.c.b16 %v7872, %v7871
    %v8060 = vpack.c.b16 %v7874, %v7873
    %v8061 = vpack.c.b16 %v7876, %v7875
    %v8062 = vpack.c.b16 %v7878, %v7877
    %v8063 = vpack.c.b16 %v7880, %v7879
    %v8064 = vpack.c.b16 %v7882, %v7881
    %v8065 = vpack.c.b16 %v7884, %v7883
    %v8066 = vpack.c.b16 %v7886, %v7885
    %v8067 = vpack.c.b16 %v7888, %v7887
    %v8068 = vpack.c.b16 %v7890, %v7889
    %v8069 = vpack.c.b16 %v7892, %v7891
    %v8070 = vpack.c.b16 %v7894, %v7893
    %v8071 = vpack.c.b16 %v7896, %v7895
    %v8072 = vpack.c.b16 %v7898, %v7897
    %v8073 = vpack.c.b16 %v7900, %v7899
    %v8074 = vpack.c.b16 %v7902, %v7901
    %v8075 = vpack.c.b16 %v7904, %v7903
    %v8076 = vpack.c.b16 %v7906, %v7905
    %v8077 = vpack.c.b16 %v7908, %v7907
    %v8078 = vpack.c.b16 %v7910, %v7909
    %v8079 = vpack.c.b16 %v7912, %v7911
    %v8080 = vpack.c.b16 %v7914, %v7913
    %v8081 = vpack.c.b16 %v7916, %v7915
    %v8082 = vpack.c.b16 %v7918, %v7917
    %v8083 = vpack.c.b16 %v7920, %v7919
    %v8084 = vpack.c.b16 %v7922, %v7921
    %v8085 = vpack.c.b16 %v7924, %v7923
    %v8086 = vpack.c.b16 %v7926, %v7925
    %v8087 = vpack.c.b16 %v7928, %v7927
    %v8088 = vpack.c.b16 %v7930, %v7929
    %v8089 = vpack.c.b16 %v7932, %v7931
    %v8090 = vpack.c.b16 %v7934, %v7933
    %v8091 = vpack.c.b16 %v7936, %v7935
    %v8092 = vpack.c.b16 %v7938, %v7937
    %v8093 = vpack.c.b16 %v7940, %v7939
    %v8094 = vpack.c.b16 %v7942, %v7941
    %v8095 = vpack.c.b16 %v7944, %v7943
    %v8096 = vpack.c.b16 %v7946, %v7945
    %v8097 = vpack.c.b16 %v7948, %v7947
    %v8098 = vpack.c.b16 %v7950, %v7949
    %v8099 = vpack.c.b16 %v7952, %v7951
    %v8100 = vpack.c.b16 %v7954, %v7953
    %v8101 = vpack.c.b16 %v7956, %v7955
    %v8102 = vpack.c.b16 %v7958, %v7957
    %v8103 = vpack.c.b16 %v7960, %v7959
    %v8104 = vpack.c.b16 %v7962, %v7961
    %v8105 = vpack.c.b16 %v7964, %v7963
    %v8106 = vpack.c.b16 %v7966, %v7965
    %v8107 = vpack.c.b16 %v7968, %v7967
    %v8108 = vpack.c.b16 %v7970, %v7969
    %v8109 = vpack.c.b16 %v7972, %v7971
    %v8110 = vpack.c.b16 %v7974, %v7973
    %v8111 = vpack.c.b16 %v7976, %v7975
    %v8112 = vpack.c.b16 %v7978, %v7977
    %v8113 = vpack.c.b16 %v7980, %v7979
    %v8114 = vpack.c.b16 %v7982, %v7981
    %v8115 = vpack.c.b16 %v7984, %v7983
    %v8116 = vpack.c.b16 %v7986, %v7985
    %v8117 = vpack.c.b16 %v7988, %v7987
    %v8118 = vpack.c.b16 %v7990, %v7989
    %v8119 = vpack.c.b16 %v7992, %v7991
    %v8120 = vpack.c.b16 %v7994, %v7993
    %v8121 = vpack.c.b16 %v7996, %v7995
    %v8122 = vpack.c.b16 %v7998, %v7997
    %v8123 = vpack.c.b16 %v8000, %v7999
    %v8124 = vpack.c.b16 %v8002, %v8001
    %v8125 = vpack.c.b16 %v8004, %v8003
    %v8126 = vpack.c.b16 %v8006, %v8005
    %v8127 = vpack.c.b16 %v8008, %v8007
    %v8128 = vpack.c.b16 %v8010, %v8009
    %v8129 = vpack.c.b16 %v8012, %v8011
    %v8130 = vpack.c.b16 %v8014, %v8013
    %v8131 = vpack.c.b16 %v8016, %v8015
    %v8132 = vpack.c.b16 %v8018, %v8017
    %v8133 = vpack.c.b16 %v8020, %v8019
    %v8134 = vpack.c.b16 %v8022, %v8021
    %v8135 = vpack.c.b16 %v8024, %v8023
    %v8136 = vpack.c.b16 %v8026, %v8025
    %v8137 = vpack.c.b16 %v8028, %v8027
    %v8138 = vpack.c.b16 %v8030, %v8029
    %v8139 = vpack.c.b16 %v8032, %v8031
    %v8140 = vpack.c.b16 %v8034, %v8033
    %v8141 = vpack.c.b16 %v8036, %v8035
    %v8142 = vpack.c.b16 %v8038, %v8037
    %v8143 = vpack.c.b16 %v8040, %v8039
    %v8144 = vpack.c.b16 %v8042, %v8041
    %v8145 = vpack.c.b16 %v8044, %v8043
    %v8146 = vpack.c.b16 %v8046, %v8045
    %v8147 = vpack.c.b16 %v8048, %v8047
    %v8148 = vpack.c.b16 %v8050, %v8049
    %vm8247 = vcmask 261120
    %v8249 = vsel %vm8247, %v7455, 0
    %8251 = vmatprep.subr.bf16.mxu0 0
    %8252 = vmatpush1.bf16.msra.mxu0 %v8051
    %8253 = vmatprep.subr.bf16.mxu0 0
    %8254 = vmatpush1.bf16.msra.mxu0 %v8052
    %8255 = vmatprep.subr.bf16.mxu0 0
    %8256 = vmatpush1.bf16.msra.mxu0 %v8053
    %8257 = vmatprep.subr.bf16.mxu0 0
    %8258 = vmatpush1.bf16.msra.mxu0 %v8054
    %8259 = vmatprep.subr.bf16.mxu0 0
    %8260 = vmatpush1.bf16.msra.mxu0 %v8055
    %8261 = vmatprep.subr.bf16.mxu0 0
    %8262 = vmatpush1.bf16.msra.mxu0 %v8056
    %8263 = vmatprep.subr.bf16.mxu0 0
    %8264 = vmatpush1.bf16.msra.mxu0 %v8057
    %8265 = vmatprep.subr.bf16.mxu0 0
    %8266 = vmatpush1.bf16.msra.mxu0 %v8058
    %8267 = vmatprep.subr.bf16.mxu0 0
    %8268 = vmatpush1.bf16.msra.mxu0 %v8059
    %8269 = vmatprep.subr.bf16.mxu0 0
    %8270 = vmatpush1.bf16.msra.mxu0 %v8060
    %8271 = vmatprep.subr.bf16.mxu0 0
    %8272 = vmatpush1.bf16.msra.mxu0 %v8061
    %8273 = vmatprep.subr.bf16.mxu0 0
    %8274 = vmatpush1.bf16.msra.mxu0 %v8062
    %8275 = vmatprep.subr.bf16.mxu0 0
    %8276 = vmatpush1.bf16.msra.mxu0 %v8063
    %8277 = vmatprep.subr.bf16.mxu0 0
    %8278 = vmatpush1.bf16.msra.mxu0 %v8064
    %8279 = vmatprep.subr.bf16.mxu0 0
    %8280 = vmatpush1.bf16.msra.mxu0 %v8065
    %8281 = vmatprep.subr.bf16.mxu0 0
    %8282 = vmatpush1.bf16.msra.mxu0 %v8066
    %8283 = vmatprep.mubr.bf16.mxu0 %v7444
    %8284 = vmatmul.mubr.bf16.gmra.mrb[0].mxu0 %v7443
    %v8285 = vpop.f32.mrb[0].mxu0
    %v8286 = vadd.f32 %v7657, %v8285
    %v8287 = vpop.f32.mrb[0].mxu0
    %v8288 = vpop.f32.mrb[0].mxu0
    %v8289 = vpop.f32.mrb[0].mxu0
    %8290 = vdwg.mxu0
    %8291 = vmatprep.subr.bf16.mxu0 0
    %8292 = vmatpush1.bf16.msra.mxu0 %v8067
    %8293 = vmatprep.subr.bf16.mxu0 0
    %8294 = vmatpush1.bf16.msra.mxu0 %v8068
    %8295 = vmatprep.subr.bf16.mxu0 0
    %8296 = vmatpush1.bf16.msra.mxu0 %v8069
    %8297 = vmatprep.subr.bf16.mxu0 0
    %8298 = vmatpush1.bf16.msra.mxu0 %v8070
    %8299 = vmatprep.subr.bf16.mxu0 0
    %8300 = vmatpush1.bf16.msra.mxu0 %v8071
    %8301 = vmatprep.subr.bf16.mxu0 0
    %8302 = vmatpush1.bf16.msra.mxu0 %v8072
    %8303 = vmatprep.subr.bf16.mxu0 0
    %8304 = vmatpush1.bf16.msra.mxu0 %v8073
    %8305 = vmatprep.subr.bf16.mxu0 0
    %8306 = vmatpush1.bf16.msra.mxu0 %v8074
    %8307 = vmatprep.subr.bf16.mxu0 0
    %8308 = vmatpush1.bf16.msra.mxu0 %v8075
    %8309 = vmatprep.subr.bf16.mxu0 0
    %8310 = vmatpush1.bf16.msra.mxu0 %v8076
    %8311 = vmatprep.subr.bf16.mxu0 0
    %8312 = vmatpush1.bf16.msra.mxu0 %v8077
    %8313 = vmatprep.subr.bf16.mxu0 0
    %8314 = vmatpush1.bf16.msra.mxu0 %v8078
    %8315 = vmatprep.subr.bf16.mxu0 0
    %8316 = vmatpush1.bf16.msra.mxu0 %v8079
    %8317 = vmatprep.subr.bf16.mxu0 0
    %8318 = vmatpush1.bf16.msra.mxu0 %v8080
    %8319 = vmatprep.subr.bf16.mxu0 0
    %8320 = vmatpush1.bf16.msra.mxu0 %v8081
    %8321 = vmatprep.subr.bf16.mxu0 0
    %8322 = vmatpush1.bf16.msra.mxu0 %v8082
    %8323 = vmatprep.mubr.bf16.mxu0 %v7446
    %8324 = vmatmul.mubr.bf16.gmra.mrb[0].mxu0 %v7445
    %v8325 = vpop.f32.mrb[0].mxu0
    %v8326 = vadd.f32 %v8286, %v8325
    %v8327 = vpop.f32.mrb[0].mxu0
    %v8328 = vpop.f32.mrb[0].mxu0
    %v8329 = vpop.f32.mrb[0].mxu0
    %8330 = vdwg.mxu0
    %8331 = vmatprep.subr.bf16.mxu0 0
    %8332 = vmatpush1.bf16.msra.mxu0 %v8083
    %8333 = vmatprep.subr.bf16.mxu0 0
    %8334 = vmatpush1.bf16.msra.mxu0 %v8084
    %8335 = vmatprep.subr.bf16.mxu0 0
    %8336 = vmatpush1.bf16.msra.mxu0 %v8085
    %8337 = vmatprep.subr.bf16.mxu0 0
    %8338 = vmatpush1.bf16.msra.mxu0 %v8086
    %8339 = vmatprep.subr.bf16.mxu0 0
    %8340 = vmatpush1.bf16.msra.mxu0 %v8087
    %8341 = vmatprep.subr.bf16.mxu0 0
    %8342 = vmatpush1.bf16.msra.mxu0 %v8088
    %8343 = vmatprep.subr.bf16.mxu0 0
    %8344 = vmatpush1.bf16.msra.mxu0 %v8089
    %8345 = vmatprep.subr.bf16.mxu0 0
    %8346 = vmatpush1.bf16.msra.mxu0 %v8090
    %8347 = vmatprep.subr.bf16.mxu0 0
    %8348 = vmatpush1.bf16.msra.mxu0 %v8091
    %8349 = vmatprep.subr.bf16.mxu0 0
    %8350 = vmatpush1.bf16.msra.mxu0 %v8092
    %8351 = vmatprep.subr.bf16.mxu0 0
    %8352 = vmatpush1.bf16.msra.mxu0 %v8093
    %8353 = vmatprep.subr.bf16.mxu0 0
    %8354 = vmatpush1.bf16.msra.mxu0 %v8094
    %8355 = vmatprep.subr.bf16.mxu0 0
    %8356 = vmatpush1.bf16.msra.mxu0 %v8095
    %8357 = vmatprep.subr.bf16.mxu0 0
    %8358 = vmatpush1.bf16.msra.mxu0 %v8096
    %8359 = vmatprep.subr.bf16.mxu0 0
    %8360 = vmatpush1.bf16.msra.mxu0 %v8097
    %8361 = vmatprep.subr.bf16.mxu0 0
    %8362 = vmatpush1.bf16.msra.mxu0 %v8098
    %8363 = vmatprep.mubr.bf16.mxu0 %v7448
    %8364 = vmatmul.mubr.bf16.gmra.mrb[0].mxu0 %v7447
    %v8365 = vpop.f32.mrb[0].mxu0
    %v8366 = vadd.f32 %v8326, %v8365
    %v8367 = vpop.f32.mrb[0].mxu0
    %v8368 = vpop.f32.mrb[0].mxu0
    %v8369 = vpop.f32.mrb[0].mxu0
    %8370 = vdwg.mxu0
    %8371 = vmatprep.subr.bf16.mxu0 0
    %8372 = vmatpush1.bf16.msra.mxu0 %v8099
    %8373 = vmatprep.subr.bf16.mxu0 0
    %8374 = vmatpush1.bf16.msra.mxu0 %v8100
    %8375 = vmatprep.subr.bf16.mxu0 0
    %8376 = vmatpush1.bf16.msra.mxu0 %v8101
    %8377 = vmatprep.subr.bf16.mxu0 0
    %8378 = vmatpush1.bf16.msra.mxu0 %v8102
    %8379 = vmatprep.subr.bf16.mxu0 0
    %8380 = vmatpush1.bf16.msra.mxu0 %v8103
    %8381 = vmatprep.subr.bf16.mxu0 0
    %8382 = vmatpush1.bf16.msra.mxu0 %v8104
    %8383 = vmatprep.subr.bf16.mxu0 0
    %8384 = vmatpush1.bf16.msra.mxu0 %v8105
    %8385 = vmatprep.subr.bf16.mxu0 0
    %8386 = vmatpush1.bf16.msra.mxu0 %v8106
    %8387 = vmatprep.subr.bf16.mxu0 0
    %8388 = vmatpush1.bf16.msra.mxu0 %v8107
    %8389 = vmatprep.subr.bf16.mxu0 0
    %8390 = vmatpush1.bf16.msra.mxu0 %v8108
    %8391 = vmatprep.subr.bf16.mxu0 0
    %8392 = vmatpush1.bf16.msra.mxu0 %v8109
    %8393 = vmatprep.subr.bf16.mxu0 0
    %8394 = vmatpush1.bf16.msra.mxu0 %v8110
    %8395 = vmatprep.subr.bf16.mxu0 0
    %8396 = vmatpush1.bf16.msra.mxu0 %v8111
    %8397 = vmatprep.subr.bf16.mxu0 0
    %8398 = vmatpush1.bf16.msra.mxu0 %v8112
    %8399 = vmatprep.subr.bf16.mxu0 0
    %8400 = vmatpush1.bf16.msra.mxu0 %v8113
    %8401 = vmatprep.subr.bf16.mxu0 0
    %8402 = vmatpush1.bf16.msra.mxu0 %v8114
    %8403 = vmatprep.mubr.bf16.mxu0 %v7450
    %8404 = vmatmul.mubr.bf16.gmra.mrb[0].mxu0 %v7449
    %v8405 = vpop.f32.mrb[0].mxu0
    %v8406 = vadd.f32 %v8366, %v8405
    %v8407 = vpop.f32.mrb[0].mxu0
    %v8408 = vpop.f32.mrb[0].mxu0
    %v8409 = vpop.f32.mrb[0].mxu0
    %8410 = vdwg.mxu0
    %8411 = vmatprep.subr.bf16.mxu0 0
    %8412 = vmatpush1.bf16.msra.mxu0 %v8115
    %8413 = vmatprep.subr.bf16.mxu0 0
    %8414 = vmatpush1.bf16.msra.mxu0 %v8116
    %8415 = vmatprep.subr.bf16.mxu0 0
    %8416 = vmatpush1.bf16.msra.mxu0 %v8117
    %8417 = vmatprep.subr.bf16.mxu0 0
    %8418 = vmatpush1.bf16.msra.mxu0 %v8118
    %8419 = vmatprep.subr.bf16.mxu0 0
    %8420 = vmatpush1.bf16.msra.mxu0 %v8119
    %8421 = vmatprep.subr.bf16.mxu0 0
    %8422 = vmatpush1.bf16.msra.mxu0 %v8120
    %8423 = vmatprep.subr.bf16.mxu0 0
    %8424 = vmatpush1.bf16.msra.mxu0 %v8121
    %8425 = vmatprep.subr.bf16.mxu0 0
    %8426 = vmatpush1.bf16.msra.mxu0 %v8122
    %8427 = vmatprep.subr.bf16.mxu0 0
    %8428 = vmatpush1.bf16.msra.mxu0 %v8123
    %8429 = vmatprep.subr.bf16.mxu0 0
    %8430 = vmatpush1.bf16.msra.mxu0 %v8124
    %8431 = vmatprep.subr.bf16.mxu0 0
    %8432 = vmatpush1.bf16.msra.mxu0 %v8125
    %8433 = vmatprep.subr.bf16.mxu0 0
    %8434 = vmatpush1.bf16.msra.mxu0 %v8126
    %8435 = vmatprep.subr.bf16.mxu0 0
    %8436 = vmatpush1.bf16.msra.mxu0 %v8127
    %8437 = vmatprep.subr.bf16.mxu0 0
    %8438 = vmatpush1.bf16.msra.mxu0 %v8128
    %8439 = vmatprep.subr.bf16.mxu0 0
    %8440 = vmatpush1.bf16.msra.mxu0 %v8129
    %8441 = vmatprep.subr.bf16.mxu0 0
    %8442 = vmatpush1.bf16.msra.mxu0 %v8130
    %8443 = vmatprep.mubr.bf16.mxu0 %v7452
    %8444 = vmatmul.mubr.bf16.gmra.mrb[0].mxu0 %v7451
    %v8445 = vpop.f32.mrb[0].mxu0
    %v8446 = vadd.f32 %v8406, %v8445
    %v8447 = vpop.f32.mrb[0].mxu0
    %v8448 = vpop.f32.mrb[0].mxu0
    %v8449 = vpop.f32.mrb[0].mxu0
    %8450 = vdwg.mxu0
    %8451 = vmatprep.subr.bf16.mxu0 0
    %8452 = vmatpush1.bf16.msra.mxu0 %v8131
    %8453 = vmatprep.subr.bf16.mxu0 0
    %8454 = vmatpush1.bf16.msra.mxu0 %v8132
    %8455 = vmatprep.subr.bf16.mxu0 0
    %8456 = vmatpush1.bf16.msra.mxu0 %v8133
    %8457 = vmatprep.subr.bf16.mxu0 0
    %8458 = vmatpush1.bf16.msra.mxu0 %v8134
    %8459 = vmatprep.subr.bf16.mxu0 0
    %8460 = vmatpush1.bf16.msra.mxu0 %v8135
    %8461 = vmatprep.subr.bf16.mxu0 0
    %8462 = vmatpush1.bf16.msra.mxu0 %v8136
    %8463 = vmatprep.subr.bf16.mxu0 0
    %8464 = vmatpush1.bf16.msra.mxu0 %v8137
    %8465 = vmatprep.subr.bf16.mxu0 0
    %8466 = vmatpush1.bf16.msra.mxu0 %v8138
    %8467 = vmatprep.subr.bf16.mxu0 0
    %8468 = vmatpush1.bf16.msra.mxu0 %v8139
    %8469 = vmatprep.subr.bf16.mxu0 0
    %8470 = vmatpush1.bf16.msra.mxu0 %v8140
    %8471 = vmatprep.subr.bf16.mxu0 0
    %8472 = vmatpush1.bf16.msra.mxu0 %v8141
    %8473 = vmatprep.subr.bf16.mxu0 0
    %8474 = vmatpush1.bf16.msra.mxu0 %v8142
    %8475 = vmatprep.subr.bf16.mxu0 0
    %8476 = vmatpush1.bf16.msra.mxu0 %v8143
    %8477 = vmatprep.subr.bf16.mxu0 0
    %8478 = vmatpush1.bf16.msra.mxu0 %v8144
    %8479 = vmatprep.subr.bf16.mxu0 0
    %8480 = vmatpush1.bf16.msra.mxu0 %v8145
    %8481 = vmatprep.subr.bf16.mxu0 0
    %8482 = vmatpush1.bf16.msra.mxu0 %v8146
    %8483 = vmatprep.mubr.bf16.mxu0 %v7454
    %8484 = vmatmul.mubr.bf16.gmra.mrb[0].mxu0 %v7453
    %v8485 = vpop.f32.mrb[0].mxu0
    %v8486 = vadd.f32 %v8446, %v8485
    %v8487 = vpop.f32.mrb[0].mxu0
    %v8488 = vpop.f32.mrb[0].mxu0
    %v8489 = vpop.f32.mrb[0].mxu0
    %8490 = vdwg.mxu0
    %8491 = vmatprep.subr.bf16.mxu0 0
    %8492 = vmatpush1.bf16.msra.mxu0 %v8147
    %8493 = vmatprep.subr.bf16.mxu0 0
    %8494 = vmatpush1.bf16.msra.mxu0 %v8148
    %8495 = vmatprep.subr.bf16.mxu0 0
    %8496 = vmatpush1.bf16.msra.mxu0 0
    %8497 = vmatprep.subr.bf16.mxu0 0
    %8498 = vmatpush1.bf16.msra.mxu0 0
    %8499 = vmatprep.subr.bf16.mxu0 0
    %8500 = vmatpush1.bf16.msra.mxu0 0
    %8501 = vmatprep.subr.bf16.mxu0 0
    %8502 = vmatpush1.bf16.msra.mxu0 0
    %8503 = vmatprep.subr.bf16.mxu0 0
    %8504 = vmatpush1.bf16.msra.mxu0 0
    %8505 = vmatprep.subr.bf16.mxu0 0
    %8506 = vmatpush1.bf16.msra.mxu0 0
    %8507 = vmatprep.subr.bf16.mxu0 0
    %8508 = vmatpush1.bf16.msra.mxu0 0
    %8509 = vmatprep.subr.bf16.mxu0 0
    %8510 = vmatpush1.bf16.msra.mxu0 0
    %8511 = vmatprep.subr.bf16.mxu0 0
    %8512 = vmatpush1.bf16.msra.mxu0 0
    %8513 = vmatprep.subr.bf16.mxu0 0
    %8514 = vmatpush1.bf16.msra.mxu0 0
    %8515 = vmatprep.subr.bf16.mxu0 0
    %8516 = vmatpush1.bf16.msra.mxu0 0
    %8517 = vmatprep.subr.bf16.mxu0 0
    %8518 = vmatpush1.bf16.msra.mxu0 0
    %8519 = vmatprep.subr.bf16.mxu0 0
    %8520 = vmatpush1.bf16.msra.mxu0 0
    %8521 = vmatprep.subr.bf16.mxu0 0
    %8522 = vmatpush1.bf16.msra.mxu0 0
    %8523 = vmatprep.mubr.bf16.mxu0 0
    %8524 = vmatmul.mubr.bf16.gmra.mrb[0].mxu0 %v8249
    %v8525 = vpop.f32.mrb[0].mxu0
    %v8526 = vadd.f32 %v8486, %v8525
    %v8527 = vpop.f32.mrb[0].mxu0
    %v8528 = vpop.f32.mrb[0].mxu0
    %v8529 = vpop.f32.mrb[0].mxu0
    %8530 = vdwg.mxu0
    %vm8531 = vcmask 74752
    %8532 = vst.msk [vmem:[#allocation6] sm:$0x3] %vm8531, %v8526
    // Predicated region
    $region58: #{cnn_forward.1} parent=1 // pred_check
      _
    $region59: #{cnn_forward.1} parent=1 // pred_check_branch
      %8534 = sbr.rel (0) target = $region61
    $region60: #{cnn_forward.1} parent=1 // pred_region
      %s8536 = ssub.s32 32, 32
      %8537 = vsyncadd [#allocation7], %s8536
      %s8539 = sshll.u32 [#allocation6], 4
      %s8540 = int_to_ptr.vmem [resolvable:$true] %s8539
      %8542 = dma.vmem_to_hbm [thread:$0]  %s8540, 32, %s14, [#allocation7]
    $region61: #{cnn_forward.1} parent=1 // pred_fallthru
      _
    // Predicated region
    $region62: #{cnn_forward.1} parent=1 // pred_check
      _
    $region63: #{cnn_forward.1} parent=1 // pred_check_branch
      %8544 = sbr.rel (0) target = $region65
    $region64: #{cnn_forward.1} parent=1 // pred_region
      %8545 = dma.done [#allocation7], 32
    $region65: #{cnn_forward.1} parent=1 // pred_fallthru
      _
    %8546 = vsyncpa [#allocation7], 1

</llo_original>
